<compile_context>
chip_gen: v7x
topology: tpu7x:2x2x1
jax: 0.10.0
libtpu: 0.0.40
codegen_flags: <defaults>
</compile_context>

<pallas_src>
import jax
import jax.numpy as jnp
from jax.experimental import pallas as pl
from jax.experimental.pallas import tpu as pltpu


_DENSE_TILE_M = 1024       # row tile for the dense / fused-head kernels
_PATCH_TILE_ROWS = 1024    # target output rows per patch-kernel grid step
_VMEM_LIMIT = 32 * 1024 * 1024

_COMPILER_PARAMS = pltpu.CompilerParams(
    dimension_semantics=("parallel",),       # M tiles are independent
    vmem_limit_bytes=_VMEM_LIMIT,            # safe on v5e/v6e/v7x
)


# ----------------------------------------------------------------------------
# Kernels
# ----------------------------------------------------------------------------
def _patch_gather_kernel(x_ref, w_ref, b_ref, o_ref):
    """2x2x2 stride-2 conv + ReLU, patch gather done in VMEM.

    x_ref: (T, 2, Ho, 2, Wo, 2*Cin)  bf16   (pure view of the NDHWC activation)
    w_ref: (4, 2*Cin, Cout)          f32    (rows ordered (kw, cin))
    b_ref: (1, Cout)                 f32
    o_ref: (T*Ho*Wo, Cout)           bf16
    """
    tile_nd, _, ho, _, wo, k2 = x_ref.shape
    rows = tile_nd * ho * wo
    cout = o_ref.shape[-1]
    acc = jnp.zeros((rows, cout), jnp.float32)
    for kd in range(2):
        for kh in range(2):
            # Leading-dim slice (free) + f32 cast; the reshape below is a
            # layout no-op because Wo % 8 == 0 is guaranteed by the wrapper.
            xk = x_ref[:, kd, :, kh, :, :].astype(jnp.float32)  # (T, Ho, Wo, 2Cin)
            xk = xk.reshape(rows, k2)
            acc = acc + jnp.dot(xk, w_ref[2 * kd + kh],
                                preferred_element_type=jnp.float32)
    y = jnp.maximum(acc + b_ref[...], 0.0)
    o_ref[...] = y.astype(o_ref.dtype)


def _dense_relu_kernel(x_ref, w_ref, b_ref, o_ref):
    """y = relu(x @ w + b) on one row tile (bf16 operands, f32 accumulate)."""
    y = jnp.dot(x_ref[...], w_ref[...], preferred_element_type=jnp.float32)
    y = jnp.maximum(y + b_ref[...], 0.0)
    o_ref[...] = y.astype(o_ref.dtype)


def _head_kernel(x_ref, w1_ref, b1_ref, w2_ref, b2_ref, w3_ref, b3_ref, o_ref):
    """Fused 1x1x1 stack: relu(64->128), relu(128->128), sigmoid(128->3).

    Intermediates stay in VMEM/vregs; only the 3-channel result hits HBM.
    """
    h = jnp.dot(x_ref[...], w1_ref[...], preferred_element_type=jnp.float32)
    h = jnp.maximum(h + b1_ref[...], 0.0).astype(jnp.bfloat16)
    h = jnp.dot(h, w2_ref[...], preferred_element_type=jnp.float32)
    h = jnp.maximum(h + b2_ref[...], 0.0).astype(jnp.bfloat16)
    h = jnp.dot(h, w3_ref[...], preferred_element_type=jnp.float32)
    h = h + b3_ref[...]
    o_ref[...] = (1.0 / (1.0 + jnp.exp(-h))).astype(o_ref.dtype)


# ----------------------------------------------------------------------------
# Pallas-call wrappers
# ----------------------------------------------------------------------------
def _row_tile(m):
    return _DENSE_TILE_M if m > _DENSE_TILE_M else m


def dense_relu(x, w, b):
    """relu(x @ w + b); x:(M,K) bf16, w:(K,N) bf16, b:(1,N) f32 -> (M,N) bf16."""
    m, k = x.shape
    _, nout = w.shape
    tile = _row_tile(m)
    cost = pl.CostEstimate(
        flops=2 * m * k * nout,
        transcendentals=0,
        bytes_accessed=m * k * 2 + k * nout * 2 + m * nout * 2,
    )
    return pl.pallas_call(
        _dense_relu_kernel,
        out_shape=jax.ShapeDtypeStruct((m, nout), jnp.bfloat16),
        grid=(pl.cdiv(m, tile),),
        in_specs=[
            pl.BlockSpec((tile, k), lambda i: (i, 0)),
            pl.BlockSpec((k, nout), lambda i: (0, 0)),
            pl.BlockSpec((1, nout), lambda i: (0, 0)),
        ],
        out_specs=pl.BlockSpec((tile, nout), lambda i: (i, 0)),
        compiler_params=_COMPILER_PARAMS,
        cost_estimate=cost,
    )(x, w, b)


def patch_conv_relu(x, w_gather, w_flat, b):
    """Conv3d(k=2, s=2) + ReLU on an NDHWC activation (bf16 in / bf16 out)."""
    n, d, h, w, c = x.shape
    do, ho, wo = d // 2, h // 2, w // 2
    cout = b.shape[1]
    m_out = n * do * ho * wo

    if wo % 8 == 0:
        # In-kernel patch gather (no extra HBM pass for the im2col).
        nd = n * do
        v = x.reshape(nd, 2, ho, 2, wo, 2 * c)      # pure (free) reshape
        t = min(nd, max(1, _PATCH_TILE_ROWS // (ho * wo)))
        rows_blk = t * ho * wo
        cost = pl.CostEstimate(
            flops=2 * m_out * 8 * c * cout,
            transcendentals=0,
            bytes_accessed=m_out * 8 * c * 2 + m_out * cout * 2 + 8 * c * cout * 4,
        )
        out = pl.pallas_call(
            _patch_gather_kernel,
            out_shape=jax.ShapeDtypeStruct((m_out, cout), jnp.bfloat16),
            grid=(pl.cdiv(nd, t),),
            in_specs=[
                pl.BlockSpec((t, 2, ho, 2, wo, 2 * c),
                             lambda i: (i, 0, 0, 0, 0, 0)),
                pl.BlockSpec((4, 2 * c, cout), lambda i: (0, 0, 0)),
                pl.BlockSpec((1, cout), lambda i: (0, 0)),
            ],
            out_specs=pl.BlockSpec((rows_blk, cout), lambda i: (i, 0)),
            compiler_params=_COMPILER_PARAMS,
            cost_estimate=cost,
        )(v, w_gather, b)
    else:
        # Tiny-spatial tail layers: wrapper-side im2col + tiled dense kernel.
        rows = x.reshape(n, do, 2, ho, 2, wo, 2, c)
        rows = rows.transpose(0, 1, 3, 5, 2, 4, 6, 7).reshape(m_out, 8 * c)
        out = dense_relu(rows, w_flat, b)
    return out.reshape(n, do, ho, wo, cout)


def head_mlp(x, w1, b1, w2, b2, w3, b3):
    """Fused 1x1x1 conv stack; x:(M,64) bf16 -> (M,3) f32."""
    m, c = x.shape
    c1, c2, c3 = w1.shape[1], w2.shape[1], w3.shape[1]
    tile = _row_tile(m)
    cost = pl.CostEstimate(
        flops=2 * m * (c * c1 + c1 * c2 + c2 * c3),
        transcendentals=m * c3,
        bytes_accessed=m * c * 2 + m * c3 * 4
        + (c * c1 + c1 * c2 + c2 * c3) * 2,
    )
    return pl.pallas_call(
        _head_kernel,
        out_shape=jax.ShapeDtypeStruct((m, c3), jnp.float32),
        grid=(pl.cdiv(m, tile),),
        in_specs=[
            pl.BlockSpec((tile, c), lambda i: (i, 0)),
            pl.BlockSpec(w1.shape, lambda i: (0, 0)),
            pl.BlockSpec(b1.shape, lambda i: (0, 0)),
            pl.BlockSpec(w2.shape, lambda i: (0, 0)),
            pl.BlockSpec(b2.shape, lambda i: (0, 0)),
            pl.BlockSpec(w3.shape, lambda i: (0, 0)),
            pl.BlockSpec(b3.shape, lambda i: (0, 0)),
        ],
        out_specs=pl.BlockSpec((tile, c3), lambda i: (i, 0)),
        compiler_params=_COMPILER_PARAMS,
        cost_estimate=cost,
    )(x, w1, b1, w2, b2, w3, b3)


# ----------------------------------------------------------------------------
# Parameters (deterministic; mimics PyTorch Conv3d default init bounds)
# ----------------------------------------------------------------------------
_LAYER_CFG = [
    ("patch", 1, 8),
    ("patch", 8, 16),
    ("patch", 16, 32),
    ("patch", 32, 64),
    ("one", 64, 128),
    ("one", 128, 128),
    ("one", 128, 3),
]


def init_params(key):
    """Returns (kernel_layout_params, pytorch_layout_params)."""
    kparams, pt_params = [], []
    for kind, cin, cout in _LAYER_CFG:
        ksz = 2 if kind == "patch" else 1
        key, kw_key, kb_key = jax.random.split(key, 3)
        fan_in = cin * ksz ** 3
        bound = float(1.0 / (fan_in ** 0.5))
        # PyTorch Conv3d weight layout: (C_out, C_in, kD, kH, kW)
        w_pt = jax.random.uniform(kw_key, (cout, cin, ksz, ksz, ksz),
                                  jnp.float32, -bound, bound)
        b_pt = jax.random.uniform(kb_key, (cout,), jnp.float32, -bound, bound)
        pt_params.append((w_pt, b_pt))
        b = b_pt.reshape(1, cout).astype(jnp.float32)
        if kind == "patch":
            # (Cout,Cin,kd,kh,kw) -> (kd,kh,kw,Cin,Cout) -> (4, 2*Cin, Cout)
            w_g = jnp.transpose(w_pt, (2, 3, 4, 1, 0)).reshape(4, 2 * cin, cout)
            w_f = w_g.reshape(8 * cin, cout).astype(jnp.bfloat16)  # (kd,kh,kw,c)
            kparams.append((w_g.astype(jnp.float32), w_f, b))
        else:
            w_mat = jnp.transpose(w_pt.reshape(cout, cin), (1, 0))
            kparams.append((w_mat.astype(jnp.bfloat16), b))
    return kparams, pt_params


# ----------------------------------------------------------------------------
# Forward pass
# ----------------------------------------------------------------------------
def segmentation_forward(x_ncdhw, params):
    n, cin, d, h, w = x_ncdhw.shape
    assert cin == 1 and d % 16 == 0 and h % 16 == 0 and w % 16 == 0
    # NCDHW (C=1) -> NDHWC is a pure reshape; activations travel as bf16.
    x = x_ncdhw.reshape(n, d, h, w, 1).astype(jnp.bfloat16)
    for li in range(4):
        w_g, w_f, b = params[li]
        x = patch_conv_relu(x, w_g, w_f, b)
    n_, d4, h4, w4, c4 = x.shape
    rows = x.reshape(n_ * d4 * h4 * w4, c4)
    (w1, b1), (w2, b2), (w3, b3) = params[4], params[5], params[6]
    y = head_mlp(rows, w1, b1, w2, b2, w3, b3)        # (M, 3) f32
    y = y.reshape(n_, d4, h4, w4, 3)
    return jnp.transpose(y, (0, 4, 1, 2, 3))          # NDHWC -> NCDHW


# ----------------------------------------------------------------------------
# Plain-XLA reference (f32) for correctness checking
# ----------------------------------------------------------------------------
def reference_forward(x_ncdhw, pt_params):
    y = x_ncdhw.astype(jnp.float32)
    for idx, (w_pt, b_pt) in enumerate(pt_params):
        stride = (2, 2, 2) if w_pt.shape[-1] == 2 else (1, 1, 1)
        y = jax.lax.conv_general_dilated(
            y, w_pt, window_strides=stride, padding="VALID",
            dimension_numbers=("NCDHW", "OIDHW", "NCDHW"))
        y = y + b_pt.reshape(1, -1, 1, 1, 1)
        y = jax.nn.sigmoid(y) if idx == len(pt_params) - 1 else jnp.maximum(y, 0.0)
    return y


# ----------------------------------------------------------------------------
if __name__ == "__main__":
    key = jax.random.PRNGKey(0)
    k_x1, k_x2, k_p = jax.random.split(key, 3)
    params, pt_params = init_params(k_p)
    fwd = jax.jit(segmentation_forward)

    # Case 1: smallest legal volume (16^3), batch 2.
    x1 = jax.random.normal(k_x1, (2, 1, 16, 16, 16), dtype=jnp.float32)
    out1 = jax.block_until_ready(fwd(x1, params))
    ref1 = reference_forward(x1, pt_params)
    assert out1.shape == (2, 3, 1, 1, 1), out1.shape
    assert bool(jnp.all((out1 >= 0.0) & (out1 <= 1.0)))
    assert float(jnp.max(jnp.abs(out1 - ref1))) < 5e-2

    # Case 2: 32^3 exercises multi-tile grids and the in-kernel gather path
    # on more than one layer.
    x2 = jax.random.normal(k_x2, (1, 1, 32, 32, 32), dtype=jnp.float32)
    out2 = jax.block_until_ready(fwd(x2, params))
    ref2 = reference_forward(x2, pt_params)
    assert out2.shape == (1, 3, 2, 2, 2), out2.shape
    assert bool(jnp.all((out2 >= 0.0) & (out2 <= 1.0)))
    assert float(jnp.max(jnp.abs(out2 - ref2))) < 5e-2

    print("KERNEL_OK")
</pallas_src>

<mosaic_0001>
module attributes {stable_mosaic.version = 11 : i64} {
  func.func @_patch_gather_kernel(%arg0: i32, %arg1: memref<16x2x8x2x8x2xbf16, #tpu.memory_space<vmem>>, %arg2: memref<4x2x8xf32, #tpu.memory_space<vmem>>, %arg3: memref<1x8xf32, #tpu.memory_space<vmem>>, %arg4: memref<1024x8xbf16, #tpu.memory_space<vmem>>) attributes {dimension_semantics = [#tpu.dimension_semantics<parallel>], iteration_bounds = array<i64: 1>, scalar_prefetch = 0 : i64, scratch_operands = 0 : i64, tpu.core_type = #tpu.core_type<tc>, window_params = [{transform_indices = @transform_0, window_bounds = array<i64: 16, 2, 8, 2, 8, 2>}, {pipeline_mode = #tpu.pipeline_mode<synchronous>, transform_indices = @transform_1, window_bounds = array<i64: 4, 2, 8>}, {pipeline_mode = #tpu.pipeline_mode<synchronous>, transform_indices = @transform_2, window_bounds = array<i64: 1, 8>}, {transform_indices = @transform_3, window_bounds = array<i64: 1024, 8>}]} {
    %cst = arith.constant 0.000000e+00 : f32
    %0 = vector.broadcast %cst : f32 to vector<1024x8xf32>
    %c0 = arith.constant 0 : index
    %c0_0 = arith.constant 0 : index
    %c0_1 = arith.constant 0 : index
    %c0_2 = arith.constant 0 : index
    %c0_3 = arith.constant 0 : index
    %c0_4 = arith.constant 0 : index
    %1 = vector.load %arg1[%c0, %c0_0, %c0_1, %c0_2, %c0_3, %c0_4] : memref<16x2x8x2x8x2xbf16, #tpu.memory_space<vmem>>, vector<16x1x8x1x8x2xbf16>
    %2 = vector.shape_cast %1 : vector<16x1x8x1x8x2xbf16> to vector<16x8x8x2xbf16>
    %3 = arith.extf %2 : vector<16x8x8x2xbf16> to vector<16x8x8x2xf32>
    %4 = vector.shape_cast %3 : vector<16x8x8x2xf32> to vector<1024x2xf32>
    %c0_5 = arith.constant 0 : index
    %c0_6 = arith.constant 0 : index
    %c0_7 = arith.constant 0 : index
    %5 = vector.load %arg2[%c0_5, %c0_6, %c0_7] : memref<4x2x8xf32, #tpu.memory_space<vmem>>, vector<1x2x8xf32>
    %6 = vector.shape_cast %5 : vector<1x2x8xf32> to vector<2x8xf32>
    %cst_8 = arith.constant dense<0.000000e+00> : vector<1024x8xf32>
    %7 = tpu.matmul %4, %6, %cst_8 {dimension_numbers = #tpu.dot_dimension_numbers<[1], [0], [0], [1], [0, 0, 1, 1], [], []>} : vector<1024x2xf32>, vector<2x8xf32>, vector<1024x8xf32> -> vector<1024x8xf32>
    %8 = arith.addf %0, %7 : vector<1024x8xf32>
    %c0_9 = arith.constant 0 : index
    %c0_10 = arith.constant 0 : index
    %c0_11 = arith.constant 0 : index
    %c1 = arith.constant 1 : index
    %c0_12 = arith.constant 0 : index
    %c0_13 = arith.constant 0 : index
    %9 = vector.load %arg1[%c0_9, %c0_10, %c0_11, %c1, %c0_12, %c0_13] : memref<16x2x8x2x8x2xbf16, #tpu.memory_space<vmem>>, vector<16x1x8x1x8x2xbf16>
    %10 = vector.shape_cast %9 : vector<16x1x8x1x8x2xbf16> to vector<16x8x8x2xbf16>
    %11 = arith.extf %10 : vector<16x8x8x2xbf16> to vector<16x8x8x2xf32>
    %12 = vector.shape_cast %11 : vector<16x8x8x2xf32> to vector<1024x2xf32>
    %c1_14 = arith.constant 1 : index
    %c0_15 = arith.constant 0 : index
    %c0_16 = arith.constant 0 : index
    %13 = vector.load %arg2[%c1_14, %c0_15, %c0_16] : memref<4x2x8xf32, #tpu.memory_space<vmem>>, vector<1x2x8xf32>
    %14 = vector.shape_cast %13 : vector<1x2x8xf32> to vector<2x8xf32>
    %cst_17 = arith.constant dense<0.000000e+00> : vector<1024x8xf32>
    %15 = tpu.matmul %12, %14, %cst_17 {dimension_numbers = #tpu.dot_dimension_numbers<[1], [0], [0], [1], [0, 0, 1, 1], [], []>} : vector<1024x2xf32>, vector<2x8xf32>, vector<1024x8xf32> -> vector<1024x8xf32>
    %16 = arith.addf %8, %15 : vector<1024x8xf32>
    %c0_18 = arith.constant 0 : index
    %c1_19 = arith.constant 1 : index
    %c0_20 = arith.constant 0 : index
    %c0_21 = arith.constant 0 : index
    %c0_22 = arith.constant 0 : index
    %c0_23 = arith.constant 0 : index
    %17 = vector.load %arg1[%c0_18, %c1_19, %c0_20, %c0_21, %c0_22, %c0_23] : memref<16x2x8x2x8x2xbf16, #tpu.memory_space<vmem>>, vector<16x1x8x1x8x2xbf16>
    %18 = vector.shape_cast %17 : vector<16x1x8x1x8x2xbf16> to vector<16x8x8x2xbf16>
    %19 = arith.extf %18 : vector<16x8x8x2xbf16> to vector<16x8x8x2xf32>
    %20 = vector.shape_cast %19 : vector<16x8x8x2xf32> to vector<1024x2xf32>
    %c2 = arith.constant 2 : index
    %c0_24 = arith.constant 0 : index
    %c0_25 = arith.constant 0 : index
    %21 = vector.load %arg2[%c2, %c0_24, %c0_25] : memref<4x2x8xf32, #tpu.memory_space<vmem>>, vector<1x2x8xf32>
    %22 = vector.shape_cast %21 : vector<1x2x8xf32> to vector<2x8xf32>
    %cst_26 = arith.constant dense<0.000000e+00> : vector<1024x8xf32>
    %23 = tpu.matmul %20, %22, %cst_26 {dimension_numbers = #tpu.dot_dimension_numbers<[1], [0], [0], [1], [0, 0, 1, 1], [], []>} : vector<1024x2xf32>, vector<2x8xf32>, vector<1024x8xf32> -> vector<1024x8xf32>
    %24 = arith.addf %16, %23 : vector<1024x8xf32>
    %c0_27 = arith.constant 0 : index
    %c1_28 = arith.constant 1 : index
    %c0_29 = arith.constant 0 : index
    %c1_30 = arith.constant 1 : index
    %c0_31 = arith.constant 0 : index
    %c0_32 = arith.constant 0 : index
    %25 = vector.load %arg1[%c0_27, %c1_28, %c0_29, %c1_30, %c0_31, %c0_32] : memref<16x2x8x2x8x2xbf16, #tpu.memory_space<vmem>>, vector<16x1x8x1x8x2xbf16>
    %26 = vector.shape_cast %25 : vector<16x1x8x1x8x2xbf16> to vector<16x8x8x2xbf16>
    %27 = arith.extf %26 : vector<16x8x8x2xbf16> to vector<16x8x8x2xf32>
    %28 = vector.shape_cast %27 : vector<16x8x8x2xf32> to vector<1024x2xf32>
    %c3 = arith.constant 3 : index
    %c0_33 = arith.constant 0 : index
    %c0_34 = arith.constant 0 : index
    %29 = vector.load %arg2[%c3, %c0_33, %c0_34] : memref<4x2x8xf32, #tpu.memory_space<vmem>>, vector<1x2x8xf32>
    %30 = vector.shape_cast %29 : vector<1x2x8xf32> to vector<2x8xf32>
    %cst_35 = arith.constant dense<0.000000e+00> : vector<1024x8xf32>
    %31 = tpu.matmul %28, %30, %cst_35 {dimension_numbers = #tpu.dot_dimension_numbers<[1], [0], [0], [1], [0, 0, 1, 1], [], []>} : vector<1024x2xf32>, vector<2x8xf32>, vector<1024x8xf32> -> vector<1024x8xf32>
    %32 = arith.addf %24, %31 : vector<1024x8xf32>
    %c0_36 = arith.constant 0 : index
    %c0_37 = arith.constant 0 : index
    %33 = vector.load %arg3[%c0_36, %c0_37] : memref<1x8xf32, #tpu.memory_space<vmem>>, vector<1x8xf32>
    %34 = vector.broadcast %33 : vector<1x8xf32> to vector<1024x8xf32>
    %35 = arith.addf %32, %34 : vector<1024x8xf32>
    %cst_38 = arith.constant 0.000000e+00 : f32
    %36 = vector.broadcast %cst_38 : f32 to vector<1024x8xf32>
    %37 = arith.maximumf %35, %36 : vector<1024x8xf32>
    %38 = arith.truncf %37 : vector<1024x8xf32> to vector<1024x8xbf16>
    %c0_39 = arith.constant 0 : index
    %c0_40 = arith.constant 0 : index
    %39 = vector.load %arg4[%c0_39, %c0_40] : memref<1024x8xbf16, #tpu.memory_space<vmem>>, vector<1024x8xbf16>
    tpu.vector_store %arg4[%c0_39, %c0_40], %38 {strides = array<i32>} : memref<1024x8xbf16, #tpu.memory_space<vmem>>, vector<1024x8xbf16>,
    return
  }
  func.func @transform_0(%arg0: i32) -> (i32, i32, i32, i32, i32, i32) {
    %c0_i32 = arith.constant 0 : i32
    %c0_i32_0 = arith.constant 0 : i32
    %c0_i32_1 = arith.constant 0 : i32
    %c0_i32_2 = arith.constant 0 : i32
    %c0_i32_3 = arith.constant 0 : i32
    %c0_i32_4 = arith.constant 0 : i32
    return %arg0, %c0_i32, %c0_i32_0, %c0_i32_1, %c0_i32_2, %c0_i32_3 : i32, i32, i32, i32, i32, i32
  }
  func.func @transform_1(%arg0: i32) -> (i32, i32, i32) {
    %c0_i32 = arith.constant 0 : i32
    %c0_i32_0 = arith.constant 0 : i32
    %c0_i32_1 = arith.constant 0 : i32
    %c0_i32_2 = arith.constant 0 : i32
    return %c0_i32, %c0_i32_0, %c0_i32_1 : i32, i32, i32
  }
  func.func @transform_2(%arg0: i32) -> (i32, i32) {
    %c0_i32 = arith.constant 0 : i32
    %c0_i32_0 = arith.constant 0 : i32
    %c0_i32_1 = arith.constant 0 : i32
    return %c0_i32, %c0_i32_0 : i32, i32
  }
  func.func @transform_3(%arg0: i32) -> (i32, i32) {
    %c0_i32 = arith.constant 0 : i32
    %c0_i32_0 = arith.constant 0 : i32
    return %arg0, %c0_i32 : i32, i32
  }
}

module attributes {stable_mosaic.version = 11 : i64} {
  func.func @_dense_relu_kernel(%arg0: i32, %arg1: memref<128x64xbf16, #tpu.memory_space<vmem>>, %arg2: memref<64x16xbf16, #tpu.memory_space<vmem>>, %arg3: memref<1x16xf32, #tpu.memory_space<vmem>>, %arg4: memref<128x16xbf16, #tpu.memory_space<vmem>>) attributes {dimension_semantics = [#tpu.dimension_semantics<parallel>], iteration_bounds = array<i64: 1>, scalar_prefetch = 0 : i64, scratch_operands = 0 : i64, tpu.core_type = #tpu.core_type<tc>, window_params = [{transform_indices = @transform_0, window_bounds = array<i64: 128, 64>}, {pipeline_mode = #tpu.pipeline_mode<synchronous>, transform_indices = @transform_1, window_bounds = array<i64: 64, 16>}, {pipeline_mode = #tpu.pipeline_mode<synchronous>, transform_indices = @transform_2, window_bounds = array<i64: 1, 16>}, {transform_indices = @transform_3, window_bounds = array<i64: 128, 16>}]} {
    %c0 = arith.constant 0 : index
    %c0_0 = arith.constant 0 : index
    %0 = vector.load %arg1[%c0, %c0_0] : memref<128x64xbf16, #tpu.memory_space<vmem>>, vector<128x64xbf16>
    %c0_1 = arith.constant 0 : index
    %c0_2 = arith.constant 0 : index
    %1 = vector.load %arg2[%c0_1, %c0_2] : memref<64x16xbf16, #tpu.memory_space<vmem>>, vector<64x16xbf16>
    %cst = arith.constant dense<0.000000e+00> : vector<128x16xf32>
    %2 = tpu.matmul %0, %1, %cst {dimension_numbers = #tpu.dot_dimension_numbers<[1], [0], [0], [1], [0, 0, 1, 1], [], []>} : vector<128x64xbf16>, vector<64x16xbf16>, vector<128x16xf32> -> vector<128x16xf32>
    %c0_3 = arith.constant 0 : index
    %c0_4 = arith.constant 0 : index
    %3 = vector.load %arg3[%c0_3, %c0_4] : memref<1x16xf32, #tpu.memory_space<vmem>>, vector<1x16xf32>
    %4 = vector.broadcast %3 : vector<1x16xf32> to vector<128x16xf32>
    %5 = arith.addf %2, %4 : vector<128x16xf32>
    %cst_5 = arith.constant 0.000000e+00 : f32
    %6 = vector.broadcast %cst_5 : f32 to vector<128x16xf32>
    %7 = arith.maximumf %5, %6 : vector<128x16xf32>
    %8 = arith.truncf %7 : vector<128x16xf32> to vector<128x16xbf16>
    %c0_6 = arith.constant 0 : index
    %c0_7 = arith.constant 0 : index
    %9 = vector.load %arg4[%c0_6, %c0_7] : memref<128x16xbf16, #tpu.memory_space<vmem>>, vector<128x16xbf16>
    tpu.vector_store %arg4[%c0_6, %c0_7], %8 {strides = array<i32>} : memref<128x16xbf16, #tpu.memory_space<vmem>>, vector<128x16xbf16>,
    return
  }
  func.func @transform_0(%arg0: i32) -> (i32, i32) {
    %c0_i32 = arith.constant 0 : i32
    %c0_i32_0 = arith.constant 0 : i32
    return %arg0, %c0_i32 : i32, i32
  }
  func.func @transform_1(%arg0: i32) -> (i32, i32) {
    %c0_i32 = arith.constant 0 : i32
    %c0_i32_0 = arith.constant 0 : i32
    %c0_i32_1 = arith.constant 0 : i32
    return %c0_i32, %c0_i32_0 : i32, i32
  }
  func.func @transform_2(%arg0: i32) -> (i32, i32) {
    %c0_i32 = arith.constant 0 : i32
    %c0_i32_0 = arith.constant 0 : i32
    %c0_i32_1 = arith.constant 0 : i32
    return %c0_i32, %c0_i32_0 : i32, i32
  }
  func.func @transform_3(%arg0: i32) -> (i32, i32) {
    %c0_i32 = arith.constant 0 : i32
    %c0_i32_0 = arith.constant 0 : i32
    return %arg0, %c0_i32 : i32, i32
  }
}

module attributes {stable_mosaic.version = 11 : i64} {
  func.func @_dense_relu_kernel(%arg0: i32, %arg1: memref<16x128xbf16, #tpu.memory_space<vmem>>, %arg2: memref<128x32xbf16, #tpu.memory_space<vmem>>, %arg3: memref<1x32xf32, #tpu.memory_space<vmem>>, %arg4: memref<16x32xbf16, #tpu.memory_space<vmem>>) attributes {dimension_semantics = [#tpu.dimension_semantics<parallel>], iteration_bounds = array<i64: 1>, scalar_prefetch = 0 : i64, scratch_operands = 0 : i64, tpu.core_type = #tpu.core_type<tc>, window_params = [{transform_indices = @transform_0, window_bounds = array<i64: 16, 128>}, {pipeline_mode = #tpu.pipeline_mode<synchronous>, transform_indices = @transform_1, window_bounds = array<i64: 128, 32>}, {pipeline_mode = #tpu.pipeline_mode<synchronous>, transform_indices = @transform_2, window_bounds = array<i64: 1, 32>}, {transform_indices = @transform_3, window_bounds = array<i64: 16, 32>}]} {
    %c0 = arith.constant 0 : index
    %c0_0 = arith.constant 0 : index
    %0 = vector.load %arg1[%c0, %c0_0] : memref<16x128xbf16, #tpu.memory_space<vmem>>, vector<16x128xbf16>
    %c0_1 = arith.constant 0 : index
    %c0_2 = arith.constant 0 : index
    %1 = vector.load %arg2[%c0_1, %c0_2] : memref<128x32xbf16, #tpu.memory_space<vmem>>, vector<128x32xbf16>
    %cst = arith.constant dense<0.000000e+00> : vector<16x32xf32>
    %2 = tpu.matmul %0, %1, %cst {dimension_numbers = #tpu.dot_dimension_numbers<[1], [0], [0], [1], [0, 0, 1, 1], [], []>} : vector<16x128xbf16>, vector<128x32xbf16>, vector<16x32xf32> -> vector<16x32xf32>
    %c0_3 = arith.constant 0 : index
    %c0_4 = arith.constant 0 : index
    %3 = vector.load %arg3[%c0_3, %c0_4] : memref<1x32xf32, #tpu.memory_space<vmem>>, vector<1x32xf32>
    %4 = vector.broadcast %3 : vector<1x32xf32> to vector<16x32xf32>
    %5 = arith.addf %2, %4 : vector<16x32xf32>
    %cst_5 = arith.constant 0.000000e+00 : f32
    %6 = vector.broadcast %cst_5 : f32 to vector<16x32xf32>
    %7 = arith.maximumf %5, %6 : vector<16x32xf32>
    %8 = arith.truncf %7 : vector<16x32xf32> to vector<16x32xbf16>
    %c0_6 = arith.constant 0 : index
    %c0_7 = arith.constant 0 : index
    %9 = vector.load %arg4[%c0_6, %c0_7] : memref<16x32xbf16, #tpu.memory_space<vmem>>, vector<16x32xbf16>
    tpu.vector_store %arg4[%c0_6, %c0_7], %8 {strides = array<i32>} : memref<16x32xbf16, #tpu.memory_space<vmem>>, vector<16x32xbf16>,
    return
  }
  func.func @transform_0(%arg0: i32) -> (i32, i32) {
    %c0_i32 = arith.constant 0 : i32
    %c0_i32_0 = arith.constant 0 : i32
    return %arg0, %c0_i32 : i32, i32
  }
  func.func @transform_1(%arg0: i32) -> (i32, i32) {
    %c0_i32 = arith.constant 0 : i32
    %c0_i32_0 = arith.constant 0 : i32
    %c0_i32_1 = arith.constant 0 : i32
    return %c0_i32, %c0_i32_0 : i32, i32
  }
  func.func @transform_2(%arg0: i32) -> (i32, i32) {
    %c0_i32 = arith.constant 0 : i32
    %c0_i32_0 = arith.constant 0 : i32
    %c0_i32_1 = arith.constant 0 : i32
    return %c0_i32, %c0_i32_0 : i32, i32
  }
  func.func @transform_3(%arg0: i32) -> (i32, i32) {
    %c0_i32 = arith.constant 0 : i32
    %c0_i32_0 = arith.constant 0 : i32
    return %arg0, %c0_i32 : i32, i32
  }
}

module attributes {stable_mosaic.version = 11 : i64} {
  func.func @_head_kernel(%arg0: i32, %arg1: memref<2x64xbf16, #tpu.memory_space<vmem>>, %arg2: memref<64x128xbf16, #tpu.memory_space<vmem>>, %arg3: memref<1x128xf32, #tpu.memory_space<vmem>>, %arg4: memref<128x128xbf16, #tpu.memory_space<vmem>>, %arg5: memref<1x128xf32, #tpu.memory_space<vmem>>, %arg6: memref<128x3xbf16, #tpu.memory_space<vmem>>, %arg7: memref<1x3xf32, #tpu.memory_space<vmem>>, %arg8: memref<2x3xf32, #tpu.memory_space<vmem>>) attributes {dimension_semantics = [#tpu.dimension_semantics<parallel>], iteration_bounds = array<i64: 1>, scalar_prefetch = 0 : i64, scratch_operands = 0 : i64, tpu.core_type = #tpu.core_type<tc>, window_params = [{transform_indices = @transform_0, window_bounds = array<i64: 2, 64>}, {pipeline_mode = #tpu.pipeline_mode<synchronous>, transform_indices = @transform_1, window_bounds = array<i64: 64, 128>}, {pipeline_mode = #tpu.pipeline_mode<synchronous>, transform_indices = @transform_2, window_bounds = array<i64: 1, 128>}, {pipeline_mode = #tpu.pipeline_mode<synchronous>, transform_indices = @transform_3, window_bounds = array<i64: 128, 128>}, {pipeline_mode = #tpu.pipeline_mode<synchronous>, transform_indices = @transform_4, window_bounds = array<i64: 1, 128>}, {pipeline_mode = #tpu.pipeline_mode<synchronous>, transform_indices = @transform_5, window_bounds = array<i64: 128, 3>}, {pipeline_mode = #tpu.pipeline_mode<synchronous>, transform_indices = @transform_6, window_bounds = array<i64: 1, 3>}, {transform_indices = @transform_7, window_bounds = array<i64: 2, 3>}]} {
    %c0 = arith.constant 0 : index
    %c0_0 = arith.constant 0 : index
    %0 = vector.load %arg1[%c0, %c0_0] : memref<2x64xbf16, #tpu.memory_space<vmem>>, vector<2x64xbf16>
    %c0_1 = arith.constant 0 : index
    %c0_2 = arith.constant 0 : index
    %1 = vector.load %arg2[%c0_1, %c0_2] : memref<64x128xbf16, #tpu.memory_space<vmem>>, vector<64x128xbf16>
    %cst = arith.constant dense<0.000000e+00> : vector<2x128xf32>
    %2 = tpu.matmul %0, %1, %cst {dimension_numbers = #tpu.dot_dimension_numbers<[1], [0], [0], [1], [0, 0, 1, 1], [], []>} : vector<2x64xbf16>, vector<64x128xbf16>, vector<2x128xf32> -> vector<2x128xf32>
    %c0_3 = arith.constant 0 : index
    %c0_4 = arith.constant 0 : index
    %3 = vector.load %arg3[%c0_3, %c0_4] : memref<1x128xf32, #tpu.memory_space<vmem>>, vector<1x128xf32>
    %4 = vector.broadcast %3 : vector<1x128xf32> to vector<2x128xf32>
    %5 = arith.addf %2, %4 : vector<2x128xf32>
    %cst_5 = arith.constant 0.000000e+00 : f32
    %6 = vector.broadcast %cst_5 : f32 to vector<2x128xf32>
    %7 = arith.maximumf %5, %6 : vector<2x128xf32>
    %8 = arith.truncf %7 : vector<2x128xf32> to vector<2x128xbf16>
    %c0_6 = arith.constant 0 : index
    %c0_7 = arith.constant 0 : index
    %9 = vector.load %arg4[%c0_6, %c0_7] : memref<128x128xbf16, #tpu.memory_space<vmem>>, vector<128x128xbf16>
    %cst_8 = arith.constant dense<0.000000e+00> : vector<2x128xf32>
    %10 = tpu.matmul %8, %9, %cst_8 {dimension_numbers = #tpu.dot_dimension_numbers<[1], [0], [0], [1], [0, 0, 1, 1], [], []>} : vector<2x128xbf16>, vector<128x128xbf16>, vector<2x128xf32> -> vector<2x128xf32>
    %c0_9 = arith.constant 0 : index
    %c0_10 = arith.constant 0 : index
    %11 = vector.load %arg5[%c0_9, %c0_10] : memref<1x128xf32, #tpu.memory_space<vmem>>, vector<1x128xf32>
    %12 = vector.broadcast %11 : vector<1x128xf32> to vector<2x128xf32>
    %13 = arith.addf %10, %12 : vector<2x128xf32>
    %cst_11 = arith.constant 0.000000e+00 : f32
    %14 = vector.broadcast %cst_11 : f32 to vector<2x128xf32>
    %15 = arith.maximumf %13, %14 : vector<2x128xf32>
    %16 = arith.truncf %15 : vector<2x128xf32> to vector<2x128xbf16>
    %c0_12 = arith.constant 0 : index
    %c0_13 = arith.constant 0 : index
    %17 = vector.load %arg6[%c0_12, %c0_13] : memref<128x3xbf16, #tpu.memory_space<vmem>>, vector<128x3xbf16>
    %cst_14 = arith.constant dense<0.000000e+00> : vector<2x3xf32>
    %18 = tpu.matmul %16, %17, %cst_14 {dimension_numbers = #tpu.dot_dimension_numbers<[1], [0], [0], [1], [0, 0, 1, 1], [], []>} : vector<2x128xbf16>, vector<128x3xbf16>, vector<2x3xf32> -> vector<2x3xf32>
    %c0_15 = arith.constant 0 : index
    %c0_16 = arith.constant 0 : index
    %19 = vector.load %arg7[%c0_15, %c0_16] : memref<1x3xf32, #tpu.memory_space<vmem>>, vector<1x3xf32>
    %20 = vector.broadcast %19 : vector<1x3xf32> to vector<2x3xf32>
    %21 = arith.addf %18, %20 : vector<2x3xf32>
    %cst_17 = arith.constant 0.000000e+00 : f32
    %22 = vector.broadcast %cst_17 : f32 to vector<2x3xf32>
    %23 = arith.subf %22, %21 : vector<2x3xf32>
    %24 = math.exp %23 : vector<2x3xf32>
    %cst_18 = arith.constant 1.000000e+00 : f32
    %25 = vector.broadcast %cst_18 : f32 to vector<2x3xf32>
    %26 = arith.addf %25, %24 : vector<2x3xf32>
    %cst_19 = arith.constant 1.000000e+00 : f32
    %27 = vector.broadcast %cst_19 : f32 to vector<2x3xf32>
    %28 = arith.divf %27, %26 : vector<2x3xf32>
    %c0_20 = arith.constant 0 : index
    %c0_21 = arith.constant 0 : index
    %29 = vector.load %arg8[%c0_20, %c0_21] : memref<2x3xf32, #tpu.memory_space<vmem>>, vector<2x3xf32>
    tpu.vector_store %arg8[%c0_20, %c0_21], %28 {strides = array<i32>} : memref<2x3xf32, #tpu.memory_space<vmem>>, vector<2x3xf32>,
    return
  }
  func.func @transform_0(%arg0: i32) -> (i32, i32) {
    %c0_i32 = arith.constant 0 : i32
    %c0_i32_0 = arith.constant 0 : i32
    return %arg0, %c0_i32 : i32, i32
  }
  func.func @transform_1(%arg0: i32) -> (i32, i32) {
    %c0_i32 = arith.constant 0 : i32
    %c0_i32_0 = arith.constant 0 : i32
    %c0_i32_1 = arith.constant 0 : i32
    return %c0_i32, %c0_i32_0 : i32, i32
  }
  func.func @transform_2(%arg0: i32) -> (i32, i32) {
    %c0_i32 = arith.constant 0 : i32
    %c0_i32_0 = arith.constant 0 : i32
    %c0_i32_1 = arith.constant 0 : i32
    return %c0_i32, %c0_i32_0 : i32, i32
  }
  func.func @transform_3(%arg0: i32) -> (i32, i32) {
    %c0_i32 = arith.constant 0 : i32
    %c0_i32_0 = arith.constant 0 : i32
    %c0_i32_1 = arith.constant 0 : i32
    return %c0_i32, %c0_i32_0 : i32, i32
  }
  func.func @transform_4(%arg0: i32) -> (i32, i32) {
    %c0_i32 = arith.constant 0 : i32
    %c0_i32_0 = arith.constant 0 : i32
    %c0_i32_1 = arith.constant 0 : i32
    return %c0_i32, %c0_i32_0 : i32, i32
  }
  func.func @transform_5(%arg0: i32) -> (i32, i32) {
    %c0_i32 = arith.constant 0 : i32
    %c0_i32_0 = arith.constant 0 : i32
    %c0_i32_1 = arith.constant 0 : i32
    return %c0_i32, %c0_i32_0 : i32, i32
  }
  func.func @transform_6(%arg0: i32) -> (i32, i32) {
    %c0_i32 = arith.constant 0 : i32
    %c0_i32_0 = arith.constant 0 : i32
    %c0_i32_1 = arith.constant 0 : i32
    return %c0_i32, %c0_i32_0 : i32, i32
  }
  func.func @transform_7(%arg0: i32) -> (i32, i32) {
    %c0_i32 = arith.constant 0 : i32
    %c0_i32_0 = arith.constant 0 : i32
    return %arg0, %c0_i32 : i32, i32
  }
}

module attributes {stable_mosaic.version = 11 : i64} {
  func.func @_dense_relu_kernel(%arg0: i32, %arg1: memref<2x256xbf16, #tpu.memory_space<vmem>>, %arg2: memref<256x64xbf16, #tpu.memory_space<vmem>>, %arg3: memref<1x64xf32, #tpu.memory_space<vmem>>, %arg4: memref<2x64xbf16, #tpu.memory_space<vmem>>) attributes {dimension_semantics = [#tpu.dimension_semantics<parallel>], iteration_bounds = array<i64: 1>, scalar_prefetch = 0 : i64, scratch_operands = 0 : i64, tpu.core_type = #tpu.core_type<tc>, window_params = [{transform_indices = @transform_0, window_bounds = array<i64: 2, 256>}, {pipeline_mode = #tpu.pipeline_mode<synchronous>, transform_indices = @transform_1, window_bounds = array<i64: 256, 64>}, {pipeline_mode = #tpu.pipeline_mode<synchronous>, transform_indices = @transform_2, window_bounds = array<i64: 1, 64>}, {transform_indices = @transform_3, window_bounds = array<i64: 2, 64>}]} {
    %c0 = arith.constant 0 : index
    %c0_0 = arith.constant 0 : index
    %0 = vector.load %arg1[%c0, %c0_0] : memref<2x256xbf16, #tpu.memory_space<vmem>>, vector<2x256xbf16>
    %c0_1 = arith.constant 0 : index
    %c0_2 = arith.constant 0 : index
    %1 = vector.load %arg2[%c0_1, %c0_2] : memref<256x64xbf16, #tpu.memory_space<vmem>>, vector<256x64xbf16>
    %cst = arith.constant dense<0.000000e+00> : vector<2x64xf32>
    %2 = tpu.matmul %0, %1, %cst {dimension_numbers = #tpu.dot_dimension_numbers<[1], [0], [0], [1], [0, 0, 1, 1], [], []>} : vector<2x256xbf16>, vector<256x64xbf16>, vector<2x64xf32> -> vector<2x64xf32>
    %c0_3 = arith.constant 0 : index
    %c0_4 = arith.constant 0 : index
    %3 = vector.load %arg3[%c0_3, %c0_4] : memref<1x64xf32, #tpu.memory_space<vmem>>, vector<1x64xf32>
    %4 = vector.broadcast %3 : vector<1x64xf32> to vector<2x64xf32>
    %5 = arith.addf %2, %4 : vector<2x64xf32>
    %cst_5 = arith.constant 0.000000e+00 : f32
    %6 = vector.broadcast %cst_5 : f32 to vector<2x64xf32>
    %7 = arith.maximumf %5, %6 : vector<2x64xf32>
    %8 = arith.truncf %7 : vector<2x64xf32> to vector<2x64xbf16>
    %c0_6 = arith.constant 0 : index
    %c0_7 = arith.constant 0 : index
    %9 = vector.load %arg4[%c0_6, %c0_7] : memref<2x64xbf16, #tpu.memory_space<vmem>>, vector<2x64xbf16>
    tpu.vector_store %arg4[%c0_6, %c0_7], %8 {strides = array<i32>} : memref<2x64xbf16, #tpu.memory_space<vmem>>, vector<2x64xbf16>,
    return
  }
  func.func @transform_0(%arg0: i32) -> (i32, i32) {
    %c0_i32 = arith.constant 0 : i32
    %c0_i32_0 = arith.constant 0 : i32
    return %arg0, %c0_i32 : i32, i32
  }
  func.func @transform_1(%arg0: i32) -> (i32, i32) {
    %c0_i32 = arith.constant 0 : i32
    %c0_i32_0 = arith.constant 0 : i32
    %c0_i32_1 = arith.constant 0 : i32
    return %c0_i32, %c0_i32_0 : i32, i32
  }
  func.func @transform_2(%arg0: i32) -> (i32, i32) {
    %c0_i32 = arith.constant 0 : i32
    %c0_i32_0 = arith.constant 0 : i32
    %c0_i32_1 = arith.constant 0 : i32
    return %c0_i32, %c0_i32_0 : i32, i32
  }
  func.func @transform_3(%arg0: i32) -> (i32, i32) {
    %c0_i32 = arith.constant 0 : i32
    %c0_i32_0 = arith.constant 0 : i32
    return %arg0, %c0_i32 : i32, i32
  }
}

</mosaic_0001>

<llo_original>
// kernel: segmentation_forward.6
$region0: #{segmentation_forward.6}
  #allocation0 [shape = 'u32[]', space=smem, size = 0x4, offset = 0x4, fixed_abs, tag = 'smem constant byte address 0x4 - core index']
  #allocation1 [shape = 'u32[144,128]{1,0:T(1,128)}', space=vmem, size = 0x12000, scoped, tag = 'internal scratch']
  %s0 = inlined_call_operand.vmem [shape: bf16[128,64], index: 0, kind: input, shape index: {}]
  %s1 = inlined_call_operand.vmem [shape: bf16[64,16], index: 1, kind: input, shape index: {}]
  %s2 = inlined_call_operand.vmem [shape: f32[1,16], index: 2, kind: input, shape index: {}]
  %s3 = inlined_call_operand.vmem [shape: bf16[128,16], index: 3, kind: output, shape index: {}]
  %s4 = sld [smem:[#allocation0]]
  $region22: #{segmentation_forward.6} parent=0
    _
  %s6 = ssub.s32 1, %s4
  %s7 = scalar_select 0, %s6, %s4
  // Predicated region
  $region2: #{segmentation_forward.6} parent=0 // pred_check
    _
  $region3: #{segmentation_forward.6} parent=0 // pred_check_branch
    %9 = sbr.rel (0) target = $region5
  $region4: #{segmentation_forward.6} parent=0 // pred_region
    _
  $region5: #{segmentation_forward.6} parent=0 // pred_fallthru
    _
  // Predicated region
  $region6: #{segmentation_forward.6} parent=0 // pred_check
    _
  $region7: #{segmentation_forward.6} parent=0 // pred_check_branch
    %11 = sbr.rel (0) target = $region9
  $region8: #{segmentation_forward.6} parent=0 // pred_region
    _
  $region9: #{segmentation_forward.6} parent=0 // pred_fallthru
    _
  // Predicated region
  $region10: #{segmentation_forward.6} parent=0 // pred_check
    _
  $region11: #{segmentation_forward.6} parent=0 // pred_check_branch
    %13 = sbr.rel (0) target = $region13
  $region12: #{segmentation_forward.6} parent=0 // pred_region
    _
  $region13: #{segmentation_forward.6} parent=0 // pred_fallthru
    _
  %v15 = vld [vmem:[%s0] sm:$0xf]
  %v16 = vld [vmem:[%s0 + $0x4] sm:$0xf]
  %v17 = vld [vmem:[%s0 + $0x8] sm:$0xf]
  %v18 = vld [vmem:[%s0 + $0xc] sm:$0xf]
  %v19 = vld [vmem:[%s0 + $0x10] sm:$0xf]
  %v20 = vld [vmem:[%s0 + $0x14] sm:$0xf]
  %v21 = vld [vmem:[%s0 + $0x18] sm:$0xf]
  %v22 = vld [vmem:[%s0 + $0x1c] sm:$0xf]
  %v23 = vld [vmem:[%s0 + $0x20] sm:$0xf]
  %v24 = vld [vmem:[%s0 + $0x24] sm:$0xf]
  %v25 = vld [vmem:[%s0 + $0x28] sm:$0xf]
  %v26 = vld [vmem:[%s0 + $0x2c] sm:$0xf]
  %v27 = vld [vmem:[%s0 + $0x30] sm:$0xf]
  %v28 = vld [vmem:[%s0 + $0x34] sm:$0xf]
  %v29 = vld [vmem:[%s0 + $0x38] sm:$0xf]
  %v30 = vld [vmem:[%s0 + $0x3c] sm:$0xf]
  %v31 = vld [vmem:[%s1] sm:$0xf]
  %v32 = vld [vmem:[%s1 + $0x4] sm:$0xf]
  %v33 = vld [vmem:[%s1 + $0x8] sm:$0xf]
  %v34 = vld [vmem:[%s1 + $0xc] sm:$0xf]
  %v35 = vld [vmem:[%s1 + $0x10] sm:$0xf]
  %v36 = vld [vmem:[%s1 + $0x14] sm:$0xf]
  %v37 = vld [vmem:[%s1 + $0x18] sm:$0xf]
  %v38 = vld [vmem:[%s1 + $0x1c] sm:$0xf]
  %v39 = vld [vmem:[%s2] sm:$0x1]
  %v41 = vlaneseq
  %v42 = vshrl.u32 %v41, 7
  %v43 = vsub.s32 0, %v42
  %v44 = vrot.slane %v39, %v43
  %v62 = vunpack.c.l.b16 %v15
  %v63 = vunpack.c.l.b16 %v16
  %v64 = vunpack.c.l.b16 %v17
  %v65 = vunpack.c.l.b16 %v18
  %v66 = vunpack.c.l.b16 %v19
  %v67 = vunpack.c.l.b16 %v20
  %v68 = vunpack.c.l.b16 %v21
  %v69 = vunpack.c.l.b16 %v22
  %v70 = vunpack.c.l.b16 %v23
  %v71 = vunpack.c.l.b16 %v24
  %v72 = vunpack.c.l.b16 %v25
  %v73 = vunpack.c.l.b16 %v26
  %v74 = vunpack.c.l.b16 %v27
  %v75 = vunpack.c.l.b16 %v28
  %v76 = vunpack.c.l.b16 %v29
  %v77 = vunpack.c.l.b16 %v30
  %v78 = vpack.c.b16 %v63, %v62
  %v79 = vpack.c.b16 %v65, %v64
  %v80 = vpack.c.b16 %v67, %v66
  %v81 = vpack.c.b16 %v69, %v68
  %v82 = vpack.c.b16 %v71, %v70
  %v83 = vpack.c.b16 %v73, %v72
  %v84 = vpack.c.b16 %v75, %v74
  %v85 = vpack.c.b16 %v77, %v76
  %v94 = vunpack.c.l.b16 %v31
  %v95 = vunpack.c.l.b16 %v32
  %v96 = vunpack.c.l.b16 %v33
  %v97 = vunpack.c.l.b16 %v34
  %v98 = vunpack.c.l.b16 %v35
  %v99 = vunpack.c.l.b16 %v36
  %v100 = vunpack.c.l.b16 %v37
  %v101 = vunpack.c.l.b16 %v38
  %v102 = vpack.c.b16 %v95, %v94
  %v103 = vpack.c.b16 %v97, %v96
  %v104 = vpack.c.b16 %v99, %v98
  %v105 = vpack.c.b16 %v101, %v100
  %vm110 = vcmask 523264
  %v112 = vsel %vm110, %v78, 0
  %v115 = vsel %vm110, %v79, 0
  %v118 = vsel %vm110, %v80, 0
  %v121 = vsel %vm110, %v81, 0
  %v124 = vsel %vm110, %v82, 0
  %v127 = vsel %vm110, %v83, 0
  %v130 = vsel %vm110, %v84, 0
  %v133 = vsel %vm110, %v85, 0
  %135 = vmatprep.subr.bf16.mxu0 0
  %136 = vmatpush1.bf16.msra.mxu0 %v102
  %137 = vmatprep.subr.bf16.mxu0 0
  %138 = vmatpush1.bf16.msra.mxu0 %v103
  %139 = vmatprep.subr.bf16.mxu0 0
  %140 = vmatpush1.bf16.msra.mxu0 %v104
  %141 = vmatprep.subr.bf16.mxu0 0
  %142 = vmatpush1.bf16.msra.mxu0 %v105
  %143 = vmatprep.subr.bf16.mxu0 0
  %144 = vmatpush1.bf16.msra.mxu0 0
  %145 = vmatprep.subr.bf16.mxu0 0
  %146 = vmatpush1.bf16.msra.mxu0 0
  %147 = vmatprep.subr.bf16.mxu0 0
  %148 = vmatpush1.bf16.msra.mxu0 0
  %149 = vmatprep.subr.bf16.mxu0 0
  %150 = vmatpush1.bf16.msra.mxu0 0
  %151 = vmatprep.subr.bf16.mxu0 0
  %152 = vmatpush1.bf16.msra.mxu0 0
  %153 = vmatprep.subr.bf16.mxu0 0
  %154 = vmatpush1.bf16.msra.mxu0 0
  %155 = vmatprep.subr.bf16.mxu0 0
  %156 = vmatpush1.bf16.msra.mxu0 0
  %157 = vmatprep.subr.bf16.mxu0 0
  %158 = vmatpush1.bf16.msra.mxu0 0
  %159 = vmatprep.subr.bf16.mxu0 0
  %160 = vmatpush1.bf16.msra.mxu0 0
  %161 = vmatprep.subr.bf16.mxu0 0
  %162 = vmatpush1.bf16.msra.mxu0 0
  %163 = vmatprep.subr.bf16.mxu0 0
  %164 = vmatpush1.bf16.msra.mxu0 0
  %165 = vmatprep.subr.bf16.mxu0 0
  %166 = vmatpush1.bf16.msra.mxu0 0
  %167 = vmatprep.mubr.bf16.mxu0 0
  %168 = vmatmul.mubr.bf16.gmra.mrb[0].mxu0 %v112
  %v169 = vpop.f32.mrb[0].mxu0
  %v170 = vadd.f32 %v44, %v169
  %v171 = vpop.f32.mrb[0].mxu0
  %v172 = vpop.f32.mrb[0].mxu0
  %v173 = vadd.f32 %v44, %v172
  %v174 = vpop.f32.mrb[0].mxu0
  %175 = vmatprep.mubr.bf16.mxu0 0
  %176 = vmatmul.mubr.bf16.gmra.mrb[0].mxu0 %v115
  %v177 = vpop.f32.mrb[0].mxu0
  %v178 = vadd.f32 %v44, %v177
  %v179 = vpop.f32.mrb[0].mxu0
  %v180 = vpop.f32.mrb[0].mxu0
  %v181 = vadd.f32 %v44, %v180
  %v182 = vpop.f32.mrb[0].mxu0
  %183 = vmatprep.mubr.bf16.mxu0 0
  %184 = vmatmul.mubr.bf16.gmra.mrb[0].mxu0 %v118
  %v185 = vpop.f32.mrb[0].mxu0
  %v186 = vadd.f32 %v44, %v185
  %v187 = vpop.f32.mrb[0].mxu0
  %v188 = vpop.f32.mrb[0].mxu0
  %v189 = vadd.f32 %v44, %v188
  %v190 = vpop.f32.mrb[0].mxu0
  %191 = vmatprep.mubr.bf16.mxu0 0
  %192 = vmatmul.mubr.bf16.gmra.mrb[0].mxu0 %v121
  %v193 = vpop.f32.mrb[0].mxu0
  %v194 = vadd.f32 %v44, %v193
  %v195 = vpop.f32.mrb[0].mxu0
  %v196 = vpop.f32.mrb[0].mxu0
  %v197 = vadd.f32 %v44, %v196
  %v198 = vpop.f32.mrb[0].mxu0
  %199 = vmatprep.mubr.bf16.mxu0 0
  %200 = vmatmul.mubr.bf16.gmra.mrb[0].mxu0 %v124
  %v201 = vpop.f32.mrb[0].mxu0
  %v202 = vadd.f32 %v44, %v201
  %v203 = vpop.f32.mrb[0].mxu0
  %v204 = vpop.f32.mrb[0].mxu0
  %v205 = vadd.f32 %v44, %v204
  %v206 = vpop.f32.mrb[0].mxu0
  %207 = vmatprep.mubr.bf16.mxu0 0
  %208 = vmatmul.mubr.bf16.gmra.mrb[0].mxu0 %v127
  %v209 = vpop.f32.mrb[0].mxu0
  %v210 = vadd.f32 %v44, %v209
  %v211 = vpop.f32.mrb[0].mxu0
  %v212 = vpop.f32.mrb[0].mxu0
  %v213 = vadd.f32 %v44, %v212
  %v214 = vpop.f32.mrb[0].mxu0
  %215 = vmatprep.mubr.bf16.mxu0 0
  %216 = vmatmul.mubr.bf16.gmra.mrb[0].mxu0 %v130
  %v217 = vpop.f32.mrb[0].mxu0
  %v218 = vadd.f32 %v44, %v217
  %v219 = vpop.f32.mrb[0].mxu0
  %v220 = vpop.f32.mrb[0].mxu0
  %v221 = vadd.f32 %v44, %v220
  %v222 = vpop.f32.mrb[0].mxu0
  %223 = vmatprep.mubr.bf16.mxu0 0
  %224 = vmatmul.mubr.bf16.gmra.mrb[0].mxu0 %v133
  %v225 = vpop.f32.mrb[0].mxu0
  %v226 = vadd.f32 %v44, %v225
  %v227 = vpop.f32.mrb[0].mxu0
  %v228 = vpop.f32.mrb[0].mxu0
  %v229 = vadd.f32 %v44, %v228
  %v230 = vpop.f32.mrb[0].mxu0
  %231 = vdwg.mxu0
  %v232 = vmax.f32 %v170, 0.0
  %v233 = vmax.f32 %v173, 0.0
  %v234 = vmax.f32 %v178, 0.0
  %v235 = vmax.f32 %v181, 0.0
  %v236 = vmax.f32 %v186, 0.0
  %v237 = vmax.f32 %v189, 0.0
  %v238 = vmax.f32 %v194, 0.0
  %v239 = vmax.f32 %v197, 0.0
  %v240 = vmax.f32 %v202, 0.0
  %v241 = vmax.f32 %v205, 0.0
  %v242 = vmax.f32 %v210, 0.0
  %v243 = vmax.f32 %v213, 0.0
  %v244 = vmax.f32 %v218, 0.0
  %v245 = vmax.f32 %v221, 0.0
  %v246 = vmax.f32 %v226, 0.0
  %v247 = vmax.f32 %v229, 0.0
  %v248 = vpack.c.bf16 %v233, %v232
  %v249 = vpack.c.bf16 %v235, %v234
  %v250 = vpack.c.bf16 %v237, %v236
  %v251 = vpack.c.bf16 %v239, %v238
  %v252 = vpack.c.bf16 %v241, %v240
  %v253 = vpack.c.bf16 %v243, %v242
  %v254 = vpack.c.bf16 %v245, %v244
  %v255 = vpack.c.bf16 %v247, %v246
  %v264 = vunpack.c.l.b16 %v248
  %v265 = vunpack.c.h.b16 %v248
  %v266 = vunpack.c.l.b16 %v249
  %v267 = vunpack.c.h.b16 %v249
  %v268 = vunpack.c.l.b16 %v250
  %v269 = vunpack.c.h.b16 %v250
  %v270 = vunpack.c.l.b16 %v251
  %v271 = vunpack.c.h.b16 %v251
  %v272 = vunpack.c.l.b16 %v252
  %v273 = vunpack.c.h.b16 %v252
  %v274 = vunpack.c.l.b16 %v253
  %v275 = vunpack.c.h.b16 %v253
  %v276 = vunpack.c.l.b16 %v254
  %v277 = vunpack.c.h.b16 %v254
  %v278 = vunpack.c.l.b16 %v255
  %v279 = vunpack.c.h.b16 %v255
  %v280 = vpack.c.b16 %v264, %v264
  %v281 = vpack.c.b16 %v265, %v265
  %v282 = vpack.c.b16 %v266, %v266
  %v283 = vpack.c.b16 %v267, %v267
  %v284 = vpack.c.b16 %v268, %v268
  %v285 = vpack.c.b16 %v269, %v269
  %v286 = vpack.c.b16 %v270, %v270
  %v287 = vpack.c.b16 %v271, %v271
  %v288 = vpack.c.b16 %v272, %v272
  %v289 = vpack.c.b16 %v273, %v273
  %v290 = vpack.c.b16 %v274, %v274
  %v291 = vpack.c.b16 %v275, %v275
  %v292 = vpack.c.b16 %v276, %v276
  %v293 = vpack.c.b16 %v277, %v277
  %v294 = vpack.c.b16 %v278, %v278
  %v295 = vpack.c.b16 %v279, %v279
  %vm312 = vcmask 125952
  %313 = vst.msk [vmem:[%s3] sm:$0xf] %vm312, %v280
  %314 = vst.msk [vmem:[%s3 + $0x4] sm:$0xf] %vm312, %v281
  %315 = vst.msk [vmem:[%s3 + $0x8] sm:$0xf] %vm312, %v282
  %316 = vst.msk [vmem:[%s3 + $0xc] sm:$0xf] %vm312, %v283
  %317 = vst.msk [vmem:[%s3 + $0x10] sm:$0xf] %vm312, %v284
  %318 = vst.msk [vmem:[%s3 + $0x14] sm:$0xf] %vm312, %v285
  %319 = vst.msk [vmem:[%s3 + $0x18] sm:$0xf] %vm312, %v286
  %320 = vst.msk [vmem:[%s3 + $0x1c] sm:$0xf] %vm312, %v287
  %321 = vst.msk [vmem:[%s3 + $0x20] sm:$0xf] %vm312, %v288
  %322 = vst.msk [vmem:[%s3 + $0x24] sm:$0xf] %vm312, %v289
  %323 = vst.msk [vmem:[%s3 + $0x28] sm:$0xf] %vm312, %v290
  %324 = vst.msk [vmem:[%s3 + $0x2c] sm:$0xf] %vm312, %v291
  %325 = vst.msk [vmem:[%s3 + $0x30] sm:$0xf] %vm312, %v292
  %326 = vst.msk [vmem:[%s3 + $0x34] sm:$0xf] %vm312, %v293
  %327 = vst.msk [vmem:[%s3 + $0x38] sm:$0xf] %vm312, %v294
  %328 = vst.msk [vmem:[%s3 + $0x3c] sm:$0xf] %vm312, %v295
  // Predicated region
  $region14: #{segmentation_forward.6} parent=0 // pred_check
    _
  $region15: #{segmentation_forward.6} parent=0 // pred_check_branch
    %330 = sbr.rel (0) target = $region17
  $region16: #{segmentation_forward.6} parent=0 // pred_region
    _
  $region17: #{segmentation_forward.6} parent=0 // pred_fallthru
    _
  // Predicated region
  $region18: #{segmentation_forward.6} parent=0 // pred_check
    _
  $region19: #{segmentation_forward.6} parent=0 // pred_check_branch
    %332 = sbr.rel (0) target = $region21
  $region20: #{segmentation_forward.6} parent=0 // pred_region
    _
  $region21: #{segmentation_forward.6} parent=0 // pred_fallthru
    _

// kernel: segmentation_forward.7
$region0: #{segmentation_forward.7}
  #allocation0 [shape = 'u32[]', space=smem, size = 0x4, offset = 0x4, fixed_abs, tag = 'smem constant byte address 0x4 - core index']
  #allocation1 [shape = 'u32[144,128]{1,0:T(1,128)}', space=vmem, size = 0x12000, scoped, tag = 'internal scratch']
  %s0 = inlined_call_operand.vmem [shape: bf16[16,128], index: 0, kind: input, shape index: {}]
  %s1 = inlined_call_operand.vmem [shape: bf16[128,32], index: 1, kind: input, shape index: {}]
  %s2 = inlined_call_operand.vmem [shape: f32[1,32], index: 2, kind: input, shape index: {}]
  %s3 = inlined_call_operand.vmem [shape: bf16[16,32], index: 3, kind: output, shape index: {}]
  %s4 = sld [smem:[#allocation0]]
  $region22: #{segmentation_forward.7} parent=0
    _
  %s6 = ssub.s32 1, %s4
  %s7 = scalar_select 0, %s6, %s4
  // Predicated region
  $region2: #{segmentation_forward.7} parent=0 // pred_check
    _
  $region3: #{segmentation_forward.7} parent=0 // pred_check_branch
    %9 = sbr.rel (0) target = $region5
  $region4: #{segmentation_forward.7} parent=0 // pred_region
    _
  $region5: #{segmentation_forward.7} parent=0 // pred_fallthru
    _
  // Predicated region
  $region6: #{segmentation_forward.7} parent=0 // pred_check
    _
  $region7: #{segmentation_forward.7} parent=0 // pred_check_branch
    %11 = sbr.rel (0) target = $region9
  $region8: #{segmentation_forward.7} parent=0 // pred_region
    _
  $region9: #{segmentation_forward.7} parent=0 // pred_fallthru
    _
  // Predicated region
  $region10: #{segmentation_forward.7} parent=0 // pred_check
    _
  $region11: #{segmentation_forward.7} parent=0 // pred_check_branch
    %13 = sbr.rel (0) target = $region13
  $region12: #{segmentation_forward.7} parent=0 // pred_region
    _
  $region13: #{segmentation_forward.7} parent=0 // pred_fallthru
    _
  %v15 = vld [vmem:[%s0] sm:$0xf]
  %v16 = vld [vmem:[%s0 + $0x4] sm:$0xf]
  %v17 = vld [vmem:[%s1] sm:$0xf]
  %v18 = vld [vmem:[%s1 + $0x4] sm:$0xf]
  %v19 = vld [vmem:[%s1 + $0x8] sm:$0xf]
  %v20 = vld [vmem:[%s1 + $0xc] sm:$0xf]
  %v21 = vld [vmem:[%s1 + $0x10] sm:$0xf]
  %v22 = vld [vmem:[%s1 + $0x14] sm:$0xf]
  %v23 = vld [vmem:[%s1 + $0x18] sm:$0xf]
  %v24 = vld [vmem:[%s1 + $0x1c] sm:$0xf]
  %v25 = vld [vmem:[%s1 + $0x20] sm:$0xf]
  %v26 = vld [vmem:[%s1 + $0x24] sm:$0xf]
  %v27 = vld [vmem:[%s1 + $0x28] sm:$0xf]
  %v28 = vld [vmem:[%s1 + $0x2c] sm:$0xf]
  %v29 = vld [vmem:[%s1 + $0x30] sm:$0xf]
  %v30 = vld [vmem:[%s1 + $0x34] sm:$0xf]
  %v31 = vld [vmem:[%s1 + $0x38] sm:$0xf]
  %v32 = vld [vmem:[%s1 + $0x3c] sm:$0xf]
  %v33 = vld [vmem:[%s2] sm:$0x1]
  %v35 = vlaneseq
  %v36 = vshrl.u32 %v35, 7
  %v37 = vsub.s32 0, %v36
  %v38 = vrot.slane %v33, %v37
  %v42 = vunpack.c.l.b16 %v15
  %v43 = vunpack.c.l.b16 %v16
  %v44 = vpack.c.b16 %v43, %v42
  %v62 = vunpack.c.l.b16 %v17
  %v63 = vunpack.c.l.b16 %v18
  %v64 = vunpack.c.l.b16 %v19
  %v65 = vunpack.c.l.b16 %v20
  %v66 = vunpack.c.l.b16 %v21
  %v67 = vunpack.c.l.b16 %v22
  %v68 = vunpack.c.l.b16 %v23
  %v69 = vunpack.c.l.b16 %v24
  %v70 = vunpack.c.l.b16 %v25
  %v71 = vunpack.c.l.b16 %v26
  %v72 = vunpack.c.l.b16 %v27
  %v73 = vunpack.c.l.b16 %v28
  %v74 = vunpack.c.l.b16 %v29
  %v75 = vunpack.c.l.b16 %v30
  %v76 = vunpack.c.l.b16 %v31
  %v77 = vunpack.c.l.b16 %v32
  %v78 = vpack.c.b16 %v63, %v62
  %v79 = vpack.c.b16 %v65, %v64
  %v80 = vpack.c.b16 %v67, %v66
  %v81 = vpack.c.b16 %v69, %v68
  %v82 = vpack.c.b16 %v71, %v70
  %v83 = vpack.c.b16 %v73, %v72
  %v84 = vpack.c.b16 %v75, %v74
  %v85 = vpack.c.b16 %v77, %v76
  %94 = vmatprep.subr.bf16.mxu0 0
  %95 = vmatpush1.bf16.msra.mxu0 %v78
  %96 = vmatprep.subr.bf16.mxu0 0
  %97 = vmatpush1.bf16.msra.mxu0 %v79
  %98 = vmatprep.subr.bf16.mxu0 0
  %99 = vmatpush1.bf16.msra.mxu0 %v80
  %100 = vmatprep.subr.bf16.mxu0 0
  %101 = vmatpush1.bf16.msra.mxu0 %v81
  %102 = vmatprep.subr.bf16.mxu0 0
  %103 = vmatpush1.bf16.msra.mxu0 %v82
  %104 = vmatprep.subr.bf16.mxu0 0
  %105 = vmatpush1.bf16.msra.mxu0 %v83
  %106 = vmatprep.subr.bf16.mxu0 0
  %107 = vmatpush1.bf16.msra.mxu0 %v84
  %108 = vmatprep.subr.bf16.mxu0 0
  %109 = vmatpush1.bf16.msra.mxu0 %v85
  %110 = vmatprep.subr.bf16.mxu0 0
  %111 = vmatpush1.bf16.msra.mxu0 0
  %112 = vmatprep.subr.bf16.mxu0 0
  %113 = vmatpush1.bf16.msra.mxu0 0
  %114 = vmatprep.subr.bf16.mxu0 0
  %115 = vmatpush1.bf16.msra.mxu0 0
  %116 = vmatprep.subr.bf16.mxu0 0
  %117 = vmatpush1.bf16.msra.mxu0 0
  %118 = vmatprep.subr.bf16.mxu0 0
  %119 = vmatpush1.bf16.msra.mxu0 0
  %120 = vmatprep.subr.bf16.mxu0 0
  %121 = vmatpush1.bf16.msra.mxu0 0
  %122 = vmatprep.subr.bf16.mxu0 0
  %123 = vmatpush1.bf16.msra.mxu0 0
  %124 = vmatprep.subr.bf16.mxu0 0
  %125 = vmatpush1.bf16.msra.mxu0 0
  %126 = vmatprep.mubr.bf16.mxu0 0
  %127 = vmatmul.mubr.bf16.gmra.mrb[0].mxu0 %v44
  %v128 = vpop.f32.mrb[0].mxu0
  %v129 = vadd.f32 %v38, %v128
  %v130 = vpop.f32.mrb[0].mxu0
  %v131 = vpop.f32.mrb[0].mxu0
  %v132 = vadd.f32 %v38, %v131
  %v133 = vpop.f32.mrb[0].mxu0
  %134 = vdwg.mxu0
  %v135 = vmax.f32 %v129, 0.0
  %v136 = vmax.f32 %v132, 0.0
  %v137 = vpack.c.bf16 %v136, %v135
  %v139 = vunpack.c.l.b16 %v137
  %v140 = vunpack.c.h.b16 %v137
  %v141 = vpack.c.b16 %v139, %v139
  %v142 = vpack.c.b16 %v140, %v140
  %vm145 = vcmask 257024
  %146 = vst.msk [vmem:[%s3] sm:$0xf] %vm145, %v141
  %147 = vst.msk [vmem:[%s3 + $0x4] sm:$0xf] %vm145, %v142
  // Predicated region
  $region14: #{segmentation_forward.7} parent=0 // pred_check
    _
  $region15: #{segmentation_forward.7} parent=0 // pred_check_branch
    %149 = sbr.rel (0) target = $region17
  $region16: #{segmentation_forward.7} parent=0 // pred_region
    _
  $region17: #{segmentation_forward.7} parent=0 // pred_fallthru
    _
  // Predicated region
  $region18: #{segmentation_forward.7} parent=0 // pred_check
    _
  $region19: #{segmentation_forward.7} parent=0 // pred_check_branch
    %151 = sbr.rel (0) target = $region21
  $region20: #{segmentation_forward.7} parent=0 // pred_region
    _
  $region21: #{segmentation_forward.7} parent=0 // pred_fallthru
    _

// kernel: segmentation_forward.9
$region0: #{segmentation_forward.9}
  #allocation0 [shape = 'u32[]', space=smem, size = 0x4, offset = 0x4, fixed_abs, tag = 'smem constant byte address 0x4 - core index']
  #allocation1 [shape = 'u32[144,128]{1,0:T(1,128)}', space=vmem, size = 0x12000, scoped, tag = 'internal scratch']
  %s0 = inlined_call_operand.vmem [shape: bf16[2,64], index: 0, kind: input, shape index: {}]
  %s1 = inlined_call_operand.vmem [shape: bf16[64,128], index: 1, kind: input, shape index: {}]
  %s2 = inlined_call_operand.vmem [shape: f32[1,128], index: 2, kind: input, shape index: {}]
  %s3 = inlined_call_operand.vmem [shape: bf16[128,128], index: 3, kind: input, shape index: {}]
  %s4 = inlined_call_operand.vmem [shape: f32[1,128], index: 4, kind: input, shape index: {}]
  %s5 = inlined_call_operand.vmem [shape: bf16[128,3], index: 5, kind: input, shape index: {}]
  %s6 = inlined_call_operand.vmem [shape: f32[1,3], index: 6, kind: input, shape index: {}]
  %s7 = inlined_call_operand.hbm [shape: f32[2,3], index: 7, kind: output, shape index: {}]
  %s8 = sld [smem:[#allocation0]]
  $region38: #{segmentation_forward.9} parent=0
    _
  %s10 = ssub.s32 1, %s8
  %s11 = scalar_select 0, %s10, %s8
  $region1: #{segmentation_forward.9} parent=0
    #allocation2 [shape = 'u8[1024]{0}', space=vmem, size = 0x400, scoped, tag = 'output window, operand 0, single buffered']
    #allocation3 [shape = 's32[1]{0}', space=sflag, size = 0x4, scoped, tag = 'scoped memory for segmentation_forward.9']
    %12 = vsyncpa [#allocation3], 0
    // Predicated region
    $region2: #{segmentation_forward.9} parent=1 // pred_check
      _
    $region3: #{segmentation_forward.9} parent=1 // pred_check_branch
      %14 = sbr.rel (0) target = $region5
    $region4: #{segmentation_forward.9} parent=1 // pred_region
      _
    $region5: #{segmentation_forward.9} parent=1 // pred_fallthru
      _
    // Predicated region
    $region6: #{segmentation_forward.9} parent=1 // pred_check
      _
    $region7: #{segmentation_forward.9} parent=1 // pred_check_branch
      %16 = sbr.rel (0) target = $region9
    $region8: #{segmentation_forward.9} parent=1 // pred_region
      _
    $region9: #{segmentation_forward.9} parent=1 // pred_fallthru
      _
    // Predicated region
    $region10: #{segmentation_forward.9} parent=1 // pred_check
      _
    $region11: #{segmentation_forward.9} parent=1 // pred_check_branch
      %18 = sbr.rel (0) target = $region13
    $region12: #{segmentation_forward.9} parent=1 // pred_region
      _
    $region13: #{segmentation_forward.9} parent=1 // pred_fallthru
      _
    // Predicated region
    $region14: #{segmentation_forward.9} parent=1 // pred_check
      _
    $region15: #{segmentation_forward.9} parent=1 // pred_check_branch
      %20 = sbr.rel (0) target = $region17
    $region16: #{segmentation_forward.9} parent=1 // pred_region
      _
    $region17: #{segmentation_forward.9} parent=1 // pred_fallthru
      _
    // Predicated region
    $region18: #{segmentation_forward.9} parent=1 // pred_check
      _
    $region19: #{segmentation_forward.9} parent=1 // pred_check_branch
      %22 = sbr.rel (0) target = $region21
    $region20: #{segmentation_forward.9} parent=1 // pred_region
      _
    $region21: #{segmentation_forward.9} parent=1 // pred_fallthru
      _
    // Predicated region
    $region22: #{segmentation_forward.9} parent=1 // pred_check
      _
    $region23: #{segmentation_forward.9} parent=1 // pred_check_branch
      %24 = sbr.rel (0) target = $region25
    $region24: #{segmentation_forward.9} parent=1 // pred_region
      _
    $region25: #{segmentation_forward.9} parent=1 // pred_fallthru
      _
    // Predicated region
    $region26: #{segmentation_forward.9} parent=1 // pred_check
      _
    $region27: #{segmentation_forward.9} parent=1 // pred_check_branch
      %26 = sbr.rel (0) target = $region29
    $region28: #{segmentation_forward.9} parent=1 // pred_region
      _
    $region29: #{segmentation_forward.9} parent=1 // pred_fallthru
      _
    %v28 = vld [vmem:[%s0] sm:$0x1]
    %v29 = vld [vmem:[%s1] sm:$0xf]
    %v30 = vld [vmem:[%s1 + $0x4] sm:$0xf]
    %v31 = vld [vmem:[%s1 + $0x8] sm:$0xf]
    %v32 = vld [vmem:[%s1 + $0xc] sm:$0xf]
    %v33 = vld [vmem:[%s1 + $0x10] sm:$0xf]
    %v34 = vld [vmem:[%s1 + $0x14] sm:$0xf]
    %v35 = vld [vmem:[%s1 + $0x18] sm:$0xf]
    %v36 = vld [vmem:[%s1 + $0x1c] sm:$0xf]
    %v37 = vld [vmem:[%s2] sm:$0x1]
    %v39 = vlaneseq
    %v40 = vshrl.u32 %v39, 7
    %v41 = vsub.s32 0, %v40
    %v42 = vrot.slane %v37, %v41
    %v52 = vunpack.c.l.b16 %v29
    %v53 = vunpack.c.l.b16 %v30
    %v54 = vunpack.c.l.b16 %v31
    %v55 = vunpack.c.l.b16 %v32
    %v56 = vunpack.c.l.b16 %v33
    %v57 = vunpack.c.l.b16 %v34
    %v58 = vunpack.c.l.b16 %v35
    %v59 = vunpack.c.l.b16 %v36
    %v60 = vpack.c.b16 %v53, %v52
    %v61 = vpack.c.b16 %v55, %v54
    %v62 = vpack.c.b16 %v57, %v56
    %v63 = vpack.c.b16 %v59, %v58
    %vm68 = vcmask 523264
    %v70 = vsel %vm68, %v28, 0
    %72 = vmatprep.subr.bf16.mxu0 0
    %73 = vmatpush1.bf16.msra.mxu0 %v60
    %74 = vmatprep.subr.bf16.mxu0 0
    %75 = vmatpush1.bf16.msra.mxu0 %v61
    %76 = vmatprep.subr.bf16.mxu0 0
    %77 = vmatpush1.bf16.msra.mxu0 %v62
    %78 = vmatprep.subr.bf16.mxu0 0
    %79 = vmatpush1.bf16.msra.mxu0 %v63
    %80 = vmatprep.subr.bf16.mxu0 0
    %81 = vmatpush1.bf16.msra.mxu0 0
    %82 = vmatprep.subr.bf16.mxu0 0
    %83 = vmatpush1.bf16.msra.mxu0 0
    %84 = vmatprep.subr.bf16.mxu0 0
    %85 = vmatpush1.bf16.msra.mxu0 0
    %86 = vmatprep.subr.bf16.mxu0 0
    %87 = vmatpush1.bf16.msra.mxu0 0
    %88 = vmatprep.subr.bf16.mxu0 0
    %89 = vmatpush1.bf16.msra.mxu0 0
    %90 = vmatprep.subr.bf16.mxu0 0
    %91 = vmatpush1.bf16.msra.mxu0 0
    %92 = vmatprep.subr.bf16.mxu0 0
    %93 = vmatpush1.bf16.msra.mxu0 0
    %94 = vmatprep.subr.bf16.mxu0 0
    %95 = vmatpush1.bf16.msra.mxu0 0
    %96 = vmatprep.subr.bf16.mxu0 0
    %97 = vmatpush1.bf16.msra.mxu0 0
    %98 = vmatprep.subr.bf16.mxu0 0
    %99 = vmatpush1.bf16.msra.mxu0 0
    %100 = vmatprep.subr.bf16.mxu0 0
    %101 = vmatpush1.bf16.msra.mxu0 0
    %102 = vmatprep.subr.bf16.mxu0 0
    %103 = vmatpush1.bf16.msra.mxu0 0
    %104 = vmatprep.mubr.bf16.mxu0 0
    %105 = vmatmul.mubr.bf16.gmra.mrb[0].mxu0 %v70
    %v106 = vpop.f32.mrb[0].mxu0
    %v107 = vadd.f32 %v42, %v106
    %v108 = vpop.f32.mrb[0].mxu0
    %v109 = vpop.f32.mrb[0].mxu0
    %v110 = vpop.f32.mrb[0].mxu0
    %111 = vdwg.mxu0
    %v112 = vmax.f32 %v107, 0.0
    %v113 = vpack.c.bf16 %v112, %v112
    %v114 = vld [vmem:[%s3] sm:$0xf]
    %v115 = vld [vmem:[%s3 + $0x4] sm:$0xf]
    %v116 = vld [vmem:[%s3 + $0x8] sm:$0xf]
    %v117 = vld [vmem:[%s3 + $0xc] sm:$0xf]
    %v118 = vld [vmem:[%s3 + $0x10] sm:$0xf]
    %v119 = vld [vmem:[%s3 + $0x14] sm:$0xf]
    %v120 = vld [vmem:[%s3 + $0x18] sm:$0xf]
    %v121 = vld [vmem:[%s3 + $0x1c] sm:$0xf]
    %v122 = vld [vmem:[%s3 + $0x20] sm:$0xf]
    %v123 = vld [vmem:[%s3 + $0x24] sm:$0xf]
    %v124 = vld [vmem:[%s3 + $0x28] sm:$0xf]
    %v125 = vld [vmem:[%s3 + $0x2c] sm:$0xf]
    %v126 = vld [vmem:[%s3 + $0x30] sm:$0xf]
    %v127 = vld [vmem:[%s3 + $0x34] sm:$0xf]
    %v128 = vld [vmem:[%s3 + $0x38] sm:$0xf]
    %v129 = vld [vmem:[%s3 + $0x3c] sm:$0xf]
    %v130 = vld [vmem:[%s4] sm:$0x1]
    %v132 = vlaneseq
    %v133 = vshrl.u32 %v132, 7
    %v134 = vsub.s32 0, %v133
    %v135 = vrot.slane %v130, %v134
    %v153 = vunpack.c.l.b16 %v114
    %v154 = vunpack.c.l.b16 %v115
    %v155 = vunpack.c.l.b16 %v116
    %v156 = vunpack.c.l.b16 %v117
    %v157 = vunpack.c.l.b16 %v118
    %v158 = vunpack.c.l.b16 %v119
    %v159 = vunpack.c.l.b16 %v120
    %v160 = vunpack.c.l.b16 %v121
    %v161 = vunpack.c.l.b16 %v122
    %v162 = vunpack.c.l.b16 %v123
    %v163 = vunpack.c.l.b16 %v124
    %v164 = vunpack.c.l.b16 %v125
    %v165 = vunpack.c.l.b16 %v126
    %v166 = vunpack.c.l.b16 %v127
    %v167 = vunpack.c.l.b16 %v128
    %v168 = vunpack.c.l.b16 %v129
    %v169 = vpack.c.b16 %v154, %v153
    %v170 = vpack.c.b16 %v156, %v155
    %v171 = vpack.c.b16 %v158, %v157
    %v172 = vpack.c.b16 %v160, %v159
    %v173 = vpack.c.b16 %v162, %v161
    %v174 = vpack.c.b16 %v164, %v163
    %v175 = vpack.c.b16 %v166, %v165
    %v176 = vpack.c.b16 %v168, %v167
    %185 = vmatprep.subr.bf16.mxu0 0
    %186 = vmatpush1.bf16.msra.mxu0 %v169
    %187 = vmatprep.subr.bf16.mxu0 0
    %188 = vmatpush1.bf16.msra.mxu0 %v170
    %189 = vmatprep.subr.bf16.mxu0 0
    %190 = vmatpush1.bf16.msra.mxu0 %v171
    %191 = vmatprep.subr.bf16.mxu0 0
    %192 = vmatpush1.bf16.msra.mxu0 %v172
    %193 = vmatprep.subr.bf16.mxu0 0
    %194 = vmatpush1.bf16.msra.mxu0 %v173
    %195 = vmatprep.subr.bf16.mxu0 0
    %196 = vmatpush1.bf16.msra.mxu0 %v174
    %197 = vmatprep.subr.bf16.mxu0 0
    %198 = vmatpush1.bf16.msra.mxu0 %v175
    %199 = vmatprep.subr.bf16.mxu0 0
    %200 = vmatpush1.bf16.msra.mxu0 %v176
    %201 = vmatprep.subr.bf16.mxu0 0
    %202 = vmatpush1.bf16.msra.mxu0 0
    %203 = vmatprep.subr.bf16.mxu0 0
    %204 = vmatpush1.bf16.msra.mxu0 0
    %205 = vmatprep.subr.bf16.mxu0 0
    %206 = vmatpush1.bf16.msra.mxu0 0
    %207 = vmatprep.subr.bf16.mxu0 0
    %208 = vmatpush1.bf16.msra.mxu0 0
    %209 = vmatprep.subr.bf16.mxu0 0
    %210 = vmatpush1.bf16.msra.mxu0 0
    %211 = vmatprep.subr.bf16.mxu0 0
    %212 = vmatpush1.bf16.msra.mxu0 0
    %213 = vmatprep.subr.bf16.mxu0 0
    %214 = vmatpush1.bf16.msra.mxu0 0
    %215 = vmatprep.subr.bf16.mxu0 0
    %216 = vmatpush1.bf16.msra.mxu0 0
    %217 = vmatprep.mubr.bf16.mxu0 0
    %218 = vmatmul.mubr.bf16.gmra.mrb[0].mxu0 %v113
    %v219 = vpop.f32.mrb[0].mxu0
    %v220 = vadd.f32 %v135, %v219
    %v221 = vpop.f32.mrb[0].mxu0
    %v222 = vpop.f32.mrb[0].mxu0
    %v223 = vpop.f32.mrb[0].mxu0
    %224 = vdwg.mxu0
    %v225 = vmax.f32 %v220, 0.0
    %v226 = vpack.c.bf16 %v225, %v225
    %v227 = vld [vmem:[%s5] sm:$0xf]
    %v228 = vld [vmem:[%s5 + $0x4] sm:$0xf]
    %v229 = vld [vmem:[%s5 + $0x8] sm:$0xf]
    %v230 = vld [vmem:[%s5 + $0xc] sm:$0xf]
    %v231 = vld [vmem:[%s5 + $0x10] sm:$0xf]
    %v232 = vld [vmem:[%s5 + $0x14] sm:$0xf]
    %v233 = vld [vmem:[%s5 + $0x18] sm:$0xf]
    %v234 = vld [vmem:[%s5 + $0x1c] sm:$0xf]
    %v235 = vld [vmem:[%s5 + $0x20] sm:$0xf]
    %v236 = vld [vmem:[%s5 + $0x24] sm:$0xf]
    %v237 = vld [vmem:[%s5 + $0x28] sm:$0xf]
    %v238 = vld [vmem:[%s5 + $0x2c] sm:$0xf]
    %v239 = vld [vmem:[%s5 + $0x30] sm:$0xf]
    %v240 = vld [vmem:[%s5 + $0x34] sm:$0xf]
    %v241 = vld [vmem:[%s5 + $0x38] sm:$0xf]
    %v242 = vld [vmem:[%s5 + $0x3c] sm:$0xf]
    %v243 = vld [vmem:[%s6] sm:$0x1]
    %v245 = vlaneseq
    %v246 = vshrl.u32 %v245, 7
    %v247 = vsub.s32 0, %v246
    %v248 = vrot.slane %v243, %v247
    %v266 = vunpack.c.l.b16 %v227
    %v267 = vunpack.c.l.b16 %v228
    %v268 = vunpack.c.l.b16 %v229
    %v269 = vunpack.c.l.b16 %v230
    %v270 = vunpack.c.l.b16 %v231
    %v271 = vunpack.c.l.b16 %v232
    %v272 = vunpack.c.l.b16 %v233
    %v273 = vunpack.c.l.b16 %v234
    %v274 = vunpack.c.l.b16 %v235
    %v275 = vunpack.c.l.b16 %v236
    %v276 = vunpack.c.l.b16 %v237
    %v277 = vunpack.c.l.b16 %v238
    %v278 = vunpack.c.l.b16 %v239
    %v279 = vunpack.c.l.b16 %v240
    %v280 = vunpack.c.l.b16 %v241
    %v281 = vunpack.c.l.b16 %v242
    %v282 = vpack.c.b16 %v267, %v266
    %v283 = vpack.c.b16 %v269, %v268
    %v284 = vpack.c.b16 %v271, %v270
    %v285 = vpack.c.b16 %v273, %v272
    %v286 = vpack.c.b16 %v275, %v274
    %v287 = vpack.c.b16 %v277, %v276
    %v288 = vpack.c.b16 %v279, %v278
    %v289 = vpack.c.b16 %v281, %v280
    %298 = vmatprep.subr.bf16.mxu0 0
    %299 = vmatpush1.bf16.msra.mxu0 %v282
    %300 = vmatprep.subr.bf16.mxu0 0
    %301 = vmatpush1.bf16.msra.mxu0 %v283
    %302 = vmatprep.subr.bf16.mxu0 0
    %303 = vmatpush1.bf16.msra.mxu0 %v284
    %304 = vmatprep.subr.bf16.mxu0 0
    %305 = vmatpush1.bf16.msra.mxu0 %v285
    %306 = vmatprep.subr.bf16.mxu0 0
    %307 = vmatpush1.bf16.msra.mxu0 %v286
    %308 = vmatprep.subr.bf16.mxu0 0
    %309 = vmatpush1.bf16.msra.mxu0 %v287
    %310 = vmatprep.subr.bf16.mxu0 0
    %311 = vmatpush1.bf16.msra.mxu0 %v288
    %312 = vmatprep.subr.bf16.mxu0 0
    %313 = vmatpush1.bf16.msra.mxu0 %v289
    %314 = vmatprep.subr.bf16.mxu0 0
    %315 = vmatpush1.bf16.msra.mxu0 0
    %316 = vmatprep.subr.bf16.mxu0 0
    %317 = vmatpush1.bf16.msra.mxu0 0
    %318 = vmatprep.subr.bf16.mxu0 0
    %319 = vmatpush1.bf16.msra.mxu0 0
    %320 = vmatprep.subr.bf16.mxu0 0
    %321 = vmatpush1.bf16.msra.mxu0 0
    %322 = vmatprep.subr.bf16.mxu0 0
    %323 = vmatpush1.bf16.msra.mxu0 0
    %324 = vmatprep.subr.bf16.mxu0 0
    %325 = vmatpush1.bf16.msra.mxu0 0
    %326 = vmatprep.subr.bf16.mxu0 0
    %327 = vmatpush1.bf16.msra.mxu0 0
    %328 = vmatprep.subr.bf16.mxu0 0
    %329 = vmatpush1.bf16.msra.mxu0 0
    %330 = vmatprep.mubr.bf16.mxu0 0
    %331 = vmatmul.mubr.bf16.gmra.mrb[0].mxu0 %v226
    %v332 = vpop.f32.mrb[0].mxu0
    %v333 = vadd.f32 %v248, %v332
    %v334 = vpop.f32.mrb[0].mxu0
    %v335 = vpop.f32.mrb[0].mxu0
    %v336 = vpop.f32.mrb[0].mxu0
    %337 = vdwg.mxu0
    %v338 = vsub.f32 0.0, %v333
    %v339 = vmul.f32 %v338, 1.442695
    %v340 = vpow.pop %v339
    %v341 = vadd.f32 %v340, 1.0
    %v342 = vrcp.pop %v341
    %v343 = vmul.f32 1.0, %v342
    %vm344 = vcmask 17408
    %345 = vst.msk [vmem:[#allocation2] sm:$0x3] %vm344, %v343
    // Predicated region
    $region30: #{segmentation_forward.9} parent=1 // pred_check
      _
    $region31: #{segmentation_forward.9} parent=1 // pred_check_branch
      %347 = sbr.rel (0) target = $region33
    $region32: #{segmentation_forward.9} parent=1 // pred_region
      %s349 = ssub.s32 32, 32
      %350 = vsyncadd [#allocation3], %s349
      %s352 = sshll.u32 [#allocation2], 4
      %s353 = int_to_ptr.vmem [resolvable:$true] %s352
      %355 = dma.vmem_to_hbm [thread:$0]  %s353, 32, %s7, [#allocation3]
    $region33: #{segmentation_forward.9} parent=1 // pred_fallthru
      _
    // Predicated region
    $region34: #{segmentation_forward.9} parent=1 // pred_check
      _
    $region35: #{segmentation_forward.9} parent=1 // pred_check_branch
      %357 = sbr.rel (0) target = $region37
    $region36: #{segmentation_forward.9} parent=1 // pred_region
      %358 = dma.done [#allocation3], 32
    $region37: #{segmentation_forward.9} parent=1 // pred_fallthru
      _
    %359 = vsyncpa [#allocation3], 1

// kernel: segmentation_forward.8
$region0: #{segmentation_forward.8}
  #allocation0 [shape = 'u32[]', space=smem, size = 0x4, offset = 0x4, fixed_abs, tag = 'smem constant byte address 0x4 - core index']
  #allocation1 [shape = 'u32[144,128]{1,0:T(1,128)}', space=vmem, size = 0x12000, scoped, tag = 'internal scratch']
  %s0 = inlined_call_operand.vmem [shape: bf16[2,256], index: 0, kind: input, shape index: {}]
  %s1 = inlined_call_operand.vmem [shape: bf16[256,64], index: 1, kind: input, shape index: {}]
  %s2 = inlined_call_operand.vmem [shape: f32[1,64], index: 2, kind: input, shape index: {}]
  %s3 = inlined_call_operand.vmem [shape: bf16[2,64], index: 3, kind: output, shape index: {}]
  %s4 = sld [smem:[#allocation0]]
  $region22: #{segmentation_forward.8} parent=0
    _
  %s6 = ssub.s32 1, %s4
  %s7 = scalar_select 0, %s6, %s4
  // Predicated region
  $region2: #{segmentation_forward.8} parent=0 // pred_check
    _
  $region3: #{segmentation_forward.8} parent=0 // pred_check_branch
    %9 = sbr.rel (0) target = $region5
  $region4: #{segmentation_forward.8} parent=0 // pred_region
    _
  $region5: #{segmentation_forward.8} parent=0 // pred_fallthru
    _
  // Predicated region
  $region6: #{segmentation_forward.8} parent=0 // pred_check
    _
  $region7: #{segmentation_forward.8} parent=0 // pred_check_branch
    %11 = sbr.rel (0) target = $region9
  $region8: #{segmentation_forward.8} parent=0 // pred_region
    _
  $region9: #{segmentation_forward.8} parent=0 // pred_fallthru
    _
  // Predicated region
  $region10: #{segmentation_forward.8} parent=0 // pred_check
    _
  $region11: #{segmentation_forward.8} parent=0 // pred_check_branch
    %13 = sbr.rel (0) target = $region13
  $region12: #{segmentation_forward.8} parent=0 // pred_region
    _
  $region13: #{segmentation_forward.8} parent=0 // pred_fallthru
    _
  %v15 = vld [vmem:[%s0] sm:$0x3]
  %v16 = vld [vmem:[%s1] sm:$0xf]
  %v17 = vld [vmem:[%s1 + $0x4] sm:$0xf]
  %v18 = vld [vmem:[%s1 + $0x8] sm:$0xf]
  %v19 = vld [vmem:[%s1 + $0xc] sm:$0xf]
  %v20 = vld [vmem:[%s1 + $0x10] sm:$0xf]
  %v21 = vld [vmem:[%s1 + $0x14] sm:$0xf]
  %v22 = vld [vmem:[%s1 + $0x18] sm:$0xf]
  %v23 = vld [vmem:[%s1 + $0x1c] sm:$0xf]
  %v24 = vld [vmem:[%s1 + $0x20] sm:$0xf]
  %v25 = vld [vmem:[%s1 + $0x24] sm:$0xf]
  %v26 = vld [vmem:[%s1 + $0x28] sm:$0xf]
  %v27 = vld [vmem:[%s1 + $0x2c] sm:$0xf]
  %v28 = vld [vmem:[%s1 + $0x30] sm:$0xf]
  %v29 = vld [vmem:[%s1 + $0x34] sm:$0xf]
  %v30 = vld [vmem:[%s1 + $0x38] sm:$0xf]
  %v31 = vld [vmem:[%s1 + $0x3c] sm:$0xf]
  %v32 = vld [vmem:[%s1 + $0x40] sm:$0xf]
  %v33 = vld [vmem:[%s1 + $0x44] sm:$0xf]
  %v34 = vld [vmem:[%s1 + $0x48] sm:$0xf]
  %v35 = vld [vmem:[%s1 + $0x4c] sm:$0xf]
  %v36 = vld [vmem:[%s1 + $0x50] sm:$0xf]
  %v37 = vld [vmem:[%s1 + $0x54] sm:$0xf]
  %v38 = vld [vmem:[%s1 + $0x58] sm:$0xf]
  %v39 = vld [vmem:[%s1 + $0x5c] sm:$0xf]
  %v40 = vld [vmem:[%s1 + $0x60] sm:$0xf]
  %v41 = vld [vmem:[%s1 + $0x64] sm:$0xf]
  %v42 = vld [vmem:[%s1 + $0x68] sm:$0xf]
  %v43 = vld [vmem:[%s1 + $0x6c] sm:$0xf]
  %v44 = vld [vmem:[%s1 + $0x70] sm:$0xf]
  %v45 = vld [vmem:[%s1 + $0x74] sm:$0xf]
  %v46 = vld [vmem:[%s1 + $0x78] sm:$0xf]
  %v47 = vld [vmem:[%s1 + $0x7c] sm:$0xf]
  %v48 = vld [vmem:[%s2] sm:$0x1]
  %v50 = vlaneseq
  %v51 = vshrl.u32 %v50, 7
  %v52 = vsub.s32 0, %v51
  %v53 = vrot.slane %v48, %v52
  %v57 = vunpack.c.l.s4 1966171168
  %v58 = vunpack.c.0.s8 %v57
  %v59 = vlaneseq
  %v60 = vshrl.u32 %v59, 7
  %v61 = vsub.s32 %v58, %v60
  %v62 = vrot.slane %v15, %v61
  %v63 = vcombine.high %v62, %v62
  %v65 = vunpack.c.l.s4 1966171168
  %v66 = vunpack.c.0.s8 %v65
  %v67 = vlaneseq
  %v68 = vshrl.u32 %v67, 7
  %v69 = vsub.s32 %v66, %v68
  %v70 = vrot.slane %v62, %v69
  %v72 = vunpack.c.l.s4 1966171168
  %v73 = vunpack.c.0.s8 %v72
  %v74 = vlaneseq
  %v75 = vshrl.u32 %v74, 7
  %v76 = vsub.s32 %v73, %v75
  %v77 = vrot.slane %v63, %v76
  %v112 = vunpack.c.l.b16 %v16
  %v113 = vunpack.c.l.b16 %v17
  %v114 = vunpack.c.l.b16 %v18
  %v115 = vunpack.c.l.b16 %v19
  %v116 = vunpack.c.l.b16 %v20
  %v117 = vunpack.c.l.b16 %v21
  %v118 = vunpack.c.l.b16 %v22
  %v119 = vunpack.c.l.b16 %v23
  %v120 = vunpack.c.l.b16 %v24
  %v121 = vunpack.c.l.b16 %v25
  %v122 = vunpack.c.l.b16 %v26
  %v123 = vunpack.c.l.b16 %v27
  %v124 = vunpack.c.l.b16 %v28
  %v125 = vunpack.c.l.b16 %v29
  %v126 = vunpack.c.l.b16 %v30
  %v127 = vunpack.c.l.b16 %v31
  %v128 = vunpack.c.l.b16 %v32
  %v129 = vunpack.c.l.b16 %v33
  %v130 = vunpack.c.l.b16 %v34
  %v131 = vunpack.c.l.b16 %v35
  %v132 = vunpack.c.l.b16 %v36
  %v133 = vunpack.c.l.b16 %v37
  %v134 = vunpack.c.l.b16 %v38
  %v135 = vunpack.c.l.b16 %v39
  %v136 = vunpack.c.l.b16 %v40
  %v137 = vunpack.c.l.b16 %v41
  %v138 = vunpack.c.l.b16 %v42
  %v139 = vunpack.c.l.b16 %v43
  %v140 = vunpack.c.l.b16 %v44
  %v141 = vunpack.c.l.b16 %v45
  %v142 = vunpack.c.l.b16 %v46
  %v143 = vunpack.c.l.b16 %v47
  %v144 = vpack.c.b16 %v113, %v112
  %v145 = vpack.c.b16 %v115, %v114
  %v146 = vpack.c.b16 %v117, %v116
  %v147 = vpack.c.b16 %v119, %v118
  %v148 = vpack.c.b16 %v121, %v120
  %v149 = vpack.c.b16 %v123, %v122
  %v150 = vpack.c.b16 %v125, %v124
  %v151 = vpack.c.b16 %v127, %v126
  %v152 = vpack.c.b16 %v129, %v128
  %v153 = vpack.c.b16 %v131, %v130
  %v154 = vpack.c.b16 %v133, %v132
  %v155 = vpack.c.b16 %v135, %v134
  %v156 = vpack.c.b16 %v137, %v136
  %v157 = vpack.c.b16 %v139, %v138
  %v158 = vpack.c.b16 %v141, %v140
  %v159 = vpack.c.b16 %v143, %v142
  %176 = vmatprep.subr.bf16.mxu0 0
  %177 = vmatpush1.bf16.msra.mxu0 %v144
  %178 = vmatprep.subr.bf16.mxu0 0
  %179 = vmatpush1.bf16.msra.mxu0 %v145
  %180 = vmatprep.subr.bf16.mxu0 0
  %181 = vmatpush1.bf16.msra.mxu0 %v146
  %182 = vmatprep.subr.bf16.mxu0 0
  %183 = vmatpush1.bf16.msra.mxu0 %v147
  %184 = vmatprep.subr.bf16.mxu0 0
  %185 = vmatpush1.bf16.msra.mxu0 %v148
  %186 = vmatprep.subr.bf16.mxu0 0
  %187 = vmatpush1.bf16.msra.mxu0 %v149
  %188 = vmatprep.subr.bf16.mxu0 0
  %189 = vmatpush1.bf16.msra.mxu0 %v150
  %190 = vmatprep.subr.bf16.mxu0 0
  %191 = vmatpush1.bf16.msra.mxu0 %v151
  %192 = vmatprep.subr.bf16.mxu0 0
  %193 = vmatpush1.bf16.msra.mxu0 %v152
  %194 = vmatprep.subr.bf16.mxu0 0
  %195 = vmatpush1.bf16.msra.mxu0 %v153
  %196 = vmatprep.subr.bf16.mxu0 0
  %197 = vmatpush1.bf16.msra.mxu0 %v154
  %198 = vmatprep.subr.bf16.mxu0 0
  %199 = vmatpush1.bf16.msra.mxu0 %v155
  %200 = vmatprep.subr.bf16.mxu0 0
  %201 = vmatpush1.bf16.msra.mxu0 %v156
  %202 = vmatprep.subr.bf16.mxu0 0
  %203 = vmatpush1.bf16.msra.mxu0 %v157
  %204 = vmatprep.subr.bf16.mxu0 0
  %205 = vmatpush1.bf16.msra.mxu0 %v158
  %206 = vmatprep.subr.bf16.mxu0 0
  %207 = vmatpush1.bf16.msra.mxu0 %v159
  %208 = vmatprep.mubr.bf16.mxu0 %v77
  %209 = vmatmul.mubr.bf16.gmra.mrb[0].mxu0 %v70
  %v210 = vpop.f32.mrb[0].mxu0
  %v211 = vadd.f32 %v53, %v210
  %v212 = vpop.f32.mrb[0].mxu0
  %v213 = vpop.f32.mrb[0].mxu0
  %v214 = vpop.f32.mrb[0].mxu0
  %215 = vdwg.mxu0
  %v216 = vmax.f32 %v211, 0.0
  %v217 = vpack.c.bf16 %v216, %v216
  %vm218 = vcmask 516096
  %219 = vst.msk [vmem:[%s3] sm:$0x1] %vm218, %v217
  // Predicated region
  $region14: #{segmentation_forward.8} parent=0 // pred_check
    _
  $region15: #{segmentation_forward.8} parent=0 // pred_check_branch
    %221 = sbr.rel (0) target = $region17
  $region16: #{segmentation_forward.8} parent=0 // pred_region
    _
  $region17: #{segmentation_forward.8} parent=0 // pred_fallthru
    _
  // Predicated region
  $region18: #{segmentation_forward.8} parent=0 // pred_check
    _
  $region19: #{segmentation_forward.8} parent=0 // pred_check_branch
    %223 = sbr.rel (0) target = $region21
  $region20: #{segmentation_forward.8} parent=0 // pred_region
    _
  $region21: #{segmentation_forward.8} parent=0 // pred_fallthru
    _

// kernel: segmentation_forward.5
$region0: #{segmentation_forward.5}
  #allocation0 [shape = 'u32[]', space=smem, size = 0x4, offset = 0x4, fixed_abs, tag = 'smem constant byte address 0x4 - core index']
  #allocation1 [shape = 'u32[144,128]{1,0:T(1,128)}', space=vmem, size = 0x12000, scoped, tag = 'internal scratch']
  %s0 = inlined_call_operand.vmem [shape: bf16[16,2,8,2,8,2], index: 0, kind: input, shape index: {}]
  %s1 = inlined_call_operand.vmem [shape: f32[4,2,8], index: 1, kind: input, shape index: {}]
  %s2 = inlined_call_operand.vmem [shape: f32[1,8], index: 2, kind: input, shape index: {}]
  %s3 = inlined_call_operand.vmem [shape: bf16[1024,8], index: 3, kind: output, shape index: {}]
  %s4 = sld [smem:[#allocation0]]
  $region22: #{segmentation_forward.5} parent=0
    _
  %s6 = ssub.s32 1, %s4
  %s7 = scalar_select 0, %s6, %s4
  // Predicated region
  $region2: #{segmentation_forward.5} parent=0 // pred_check
    _
  $region3: #{segmentation_forward.5} parent=0 // pred_check_branch
    %9 = sbr.rel (0) target = $region5
  $region4: #{segmentation_forward.5} parent=0 // pred_region
    _
  $region5: #{segmentation_forward.5} parent=0 // pred_fallthru
    _
  // Predicated region
  $region6: #{segmentation_forward.5} parent=0 // pred_check
    _
  $region7: #{segmentation_forward.5} parent=0 // pred_check_branch
    %11 = sbr.rel (0) target = $region9
  $region8: #{segmentation_forward.5} parent=0 // pred_region
    _
  $region9: #{segmentation_forward.5} parent=0 // pred_fallthru
    _
  // Predicated region
  $region10: #{segmentation_forward.5} parent=0 // pred_check
    _
  $region11: #{segmentation_forward.5} parent=0 // pred_check_branch
    %13 = sbr.rel (0) target = $region13
  $region12: #{segmentation_forward.5} parent=0 // pred_region
    _
  $region13: #{segmentation_forward.5} parent=0 // pred_fallthru
    _
  %v14 = vld [vmem:[%s0] sm:$0xf]
  %v15 = vld [vmem:[%s0 + $0x8] sm:$0xf]
  %v16 = vld [vmem:[%s0 + $0x10] sm:$0xf]
  %v17 = vld [vmem:[%s0 + $0x18] sm:$0xf]
  %v18 = vld [vmem:[%s0 + $0x20] sm:$0xf]
  %v19 = vld [vmem:[%s0 + $0x28] sm:$0xf]
  %v20 = vld [vmem:[%s0 + $0x30] sm:$0xf]
  %v21 = vld [vmem:[%s0 + $0x38] sm:$0xf]
  %v22 = vld [vmem:[%s0 + $0x80] sm:$0xf]
  %v23 = vld [vmem:[%s0 + $0x88] sm:$0xf]
  %v24 = vld [vmem:[%s0 + $0x90] sm:$0xf]
  %v25 = vld [vmem:[%s0 + $0x98] sm:$0xf]
  %v26 = vld [vmem:[%s0 + $0xa0] sm:$0xf]
  %v27 = vld [vmem:[%s0 + $0xa8] sm:$0xf]
  %v28 = vld [vmem:[%s0 + $0xb0] sm:$0xf]
  %v29 = vld [vmem:[%s0 + $0xb8] sm:$0xf]
  %v30 = vld [vmem:[%s0 + $0x100] sm:$0xf]
  %v31 = vld [vmem:[%s0 + $0x108] sm:$0xf]
  %v32 = vld [vmem:[%s0 + $0x110] sm:$0xf]
  %v33 = vld [vmem:[%s0 + $0x118] sm:$0xf]
  %v34 = vld [vmem:[%s0 + $0x120] sm:$0xf]
  %v35 = vld [vmem:[%s0 + $0x128] sm:$0xf]
  %v36 = vld [vmem:[%s0 + $0x130] sm:$0xf]
  %v37 = vld [vmem:[%s0 + $0x138] sm:$0xf]
  %v38 = vld [vmem:[%s0 + $0x180] sm:$0xf]
  %v39 = vld [vmem:[%s0 + $0x188] sm:$0xf]
  %v40 = vld [vmem:[%s0 + $0x190] sm:$0xf]
  %v41 = vld [vmem:[%s0 + $0x198] sm:$0xf]
  %v42 = vld [vmem:[%s0 + $0x1a0] sm:$0xf]
  %v43 = vld [vmem:[%s0 + $0x1a8] sm:$0xf]
  %v44 = vld [vmem:[%s0 + $0x1b0] sm:$0xf]
  %v45 = vld [vmem:[%s0 + $0x1b8] sm:$0xf]
  %v46 = vld [vmem:[%s0 + $0x200] sm:$0xf]
  %v47 = vld [vmem:[%s0 + $0x208] sm:$0xf]
  %v48 = vld [vmem:[%s0 + $0x210] sm:$0xf]
  %v49 = vld [vmem:[%s0 + $0x218] sm:$0xf]
  %v50 = vld [vmem:[%s0 + $0x220] sm:$0xf]
  %v51 = vld [vmem:[%s0 + $0x228] sm:$0xf]
  %v52 = vld [vmem:[%s0 + $0x230] sm:$0xf]
  %v53 = vld [vmem:[%s0 + $0x238] sm:$0xf]
  %v54 = vld [vmem:[%s0 + $0x280] sm:$0xf]
  %v55 = vld [vmem:[%s0 + $0x288] sm:$0xf]
  %v56 = vld [vmem:[%s0 + $0x290] sm:$0xf]
  %v57 = vld [vmem:[%s0 + $0x298] sm:$0xf]
  %v58 = vld [vmem:[%s0 + $0x2a0] sm:$0xf]
  %v59 = vld [vmem:[%s0 + $0x2a8] sm:$0xf]
  %v60 = vld [vmem:[%s0 + $0x2b0] sm:$0xf]
  %v61 = vld [vmem:[%s0 + $0x2b8] sm:$0xf]
  %v62 = vld [vmem:[%s0 + $0x300] sm:$0xf]
  %v63 = vld [vmem:[%s0 + $0x308] sm:$0xf]
  %v64 = vld [vmem:[%s0 + $0x310] sm:$0xf]
  %v65 = vld [vmem:[%s0 + $0x318] sm:$0xf]
  %v66 = vld [vmem:[%s0 + $0x320] sm:$0xf]
  %v67 = vld [vmem:[%s0 + $0x328] sm:$0xf]
  %v68 = vld [vmem:[%s0 + $0x330] sm:$0xf]
  %v69 = vld [vmem:[%s0 + $0x338] sm:$0xf]
  %v70 = vld [vmem:[%s0 + $0x380] sm:$0xf]
  %v71 = vld [vmem:[%s0 + $0x388] sm:$0xf]
  %v72 = vld [vmem:[%s0 + $0x390] sm:$0xf]
  %v73 = vld [vmem:[%s0 + $0x398] sm:$0xf]
  %v74 = vld [vmem:[%s0 + $0x3a0] sm:$0xf]
  %v75 = vld [vmem:[%s0 + $0x3a8] sm:$0xf]
  %v76 = vld [vmem:[%s0 + $0x3b0] sm:$0xf]
  %v77 = vld [vmem:[%s0 + $0x3b8] sm:$0xf]
  %v78 = vld [vmem:[%s0 + $0x400] sm:$0xf]
  %v79 = vld [vmem:[%s0 + $0x408] sm:$0xf]
  %v80 = vld [vmem:[%s0 + $0x410] sm:$0xf]
  %v81 = vld [vmem:[%s0 + $0x418] sm:$0xf]
  %v82 = vld [vmem:[%s0 + $0x420] sm:$0xf]
  %v83 = vld [vmem:[%s0 + $0x428] sm:$0xf]
  %v84 = vld [vmem:[%s0 + $0x430] sm:$0xf]
  %v85 = vld [vmem:[%s0 + $0x438] sm:$0xf]
  %v86 = vld [vmem:[%s0 + $0x480] sm:$0xf]
  %v87 = vld [vmem:[%s0 + $0x488] sm:$0xf]
  %v88 = vld [vmem:[%s0 + $0x490] sm:$0xf]
  %v89 = vld [vmem:[%s0 + $0x498] sm:$0xf]
  %v90 = vld [vmem:[%s0 + $0x4a0] sm:$0xf]
  %v91 = vld [vmem:[%s0 + $0x4a8] sm:$0xf]
  %v92 = vld [vmem:[%s0 + $0x4b0] sm:$0xf]
  %v93 = vld [vmem:[%s0 + $0x4b8] sm:$0xf]
  %v94 = vld [vmem:[%s0 + $0x500] sm:$0xf]
  %v95 = vld [vmem:[%s0 + $0x508] sm:$0xf]
  %v96 = vld [vmem:[%s0 + $0x510] sm:$0xf]
  %v97 = vld [vmem:[%s0 + $0x518] sm:$0xf]
  %v98 = vld [vmem:[%s0 + $0x520] sm:$0xf]
  %v99 = vld [vmem:[%s0 + $0x528] sm:$0xf]
  %v100 = vld [vmem:[%s0 + $0x530] sm:$0xf]
  %v101 = vld [vmem:[%s0 + $0x538] sm:$0xf]
  %v102 = vld [vmem:[%s0 + $0x580] sm:$0xf]
  %v103 = vld [vmem:[%s0 + $0x588] sm:$0xf]
  %v104 = vld [vmem:[%s0 + $0x590] sm:$0xf]
  %v105 = vld [vmem:[%s0 + $0x598] sm:$0xf]
  %v106 = vld [vmem:[%s0 + $0x5a0] sm:$0xf]
  %v107 = vld [vmem:[%s0 + $0x5a8] sm:$0xf]
  %v108 = vld [vmem:[%s0 + $0x5b0] sm:$0xf]
  %v109 = vld [vmem:[%s0 + $0x5b8] sm:$0xf]
  %v110 = vld [vmem:[%s0 + $0x600] sm:$0xf]
  %v111 = vld [vmem:[%s0 + $0x608] sm:$0xf]
  %v112 = vld [vmem:[%s0 + $0x610] sm:$0xf]
  %v113 = vld [vmem:[%s0 + $0x618] sm:$0xf]
  %v114 = vld [vmem:[%s0 + $0x620] sm:$0xf]
  %v115 = vld [vmem:[%s0 + $0x628] sm:$0xf]
  %v116 = vld [vmem:[%s0 + $0x630] sm:$0xf]
  %v117 = vld [vmem:[%s0 + $0x638] sm:$0xf]
  %v118 = vld [vmem:[%s0 + $0x680] sm:$0xf]
  %v119 = vld [vmem:[%s0 + $0x688] sm:$0xf]
  %v120 = vld [vmem:[%s0 + $0x690] sm:$0xf]
  %v121 = vld [vmem:[%s0 + $0x698] sm:$0xf]
  %v122 = vld [vmem:[%s0 + $0x6a0] sm:$0xf]
  %v123 = vld [vmem:[%s0 + $0x6a8] sm:$0xf]
  %v124 = vld [vmem:[%s0 + $0x6b0] sm:$0xf]
  %v125 = vld [vmem:[%s0 + $0x6b8] sm:$0xf]
  %v126 = vld [vmem:[%s0 + $0x700] sm:$0xf]
  %v127 = vld [vmem:[%s0 + $0x708] sm:$0xf]
  %v128 = vld [vmem:[%s0 + $0x710] sm:$0xf]
  %v129 = vld [vmem:[%s0 + $0x718] sm:$0xf]
  %v130 = vld [vmem:[%s0 + $0x720] sm:$0xf]
  %v131 = vld [vmem:[%s0 + $0x728] sm:$0xf]
  %v132 = vld [vmem:[%s0 + $0x730] sm:$0xf]
  %v133 = vld [vmem:[%s0 + $0x738] sm:$0xf]
  %v134 = vld [vmem:[%s0 + $0x780] sm:$0xf]
  %v135 = vld [vmem:[%s0 + $0x788] sm:$0xf]
  %v136 = vld [vmem:[%s0 + $0x790] sm:$0xf]
  %v137 = vld [vmem:[%s0 + $0x798] sm:$0xf]
  %v138 = vld [vmem:[%s0 + $0x7a0] sm:$0xf]
  %v139 = vld [vmem:[%s0 + $0x7a8] sm:$0xf]
  %v140 = vld [vmem:[%s0 + $0x7b0] sm:$0xf]
  %v141 = vld [vmem:[%s0 + $0x7b8] sm:$0xf]
  %v142 = vunpack.c.l.bf16 %v14
  %v143 = vunpack.c.l.bf16 %v15
  %v144 = vunpack.c.l.bf16 %v16
  %v145 = vunpack.c.l.bf16 %v17
  %v146 = vunpack.c.l.bf16 %v18
  %v147 = vunpack.c.l.bf16 %v19
  %v148 = vunpack.c.l.bf16 %v20
  %v149 = vunpack.c.l.bf16 %v21
  %v150 = vunpack.c.l.bf16 %v22
  %v151 = vunpack.c.l.bf16 %v23
  %v152 = vunpack.c.l.bf16 %v24
  %v153 = vunpack.c.l.bf16 %v25
  %v154 = vunpack.c.l.bf16 %v26
  %v155 = vunpack.c.l.bf16 %v27
  %v156 = vunpack.c.l.bf16 %v28
  %v157 = vunpack.c.l.bf16 %v29
  %v158 = vunpack.c.l.bf16 %v30
  %v159 = vunpack.c.l.bf16 %v31
  %v160 = vunpack.c.l.bf16 %v32
  %v161 = vunpack.c.l.bf16 %v33
  %v162 = vunpack.c.l.bf16 %v34
  %v163 = vunpack.c.l.bf16 %v35
  %v164 = vunpack.c.l.bf16 %v36
  %v165 = vunpack.c.l.bf16 %v37
  %v166 = vunpack.c.l.bf16 %v38
  %v167 = vunpack.c.l.bf16 %v39
  %v168 = vunpack.c.l.bf16 %v40
  %v169 = vunpack.c.l.bf16 %v41
  %v170 = vunpack.c.l.bf16 %v42
  %v171 = vunpack.c.l.bf16 %v43
  %v172 = vunpack.c.l.bf16 %v44
  %v173 = vunpack.c.l.bf16 %v45
  %v174 = vunpack.c.l.bf16 %v46
  %v175 = vunpack.c.l.bf16 %v47
  %v176 = vunpack.c.l.bf16 %v48
  %v177 = vunpack.c.l.bf16 %v49
  %v178 = vunpack.c.l.bf16 %v50
  %v179 = vunpack.c.l.bf16 %v51
  %v180 = vunpack.c.l.bf16 %v52
  %v181 = vunpack.c.l.bf16 %v53
  %v182 = vunpack.c.l.bf16 %v54
  %v183 = vunpack.c.l.bf16 %v55
  %v184 = vunpack.c.l.bf16 %v56
  %v185 = vunpack.c.l.bf16 %v57
  %v186 = vunpack.c.l.bf16 %v58
  %v187 = vunpack.c.l.bf16 %v59
  %v188 = vunpack.c.l.bf16 %v60
  %v189 = vunpack.c.l.bf16 %v61
  %v190 = vunpack.c.l.bf16 %v62
  %v191 = vunpack.c.l.bf16 %v63
  %v192 = vunpack.c.l.bf16 %v64
  %v193 = vunpack.c.l.bf16 %v65
  %v194 = vunpack.c.l.bf16 %v66
  %v195 = vunpack.c.l.bf16 %v67
  %v196 = vunpack.c.l.bf16 %v68
  %v197 = vunpack.c.l.bf16 %v69
  %v198 = vunpack.c.l.bf16 %v70
  %v199 = vunpack.c.l.bf16 %v71
  %v200 = vunpack.c.l.bf16 %v72
  %v201 = vunpack.c.l.bf16 %v73
  %v202 = vunpack.c.l.bf16 %v74
  %v203 = vunpack.c.l.bf16 %v75
  %v204 = vunpack.c.l.bf16 %v76
  %v205 = vunpack.c.l.bf16 %v77
  %v206 = vunpack.c.l.bf16 %v78
  %v207 = vunpack.c.l.bf16 %v79
  %v208 = vunpack.c.l.bf16 %v80
  %v209 = vunpack.c.l.bf16 %v81
  %v210 = vunpack.c.l.bf16 %v82
  %v211 = vunpack.c.l.bf16 %v83
  %v212 = vunpack.c.l.bf16 %v84
  %v213 = vunpack.c.l.bf16 %v85
  %v214 = vunpack.c.l.bf16 %v86
  %v215 = vunpack.c.l.bf16 %v87
  %v216 = vunpack.c.l.bf16 %v88
  %v217 = vunpack.c.l.bf16 %v89
  %v218 = vunpack.c.l.bf16 %v90
  %v219 = vunpack.c.l.bf16 %v91
  %v220 = vunpack.c.l.bf16 %v92
  %v221 = vunpack.c.l.bf16 %v93
  %v222 = vunpack.c.l.bf16 %v94
  %v223 = vunpack.c.l.bf16 %v95
  %v224 = vunpack.c.l.bf16 %v96
  %v225 = vunpack.c.l.bf16 %v97
  %v226 = vunpack.c.l.bf16 %v98
  %v227 = vunpack.c.l.bf16 %v99
  %v228 = vunpack.c.l.bf16 %v100
  %v229 = vunpack.c.l.bf16 %v101
  %v230 = vunpack.c.l.bf16 %v102
  %v231 = vunpack.c.l.bf16 %v103
  %v232 = vunpack.c.l.bf16 %v104
  %v233 = vunpack.c.l.bf16 %v105
  %v234 = vunpack.c.l.bf16 %v106
  %v235 = vunpack.c.l.bf16 %v107
  %v236 = vunpack.c.l.bf16 %v108
  %v237 = vunpack.c.l.bf16 %v109
  %v238 = vunpack.c.l.bf16 %v110
  %v239 = vunpack.c.l.bf16 %v111
  %v240 = vunpack.c.l.bf16 %v112
  %v241 = vunpack.c.l.bf16 %v113
  %v242 = vunpack.c.l.bf16 %v114
  %v243 = vunpack.c.l.bf16 %v115
  %v244 = vunpack.c.l.bf16 %v116
  %v245 = vunpack.c.l.bf16 %v117
  %v246 = vunpack.c.l.bf16 %v118
  %v247 = vunpack.c.l.bf16 %v119
  %v248 = vunpack.c.l.bf16 %v120
  %v249 = vunpack.c.l.bf16 %v121
  %v250 = vunpack.c.l.bf16 %v122
  %v251 = vunpack.c.l.bf16 %v123
  %v252 = vunpack.c.l.bf16 %v124
  %v253 = vunpack.c.l.bf16 %v125
  %v254 = vunpack.c.l.bf16 %v126
  %v255 = vunpack.c.l.bf16 %v127
  %v256 = vunpack.c.l.bf16 %v128
  %v257 = vunpack.c.l.bf16 %v129
  %v258 = vunpack.c.l.bf16 %v130
  %v259 = vunpack.c.l.bf16 %v131
  %v260 = vunpack.c.l.bf16 %v132
  %v261 = vunpack.c.l.bf16 %v133
  %v262 = vunpack.c.l.bf16 %v134
  %v263 = vunpack.c.l.bf16 %v135
  %v264 = vunpack.c.l.bf16 %v136
  %v265 = vunpack.c.l.bf16 %v137
  %v266 = vunpack.c.l.bf16 %v138
  %v267 = vunpack.c.l.bf16 %v139
  %v268 = vunpack.c.l.bf16 %v140
  %v269 = vunpack.c.l.bf16 %v141
  %v270 = vld [vmem:[%s1] sm:$0x3]
  %s271 = scalar_lea.vmem %s0, 4
  %v272 = vld [vmem:[%s271] sm:$0xf]
  %v273 = vld [vmem:[%s271 + $0x8] sm:$0xf]
  %v274 = vld [vmem:[%s271 + $0x10] sm:$0xf]
  %v275 = vld [vmem:[%s271 + $0x18] sm:$0xf]
  %v276 = vld [vmem:[%s271 + $0x20] sm:$0xf]
  %v277 = vld [vmem:[%s271 + $0x28] sm:$0xf]
  %v278 = vld [vmem:[%s271 + $0x30] sm:$0xf]
  %v279 = vld [vmem:[%s271 + $0x38] sm:$0xf]
  %v280 = vld [vmem:[%s271 + $0x80] sm:$0xf]
  %v281 = vld [vmem:[%s271 + $0x88] sm:$0xf]
  %v282 = vld [vmem:[%s271 + $0x90] sm:$0xf]
  %v283 = vld [vmem:[%s271 + $0x98] sm:$0xf]
  %v284 = vld [vmem:[%s271 + $0xa0] sm:$0xf]
  %v285 = vld [vmem:[%s271 + $0xa8] sm:$0xf]
  %v286 = vld [vmem:[%s271 + $0xb0] sm:$0xf]
  %v287 = vld [vmem:[%s271 + $0xb8] sm:$0xf]
  %v288 = vld [vmem:[%s271 + $0x100] sm:$0xf]
  %v289 = vld [vmem:[%s271 + $0x108] sm:$0xf]
  %v290 = vld [vmem:[%s271 + $0x110] sm:$0xf]
  %v291 = vld [vmem:[%s271 + $0x118] sm:$0xf]
  %v292 = vld [vmem:[%s271 + $0x120] sm:$0xf]
  %v293 = vld [vmem:[%s271 + $0x128] sm:$0xf]
  %v294 = vld [vmem:[%s271 + $0x130] sm:$0xf]
  %v295 = vld [vmem:[%s271 + $0x138] sm:$0xf]
  %v296 = vld [vmem:[%s271 + $0x180] sm:$0xf]
  %v297 = vld [vmem:[%s271 + $0x188] sm:$0xf]
  %v298 = vld [vmem:[%s271 + $0x190] sm:$0xf]
  %v299 = vld [vmem:[%s271 + $0x198] sm:$0xf]
  %v300 = vld [vmem:[%s271 + $0x1a0] sm:$0xf]
  %v301 = vld [vmem:[%s271 + $0x1a8] sm:$0xf]
  %v302 = vld [vmem:[%s271 + $0x1b0] sm:$0xf]
  %v303 = vld [vmem:[%s271 + $0x1b8] sm:$0xf]
  %v304 = vld [vmem:[%s271 + $0x200] sm:$0xf]
  %v305 = vld [vmem:[%s271 + $0x208] sm:$0xf]
  %v306 = vld [vmem:[%s271 + $0x210] sm:$0xf]
  %v307 = vld [vmem:[%s271 + $0x218] sm:$0xf]
  %v308 = vld [vmem:[%s271 + $0x220] sm:$0xf]
  %v309 = vld [vmem:[%s271 + $0x228] sm:$0xf]
  %v310 = vld [vmem:[%s271 + $0x230] sm:$0xf]
  %v311 = vld [vmem:[%s271 + $0x238] sm:$0xf]
  %v312 = vld [vmem:[%s271 + $0x280] sm:$0xf]
  %v313 = vld [vmem:[%s271 + $0x288] sm:$0xf]
  %v314 = vld [vmem:[%s271 + $0x290] sm:$0xf]
  %v315 = vld [vmem:[%s271 + $0x298] sm:$0xf]
  %v316 = vld [vmem:[%s271 + $0x2a0] sm:$0xf]
  %v317 = vld [vmem:[%s271 + $0x2a8] sm:$0xf]
  %v318 = vld [vmem:[%s271 + $0x2b0] sm:$0xf]
  %v319 = vld [vmem:[%s271 + $0x2b8] sm:$0xf]
  %v320 = vld [vmem:[%s271 + $0x300] sm:$0xf]
  %v321 = vld [vmem:[%s271 + $0x308] sm:$0xf]
  %v322 = vld [vmem:[%s271 + $0x310] sm:$0xf]
  %v323 = vld [vmem:[%s271 + $0x318] sm:$0xf]
  %v324 = vld [vmem:[%s271 + $0x320] sm:$0xf]
  %v325 = vld [vmem:[%s271 + $0x328] sm:$0xf]
  %v326 = vld [vmem:[%s271 + $0x330] sm:$0xf]
  %v327 = vld [vmem:[%s271 + $0x338] sm:$0xf]
  %v328 = vld [vmem:[%s271 + $0x380] sm:$0xf]
  %v329 = vld [vmem:[%s271 + $0x388] sm:$0xf]
  %v330 = vld [vmem:[%s271 + $0x390] sm:$0xf]
  %v331 = vld [vmem:[%s271 + $0x398] sm:$0xf]
  %v332 = vld [vmem:[%s271 + $0x3a0] sm:$0xf]
  %v333 = vld [vmem:[%s271 + $0x3a8] sm:$0xf]
  %v334 = vld [vmem:[%s271 + $0x3b0] sm:$0xf]
  %v335 = vld [vmem:[%s271 + $0x3b8] sm:$0xf]
  %v336 = vld [vmem:[%s271 + $0x400] sm:$0xf]
  %v337 = vld [vmem:[%s271 + $0x408] sm:$0xf]
  %v338 = vld [vmem:[%s271 + $0x410] sm:$0xf]
  %v339 = vld [vmem:[%s271 + $0x418] sm:$0xf]
  %v340 = vld [vmem:[%s271 + $0x420] sm:$0xf]
  %v341 = vld [vmem:[%s271 + $0x428] sm:$0xf]
  %v342 = vld [vmem:[%s271 + $0x430] sm:$0xf]
  %v343 = vld [vmem:[%s271 + $0x438] sm:$0xf]
  %v344 = vld [vmem:[%s271 + $0x480] sm:$0xf]
  %v345 = vld [vmem:[%s271 + $0x488] sm:$0xf]
  %v346 = vld [vmem:[%s271 + $0x490] sm:$0xf]
  %v347 = vld [vmem:[%s271 + $0x498] sm:$0xf]
  %v348 = vld [vmem:[%s271 + $0x4a0] sm:$0xf]
  %v349 = vld [vmem:[%s271 + $0x4a8] sm:$0xf]
  %v350 = vld [vmem:[%s271 + $0x4b0] sm:$0xf]
  %v351 = vld [vmem:[%s271 + $0x4b8] sm:$0xf]
  %v352 = vld [vmem:[%s271 + $0x500] sm:$0xf]
  %v353 = vld [vmem:[%s271 + $0x508] sm:$0xf]
  %v354 = vld [vmem:[%s271 + $0x510] sm:$0xf]
  %v355 = vld [vmem:[%s271 + $0x518] sm:$0xf]
  %v356 = vld [vmem:[%s271 + $0x520] sm:$0xf]
  %v357 = vld [vmem:[%s271 + $0x528] sm:$0xf]
  %v358 = vld [vmem:[%s271 + $0x530] sm:$0xf]
  %v359 = vld [vmem:[%s271 + $0x538] sm:$0xf]
  %v360 = vld [vmem:[%s271 + $0x580] sm:$0xf]
  %v361 = vld [vmem:[%s271 + $0x588] sm:$0xf]
  %v362 = vld [vmem:[%s271 + $0x590] sm:$0xf]
  %v363 = vld [vmem:[%s271 + $0x598] sm:$0xf]
  %v364 = vld [vmem:[%s271 + $0x5a0] sm:$0xf]
  %v365 = vld [vmem:[%s271 + $0x5a8] sm:$0xf]
  %v366 = vld [vmem:[%s271 + $0x5b0] sm:$0xf]
  %v367 = vld [vmem:[%s271 + $0x5b8] sm:$0xf]
  %v368 = vld [vmem:[%s271 + $0x600] sm:$0xf]
  %v369 = vld [vmem:[%s271 + $0x608] sm:$0xf]
  %v370 = vld [vmem:[%s271 + $0x610] sm:$0xf]
  %v371 = vld [vmem:[%s271 + $0x618] sm:$0xf]
  %v372 = vld [vmem:[%s271 + $0x620] sm:$0xf]
  %v373 = vld [vmem:[%s271 + $0x628] sm:$0xf]
  %v374 = vld [vmem:[%s271 + $0x630] sm:$0xf]
  %v375 = vld [vmem:[%s271 + $0x638] sm:$0xf]
  %v376 = vld [vmem:[%s271 + $0x680] sm:$0xf]
  %v377 = vld [vmem:[%s271 + $0x688] sm:$0xf]
  %v378 = vld [vmem:[%s271 + $0x690] sm:$0xf]
  %v379 = vld [vmem:[%s271 + $0x698] sm:$0xf]
  %v380 = vld [vmem:[%s271 + $0x6a0] sm:$0xf]
  %v381 = vld [vmem:[%s271 + $0x6a8] sm:$0xf]
  %v382 = vld [vmem:[%s271 + $0x6b0] sm:$0xf]
  %v383 = vld [vmem:[%s271 + $0x6b8] sm:$0xf]
  %v384 = vld [vmem:[%s271 + $0x700] sm:$0xf]
  %v385 = vld [vmem:[%s271 + $0x708] sm:$0xf]
  %v386 = vld [vmem:[%s271 + $0x710] sm:$0xf]
  %v387 = vld [vmem:[%s271 + $0x718] sm:$0xf]
  %v388 = vld [vmem:[%s271 + $0x720] sm:$0xf]
  %v389 = vld [vmem:[%s271 + $0x728] sm:$0xf]
  %v390 = vld [vmem:[%s271 + $0x730] sm:$0xf]
  %v391 = vld [vmem:[%s271 + $0x738] sm:$0xf]
  %v392 = vld [vmem:[%s271 + $0x780] sm:$0xf]
  %v393 = vld [vmem:[%s271 + $0x788] sm:$0xf]
  %v394 = vld [vmem:[%s271 + $0x790] sm:$0xf]
  %v395 = vld [vmem:[%s271 + $0x798] sm:$0xf]
  %v396 = vld [vmem:[%s271 + $0x7a0] sm:$0xf]
  %v397 = vld [vmem:[%s271 + $0x7a8] sm:$0xf]
  %v398 = vld [vmem:[%s271 + $0x7b0] sm:$0xf]
  %v399 = vld [vmem:[%s271 + $0x7b8] sm:$0xf]
  %v400 = vunpack.c.l.bf16 %v272
  %v401 = vunpack.c.l.bf16 %v273
  %v402 = vunpack.c.l.bf16 %v274
  %v403 = vunpack.c.l.bf16 %v275
  %v404 = vunpack.c.l.bf16 %v276
  %v405 = vunpack.c.l.bf16 %v277
  %v406 = vunpack.c.l.bf16 %v278
  %v407 = vunpack.c.l.bf16 %v279
  %v408 = vunpack.c.l.bf16 %v280
  %v409 = vunpack.c.l.bf16 %v281
  %v410 = vunpack.c.l.bf16 %v282
  %v411 = vunpack.c.l.bf16 %v283
  %v412 = vunpack.c.l.bf16 %v284
  %v413 = vunpack.c.l.bf16 %v285
  %v414 = vunpack.c.l.bf16 %v286
  %v415 = vunpack.c.l.bf16 %v287
  %v416 = vunpack.c.l.bf16 %v288
  %v417 = vunpack.c.l.bf16 %v289
  %v418 = vunpack.c.l.bf16 %v290
  %v419 = vunpack.c.l.bf16 %v291
  %v420 = vunpack.c.l.bf16 %v292
  %v421 = vunpack.c.l.bf16 %v293
  %v422 = vunpack.c.l.bf16 %v294
  %v423 = vunpack.c.l.bf16 %v295
  %v424 = vunpack.c.l.bf16 %v296
  %v425 = vunpack.c.l.bf16 %v297
  %v426 = vunpack.c.l.bf16 %v298
  %v427 = vunpack.c.l.bf16 %v299
  %v428 = vunpack.c.l.bf16 %v300
  %v429 = vunpack.c.l.bf16 %v301
  %v430 = vunpack.c.l.bf16 %v302
  %v431 = vunpack.c.l.bf16 %v303
  %v432 = vunpack.c.l.bf16 %v304
  %v433 = vunpack.c.l.bf16 %v305
  %v434 = vunpack.c.l.bf16 %v306
  %v435 = vunpack.c.l.bf16 %v307
  %v436 = vunpack.c.l.bf16 %v308
  %v437 = vunpack.c.l.bf16 %v309
  %v438 = vunpack.c.l.bf16 %v310
  %v439 = vunpack.c.l.bf16 %v311
  %v440 = vunpack.c.l.bf16 %v312
  %v441 = vunpack.c.l.bf16 %v313
  %v442 = vunpack.c.l.bf16 %v314
  %v443 = vunpack.c.l.bf16 %v315
  %v444 = vunpack.c.l.bf16 %v316
  %v445 = vunpack.c.l.bf16 %v317
  %v446 = vunpack.c.l.bf16 %v318
  %v447 = vunpack.c.l.bf16 %v319
  %v448 = vunpack.c.l.bf16 %v320
  %v449 = vunpack.c.l.bf16 %v321
  %v450 = vunpack.c.l.bf16 %v322
  %v451 = vunpack.c.l.bf16 %v323
  %v452 = vunpack.c.l.bf16 %v324
  %v453 = vunpack.c.l.bf16 %v325
  %v454 = vunpack.c.l.bf16 %v326
  %v455 = vunpack.c.l.bf16 %v327
  %v456 = vunpack.c.l.bf16 %v328
  %v457 = vunpack.c.l.bf16 %v329
  %v458 = vunpack.c.l.bf16 %v330
  %v459 = vunpack.c.l.bf16 %v331
  %v460 = vunpack.c.l.bf16 %v332
  %v461 = vunpack.c.l.bf16 %v333
  %v462 = vunpack.c.l.bf16 %v334
  %v463 = vunpack.c.l.bf16 %v335
  %v464 = vunpack.c.l.bf16 %v336
  %v465 = vunpack.c.l.bf16 %v337
  %v466 = vunpack.c.l.bf16 %v338
  %v467 = vunpack.c.l.bf16 %v339
  %v468 = vunpack.c.l.bf16 %v340
  %v469 = vunpack.c.l.bf16 %v341
  %v470 = vunpack.c.l.bf16 %v342
  %v471 = vunpack.c.l.bf16 %v343
  %v472 = vunpack.c.l.bf16 %v344
  %v473 = vunpack.c.l.bf16 %v345
  %v474 = vunpack.c.l.bf16 %v346
  %v475 = vunpack.c.l.bf16 %v347
  %v476 = vunpack.c.l.bf16 %v348
  %v477 = vunpack.c.l.bf16 %v349
  %v478 = vunpack.c.l.bf16 %v350
  %v479 = vunpack.c.l.bf16 %v351
  %v480 = vunpack.c.l.bf16 %v352
  %v481 = vunpack.c.l.bf16 %v353
  %v482 = vunpack.c.l.bf16 %v354
  %v483 = vunpack.c.l.bf16 %v355
  %v484 = vunpack.c.l.bf16 %v356
  %v485 = vunpack.c.l.bf16 %v357
  %v486 = vunpack.c.l.bf16 %v358
  %v487 = vunpack.c.l.bf16 %v359
  %v488 = vunpack.c.l.bf16 %v360
  %v489 = vunpack.c.l.bf16 %v361
  %v490 = vunpack.c.l.bf16 %v362
  %v491 = vunpack.c.l.bf16 %v363
  %v492 = vunpack.c.l.bf16 %v364
  %v493 = vunpack.c.l.bf16 %v365
  %v494 = vunpack.c.l.bf16 %v366
  %v495 = vunpack.c.l.bf16 %v367
  %v496 = vunpack.c.l.bf16 %v368
  %v497 = vunpack.c.l.bf16 %v369
  %v498 = vunpack.c.l.bf16 %v370
  %v499 = vunpack.c.l.bf16 %v371
  %v500 = vunpack.c.l.bf16 %v372
  %v501 = vunpack.c.l.bf16 %v373
  %v502 = vunpack.c.l.bf16 %v374
  %v503 = vunpack.c.l.bf16 %v375
  %v504 = vunpack.c.l.bf16 %v376
  %v505 = vunpack.c.l.bf16 %v377
  %v506 = vunpack.c.l.bf16 %v378
  %v507 = vunpack.c.l.bf16 %v379
  %v508 = vunpack.c.l.bf16 %v380
  %v509 = vunpack.c.l.bf16 %v381
  %v510 = vunpack.c.l.bf16 %v382
  %v511 = vunpack.c.l.bf16 %v383
  %v512 = vunpack.c.l.bf16 %v384
  %v513 = vunpack.c.l.bf16 %v385
  %v514 = vunpack.c.l.bf16 %v386
  %v515 = vunpack.c.l.bf16 %v387
  %v516 = vunpack.c.l.bf16 %v388
  %v517 = vunpack.c.l.bf16 %v389
  %v518 = vunpack.c.l.bf16 %v390
  %v519 = vunpack.c.l.bf16 %v391
  %v520 = vunpack.c.l.bf16 %v392
  %v521 = vunpack.c.l.bf16 %v393
  %v522 = vunpack.c.l.bf16 %v394
  %v523 = vunpack.c.l.bf16 %v395
  %v524 = vunpack.c.l.bf16 %v396
  %v525 = vunpack.c.l.bf16 %v397
  %v526 = vunpack.c.l.bf16 %v398
  %v527 = vunpack.c.l.bf16 %v399
  %s528 = scalar_lea.vmem %s1, 2
  %v529 = vld [vmem:[%s528] sm:$0x3]
  %vm530 = vcmask 15360
  %v532 = vsel %vm530, %v400, 0
  %v535 = vsel %vm530, %v401, 0
  %v538 = vsel %vm530, %v402, 0
  %v541 = vsel %vm530, %v403, 0
  %v544 = vsel %vm530, %v404, 0
  %v547 = vsel %vm530, %v405, 0
  %v550 = vsel %vm530, %v406, 0
  %v553 = vsel %vm530, %v407, 0
  %v556 = vsel %vm530, %v408, 0
  %v559 = vsel %vm530, %v409, 0
  %v562 = vsel %vm530, %v410, 0
  %v565 = vsel %vm530, %v411, 0
  %v568 = vsel %vm530, %v412, 0
  %v571 = vsel %vm530, %v413, 0
  %v574 = vsel %vm530, %v414, 0
  %v577 = vsel %vm530, %v415, 0
  %v580 = vsel %vm530, %v416, 0
  %v583 = vsel %vm530, %v417, 0
  %v586 = vsel %vm530, %v418, 0
  %v589 = vsel %vm530, %v419, 0
  %v592 = vsel %vm530, %v420, 0
  %v595 = vsel %vm530, %v421, 0
  %v598 = vsel %vm530, %v422, 0
  %v601 = vsel %vm530, %v423, 0
  %v604 = vsel %vm530, %v424, 0
  %v607 = vsel %vm530, %v425, 0
  %v610 = vsel %vm530, %v426, 0
  %v613 = vsel %vm530, %v427, 0
  %v616 = vsel %vm530, %v428, 0
  %v619 = vsel %vm530, %v429, 0
  %v622 = vsel %vm530, %v430, 0
  %v625 = vsel %vm530, %v431, 0
  %v628 = vsel %vm530, %v432, 0
  %v631 = vsel %vm530, %v433, 0
  %v634 = vsel %vm530, %v434, 0
  %v637 = vsel %vm530, %v435, 0
  %v640 = vsel %vm530, %v436, 0
  %v643 = vsel %vm530, %v437, 0
  %v646 = vsel %vm530, %v438, 0
  %v649 = vsel %vm530, %v439, 0
  %v652 = vsel %vm530, %v440, 0
  %v655 = vsel %vm530, %v441, 0
  %v658 = vsel %vm530, %v442, 0
  %v661 = vsel %vm530, %v443, 0
  %v664 = vsel %vm530, %v444, 0
  %v667 = vsel %vm530, %v445, 0
  %v670 = vsel %vm530, %v446, 0
  %v673 = vsel %vm530, %v447, 0
  %v676 = vsel %vm530, %v448, 0
  %v679 = vsel %vm530, %v449, 0
  %v682 = vsel %vm530, %v450, 0
  %v685 = vsel %vm530, %v451, 0
  %v688 = vsel %vm530, %v452, 0
  %v691 = vsel %vm530, %v453, 0
  %v694 = vsel %vm530, %v454, 0
  %v697 = vsel %vm530, %v455, 0
  %v700 = vsel %vm530, %v456, 0
  %v703 = vsel %vm530, %v457, 0
  %v706 = vsel %vm530, %v458, 0
  %v709 = vsel %vm530, %v459, 0
  %v712 = vsel %vm530, %v460, 0
  %v715 = vsel %vm530, %v461, 0
  %v718 = vsel %vm530, %v462, 0
  %v721 = vsel %vm530, %v463, 0
  %v724 = vsel %vm530, %v464, 0
  %v727 = vsel %vm530, %v465, 0
  %v730 = vsel %vm530, %v466, 0
  %v733 = vsel %vm530, %v467, 0
  %v736 = vsel %vm530, %v468, 0
  %v739 = vsel %vm530, %v469, 0
  %v742 = vsel %vm530, %v470, 0
  %v745 = vsel %vm530, %v471, 0
  %v748 = vsel %vm530, %v472, 0
  %v751 = vsel %vm530, %v473, 0
  %v754 = vsel %vm530, %v474, 0
  %v757 = vsel %vm530, %v475, 0
  %v760 = vsel %vm530, %v476, 0
  %v763 = vsel %vm530, %v477, 0
  %v766 = vsel %vm530, %v478, 0
  %v769 = vsel %vm530, %v479, 0
  %v772 = vsel %vm530, %v480, 0
  %v775 = vsel %vm530, %v481, 0
  %v778 = vsel %vm530, %v482, 0
  %v781 = vsel %vm530, %v483, 0
  %v784 = vsel %vm530, %v484, 0
  %v787 = vsel %vm530, %v485, 0
  %v790 = vsel %vm530, %v486, 0
  %v793 = vsel %vm530, %v487, 0
  %v796 = vsel %vm530, %v488, 0
  %v799 = vsel %vm530, %v489, 0
  %v802 = vsel %vm530, %v490, 0
  %v805 = vsel %vm530, %v491, 0
  %v808 = vsel %vm530, %v492, 0
  %v811 = vsel %vm530, %v493, 0
  %v814 = vsel %vm530, %v494, 0
  %v817 = vsel %vm530, %v495, 0
  %v820 = vsel %vm530, %v496, 0
  %v823 = vsel %vm530, %v497, 0
  %v826 = vsel %vm530, %v498, 0
  %v829 = vsel %vm530, %v499, 0
  %v832 = vsel %vm530, %v500, 0
  %v835 = vsel %vm530, %v501, 0
  %v838 = vsel %vm530, %v502, 0
  %v841 = vsel %vm530, %v503, 0
  %v844 = vsel %vm530, %v504, 0
  %v847 = vsel %vm530, %v505, 0
  %v850 = vsel %vm530, %v506, 0
  %v853 = vsel %vm530, %v507, 0
  %v856 = vsel %vm530, %v508, 0
  %v859 = vsel %vm530, %v509, 0
  %v862 = vsel %vm530, %v510, 0
  %v865 = vsel %vm530, %v511, 0
  %v868 = vsel %vm530, %v512, 0
  %v871 = vsel %vm530, %v513, 0
  %v874 = vsel %vm530, %v514, 0
  %v877 = vsel %vm530, %v515, 0
  %v880 = vsel %vm530, %v516, 0
  %v883 = vsel %vm530, %v517, 0
  %v886 = vsel %vm530, %v518, 0
  %v889 = vsel %vm530, %v519, 0
  %v892 = vsel %vm530, %v520, 0
  %v895 = vsel %vm530, %v521, 0
  %v898 = vsel %vm530, %v522, 0
  %v901 = vsel %vm530, %v523, 0
  %v904 = vsel %vm530, %v524, 0
  %v907 = vsel %vm530, %v525, 0
  %v910 = vsel %vm530, %v526, 0
  %v913 = vsel %vm530, %v527, 0
  %vm915 = vcmask 1041408
  %v917 = vsel %vm915, %v529, 0
  %919 = vmatprep.subr.mxu0 0.0
  %920 = vmatpush1.msra.mxu0 %v917
  %921 = vmatprep.subr.mxu0 0.0
  %922 = vmatpush1.msra.mxu0 0.0
  %923 = vmatprep.subr.mxu0 0.0
  %924 = vmatpush1.msra.mxu0 0.0
  %925 = vmatprep.subr.mxu0 0.0
  %926 = vmatpush1.msra.mxu0 0.0
  %927 = vmatprep.subr.mxu0 0.0
  %928 = vmatpush1.msra.mxu0 0.0
  %929 = vmatprep.subr.mxu0 0.0
  %930 = vmatpush1.msra.mxu0 0.0
  %931 = vmatprep.subr.mxu0 0.0
  %932 = vmatpush1.msra.mxu0 0.0
  %933 = vmatprep.subr.mxu0 0.0
  %934 = vmatpush1.msra.mxu0 0.0
  %935 = vmatprep.subr.mxu0 0.0
  %936 = vmatpush1.msra.mxu0 0.0
  %937 = vmatprep.subr.mxu0 0.0
  %938 = vmatpush1.msra.mxu0 0.0
  %939 = vmatprep.subr.mxu0 0.0
  %940 = vmatpush1.msra.mxu0 0.0
  %941 = vmatprep.subr.mxu0 0.0
  %942 = vmatpush1.msra.mxu0 0.0
  %943 = vmatprep.subr.mxu0 0.0
  %944 = vmatpush1.msra.mxu0 0.0
  %945 = vmatprep.subr.mxu0 0.0
  %946 = vmatpush1.msra.mxu0 0.0
  %947 = vmatprep.subr.mxu0 0.0
  %948 = vmatpush1.msra.mxu0 0.0
  %949 = vmatprep.subr.mxu0 0.0
  %950 = vmatpush1.msra.mxu0 0.0
  %951 = vmatprep.subr.mxu0 0.0
  %952 = vmatpush1.msra.mxu0 0.0
  %953 = vmatprep.subr.mxu0 0.0
  %954 = vmatpush1.msra.mxu0 0.0
  %955 = vmatprep.subr.mxu0 0.0
  %956 = vmatpush1.msra.mxu0 0.0
  %957 = vmatprep.subr.mxu0 0.0
  %958 = vmatpush1.msra.mxu0 0.0
  %959 = vmatprep.subr.mxu0 0.0
  %960 = vmatpush1.msra.mxu0 0.0
  %961 = vmatprep.subr.mxu0 0.0
  %962 = vmatpush1.msra.mxu0 0.0
  %963 = vmatprep.subr.mxu0 0.0
  %964 = vmatpush1.msra.mxu0 0.0
  %965 = vmatprep.subr.mxu0 0.0
  %966 = vmatpush1.msra.mxu0 0.0
  %967 = vmatprep.subr.mxu0 0.0
  %968 = vmatpush1.msra.mxu0 0.0
  %969 = vmatprep.subr.mxu0 0.0
  %970 = vmatpush1.msra.mxu0 0.0
  %971 = vmatprep.subr.mxu0 0.0
  %972 = vmatpush1.msra.mxu0 0.0
  %973 = vmatprep.subr.mxu0 0.0
  %974 = vmatpush1.msra.mxu0 0.0
  %975 = vmatprep.subr.mxu0 0.0
  %976 = vmatpush1.msra.mxu0 0.0
  %977 = vmatprep.subr.mxu0 0.0
  %978 = vmatpush1.msra.mxu0 0.0
  %979 = vmatprep.subr.mxu0 0.0
  %980 = vmatpush1.msra.mxu0 0.0
  %981 = vmatprep.subr.mxu0 0.0
  %982 = vmatpush1.msra.mxu0 0.0
  %983 = vmatprep.mubr.f32.mxu0 0.0
  %984 = vmatmul.mubr.f32.gmra.mrb[0].mxu0 %v532
  %v985 = vpop.f32.mrb[0].mxu0
  %v986 = vadd.f32 0.0, %v985
  %v987 = vpop.f32.mrb[0].mxu0
  %988 = vmatprep.mubr.f32.mxu0 0.0
  %989 = vmatmul.mubr.f32.gmra.mrb[0].mxu0 %v535
  %v990 = vpop.f32.mrb[0].mxu0
  %v991 = vadd.f32 0.0, %v990
  %v992 = vpop.f32.mrb[0].mxu0
  %993 = vmatprep.mubr.f32.mxu0 0.0
  %994 = vmatmul.mubr.f32.gmra.mrb[0].mxu0 %v538
  %v995 = vpop.f32.mrb[0].mxu0
  %v996 = vadd.f32 0.0, %v995
  %v997 = vpop.f32.mrb[0].mxu0
  %998 = vmatprep.mubr.f32.mxu0 0.0
  %999 = vmatmul.mubr.f32.gmra.mrb[0].mxu0 %v541
  %v1000 = vpop.f32.mrb[0].mxu0
  %v1001 = vadd.f32 0.0, %v1000
  %v1002 = vpop.f32.mrb[0].mxu0
  %1003 = vmatprep.mubr.f32.mxu0 0.0
  %1004 = vmatmul.mubr.f32.gmra.mrb[0].mxu0 %v544
  %v1005 = vpop.f32.mrb[0].mxu0
  %v1006 = vadd.f32 0.0, %v1005
  %v1007 = vpop.f32.mrb[0].mxu0
  %1008 = vmatprep.mubr.f32.mxu0 0.0
  %1009 = vmatmul.mubr.f32.gmra.mrb[0].mxu0 %v547
  %v1010 = vpop.f32.mrb[0].mxu0
  %v1011 = vadd.f32 0.0, %v1010
  %v1012 = vpop.f32.mrb[0].mxu0
  %1013 = vmatprep.mubr.f32.mxu0 0.0
  %1014 = vmatmul.mubr.f32.gmra.mrb[0].mxu0 %v550
  %v1015 = vpop.f32.mrb[0].mxu0
  %v1016 = vadd.f32 0.0, %v1015
  %v1017 = vpop.f32.mrb[0].mxu0
  %1018 = vmatprep.mubr.f32.mxu0 0.0
  %1019 = vmatmul.mubr.f32.gmra.mrb[0].mxu0 %v553
  %v1020 = vpop.f32.mrb[0].mxu0
  %v1021 = vadd.f32 0.0, %v1020
  %v1022 = vpop.f32.mrb[0].mxu0
  %1023 = vmatprep.mubr.f32.mxu0 0.0
  %1024 = vmatmul.mubr.f32.gmra.mrb[0].mxu0 %v556
  %v1025 = vpop.f32.mrb[0].mxu0
  %v1026 = vadd.f32 0.0, %v1025
  %v1027 = vpop.f32.mrb[0].mxu0
  %1028 = vmatprep.mubr.f32.mxu0 0.0
  %1029 = vmatmul.mubr.f32.gmra.mrb[0].mxu0 %v559
  %v1030 = vpop.f32.mrb[0].mxu0
  %v1031 = vadd.f32 0.0, %v1030
  %v1032 = vpop.f32.mrb[0].mxu0
  %1033 = vmatprep.mubr.f32.mxu0 0.0
  %1034 = vmatmul.mubr.f32.gmra.mrb[0].mxu0 %v562
  %v1035 = vpop.f32.mrb[0].mxu0
  %v1036 = vadd.f32 0.0, %v1035
  %v1037 = vpop.f32.mrb[0].mxu0
  %1038 = vmatprep.mubr.f32.mxu0 0.0
  %1039 = vmatmul.mubr.f32.gmra.mrb[0].mxu0 %v565
  %v1040 = vpop.f32.mrb[0].mxu0
  %v1041 = vadd.f32 0.0, %v1040
  %v1042 = vpop.f32.mrb[0].mxu0
  %1043 = vmatprep.mubr.f32.mxu0 0.0
  %1044 = vmatmul.mubr.f32.gmra.mrb[0].mxu0 %v568
  %v1045 = vpop.f32.mrb[0].mxu0
  %v1046 = vadd.f32 0.0, %v1045
  %v1047 = vpop.f32.mrb[0].mxu0
  %1048 = vmatprep.mubr.f32.mxu0 0.0
  %1049 = vmatmul.mubr.f32.gmra.mrb[0].mxu0 %v571
  %v1050 = vpop.f32.mrb[0].mxu0
  %v1051 = vadd.f32 0.0, %v1050
  %v1052 = vpop.f32.mrb[0].mxu0
  %1053 = vmatprep.mubr.f32.mxu0 0.0
  %1054 = vmatmul.mubr.f32.gmra.mrb[0].mxu0 %v574
  %v1055 = vpop.f32.mrb[0].mxu0
  %v1056 = vadd.f32 0.0, %v1055
  %v1057 = vpop.f32.mrb[0].mxu0
  %1058 = vmatprep.mubr.f32.mxu0 0.0
  %1059 = vmatmul.mubr.f32.gmra.mrb[0].mxu0 %v577
  %v1060 = vpop.f32.mrb[0].mxu0
  %v1061 = vadd.f32 0.0, %v1060
  %v1062 = vpop.f32.mrb[0].mxu0
  %1063 = vmatprep.mubr.f32.mxu0 0.0
  %1064 = vmatmul.mubr.f32.gmra.mrb[0].mxu0 %v580
  %v1065 = vpop.f32.mrb[0].mxu0
  %v1066 = vadd.f32 0.0, %v1065
  %v1067 = vpop.f32.mrb[0].mxu0
  %1068 = vmatprep.mubr.f32.mxu0 0.0
  %1069 = vmatmul.mubr.f32.gmra.mrb[0].mxu0 %v583
  %v1070 = vpop.f32.mrb[0].mxu0
  %v1071 = vadd.f32 0.0, %v1070
  %v1072 = vpop.f32.mrb[0].mxu0
  %1073 = vmatprep.mubr.f32.mxu0 0.0
  %1074 = vmatmul.mubr.f32.gmra.mrb[0].mxu0 %v586
  %v1075 = vpop.f32.mrb[0].mxu0
  %v1076 = vadd.f32 0.0, %v1075
  %v1077 = vpop.f32.mrb[0].mxu0
  %1078 = vmatprep.mubr.f32.mxu0 0.0
  %1079 = vmatmul.mubr.f32.gmra.mrb[0].mxu0 %v589
  %v1080 = vpop.f32.mrb[0].mxu0
  %v1081 = vadd.f32 0.0, %v1080
  %v1082 = vpop.f32.mrb[0].mxu0
  %1083 = vmatprep.mubr.f32.mxu0 0.0
  %1084 = vmatmul.mubr.f32.gmra.mrb[0].mxu0 %v592
  %v1085 = vpop.f32.mrb[0].mxu0
  %v1086 = vadd.f32 0.0, %v1085
  %v1087 = vpop.f32.mrb[0].mxu0
  %1088 = vmatprep.mubr.f32.mxu0 0.0
  %1089 = vmatmul.mubr.f32.gmra.mrb[0].mxu0 %v595
  %v1090 = vpop.f32.mrb[0].mxu0
  %v1091 = vadd.f32 0.0, %v1090
  %v1092 = vpop.f32.mrb[0].mxu0
  %1093 = vmatprep.mubr.f32.mxu0 0.0
  %1094 = vmatmul.mubr.f32.gmra.mrb[0].mxu0 %v598
  %v1095 = vpop.f32.mrb[0].mxu0
  %v1096 = vadd.f32 0.0, %v1095
  %v1097 = vpop.f32.mrb[0].mxu0
  %1098 = vmatprep.mubr.f32.mxu0 0.0
  %1099 = vmatmul.mubr.f32.gmra.mrb[0].mxu0 %v601
  %v1100 = vpop.f32.mrb[0].mxu0
  %v1101 = vadd.f32 0.0, %v1100
  %v1102 = vpop.f32.mrb[0].mxu0
  %1103 = vmatprep.mubr.f32.mxu0 0.0
  %1104 = vmatmul.mubr.f32.gmra.mrb[0].mxu0 %v604
  %v1105 = vpop.f32.mrb[0].mxu0
  %v1106 = vadd.f32 0.0, %v1105
  %v1107 = vpop.f32.mrb[0].mxu0
  %1108 = vmatprep.mubr.f32.mxu0 0.0
  %1109 = vmatmul.mubr.f32.gmra.mrb[0].mxu0 %v607
  %v1110 = vpop.f32.mrb[0].mxu0
  %v1111 = vadd.f32 0.0, %v1110
  %v1112 = vpop.f32.mrb[0].mxu0
  %1113 = vmatprep.mubr.f32.mxu0 0.0
  %1114 = vmatmul.mubr.f32.gmra.mrb[0].mxu0 %v610
  %v1115 = vpop.f32.mrb[0].mxu0
  %v1116 = vadd.f32 0.0, %v1115
  %v1117 = vpop.f32.mrb[0].mxu0
  %1118 = vmatprep.mubr.f32.mxu0 0.0
  %1119 = vmatmul.mubr.f32.gmra.mrb[0].mxu0 %v613
  %v1120 = vpop.f32.mrb[0].mxu0
  %v1121 = vadd.f32 0.0, %v1120
  %v1122 = vpop.f32.mrb[0].mxu0
  %1123 = vmatprep.mubr.f32.mxu0 0.0
  %1124 = vmatmul.mubr.f32.gmra.mrb[0].mxu0 %v616
  %v1125 = vpop.f32.mrb[0].mxu0
  %v1126 = vadd.f32 0.0, %v1125
  %v1127 = vpop.f32.mrb[0].mxu0
  %1128 = vmatprep.mubr.f32.mxu0 0.0
  %1129 = vmatmul.mubr.f32.gmra.mrb[0].mxu0 %v619
  %v1130 = vpop.f32.mrb[0].mxu0
  %v1131 = vadd.f32 0.0, %v1130
  %v1132 = vpop.f32.mrb[0].mxu0
  %1133 = vmatprep.mubr.f32.mxu0 0.0
  %1134 = vmatmul.mubr.f32.gmra.mrb[0].mxu0 %v622
  %v1135 = vpop.f32.mrb[0].mxu0
  %v1136 = vadd.f32 0.0, %v1135
  %v1137 = vpop.f32.mrb[0].mxu0
  %1138 = vmatprep.mubr.f32.mxu0 0.0
  %1139 = vmatmul.mubr.f32.gmra.mrb[0].mxu0 %v625
  %v1140 = vpop.f32.mrb[0].mxu0
  %v1141 = vadd.f32 0.0, %v1140
  %v1142 = vpop.f32.mrb[0].mxu0
  %1143 = vmatprep.mubr.f32.mxu0 0.0
  %1144 = vmatmul.mubr.f32.gmra.mrb[0].mxu0 %v628
  %v1145 = vpop.f32.mrb[0].mxu0
  %v1146 = vadd.f32 0.0, %v1145
  %v1147 = vpop.f32.mrb[0].mxu0
  %1148 = vmatprep.mubr.f32.mxu0 0.0
  %1149 = vmatmul.mubr.f32.gmra.mrb[0].mxu0 %v631
  %v1150 = vpop.f32.mrb[0].mxu0
  %v1151 = vadd.f32 0.0, %v1150
  %v1152 = vpop.f32.mrb[0].mxu0
  %1153 = vmatprep.mubr.f32.mxu0 0.0
  %1154 = vmatmul.mubr.f32.gmra.mrb[0].mxu0 %v634
  %v1155 = vpop.f32.mrb[0].mxu0
  %v1156 = vadd.f32 0.0, %v1155
  %v1157 = vpop.f32.mrb[0].mxu0
  %1158 = vmatprep.mubr.f32.mxu0 0.0
  %1159 = vmatmul.mubr.f32.gmra.mrb[0].mxu0 %v637
  %v1160 = vpop.f32.mrb[0].mxu0
  %v1161 = vadd.f32 0.0, %v1160
  %v1162 = vpop.f32.mrb[0].mxu0
  %1163 = vmatprep.mubr.f32.mxu0 0.0
  %1164 = vmatmul.mubr.f32.gmra.mrb[0].mxu0 %v640
  %v1165 = vpop.f32.mrb[0].mxu0
  %v1166 = vadd.f32 0.0, %v1165
  %v1167 = vpop.f32.mrb[0].mxu0
  %1168 = vmatprep.mubr.f32.mxu0 0.0
  %1169 = vmatmul.mubr.f32.gmra.mrb[0].mxu0 %v643
  %v1170 = vpop.f32.mrb[0].mxu0
  %v1171 = vadd.f32 0.0, %v1170
  %v1172 = vpop.f32.mrb[0].mxu0
  %1173 = vmatprep.mubr.f32.mxu0 0.0
  %1174 = vmatmul.mubr.f32.gmra.mrb[0].mxu0 %v646
  %v1175 = vpop.f32.mrb[0].mxu0
  %v1176 = vadd.f32 0.0, %v1175
  %v1177 = vpop.f32.mrb[0].mxu0
  %1178 = vmatprep.mubr.f32.mxu0 0.0
  %1179 = vmatmul.mubr.f32.gmra.mrb[0].mxu0 %v649
  %v1180 = vpop.f32.mrb[0].mxu0
  %v1181 = vadd.f32 0.0, %v1180
  %v1182 = vpop.f32.mrb[0].mxu0
  %1183 = vmatprep.mubr.f32.mxu0 0.0
  %1184 = vmatmul.mubr.f32.gmra.mrb[0].mxu0 %v652
  %v1185 = vpop.f32.mrb[0].mxu0
  %v1186 = vadd.f32 0.0, %v1185
  %v1187 = vpop.f32.mrb[0].mxu0
  %1188 = vmatprep.mubr.f32.mxu0 0.0
  %1189 = vmatmul.mubr.f32.gmra.mrb[0].mxu0 %v655
  %v1190 = vpop.f32.mrb[0].mxu0
  %v1191 = vadd.f32 0.0, %v1190
  %v1192 = vpop.f32.mrb[0].mxu0
  %1193 = vmatprep.mubr.f32.mxu0 0.0
  %1194 = vmatmul.mubr.f32.gmra.mrb[0].mxu0 %v658
  %v1195 = vpop.f32.mrb[0].mxu0
  %v1196 = vadd.f32 0.0, %v1195
  %v1197 = vpop.f32.mrb[0].mxu0
  %1198 = vmatprep.mubr.f32.mxu0 0.0
  %1199 = vmatmul.mubr.f32.gmra.mrb[0].mxu0 %v661
  %v1200 = vpop.f32.mrb[0].mxu0
  %v1201 = vadd.f32 0.0, %v1200
  %v1202 = vpop.f32.mrb[0].mxu0
  %1203 = vmatprep.mubr.f32.mxu0 0.0
  %1204 = vmatmul.mubr.f32.gmra.mrb[0].mxu0 %v664
  %v1205 = vpop.f32.mrb[0].mxu0
  %v1206 = vadd.f32 0.0, %v1205
  %v1207 = vpop.f32.mrb[0].mxu0
  %1208 = vmatprep.mubr.f32.mxu0 0.0
  %1209 = vmatmul.mubr.f32.gmra.mrb[0].mxu0 %v667
  %v1210 = vpop.f32.mrb[0].mxu0
  %v1211 = vadd.f32 0.0, %v1210
  %v1212 = vpop.f32.mrb[0].mxu0
  %1213 = vmatprep.mubr.f32.mxu0 0.0
  %1214 = vmatmul.mubr.f32.gmra.mrb[0].mxu0 %v670
  %v1215 = vpop.f32.mrb[0].mxu0
  %v1216 = vadd.f32 0.0, %v1215
  %v1217 = vpop.f32.mrb[0].mxu0
  %1218 = vmatprep.mubr.f32.mxu0 0.0
  %1219 = vmatmul.mubr.f32.gmra.mrb[0].mxu0 %v673
  %v1220 = vpop.f32.mrb[0].mxu0
  %v1221 = vadd.f32 0.0, %v1220
  %v1222 = vpop.f32.mrb[0].mxu0
  %1223 = vmatprep.mubr.f32.mxu0 0.0
  %1224 = vmatmul.mubr.f32.gmra.mrb[0].mxu0 %v676
  %v1225 = vpop.f32.mrb[0].mxu0
  %v1226 = vadd.f32 0.0, %v1225
  %v1227 = vpop.f32.mrb[0].mxu0
  %1228 = vmatprep.mubr.f32.mxu0 0.0
  %1229 = vmatmul.mubr.f32.gmra.mrb[0].mxu0 %v679
  %v1230 = vpop.f32.mrb[0].mxu0
  %v1231 = vadd.f32 0.0, %v1230
  %v1232 = vpop.f32.mrb[0].mxu0
  %1233 = vmatprep.mubr.f32.mxu0 0.0
  %1234 = vmatmul.mubr.f32.gmra.mrb[0].mxu0 %v682
  %v1235 = vpop.f32.mrb[0].mxu0
  %v1236 = vadd.f32 0.0, %v1235
  %v1237 = vpop.f32.mrb[0].mxu0
  %1238 = vmatprep.mubr.f32.mxu0 0.0
  %1239 = vmatmul.mubr.f32.gmra.mrb[0].mxu0 %v685
  %v1240 = vpop.f32.mrb[0].mxu0
  %v1241 = vadd.f32 0.0, %v1240
  %v1242 = vpop.f32.mrb[0].mxu0
  %1243 = vmatprep.mubr.f32.mxu0 0.0
  %1244 = vmatmul.mubr.f32.gmra.mrb[0].mxu0 %v688
  %v1245 = vpop.f32.mrb[0].mxu0
  %v1246 = vadd.f32 0.0, %v1245
  %v1247 = vpop.f32.mrb[0].mxu0
  %1248 = vmatprep.mubr.f32.mxu0 0.0
  %1249 = vmatmul.mubr.f32.gmra.mrb[0].mxu0 %v691
  %v1250 = vpop.f32.mrb[0].mxu0
  %v1251 = vadd.f32 0.0, %v1250
  %v1252 = vpop.f32.mrb[0].mxu0
  %1253 = vmatprep.mubr.f32.mxu0 0.0
  %1254 = vmatmul.mubr.f32.gmra.mrb[0].mxu0 %v694
  %v1255 = vpop.f32.mrb[0].mxu0
  %v1256 = vadd.f32 0.0, %v1255
  %v1257 = vpop.f32.mrb[0].mxu0
  %1258 = vmatprep.mubr.f32.mxu0 0.0
  %1259 = vmatmul.mubr.f32.gmra.mrb[0].mxu0 %v697
  %v1260 = vpop.f32.mrb[0].mxu0
  %v1261 = vadd.f32 0.0, %v1260
  %v1262 = vpop.f32.mrb[0].mxu0
  %1263 = vmatprep.mubr.f32.mxu0 0.0
  %1264 = vmatmul.mubr.f32.gmra.mrb[0].mxu0 %v700
  %v1265 = vpop.f32.mrb[0].mxu0
  %v1266 = vadd.f32 0.0, %v1265
  %v1267 = vpop.f32.mrb[0].mxu0
  %1268 = vmatprep.mubr.f32.mxu0 0.0
  %1269 = vmatmul.mubr.f32.gmra.mrb[0].mxu0 %v703
  %v1270 = vpop.f32.mrb[0].mxu0
  %v1271 = vadd.f32 0.0, %v1270
  %v1272 = vpop.f32.mrb[0].mxu0
  %1273 = vmatprep.mubr.f32.mxu0 0.0
  %1274 = vmatmul.mubr.f32.gmra.mrb[0].mxu0 %v706
  %v1275 = vpop.f32.mrb[0].mxu0
  %v1276 = vadd.f32 0.0, %v1275
  %v1277 = vpop.f32.mrb[0].mxu0
  %1278 = vmatprep.mubr.f32.mxu0 0.0
  %1279 = vmatmul.mubr.f32.gmra.mrb[0].mxu0 %v709
  %v1280 = vpop.f32.mrb[0].mxu0
  %v1281 = vadd.f32 0.0, %v1280
  %v1282 = vpop.f32.mrb[0].mxu0
  %1283 = vmatprep.mubr.f32.mxu0 0.0
  %1284 = vmatmul.mubr.f32.gmra.mrb[0].mxu0 %v712
  %v1285 = vpop.f32.mrb[0].mxu0
  %v1286 = vadd.f32 0.0, %v1285
  %v1287 = vpop.f32.mrb[0].mxu0
  %1288 = vmatprep.mubr.f32.mxu0 0.0
  %1289 = vmatmul.mubr.f32.gmra.mrb[0].mxu0 %v715
  %v1290 = vpop.f32.mrb[0].mxu0
  %v1291 = vadd.f32 0.0, %v1290
  %v1292 = vpop.f32.mrb[0].mxu0
  %1293 = vmatprep.mubr.f32.mxu0 0.0
  %1294 = vmatmul.mubr.f32.gmra.mrb[0].mxu0 %v718
  %v1295 = vpop.f32.mrb[0].mxu0
  %v1296 = vadd.f32 0.0, %v1295
  %v1297 = vpop.f32.mrb[0].mxu0
  %1298 = vmatprep.mubr.f32.mxu0 0.0
  %1299 = vmatmul.mubr.f32.gmra.mrb[0].mxu0 %v721
  %v1300 = vpop.f32.mrb[0].mxu0
  %v1301 = vadd.f32 0.0, %v1300
  %v1302 = vpop.f32.mrb[0].mxu0
  %1303 = vmatprep.mubr.f32.mxu0 0.0
  %1304 = vmatmul.mubr.f32.gmra.mrb[0].mxu0 %v724
  %v1305 = vpop.f32.mrb[0].mxu0
  %v1306 = vadd.f32 0.0, %v1305
  %v1307 = vpop.f32.mrb[0].mxu0
  %1308 = vmatprep.mubr.f32.mxu0 0.0
  %1309 = vmatmul.mubr.f32.gmra.mrb[0].mxu0 %v727
  %v1310 = vpop.f32.mrb[0].mxu0
  %v1311 = vadd.f32 0.0, %v1310
  %v1312 = vpop.f32.mrb[0].mxu0
  %1313 = vmatprep.mubr.f32.mxu0 0.0
  %1314 = vmatmul.mubr.f32.gmra.mrb[0].mxu0 %v730
  %v1315 = vpop.f32.mrb[0].mxu0
  %v1316 = vadd.f32 0.0, %v1315
  %v1317 = vpop.f32.mrb[0].mxu0
  %1318 = vmatprep.mubr.f32.mxu0 0.0
  %1319 = vmatmul.mubr.f32.gmra.mrb[0].mxu0 %v733
  %v1320 = vpop.f32.mrb[0].mxu0
  %v1321 = vadd.f32 0.0, %v1320
  %v1322 = vpop.f32.mrb[0].mxu0
  %1323 = vmatprep.mubr.f32.mxu0 0.0
  %1324 = vmatmul.mubr.f32.gmra.mrb[0].mxu0 %v736
  %v1325 = vpop.f32.mrb[0].mxu0
  %v1326 = vadd.f32 0.0, %v1325
  %v1327 = vpop.f32.mrb[0].mxu0
  %1328 = vmatprep.mubr.f32.mxu0 0.0
  %1329 = vmatmul.mubr.f32.gmra.mrb[0].mxu0 %v739
  %v1330 = vpop.f32.mrb[0].mxu0
  %v1331 = vadd.f32 0.0, %v1330
  %v1332 = vpop.f32.mrb[0].mxu0
  %1333 = vmatprep.mubr.f32.mxu0 0.0
  %1334 = vmatmul.mubr.f32.gmra.mrb[0].mxu0 %v742
  %v1335 = vpop.f32.mrb[0].mxu0
  %v1336 = vadd.f32 0.0, %v1335
  %v1337 = vpop.f32.mrb[0].mxu0
  %1338 = vmatprep.mubr.f32.mxu0 0.0
  %1339 = vmatmul.mubr.f32.gmra.mrb[0].mxu0 %v745
  %v1340 = vpop.f32.mrb[0].mxu0
  %v1341 = vadd.f32 0.0, %v1340
  %v1342 = vpop.f32.mrb[0].mxu0
  %1343 = vmatprep.mubr.f32.mxu0 0.0
  %1344 = vmatmul.mubr.f32.gmra.mrb[0].mxu0 %v748
  %v1345 = vpop.f32.mrb[0].mxu0
  %v1346 = vadd.f32 0.0, %v1345
  %v1347 = vpop.f32.mrb[0].mxu0
  %1348 = vmatprep.mubr.f32.mxu0 0.0
  %1349 = vmatmul.mubr.f32.gmra.mrb[0].mxu0 %v751
  %v1350 = vpop.f32.mrb[0].mxu0
  %v1351 = vadd.f32 0.0, %v1350
  %v1352 = vpop.f32.mrb[0].mxu0
  %1353 = vmatprep.mubr.f32.mxu0 0.0
  %1354 = vmatmul.mubr.f32.gmra.mrb[0].mxu0 %v754
  %v1355 = vpop.f32.mrb[0].mxu0
  %v1356 = vadd.f32 0.0, %v1355
  %v1357 = vpop.f32.mrb[0].mxu0
  %1358 = vmatprep.mubr.f32.mxu0 0.0
  %1359 = vmatmul.mubr.f32.gmra.mrb[0].mxu0 %v757
  %v1360 = vpop.f32.mrb[0].mxu0
  %v1361 = vadd.f32 0.0, %v1360
  %v1362 = vpop.f32.mrb[0].mxu0
  %1363 = vmatprep.mubr.f32.mxu0 0.0
  %1364 = vmatmul.mubr.f32.gmra.mrb[0].mxu0 %v760
  %v1365 = vpop.f32.mrb[0].mxu0
  %v1366 = vadd.f32 0.0, %v1365
  %v1367 = vpop.f32.mrb[0].mxu0
  %1368 = vmatprep.mubr.f32.mxu0 0.0
  %1369 = vmatmul.mubr.f32.gmra.mrb[0].mxu0 %v763
  %v1370 = vpop.f32.mrb[0].mxu0
  %v1371 = vadd.f32 0.0, %v1370
  %v1372 = vpop.f32.mrb[0].mxu0
  %1373 = vmatprep.mubr.f32.mxu0 0.0
  %1374 = vmatmul.mubr.f32.gmra.mrb[0].mxu0 %v766
  %v1375 = vpop.f32.mrb[0].mxu0
  %v1376 = vadd.f32 0.0, %v1375
  %v1377 = vpop.f32.mrb[0].mxu0
  %1378 = vmatprep.mubr.f32.mxu0 0.0
  %1379 = vmatmul.mubr.f32.gmra.mrb[0].mxu0 %v769
  %v1380 = vpop.f32.mrb[0].mxu0
  %v1381 = vadd.f32 0.0, %v1380
  %v1382 = vpop.f32.mrb[0].mxu0
  %1383 = vmatprep.mubr.f32.mxu0 0.0
  %1384 = vmatmul.mubr.f32.gmra.mrb[0].mxu0 %v772
  %v1385 = vpop.f32.mrb[0].mxu0
  %v1386 = vadd.f32 0.0, %v1385
  %v1387 = vpop.f32.mrb[0].mxu0
  %1388 = vmatprep.mubr.f32.mxu0 0.0
  %1389 = vmatmul.mubr.f32.gmra.mrb[0].mxu0 %v775
  %v1390 = vpop.f32.mrb[0].mxu0
  %v1391 = vadd.f32 0.0, %v1390
  %v1392 = vpop.f32.mrb[0].mxu0
  %1393 = vmatprep.mubr.f32.mxu0 0.0
  %1394 = vmatmul.mubr.f32.gmra.mrb[0].mxu0 %v778
  %v1395 = vpop.f32.mrb[0].mxu0
  %v1396 = vadd.f32 0.0, %v1395
  %v1397 = vpop.f32.mrb[0].mxu0
  %1398 = vmatprep.mubr.f32.mxu0 0.0
  %1399 = vmatmul.mubr.f32.gmra.mrb[0].mxu0 %v781
  %v1400 = vpop.f32.mrb[0].mxu0
  %v1401 = vadd.f32 0.0, %v1400
  %v1402 = vpop.f32.mrb[0].mxu0
  %1403 = vmatprep.mubr.f32.mxu0 0.0
  %1404 = vmatmul.mubr.f32.gmra.mrb[0].mxu0 %v784
  %v1405 = vpop.f32.mrb[0].mxu0
  %v1406 = vadd.f32 0.0, %v1405
  %v1407 = vpop.f32.mrb[0].mxu0
  %1408 = vmatprep.mubr.f32.mxu0 0.0
  %1409 = vmatmul.mubr.f32.gmra.mrb[0].mxu0 %v787
  %v1410 = vpop.f32.mrb[0].mxu0
  %v1411 = vadd.f32 0.0, %v1410
  %v1412 = vpop.f32.mrb[0].mxu0
  %1413 = vmatprep.mubr.f32.mxu0 0.0
  %1414 = vmatmul.mubr.f32.gmra.mrb[0].mxu0 %v790
  %v1415 = vpop.f32.mrb[0].mxu0
  %v1416 = vadd.f32 0.0, %v1415
  %v1417 = vpop.f32.mrb[0].mxu0
  %1418 = vmatprep.mubr.f32.mxu0 0.0
  %1419 = vmatmul.mubr.f32.gmra.mrb[0].mxu0 %v793
  %v1420 = vpop.f32.mrb[0].mxu0
  %v1421 = vadd.f32 0.0, %v1420
  %v1422 = vpop.f32.mrb[0].mxu0
  %1423 = vmatprep.mubr.f32.mxu0 0.0
  %1424 = vmatmul.mubr.f32.gmra.mrb[0].mxu0 %v796
  %v1425 = vpop.f32.mrb[0].mxu0
  %v1426 = vadd.f32 0.0, %v1425
  %v1427 = vpop.f32.mrb[0].mxu0
  %1428 = vmatprep.mubr.f32.mxu0 0.0
  %1429 = vmatmul.mubr.f32.gmra.mrb[0].mxu0 %v799
  %v1430 = vpop.f32.mrb[0].mxu0
  %v1431 = vadd.f32 0.0, %v1430
  %v1432 = vpop.f32.mrb[0].mxu0
  %1433 = vmatprep.mubr.f32.mxu0 0.0
  %1434 = vmatmul.mubr.f32.gmra.mrb[0].mxu0 %v802
  %v1435 = vpop.f32.mrb[0].mxu0
  %v1436 = vadd.f32 0.0, %v1435
  %v1437 = vpop.f32.mrb[0].mxu0
  %1438 = vmatprep.mubr.f32.mxu0 0.0
  %1439 = vmatmul.mubr.f32.gmra.mrb[0].mxu0 %v805
  %v1440 = vpop.f32.mrb[0].mxu0
  %v1441 = vadd.f32 0.0, %v1440
  %v1442 = vpop.f32.mrb[0].mxu0
  %1443 = vmatprep.mubr.f32.mxu0 0.0
  %1444 = vmatmul.mubr.f32.gmra.mrb[0].mxu0 %v808
  %v1445 = vpop.f32.mrb[0].mxu0
  %v1446 = vadd.f32 0.0, %v1445
  %v1447 = vpop.f32.mrb[0].mxu0
  %1448 = vmatprep.mubr.f32.mxu0 0.0
  %1449 = vmatmul.mubr.f32.gmra.mrb[0].mxu0 %v811
  %v1450 = vpop.f32.mrb[0].mxu0
  %v1451 = vadd.f32 0.0, %v1450
  %v1452 = vpop.f32.mrb[0].mxu0
  %1453 = vmatprep.mubr.f32.mxu0 0.0
  %1454 = vmatmul.mubr.f32.gmra.mrb[0].mxu0 %v814
  %v1455 = vpop.f32.mrb[0].mxu0
  %v1456 = vadd.f32 0.0, %v1455
  %v1457 = vpop.f32.mrb[0].mxu0
  %1458 = vmatprep.mubr.f32.mxu0 0.0
  %1459 = vmatmul.mubr.f32.gmra.mrb[0].mxu0 %v817
  %v1460 = vpop.f32.mrb[0].mxu0
  %v1461 = vadd.f32 0.0, %v1460
  %v1462 = vpop.f32.mrb[0].mxu0
  %1463 = vmatprep.mubr.f32.mxu0 0.0
  %1464 = vmatmul.mubr.f32.gmra.mrb[0].mxu0 %v820
  %v1465 = vpop.f32.mrb[0].mxu0
  %v1466 = vadd.f32 0.0, %v1465
  %v1467 = vpop.f32.mrb[0].mxu0
  %1468 = vmatprep.mubr.f32.mxu0 0.0
  %1469 = vmatmul.mubr.f32.gmra.mrb[0].mxu0 %v823
  %v1470 = vpop.f32.mrb[0].mxu0
  %v1471 = vadd.f32 0.0, %v1470
  %v1472 = vpop.f32.mrb[0].mxu0
  %1473 = vmatprep.mubr.f32.mxu0 0.0
  %1474 = vmatmul.mubr.f32.gmra.mrb[0].mxu0 %v826
  %v1475 = vpop.f32.mrb[0].mxu0
  %v1476 = vadd.f32 0.0, %v1475
  %v1477 = vpop.f32.mrb[0].mxu0
  %1478 = vmatprep.mubr.f32.mxu0 0.0
  %1479 = vmatmul.mubr.f32.gmra.mrb[0].mxu0 %v829
  %v1480 = vpop.f32.mrb[0].mxu0
  %v1481 = vadd.f32 0.0, %v1480
  %v1482 = vpop.f32.mrb[0].mxu0
  %1483 = vmatprep.mubr.f32.mxu0 0.0
  %1484 = vmatmul.mubr.f32.gmra.mrb[0].mxu0 %v832
  %v1485 = vpop.f32.mrb[0].mxu0
  %v1486 = vadd.f32 0.0, %v1485
  %v1487 = vpop.f32.mrb[0].mxu0
  %1488 = vmatprep.mubr.f32.mxu0 0.0
  %1489 = vmatmul.mubr.f32.gmra.mrb[0].mxu0 %v835
  %v1490 = vpop.f32.mrb[0].mxu0
  %v1491 = vadd.f32 0.0, %v1490
  %v1492 = vpop.f32.mrb[0].mxu0
  %1493 = vmatprep.mubr.f32.mxu0 0.0
  %1494 = vmatmul.mubr.f32.gmra.mrb[0].mxu0 %v838
  %v1495 = vpop.f32.mrb[0].mxu0
  %v1496 = vadd.f32 0.0, %v1495
  %v1497 = vpop.f32.mrb[0].mxu0
  %1498 = vmatprep.mubr.f32.mxu0 0.0
  %1499 = vmatmul.mubr.f32.gmra.mrb[0].mxu0 %v841
  %v1500 = vpop.f32.mrb[0].mxu0
  %v1501 = vadd.f32 0.0, %v1500
  %v1502 = vpop.f32.mrb[0].mxu0
  %1503 = vmatprep.mubr.f32.mxu0 0.0
  %1504 = vmatmul.mubr.f32.gmra.mrb[0].mxu0 %v844
  %v1505 = vpop.f32.mrb[0].mxu0
  %v1506 = vadd.f32 0.0, %v1505
  %v1507 = vpop.f32.mrb[0].mxu0
  %1508 = vmatprep.mubr.f32.mxu0 0.0
  %1509 = vmatmul.mubr.f32.gmra.mrb[0].mxu0 %v847
  %v1510 = vpop.f32.mrb[0].mxu0
  %v1511 = vadd.f32 0.0, %v1510
  %v1512 = vpop.f32.mrb[0].mxu0
  %1513 = vmatprep.mubr.f32.mxu0 0.0
  %1514 = vmatmul.mubr.f32.gmra.mrb[0].mxu0 %v850
  %v1515 = vpop.f32.mrb[0].mxu0
  %v1516 = vadd.f32 0.0, %v1515
  %v1517 = vpop.f32.mrb[0].mxu0
  %1518 = vmatprep.mubr.f32.mxu0 0.0
  %1519 = vmatmul.mubr.f32.gmra.mrb[0].mxu0 %v853
  %v1520 = vpop.f32.mrb[0].mxu0
  %v1521 = vadd.f32 0.0, %v1520
  %v1522 = vpop.f32.mrb[0].mxu0
  %1523 = vmatprep.mubr.f32.mxu0 0.0
  %1524 = vmatmul.mubr.f32.gmra.mrb[0].mxu0 %v856
  %v1525 = vpop.f32.mrb[0].mxu0
  %v1526 = vadd.f32 0.0, %v1525
  %v1527 = vpop.f32.mrb[0].mxu0
  %1528 = vmatprep.mubr.f32.mxu0 0.0
  %1529 = vmatmul.mubr.f32.gmra.mrb[0].mxu0 %v859
  %v1530 = vpop.f32.mrb[0].mxu0
  %v1531 = vadd.f32 0.0, %v1530
  %v1532 = vpop.f32.mrb[0].mxu0
  %1533 = vmatprep.mubr.f32.mxu0 0.0
  %1534 = vmatmul.mubr.f32.gmra.mrb[0].mxu0 %v862
  %v1535 = vpop.f32.mrb[0].mxu0
  %v1536 = vadd.f32 0.0, %v1535
  %v1537 = vpop.f32.mrb[0].mxu0
  %1538 = vmatprep.mubr.f32.mxu0 0.0
  %1539 = vmatmul.mubr.f32.gmra.mrb[0].mxu0 %v865
  %v1540 = vpop.f32.mrb[0].mxu0
  %v1541 = vadd.f32 0.0, %v1540
  %v1542 = vpop.f32.mrb[0].mxu0
  %1543 = vmatprep.mubr.f32.mxu0 0.0
  %1544 = vmatmul.mubr.f32.gmra.mrb[0].mxu0 %v868
  %v1545 = vpop.f32.mrb[0].mxu0
  %v1546 = vadd.f32 0.0, %v1545
  %v1547 = vpop.f32.mrb[0].mxu0
  %1548 = vmatprep.mubr.f32.mxu0 0.0
  %1549 = vmatmul.mubr.f32.gmra.mrb[0].mxu0 %v871
  %v1550 = vpop.f32.mrb[0].mxu0
  %v1551 = vadd.f32 0.0, %v1550
  %v1552 = vpop.f32.mrb[0].mxu0
  %1553 = vmatprep.mubr.f32.mxu0 0.0
  %1554 = vmatmul.mubr.f32.gmra.mrb[0].mxu0 %v874
  %v1555 = vpop.f32.mrb[0].mxu0
  %v1556 = vadd.f32 0.0, %v1555
  %v1557 = vpop.f32.mrb[0].mxu0
  %1558 = vmatprep.mubr.f32.mxu0 0.0
  %1559 = vmatmul.mubr.f32.gmra.mrb[0].mxu0 %v877
  %v1560 = vpop.f32.mrb[0].mxu0
  %v1561 = vadd.f32 0.0, %v1560
  %v1562 = vpop.f32.mrb[0].mxu0
  %1563 = vmatprep.mubr.f32.mxu0 0.0
  %1564 = vmatmul.mubr.f32.gmra.mrb[0].mxu0 %v880
  %v1565 = vpop.f32.mrb[0].mxu0
  %v1566 = vadd.f32 0.0, %v1565
  %v1567 = vpop.f32.mrb[0].mxu0
  %1568 = vmatprep.mubr.f32.mxu0 0.0
  %1569 = vmatmul.mubr.f32.gmra.mrb[0].mxu0 %v883
  %v1570 = vpop.f32.mrb[0].mxu0
  %v1571 = vadd.f32 0.0, %v1570
  %v1572 = vpop.f32.mrb[0].mxu0
  %1573 = vmatprep.mubr.f32.mxu0 0.0
  %1574 = vmatmul.mubr.f32.gmra.mrb[0].mxu0 %v886
  %v1575 = vpop.f32.mrb[0].mxu0
  %v1576 = vadd.f32 0.0, %v1575
  %v1577 = vpop.f32.mrb[0].mxu0
  %1578 = vmatprep.mubr.f32.mxu0 0.0
  %1579 = vmatmul.mubr.f32.gmra.mrb[0].mxu0 %v889
  %v1580 = vpop.f32.mrb[0].mxu0
  %v1581 = vadd.f32 0.0, %v1580
  %v1582 = vpop.f32.mrb[0].mxu0
  %1583 = vmatprep.mubr.f32.mxu0 0.0
  %1584 = vmatmul.mubr.f32.gmra.mrb[0].mxu0 %v892
  %v1585 = vpop.f32.mrb[0].mxu0
  %v1586 = vadd.f32 0.0, %v1585
  %v1587 = vpop.f32.mrb[0].mxu0
  %1588 = vmatprep.mubr.f32.mxu0 0.0
  %1589 = vmatmul.mubr.f32.gmra.mrb[0].mxu0 %v895
  %v1590 = vpop.f32.mrb[0].mxu0
  %v1591 = vadd.f32 0.0, %v1590
  %v1592 = vpop.f32.mrb[0].mxu0
  %1593 = vmatprep.mubr.f32.mxu0 0.0
  %1594 = vmatmul.mubr.f32.gmra.mrb[0].mxu0 %v898
  %v1595 = vpop.f32.mrb[0].mxu0
  %v1596 = vadd.f32 0.0, %v1595
  %v1597 = vpop.f32.mrb[0].mxu0
  %1598 = vmatprep.mubr.f32.mxu0 0.0
  %1599 = vmatmul.mubr.f32.gmra.mrb[0].mxu0 %v901
  %v1600 = vpop.f32.mrb[0].mxu0
  %v1601 = vadd.f32 0.0, %v1600
  %v1602 = vpop.f32.mrb[0].mxu0
  %1603 = vmatprep.mubr.f32.mxu0 0.0
  %1604 = vmatmul.mubr.f32.gmra.mrb[0].mxu0 %v904
  %v1605 = vpop.f32.mrb[0].mxu0
  %v1606 = vadd.f32 0.0, %v1605
  %v1607 = vpop.f32.mrb[0].mxu0
  %1608 = vmatprep.mubr.f32.mxu0 0.0
  %1609 = vmatmul.mubr.f32.gmra.mrb[0].mxu0 %v907
  %v1610 = vpop.f32.mrb[0].mxu0
  %v1611 = vadd.f32 0.0, %v1610
  %v1612 = vpop.f32.mrb[0].mxu0
  %1613 = vmatprep.mubr.f32.mxu0 0.0
  %1614 = vmatmul.mubr.f32.gmra.mrb[0].mxu0 %v910
  %v1615 = vpop.f32.mrb[0].mxu0
  %v1616 = vadd.f32 0.0, %v1615
  %v1617 = vpop.f32.mrb[0].mxu0
  %1618 = vmatprep.mubr.f32.mxu0 0.0
  %1619 = vmatmul.mubr.f32.gmra.mrb[0].mxu0 %v913
  %v1620 = vpop.f32.mrb[0].mxu0
  %v1621 = vadd.f32 0.0, %v1620
  %v1622 = vpop.f32.mrb[0].mxu0
  %1623 = vdwg.mxu0
  %v1625 = vsel %vm530, %v142, 0
  %v1628 = vsel %vm530, %v143, 0
  %v1631 = vsel %vm530, %v144, 0
  %v1634 = vsel %vm530, %v145, 0
  %v1637 = vsel %vm530, %v146, 0
  %v1640 = vsel %vm530, %v147, 0
  %v1643 = vsel %vm530, %v148, 0
  %v1646 = vsel %vm530, %v149, 0
  %v1649 = vsel %vm530, %v150, 0
  %v1652 = vsel %vm530, %v151, 0
  %v1655 = vsel %vm530, %v152, 0
  %v1658 = vsel %vm530, %v153, 0
  %v1661 = vsel %vm530, %v154, 0
  %v1664 = vsel %vm530, %v155, 0
  %v1667 = vsel %vm530, %v156, 0
  %v1670 = vsel %vm530, %v157, 0
  %v1673 = vsel %vm530, %v158, 0
  %v1676 = vsel %vm530, %v159, 0
  %v1679 = vsel %vm530, %v160, 0
  %v1682 = vsel %vm530, %v161, 0
  %v1685 = vsel %vm530, %v162, 0
  %v1688 = vsel %vm530, %v163, 0
  %v1691 = vsel %vm530, %v164, 0
  %v1694 = vsel %vm530, %v165, 0
  %v1697 = vsel %vm530, %v166, 0
  %v1700 = vsel %vm530, %v167, 0
  %v1703 = vsel %vm530, %v168, 0
  %v1706 = vsel %vm530, %v169, 0
  %v1709 = vsel %vm530, %v170, 0
  %v1712 = vsel %vm530, %v171, 0
  %v1715 = vsel %vm530, %v172, 0
  %v1718 = vsel %vm530, %v173, 0
  %v1721 = vsel %vm530, %v174, 0
  %v1724 = vsel %vm530, %v175, 0
  %v1727 = vsel %vm530, %v176, 0
  %v1730 = vsel %vm530, %v177, 0
  %v1733 = vsel %vm530, %v178, 0
  %v1736 = vsel %vm530, %v179, 0
  %v1739 = vsel %vm530, %v180, 0
  %v1742 = vsel %vm530, %v181, 0
  %v1745 = vsel %vm530, %v182, 0
  %v1748 = vsel %vm530, %v183, 0
  %v1751 = vsel %vm530, %v184, 0
  %v1754 = vsel %vm530, %v185, 0
  %v1757 = vsel %vm530, %v186, 0
  %v1760 = vsel %vm530, %v187, 0
  %v1763 = vsel %vm530, %v188, 0
  %v1766 = vsel %vm530, %v189, 0
  %v1769 = vsel %vm530, %v190, 0
  %v1772 = vsel %vm530, %v191, 0
  %v1775 = vsel %vm530, %v192, 0
  %v1778 = vsel %vm530, %v193, 0
  %v1781 = vsel %vm530, %v194, 0
  %v1784 = vsel %vm530, %v195, 0
  %v1787 = vsel %vm530, %v196, 0
  %v1790 = vsel %vm530, %v197, 0
  %v1793 = vsel %vm530, %v198, 0
  %v1796 = vsel %vm530, %v199, 0
  %v1799 = vsel %vm530, %v200, 0
  %v1802 = vsel %vm530, %v201, 0
  %v1805 = vsel %vm530, %v202, 0
  %v1808 = vsel %vm530, %v203, 0
  %v1811 = vsel %vm530, %v204, 0
  %v1814 = vsel %vm530, %v205, 0
  %v1817 = vsel %vm530, %v206, 0
  %v1820 = vsel %vm530, %v207, 0
  %v1823 = vsel %vm530, %v208, 0
  %v1826 = vsel %vm530, %v209, 0
  %v1829 = vsel %vm530, %v210, 0
  %v1832 = vsel %vm530, %v211, 0
  %v1835 = vsel %vm530, %v212, 0
  %v1838 = vsel %vm530, %v213, 0
  %v1841 = vsel %vm530, %v214, 0
  %v1844 = vsel %vm530, %v215, 0
  %v1847 = vsel %vm530, %v216, 0
  %v1850 = vsel %vm530, %v217, 0
  %v1853 = vsel %vm530, %v218, 0
  %v1856 = vsel %vm530, %v219, 0
  %v1859 = vsel %vm530, %v220, 0
  %v1862 = vsel %vm530, %v221, 0
  %v1865 = vsel %vm530, %v222, 0
  %v1868 = vsel %vm530, %v223, 0
  %v1871 = vsel %vm530, %v224, 0
  %v1874 = vsel %vm530, %v225, 0
  %v1877 = vsel %vm530, %v226, 0
  %v1880 = vsel %vm530, %v227, 0
  %v1883 = vsel %vm530, %v228, 0
  %v1886 = vsel %vm530, %v229, 0
  %v1889 = vsel %vm530, %v230, 0
  %v1892 = vsel %vm530, %v231, 0
  %v1895 = vsel %vm530, %v232, 0
  %v1898 = vsel %vm530, %v233, 0
  %v1901 = vsel %vm530, %v234, 0
  %v1904 = vsel %vm530, %v235, 0
  %v1907 = vsel %vm530, %v236, 0
  %v1910 = vsel %vm530, %v237, 0
  %v1913 = vsel %vm530, %v238, 0
  %v1916 = vsel %vm530, %v239, 0
  %v1919 = vsel %vm530, %v240, 0
  %v1922 = vsel %vm530, %v241, 0
  %v1925 = vsel %vm530, %v242, 0
  %v1928 = vsel %vm530, %v243, 0
  %v1931 = vsel %vm530, %v244, 0
  %v1934 = vsel %vm530, %v245, 0
  %v1937 = vsel %vm530, %v246, 0
  %v1940 = vsel %vm530, %v247, 0
  %v1943 = vsel %vm530, %v248, 0
  %v1946 = vsel %vm530, %v249, 0
  %v1949 = vsel %vm530, %v250, 0
  %v1952 = vsel %vm530, %v251, 0
  %v1955 = vsel %vm530, %v252, 0
  %v1958 = vsel %vm530, %v253, 0
  %v1961 = vsel %vm530, %v254, 0
  %v1964 = vsel %vm530, %v255, 0
  %v1967 = vsel %vm530, %v256, 0
  %v1970 = vsel %vm530, %v257, 0
  %v1973 = vsel %vm530, %v258, 0
  %v1976 = vsel %vm530, %v259, 0
  %v1979 = vsel %vm530, %v260, 0
  %v1982 = vsel %vm530, %v261, 0
  %v1985 = vsel %vm530, %v262, 0
  %v1988 = vsel %vm530, %v263, 0
  %v1991 = vsel %vm530, %v264, 0
  %v1994 = vsel %vm530, %v265, 0
  %v1997 = vsel %vm530, %v266, 0
  %v2000 = vsel %vm530, %v267, 0
  %v2003 = vsel %vm530, %v268, 0
  %v2006 = vsel %vm530, %v269, 0
  %v2009 = vsel %vm915, %v270, 0
  %2011 = vmatprep.subr.mxu0 0.0
  %2012 = vmatpush1.msra.mxu0 %v2009
  %2013 = vmatprep.subr.mxu0 0.0
  %2014 = vmatpush1.msra.mxu0 0.0
  %2015 = vmatprep.subr.mxu0 0.0
  %2016 = vmatpush1.msra.mxu0 0.0
  %2017 = vmatprep.subr.mxu0 0.0
  %2018 = vmatpush1.msra.mxu0 0.0
  %2019 = vmatprep.subr.mxu0 0.0
  %2020 = vmatpush1.msra.mxu0 0.0
  %2021 = vmatprep.subr.mxu0 0.0
  %2022 = vmatpush1.msra.mxu0 0.0
  %2023 = vmatprep.subr.mxu0 0.0
  %2024 = vmatpush1.msra.mxu0 0.0
  %2025 = vmatprep.subr.mxu0 0.0
  %2026 = vmatpush1.msra.mxu0 0.0
  %2027 = vmatprep.subr.mxu0 0.0
  %2028 = vmatpush1.msra.mxu0 0.0
  %2029 = vmatprep.subr.mxu0 0.0
  %2030 = vmatpush1.msra.mxu0 0.0
  %2031 = vmatprep.subr.mxu0 0.0
  %2032 = vmatpush1.msra.mxu0 0.0
  %2033 = vmatprep.subr.mxu0 0.0
  %2034 = vmatpush1.msra.mxu0 0.0
  %2035 = vmatprep.subr.mxu0 0.0
  %2036 = vmatpush1.msra.mxu0 0.0
  %2037 = vmatprep.subr.mxu0 0.0
  %2038 = vmatpush1.msra.mxu0 0.0
  %2039 = vmatprep.subr.mxu0 0.0
  %2040 = vmatpush1.msra.mxu0 0.0
  %2041 = vmatprep.subr.mxu0 0.0
  %2042 = vmatpush1.msra.mxu0 0.0
  %2043 = vmatprep.subr.mxu0 0.0
  %2044 = vmatpush1.msra.mxu0 0.0
  %2045 = vmatprep.subr.mxu0 0.0
  %2046 = vmatpush1.msra.mxu0 0.0
  %2047 = vmatprep.subr.mxu0 0.0
  %2048 = vmatpush1.msra.mxu0 0.0
  %2049 = vmatprep.subr.mxu0 0.0
  %2050 = vmatpush1.msra.mxu0 0.0
  %2051 = vmatprep.subr.mxu0 0.0
  %2052 = vmatpush1.msra.mxu0 0.0
  %2053 = vmatprep.subr.mxu0 0.0
  %2054 = vmatpush1.msra.mxu0 0.0
  %2055 = vmatprep.subr.mxu0 0.0
  %2056 = vmatpush1.msra.mxu0 0.0
  %2057 = vmatprep.subr.mxu0 0.0
  %2058 = vmatpush1.msra.mxu0 0.0
  %2059 = vmatprep.subr.mxu0 0.0
  %2060 = vmatpush1.msra.mxu0 0.0
  %2061 = vmatprep.subr.mxu0 0.0
  %2062 = vmatpush1.msra.mxu0 0.0
  %2063 = vmatprep.subr.mxu0 0.0
  %2064 = vmatpush1.msra.mxu0 0.0
  %2065 = vmatprep.subr.mxu0 0.0
  %2066 = vmatpush1.msra.mxu0 0.0
  %2067 = vmatprep.subr.mxu0 0.0
  %2068 = vmatpush1.msra.mxu0 0.0
  %2069 = vmatprep.subr.mxu0 0.0
  %2070 = vmatpush1.msra.mxu0 0.0
  %2071 = vmatprep.subr.mxu0 0.0
  %2072 = vmatpush1.msra.mxu0 0.0
  %2073 = vmatprep.subr.mxu0 0.0
  %2074 = vmatpush1.msra.mxu0 0.0
  %2075 = vmatprep.mubr.f32.mxu0 0.0
  %2076 = vmatmul.mubr.f32.gmra.mrb[0].mxu0 %v1625
  %v2077 = vpop.f32.mrb[0].mxu0
  %v2078 = vadd.f32 %v986, %v2077
  %v2079 = vpop.f32.mrb[0].mxu0
  %2080 = vmatprep.mubr.f32.mxu0 0.0
  %2081 = vmatmul.mubr.f32.gmra.mrb[0].mxu0 %v1628
  %v2082 = vpop.f32.mrb[0].mxu0
  %v2083 = vadd.f32 %v991, %v2082
  %v2084 = vpop.f32.mrb[0].mxu0
  %2085 = vmatprep.mubr.f32.mxu0 0.0
  %2086 = vmatmul.mubr.f32.gmra.mrb[0].mxu0 %v1631
  %v2087 = vpop.f32.mrb[0].mxu0
  %v2088 = vadd.f32 %v996, %v2087
  %v2089 = vpop.f32.mrb[0].mxu0
  %2090 = vmatprep.mubr.f32.mxu0 0.0
  %2091 = vmatmul.mubr.f32.gmra.mrb[0].mxu0 %v1634
  %v2092 = vpop.f32.mrb[0].mxu0
  %v2093 = vadd.f32 %v1001, %v2092
  %v2094 = vpop.f32.mrb[0].mxu0
  %2095 = vmatprep.mubr.f32.mxu0 0.0
  %2096 = vmatmul.mubr.f32.gmra.mrb[0].mxu0 %v1637
  %v2097 = vpop.f32.mrb[0].mxu0
  %v2098 = vadd.f32 %v1006, %v2097
  %v2099 = vpop.f32.mrb[0].mxu0
  %2100 = vmatprep.mubr.f32.mxu0 0.0
  %2101 = vmatmul.mubr.f32.gmra.mrb[0].mxu0 %v1640
  %v2102 = vpop.f32.mrb[0].mxu0
  %v2103 = vadd.f32 %v1011, %v2102
  %v2104 = vpop.f32.mrb[0].mxu0
  %2105 = vmatprep.mubr.f32.mxu0 0.0
  %2106 = vmatmul.mubr.f32.gmra.mrb[0].mxu0 %v1643
  %v2107 = vpop.f32.mrb[0].mxu0
  %v2108 = vadd.f32 %v1016, %v2107
  %v2109 = vpop.f32.mrb[0].mxu0
  %2110 = vmatprep.mubr.f32.mxu0 0.0
  %2111 = vmatmul.mubr.f32.gmra.mrb[0].mxu0 %v1646
  %v2112 = vpop.f32.mrb[0].mxu0
  %v2113 = vadd.f32 %v1021, %v2112
  %v2114 = vpop.f32.mrb[0].mxu0
  %2115 = vmatprep.mubr.f32.mxu0 0.0
  %2116 = vmatmul.mubr.f32.gmra.mrb[0].mxu0 %v1649
  %v2117 = vpop.f32.mrb[0].mxu0
  %v2118 = vadd.f32 %v1026, %v2117
  %v2119 = vpop.f32.mrb[0].mxu0
  %2120 = vmatprep.mubr.f32.mxu0 0.0
  %2121 = vmatmul.mubr.f32.gmra.mrb[0].mxu0 %v1652
  %v2122 = vpop.f32.mrb[0].mxu0
  %v2123 = vadd.f32 %v1031, %v2122
  %v2124 = vpop.f32.mrb[0].mxu0
  %2125 = vmatprep.mubr.f32.mxu0 0.0
  %2126 = vmatmul.mubr.f32.gmra.mrb[0].mxu0 %v1655
  %v2127 = vpop.f32.mrb[0].mxu0
  %v2128 = vadd.f32 %v1036, %v2127
  %v2129 = vpop.f32.mrb[0].mxu0
  %2130 = vmatprep.mubr.f32.mxu0 0.0
  %2131 = vmatmul.mubr.f32.gmra.mrb[0].mxu0 %v1658
  %v2132 = vpop.f32.mrb[0].mxu0
  %v2133 = vadd.f32 %v1041, %v2132
  %v2134 = vpop.f32.mrb[0].mxu0
  %2135 = vmatprep.mubr.f32.mxu0 0.0
  %2136 = vmatmul.mubr.f32.gmra.mrb[0].mxu0 %v1661
  %v2137 = vpop.f32.mrb[0].mxu0
  %v2138 = vadd.f32 %v1046, %v2137
  %v2139 = vpop.f32.mrb[0].mxu0
  %2140 = vmatprep.mubr.f32.mxu0 0.0
  %2141 = vmatmul.mubr.f32.gmra.mrb[0].mxu0 %v1664
  %v2142 = vpop.f32.mrb[0].mxu0
  %v2143 = vadd.f32 %v1051, %v2142
  %v2144 = vpop.f32.mrb[0].mxu0
  %2145 = vmatprep.mubr.f32.mxu0 0.0
  %2146 = vmatmul.mubr.f32.gmra.mrb[0].mxu0 %v1667
  %v2147 = vpop.f32.mrb[0].mxu0
  %v2148 = vadd.f32 %v1056, %v2147
  %v2149 = vpop.f32.mrb[0].mxu0
  %2150 = vmatprep.mubr.f32.mxu0 0.0
  %2151 = vmatmul.mubr.f32.gmra.mrb[0].mxu0 %v1670
  %v2152 = vpop.f32.mrb[0].mxu0
  %v2153 = vadd.f32 %v1061, %v2152
  %v2154 = vpop.f32.mrb[0].mxu0
  %2155 = vmatprep.mubr.f32.mxu0 0.0
  %2156 = vmatmul.mubr.f32.gmra.mrb[0].mxu0 %v1673
  %v2157 = vpop.f32.mrb[0].mxu0
  %v2158 = vadd.f32 %v1066, %v2157
  %v2159 = vpop.f32.mrb[0].mxu0
  %2160 = vmatprep.mubr.f32.mxu0 0.0
  %2161 = vmatmul.mubr.f32.gmra.mrb[0].mxu0 %v1676
  %v2162 = vpop.f32.mrb[0].mxu0
  %v2163 = vadd.f32 %v1071, %v2162
  %v2164 = vpop.f32.mrb[0].mxu0
  %2165 = vmatprep.mubr.f32.mxu0 0.0
  %2166 = vmatmul.mubr.f32.gmra.mrb[0].mxu0 %v1679
  %v2167 = vpop.f32.mrb[0].mxu0
  %v2168 = vadd.f32 %v1076, %v2167
  %v2169 = vpop.f32.mrb[0].mxu0
  %2170 = vmatprep.mubr.f32.mxu0 0.0
  %2171 = vmatmul.mubr.f32.gmra.mrb[0].mxu0 %v1682
  %v2172 = vpop.f32.mrb[0].mxu0
  %v2173 = vadd.f32 %v1081, %v2172
  %v2174 = vpop.f32.mrb[0].mxu0
  %2175 = vmatprep.mubr.f32.mxu0 0.0
  %2176 = vmatmul.mubr.f32.gmra.mrb[0].mxu0 %v1685
  %v2177 = vpop.f32.mrb[0].mxu0
  %v2178 = vadd.f32 %v1086, %v2177
  %v2179 = vpop.f32.mrb[0].mxu0
  %2180 = vmatprep.mubr.f32.mxu0 0.0
  %2181 = vmatmul.mubr.f32.gmra.mrb[0].mxu0 %v1688
  %v2182 = vpop.f32.mrb[0].mxu0
  %v2183 = vadd.f32 %v1091, %v2182
  %v2184 = vpop.f32.mrb[0].mxu0
  %2185 = vmatprep.mubr.f32.mxu0 0.0
  %2186 = vmatmul.mubr.f32.gmra.mrb[0].mxu0 %v1691
  %v2187 = vpop.f32.mrb[0].mxu0
  %v2188 = vadd.f32 %v1096, %v2187
  %v2189 = vpop.f32.mrb[0].mxu0
  %2190 = vmatprep.mubr.f32.mxu0 0.0
  %2191 = vmatmul.mubr.f32.gmra.mrb[0].mxu0 %v1694
  %v2192 = vpop.f32.mrb[0].mxu0
  %v2193 = vadd.f32 %v1101, %v2192
  %v2194 = vpop.f32.mrb[0].mxu0
  %2195 = vmatprep.mubr.f32.mxu0 0.0
  %2196 = vmatmul.mubr.f32.gmra.mrb[0].mxu0 %v1697
  %v2197 = vpop.f32.mrb[0].mxu0
  %v2198 = vadd.f32 %v1106, %v2197
  %v2199 = vpop.f32.mrb[0].mxu0
  %2200 = vmatprep.mubr.f32.mxu0 0.0
  %2201 = vmatmul.mubr.f32.gmra.mrb[0].mxu0 %v1700
  %v2202 = vpop.f32.mrb[0].mxu0
  %v2203 = vadd.f32 %v1111, %v2202
  %v2204 = vpop.f32.mrb[0].mxu0
  %2205 = vmatprep.mubr.f32.mxu0 0.0
  %2206 = vmatmul.mubr.f32.gmra.mrb[0].mxu0 %v1703
  %v2207 = vpop.f32.mrb[0].mxu0
  %v2208 = vadd.f32 %v1116, %v2207
  %v2209 = vpop.f32.mrb[0].mxu0
  %2210 = vmatprep.mubr.f32.mxu0 0.0
  %2211 = vmatmul.mubr.f32.gmra.mrb[0].mxu0 %v1706
  %v2212 = vpop.f32.mrb[0].mxu0
  %v2213 = vadd.f32 %v1121, %v2212
  %v2214 = vpop.f32.mrb[0].mxu0
  %2215 = vmatprep.mubr.f32.mxu0 0.0
  %2216 = vmatmul.mubr.f32.gmra.mrb[0].mxu0 %v1709
  %v2217 = vpop.f32.mrb[0].mxu0
  %v2218 = vadd.f32 %v1126, %v2217
  %v2219 = vpop.f32.mrb[0].mxu0
  %2220 = vmatprep.mubr.f32.mxu0 0.0
  %2221 = vmatmul.mubr.f32.gmra.mrb[0].mxu0 %v1712
  %v2222 = vpop.f32.mrb[0].mxu0
  %v2223 = vadd.f32 %v1131, %v2222
  %v2224 = vpop.f32.mrb[0].mxu0
  %2225 = vmatprep.mubr.f32.mxu0 0.0
  %2226 = vmatmul.mubr.f32.gmra.mrb[0].mxu0 %v1715
  %v2227 = vpop.f32.mrb[0].mxu0
  %v2228 = vadd.f32 %v1136, %v2227
  %v2229 = vpop.f32.mrb[0].mxu0
  %2230 = vmatprep.mubr.f32.mxu0 0.0
  %2231 = vmatmul.mubr.f32.gmra.mrb[0].mxu0 %v1718
  %v2232 = vpop.f32.mrb[0].mxu0
  %v2233 = vadd.f32 %v1141, %v2232
  %v2234 = vpop.f32.mrb[0].mxu0
  %2235 = vmatprep.mubr.f32.mxu0 0.0
  %2236 = vmatmul.mubr.f32.gmra.mrb[0].mxu0 %v1721
  %v2237 = vpop.f32.mrb[0].mxu0
  %v2238 = vadd.f32 %v1146, %v2237
  %v2239 = vpop.f32.mrb[0].mxu0
  %2240 = vmatprep.mubr.f32.mxu0 0.0
  %2241 = vmatmul.mubr.f32.gmra.mrb[0].mxu0 %v1724
  %v2242 = vpop.f32.mrb[0].mxu0
  %v2243 = vadd.f32 %v1151, %v2242
  %v2244 = vpop.f32.mrb[0].mxu0
  %2245 = vmatprep.mubr.f32.mxu0 0.0
  %2246 = vmatmul.mubr.f32.gmra.mrb[0].mxu0 %v1727
  %v2247 = vpop.f32.mrb[0].mxu0
  %v2248 = vadd.f32 %v1156, %v2247
  %v2249 = vpop.f32.mrb[0].mxu0
  %2250 = vmatprep.mubr.f32.mxu0 0.0
  %2251 = vmatmul.mubr.f32.gmra.mrb[0].mxu0 %v1730
  %v2252 = vpop.f32.mrb[0].mxu0
  %v2253 = vadd.f32 %v1161, %v2252
  %v2254 = vpop.f32.mrb[0].mxu0
  %2255 = vmatprep.mubr.f32.mxu0 0.0
  %2256 = vmatmul.mubr.f32.gmra.mrb[0].mxu0 %v1733
  %v2257 = vpop.f32.mrb[0].mxu0
  %v2258 = vadd.f32 %v1166, %v2257
  %v2259 = vpop.f32.mrb[0].mxu0
  %2260 = vmatprep.mubr.f32.mxu0 0.0
  %2261 = vmatmul.mubr.f32.gmra.mrb[0].mxu0 %v1736
  %v2262 = vpop.f32.mrb[0].mxu0
  %v2263 = vadd.f32 %v1171, %v2262
  %v2264 = vpop.f32.mrb[0].mxu0
  %2265 = vmatprep.mubr.f32.mxu0 0.0
  %2266 = vmatmul.mubr.f32.gmra.mrb[0].mxu0 %v1739
  %v2267 = vpop.f32.mrb[0].mxu0
  %v2268 = vadd.f32 %v1176, %v2267
  %v2269 = vpop.f32.mrb[0].mxu0
  %2270 = vmatprep.mubr.f32.mxu0 0.0
  %2271 = vmatmul.mubr.f32.gmra.mrb[0].mxu0 %v1742
  %v2272 = vpop.f32.mrb[0].mxu0
  %v2273 = vadd.f32 %v1181, %v2272
  %v2274 = vpop.f32.mrb[0].mxu0
  %2275 = vmatprep.mubr.f32.mxu0 0.0
  %2276 = vmatmul.mubr.f32.gmra.mrb[0].mxu0 %v1745
  %v2277 = vpop.f32.mrb[0].mxu0
  %v2278 = vadd.f32 %v1186, %v2277
  %v2279 = vpop.f32.mrb[0].mxu0
  %2280 = vmatprep.mubr.f32.mxu0 0.0
  %2281 = vmatmul.mubr.f32.gmra.mrb[0].mxu0 %v1748
  %v2282 = vpop.f32.mrb[0].mxu0
  %v2283 = vadd.f32 %v1191, %v2282
  %v2284 = vpop.f32.mrb[0].mxu0
  %2285 = vmatprep.mubr.f32.mxu0 0.0
  %2286 = vmatmul.mubr.f32.gmra.mrb[0].mxu0 %v1751
  %v2287 = vpop.f32.mrb[0].mxu0
  %v2288 = vadd.f32 %v1196, %v2287
  %v2289 = vpop.f32.mrb[0].mxu0
  %2290 = vmatprep.mubr.f32.mxu0 0.0
  %2291 = vmatmul.mubr.f32.gmra.mrb[0].mxu0 %v1754
  %v2292 = vpop.f32.mrb[0].mxu0
  %v2293 = vadd.f32 %v1201, %v2292
  %v2294 = vpop.f32.mrb[0].mxu0
  %2295 = vmatprep.mubr.f32.mxu0 0.0
  %2296 = vmatmul.mubr.f32.gmra.mrb[0].mxu0 %v1757
  %v2297 = vpop.f32.mrb[0].mxu0
  %v2298 = vadd.f32 %v1206, %v2297
  %v2299 = vpop.f32.mrb[0].mxu0
  %2300 = vmatprep.mubr.f32.mxu0 0.0
  %2301 = vmatmul.mubr.f32.gmra.mrb[0].mxu0 %v1760
  %v2302 = vpop.f32.mrb[0].mxu0
  %v2303 = vadd.f32 %v1211, %v2302
  %v2304 = vpop.f32.mrb[0].mxu0
  %2305 = vmatprep.mubr.f32.mxu0 0.0
  %2306 = vmatmul.mubr.f32.gmra.mrb[0].mxu0 %v1763
  %v2307 = vpop.f32.mrb[0].mxu0
  %v2308 = vadd.f32 %v1216, %v2307
  %v2309 = vpop.f32.mrb[0].mxu0
  %2310 = vmatprep.mubr.f32.mxu0 0.0
  %2311 = vmatmul.mubr.f32.gmra.mrb[0].mxu0 %v1766
  %v2312 = vpop.f32.mrb[0].mxu0
  %v2313 = vadd.f32 %v1221, %v2312
  %v2314 = vpop.f32.mrb[0].mxu0
  %2315 = vmatprep.mubr.f32.mxu0 0.0
  %2316 = vmatmul.mubr.f32.gmra.mrb[0].mxu0 %v1769
  %v2317 = vpop.f32.mrb[0].mxu0
  %v2318 = vadd.f32 %v1226, %v2317
  %v2319 = vpop.f32.mrb[0].mxu0
  %2320 = vmatprep.mubr.f32.mxu0 0.0
  %2321 = vmatmul.mubr.f32.gmra.mrb[0].mxu0 %v1772
  %v2322 = vpop.f32.mrb[0].mxu0
  %v2323 = vadd.f32 %v1231, %v2322
  %v2324 = vpop.f32.mrb[0].mxu0
  %2325 = vmatprep.mubr.f32.mxu0 0.0
  %2326 = vmatmul.mubr.f32.gmra.mrb[0].mxu0 %v1775
  %v2327 = vpop.f32.mrb[0].mxu0
  %v2328 = vadd.f32 %v1236, %v2327
  %v2329 = vpop.f32.mrb[0].mxu0
  %2330 = vmatprep.mubr.f32.mxu0 0.0
  %2331 = vmatmul.mubr.f32.gmra.mrb[0].mxu0 %v1778
  %v2332 = vpop.f32.mrb[0].mxu0
  %v2333 = vadd.f32 %v1241, %v2332
  %v2334 = vpop.f32.mrb[0].mxu0
  %2335 = vmatprep.mubr.f32.mxu0 0.0
  %2336 = vmatmul.mubr.f32.gmra.mrb[0].mxu0 %v1781
  %v2337 = vpop.f32.mrb[0].mxu0
  %v2338 = vadd.f32 %v1246, %v2337
  %v2339 = vpop.f32.mrb[0].mxu0
  %2340 = vmatprep.mubr.f32.mxu0 0.0
  %2341 = vmatmul.mubr.f32.gmra.mrb[0].mxu0 %v1784
  %v2342 = vpop.f32.mrb[0].mxu0
  %v2343 = vadd.f32 %v1251, %v2342
  %v2344 = vpop.f32.mrb[0].mxu0
  %2345 = vmatprep.mubr.f32.mxu0 0.0
  %2346 = vmatmul.mubr.f32.gmra.mrb[0].mxu0 %v1787
  %v2347 = vpop.f32.mrb[0].mxu0
  %v2348 = vadd.f32 %v1256, %v2347
  %v2349 = vpop.f32.mrb[0].mxu0
  %2350 = vmatprep.mubr.f32.mxu0 0.0
  %2351 = vmatmul.mubr.f32.gmra.mrb[0].mxu0 %v1790
  %v2352 = vpop.f32.mrb[0].mxu0
  %v2353 = vadd.f32 %v1261, %v2352
  %v2354 = vpop.f32.mrb[0].mxu0
  %2355 = vmatprep.mubr.f32.mxu0 0.0
  %2356 = vmatmul.mubr.f32.gmra.mrb[0].mxu0 %v1793
  %v2357 = vpop.f32.mrb[0].mxu0
  %v2358 = vadd.f32 %v1266, %v2357
  %v2359 = vpop.f32.mrb[0].mxu0
  %2360 = vmatprep.mubr.f32.mxu0 0.0
  %2361 = vmatmul.mubr.f32.gmra.mrb[0].mxu0 %v1796
  %v2362 = vpop.f32.mrb[0].mxu0
  %v2363 = vadd.f32 %v1271, %v2362
  %v2364 = vpop.f32.mrb[0].mxu0
  %2365 = vmatprep.mubr.f32.mxu0 0.0
  %2366 = vmatmul.mubr.f32.gmra.mrb[0].mxu0 %v1799
  %v2367 = vpop.f32.mrb[0].mxu0
  %v2368 = vadd.f32 %v1276, %v2367
  %v2369 = vpop.f32.mrb[0].mxu0
  %2370 = vmatprep.mubr.f32.mxu0 0.0
  %2371 = vmatmul.mubr.f32.gmra.mrb[0].mxu0 %v1802
  %v2372 = vpop.f32.mrb[0].mxu0
  %v2373 = vadd.f32 %v1281, %v2372
  %v2374 = vpop.f32.mrb[0].mxu0
  %2375 = vmatprep.mubr.f32.mxu0 0.0
  %2376 = vmatmul.mubr.f32.gmra.mrb[0].mxu0 %v1805
  %v2377 = vpop.f32.mrb[0].mxu0
  %v2378 = vadd.f32 %v1286, %v2377
  %v2379 = vpop.f32.mrb[0].mxu0
  %2380 = vmatprep.mubr.f32.mxu0 0.0
  %2381 = vmatmul.mubr.f32.gmra.mrb[0].mxu0 %v1808
  %v2382 = vpop.f32.mrb[0].mxu0
  %v2383 = vadd.f32 %v1291, %v2382
  %v2384 = vpop.f32.mrb[0].mxu0
  %2385 = vmatprep.mubr.f32.mxu0 0.0
  %2386 = vmatmul.mubr.f32.gmra.mrb[0].mxu0 %v1811
  %v2387 = vpop.f32.mrb[0].mxu0
  %v2388 = vadd.f32 %v1296, %v2387
  %v2389 = vpop.f32.mrb[0].mxu0
  %2390 = vmatprep.mubr.f32.mxu0 0.0
  %2391 = vmatmul.mubr.f32.gmra.mrb[0].mxu0 %v1814
  %v2392 = vpop.f32.mrb[0].mxu0
  %v2393 = vadd.f32 %v1301, %v2392
  %v2394 = vpop.f32.mrb[0].mxu0
  %2395 = vmatprep.mubr.f32.mxu0 0.0
  %2396 = vmatmul.mubr.f32.gmra.mrb[0].mxu0 %v1817
  %v2397 = vpop.f32.mrb[0].mxu0
  %v2398 = vadd.f32 %v1306, %v2397
  %v2399 = vpop.f32.mrb[0].mxu0
  %2400 = vmatprep.mubr.f32.mxu0 0.0
  %2401 = vmatmul.mubr.f32.gmra.mrb[0].mxu0 %v1820
  %v2402 = vpop.f32.mrb[0].mxu0
  %v2403 = vadd.f32 %v1311, %v2402
  %v2404 = vpop.f32.mrb[0].mxu0
  %2405 = vmatprep.mubr.f32.mxu0 0.0
  %2406 = vmatmul.mubr.f32.gmra.mrb[0].mxu0 %v1823
  %v2407 = vpop.f32.mrb[0].mxu0
  %v2408 = vadd.f32 %v1316, %v2407
  %v2409 = vpop.f32.mrb[0].mxu0
  %2410 = vmatprep.mubr.f32.mxu0 0.0
  %2411 = vmatmul.mubr.f32.gmra.mrb[0].mxu0 %v1826
  %v2412 = vpop.f32.mrb[0].mxu0
  %v2413 = vadd.f32 %v1321, %v2412
  %v2414 = vpop.f32.mrb[0].mxu0
  %2415 = vmatprep.mubr.f32.mxu0 0.0
  %2416 = vmatmul.mubr.f32.gmra.mrb[0].mxu0 %v1829
  %v2417 = vpop.f32.mrb[0].mxu0
  %v2418 = vadd.f32 %v1326, %v2417
  %v2419 = vpop.f32.mrb[0].mxu0
  %2420 = vmatprep.mubr.f32.mxu0 0.0
  %2421 = vmatmul.mubr.f32.gmra.mrb[0].mxu0 %v1832
  %v2422 = vpop.f32.mrb[0].mxu0
  %v2423 = vadd.f32 %v1331, %v2422
  %v2424 = vpop.f32.mrb[0].mxu0
  %2425 = vmatprep.mubr.f32.mxu0 0.0
  %2426 = vmatmul.mubr.f32.gmra.mrb[0].mxu0 %v1835
  %v2427 = vpop.f32.mrb[0].mxu0
  %v2428 = vadd.f32 %v1336, %v2427
  %v2429 = vpop.f32.mrb[0].mxu0
  %2430 = vmatprep.mubr.f32.mxu0 0.0
  %2431 = vmatmul.mubr.f32.gmra.mrb[0].mxu0 %v1838
  %v2432 = vpop.f32.mrb[0].mxu0
  %v2433 = vadd.f32 %v1341, %v2432
  %v2434 = vpop.f32.mrb[0].mxu0
  %2435 = vmatprep.mubr.f32.mxu0 0.0
  %2436 = vmatmul.mubr.f32.gmra.mrb[0].mxu0 %v1841
  %v2437 = vpop.f32.mrb[0].mxu0
  %v2438 = vadd.f32 %v1346, %v2437
  %v2439 = vpop.f32.mrb[0].mxu0
  %2440 = vmatprep.mubr.f32.mxu0 0.0
  %2441 = vmatmul.mubr.f32.gmra.mrb[0].mxu0 %v1844
  %v2442 = vpop.f32.mrb[0].mxu0
  %v2443 = vadd.f32 %v1351, %v2442
  %v2444 = vpop.f32.mrb[0].mxu0
  %2445 = vmatprep.mubr.f32.mxu0 0.0
  %2446 = vmatmul.mubr.f32.gmra.mrb[0].mxu0 %v1847
  %v2447 = vpop.f32.mrb[0].mxu0
  %v2448 = vadd.f32 %v1356, %v2447
  %v2449 = vpop.f32.mrb[0].mxu0
  %2450 = vmatprep.mubr.f32.mxu0 0.0
  %2451 = vmatmul.mubr.f32.gmra.mrb[0].mxu0 %v1850
  %v2452 = vpop.f32.mrb[0].mxu0
  %v2453 = vadd.f32 %v1361, %v2452
  %v2454 = vpop.f32.mrb[0].mxu0
  %2455 = vmatprep.mubr.f32.mxu0 0.0
  %2456 = vmatmul.mubr.f32.gmra.mrb[0].mxu0 %v1853
  %v2457 = vpop.f32.mrb[0].mxu0
  %v2458 = vadd.f32 %v1366, %v2457
  %v2459 = vpop.f32.mrb[0].mxu0
  %2460 = vmatprep.mubr.f32.mxu0 0.0
  %2461 = vmatmul.mubr.f32.gmra.mrb[0].mxu0 %v1856
  %v2462 = vpop.f32.mrb[0].mxu0
  %v2463 = vadd.f32 %v1371, %v2462
  %v2464 = vpop.f32.mrb[0].mxu0
  %2465 = vmatprep.mubr.f32.mxu0 0.0
  %2466 = vmatmul.mubr.f32.gmra.mrb[0].mxu0 %v1859
  %v2467 = vpop.f32.mrb[0].mxu0
  %v2468 = vadd.f32 %v1376, %v2467
  %v2469 = vpop.f32.mrb[0].mxu0
  %2470 = vmatprep.mubr.f32.mxu0 0.0
  %2471 = vmatmul.mubr.f32.gmra.mrb[0].mxu0 %v1862
  %v2472 = vpop.f32.mrb[0].mxu0
  %v2473 = vadd.f32 %v1381, %v2472
  %v2474 = vpop.f32.mrb[0].mxu0
  %2475 = vmatprep.mubr.f32.mxu0 0.0
  %2476 = vmatmul.mubr.f32.gmra.mrb[0].mxu0 %v1865
  %v2477 = vpop.f32.mrb[0].mxu0
  %v2478 = vadd.f32 %v1386, %v2477
  %v2479 = vpop.f32.mrb[0].mxu0
  %2480 = vmatprep.mubr.f32.mxu0 0.0
  %2481 = vmatmul.mubr.f32.gmra.mrb[0].mxu0 %v1868
  %v2482 = vpop.f32.mrb[0].mxu0
  %v2483 = vadd.f32 %v1391, %v2482
  %v2484 = vpop.f32.mrb[0].mxu0
  %2485 = vmatprep.mubr.f32.mxu0 0.0
  %2486 = vmatmul.mubr.f32.gmra.mrb[0].mxu0 %v1871
  %v2487 = vpop.f32.mrb[0].mxu0
  %v2488 = vadd.f32 %v1396, %v2487
  %v2489 = vpop.f32.mrb[0].mxu0
  %2490 = vmatprep.mubr.f32.mxu0 0.0
  %2491 = vmatmul.mubr.f32.gmra.mrb[0].mxu0 %v1874
  %v2492 = vpop.f32.mrb[0].mxu0
  %v2493 = vadd.f32 %v1401, %v2492
  %v2494 = vpop.f32.mrb[0].mxu0
  %2495 = vmatprep.mubr.f32.mxu0 0.0
  %2496 = vmatmul.mubr.f32.gmra.mrb[0].mxu0 %v1877
  %v2497 = vpop.f32.mrb[0].mxu0
  %v2498 = vadd.f32 %v1406, %v2497
  %v2499 = vpop.f32.mrb[0].mxu0
  %2500 = vmatprep.mubr.f32.mxu0 0.0
  %2501 = vmatmul.mubr.f32.gmra.mrb[0].mxu0 %v1880
  %v2502 = vpop.f32.mrb[0].mxu0
  %v2503 = vadd.f32 %v1411, %v2502
  %v2504 = vpop.f32.mrb[0].mxu0
  %2505 = vmatprep.mubr.f32.mxu0 0.0
  %2506 = vmatmul.mubr.f32.gmra.mrb[0].mxu0 %v1883
  %v2507 = vpop.f32.mrb[0].mxu0
  %v2508 = vadd.f32 %v1416, %v2507
  %v2509 = vpop.f32.mrb[0].mxu0
  %2510 = vmatprep.mubr.f32.mxu0 0.0
  %2511 = vmatmul.mubr.f32.gmra.mrb[0].mxu0 %v1886
  %v2512 = vpop.f32.mrb[0].mxu0
  %v2513 = vadd.f32 %v1421, %v2512
  %v2514 = vpop.f32.mrb[0].mxu0
  %2515 = vmatprep.mubr.f32.mxu0 0.0
  %2516 = vmatmul.mubr.f32.gmra.mrb[0].mxu0 %v1889
  %v2517 = vpop.f32.mrb[0].mxu0
  %v2518 = vadd.f32 %v1426, %v2517
  %v2519 = vpop.f32.mrb[0].mxu0
  %2520 = vmatprep.mubr.f32.mxu0 0.0
  %2521 = vmatmul.mubr.f32.gmra.mrb[0].mxu0 %v1892
  %v2522 = vpop.f32.mrb[0].mxu0
  %v2523 = vadd.f32 %v1431, %v2522
  %v2524 = vpop.f32.mrb[0].mxu0
  %2525 = vmatprep.mubr.f32.mxu0 0.0
  %2526 = vmatmul.mubr.f32.gmra.mrb[0].mxu0 %v1895
  %v2527 = vpop.f32.mrb[0].mxu0
  %v2528 = vadd.f32 %v1436, %v2527
  %v2529 = vpop.f32.mrb[0].mxu0
  %2530 = vmatprep.mubr.f32.mxu0 0.0
  %2531 = vmatmul.mubr.f32.gmra.mrb[0].mxu0 %v1898
  %v2532 = vpop.f32.mrb[0].mxu0
  %v2533 = vadd.f32 %v1441, %v2532
  %v2534 = vpop.f32.mrb[0].mxu0
  %2535 = vmatprep.mubr.f32.mxu0 0.0
  %2536 = vmatmul.mubr.f32.gmra.mrb[0].mxu0 %v1901
  %v2537 = vpop.f32.mrb[0].mxu0
  %v2538 = vadd.f32 %v1446, %v2537
  %v2539 = vpop.f32.mrb[0].mxu0
  %2540 = vmatprep.mubr.f32.mxu0 0.0
  %2541 = vmatmul.mubr.f32.gmra.mrb[0].mxu0 %v1904
  %v2542 = vpop.f32.mrb[0].mxu0
  %v2543 = vadd.f32 %v1451, %v2542
  %v2544 = vpop.f32.mrb[0].mxu0
  %2545 = vmatprep.mubr.f32.mxu0 0.0
  %2546 = vmatmul.mubr.f32.gmra.mrb[0].mxu0 %v1907
  %v2547 = vpop.f32.mrb[0].mxu0
  %v2548 = vadd.f32 %v1456, %v2547
  %v2549 = vpop.f32.mrb[0].mxu0
  %2550 = vmatprep.mubr.f32.mxu0 0.0
  %2551 = vmatmul.mubr.f32.gmra.mrb[0].mxu0 %v1910
  %v2552 = vpop.f32.mrb[0].mxu0
  %v2553 = vadd.f32 %v1461, %v2552
  %v2554 = vpop.f32.mrb[0].mxu0
  %2555 = vmatprep.mubr.f32.mxu0 0.0
  %2556 = vmatmul.mubr.f32.gmra.mrb[0].mxu0 %v1913
  %v2557 = vpop.f32.mrb[0].mxu0
  %v2558 = vadd.f32 %v1466, %v2557
  %v2559 = vpop.f32.mrb[0].mxu0
  %2560 = vmatprep.mubr.f32.mxu0 0.0
  %2561 = vmatmul.mubr.f32.gmra.mrb[0].mxu0 %v1916
  %v2562 = vpop.f32.mrb[0].mxu0
  %v2563 = vadd.f32 %v1471, %v2562
  %v2564 = vpop.f32.mrb[0].mxu0
  %2565 = vmatprep.mubr.f32.mxu0 0.0
  %2566 = vmatmul.mubr.f32.gmra.mrb[0].mxu0 %v1919
  %v2567 = vpop.f32.mrb[0].mxu0
  %v2568 = vadd.f32 %v1476, %v2567
  %v2569 = vpop.f32.mrb[0].mxu0
  %2570 = vmatprep.mubr.f32.mxu0 0.0
  %2571 = vmatmul.mubr.f32.gmra.mrb[0].mxu0 %v1922
  %v2572 = vpop.f32.mrb[0].mxu0
  %v2573 = vadd.f32 %v1481, %v2572
  %v2574 = vpop.f32.mrb[0].mxu0
  %2575 = vmatprep.mubr.f32.mxu0 0.0
  %2576 = vmatmul.mubr.f32.gmra.mrb[0].mxu0 %v1925
  %v2577 = vpop.f32.mrb[0].mxu0
  %v2578 = vadd.f32 %v1486, %v2577
  %v2579 = vpop.f32.mrb[0].mxu0
  %2580 = vmatprep.mubr.f32.mxu0 0.0
  %2581 = vmatmul.mubr.f32.gmra.mrb[0].mxu0 %v1928
  %v2582 = vpop.f32.mrb[0].mxu0
  %v2583 = vadd.f32 %v1491, %v2582
  %v2584 = vpop.f32.mrb[0].mxu0
  %2585 = vmatprep.mubr.f32.mxu0 0.0
  %2586 = vmatmul.mubr.f32.gmra.mrb[0].mxu0 %v1931
  %v2587 = vpop.f32.mrb[0].mxu0
  %v2588 = vadd.f32 %v1496, %v2587
  %v2589 = vpop.f32.mrb[0].mxu0
  %2590 = vmatprep.mubr.f32.mxu0 0.0
  %2591 = vmatmul.mubr.f32.gmra.mrb[0].mxu0 %v1934
  %v2592 = vpop.f32.mrb[0].mxu0
  %v2593 = vadd.f32 %v1501, %v2592
  %v2594 = vpop.f32.mrb[0].mxu0
  %2595 = vmatprep.mubr.f32.mxu0 0.0
  %2596 = vmatmul.mubr.f32.gmra.mrb[0].mxu0 %v1937
  %v2597 = vpop.f32.mrb[0].mxu0
  %v2598 = vadd.f32 %v1506, %v2597
  %v2599 = vpop.f32.mrb[0].mxu0
  %2600 = vmatprep.mubr.f32.mxu0 0.0
  %2601 = vmatmul.mubr.f32.gmra.mrb[0].mxu0 %v1940
  %v2602 = vpop.f32.mrb[0].mxu0
  %v2603 = vadd.f32 %v1511, %v2602
  %v2604 = vpop.f32.mrb[0].mxu0
  %2605 = vmatprep.mubr.f32.mxu0 0.0
  %2606 = vmatmul.mubr.f32.gmra.mrb[0].mxu0 %v1943
  %v2607 = vpop.f32.mrb[0].mxu0
  %v2608 = vadd.f32 %v1516, %v2607
  %v2609 = vpop.f32.mrb[0].mxu0
  %2610 = vmatprep.mubr.f32.mxu0 0.0
  %2611 = vmatmul.mubr.f32.gmra.mrb[0].mxu0 %v1946
  %v2612 = vpop.f32.mrb[0].mxu0
  %v2613 = vadd.f32 %v1521, %v2612
  %v2614 = vpop.f32.mrb[0].mxu0
  %2615 = vmatprep.mubr.f32.mxu0 0.0
  %2616 = vmatmul.mubr.f32.gmra.mrb[0].mxu0 %v1949
  %v2617 = vpop.f32.mrb[0].mxu0
  %v2618 = vadd.f32 %v1526, %v2617
  %v2619 = vpop.f32.mrb[0].mxu0
  %2620 = vmatprep.mubr.f32.mxu0 0.0
  %2621 = vmatmul.mubr.f32.gmra.mrb[0].mxu0 %v1952
  %v2622 = vpop.f32.mrb[0].mxu0
  %v2623 = vadd.f32 %v1531, %v2622
  %v2624 = vpop.f32.mrb[0].mxu0
  %2625 = vmatprep.mubr.f32.mxu0 0.0
  %2626 = vmatmul.mubr.f32.gmra.mrb[0].mxu0 %v1955
  %v2627 = vpop.f32.mrb[0].mxu0
  %v2628 = vadd.f32 %v1536, %v2627
  %v2629 = vpop.f32.mrb[0].mxu0
  %2630 = vmatprep.mubr.f32.mxu0 0.0
  %2631 = vmatmul.mubr.f32.gmra.mrb[0].mxu0 %v1958
  %v2632 = vpop.f32.mrb[0].mxu0
  %v2633 = vadd.f32 %v1541, %v2632
  %v2634 = vpop.f32.mrb[0].mxu0
  %2635 = vmatprep.mubr.f32.mxu0 0.0
  %2636 = vmatmul.mubr.f32.gmra.mrb[0].mxu0 %v1961
  %v2637 = vpop.f32.mrb[0].mxu0
  %v2638 = vadd.f32 %v1546, %v2637
  %v2639 = vpop.f32.mrb[0].mxu0
  %2640 = vmatprep.mubr.f32.mxu0 0.0
  %2641 = vmatmul.mubr.f32.gmra.mrb[0].mxu0 %v1964
  %v2642 = vpop.f32.mrb[0].mxu0
  %v2643 = vadd.f32 %v1551, %v2642
  %v2644 = vpop.f32.mrb[0].mxu0
  %2645 = vmatprep.mubr.f32.mxu0 0.0
  %2646 = vmatmul.mubr.f32.gmra.mrb[0].mxu0 %v1967
  %v2647 = vpop.f32.mrb[0].mxu0
  %v2648 = vadd.f32 %v1556, %v2647
  %v2649 = vpop.f32.mrb[0].mxu0
  %2650 = vmatprep.mubr.f32.mxu0 0.0
  %2651 = vmatmul.mubr.f32.gmra.mrb[0].mxu0 %v1970
  %v2652 = vpop.f32.mrb[0].mxu0
  %v2653 = vadd.f32 %v1561, %v2652
  %v2654 = vpop.f32.mrb[0].mxu0
  %2655 = vmatprep.mubr.f32.mxu0 0.0
  %2656 = vmatmul.mubr.f32.gmra.mrb[0].mxu0 %v1973
  %v2657 = vpop.f32.mrb[0].mxu0
  %v2658 = vadd.f32 %v1566, %v2657
  %v2659 = vpop.f32.mrb[0].mxu0
  %2660 = vmatprep.mubr.f32.mxu0 0.0
  %2661 = vmatmul.mubr.f32.gmra.mrb[0].mxu0 %v1976
  %v2662 = vpop.f32.mrb[0].mxu0
  %v2663 = vadd.f32 %v1571, %v2662
  %v2664 = vpop.f32.mrb[0].mxu0
  %2665 = vmatprep.mubr.f32.mxu0 0.0
  %2666 = vmatmul.mubr.f32.gmra.mrb[0].mxu0 %v1979
  %v2667 = vpop.f32.mrb[0].mxu0
  %v2668 = vadd.f32 %v1576, %v2667
  %v2669 = vpop.f32.mrb[0].mxu0
  %2670 = vmatprep.mubr.f32.mxu0 0.0
  %2671 = vmatmul.mubr.f32.gmra.mrb[0].mxu0 %v1982
  %v2672 = vpop.f32.mrb[0].mxu0
  %v2673 = vadd.f32 %v1581, %v2672
  %v2674 = vpop.f32.mrb[0].mxu0
  %2675 = vmatprep.mubr.f32.mxu0 0.0
  %2676 = vmatmul.mubr.f32.gmra.mrb[0].mxu0 %v1985
  %v2677 = vpop.f32.mrb[0].mxu0
  %v2678 = vadd.f32 %v1586, %v2677
  %v2679 = vpop.f32.mrb[0].mxu0
  %2680 = vmatprep.mubr.f32.mxu0 0.0
  %2681 = vmatmul.mubr.f32.gmra.mrb[0].mxu0 %v1988
  %v2682 = vpop.f32.mrb[0].mxu0
  %v2683 = vadd.f32 %v1591, %v2682
  %v2684 = vpop.f32.mrb[0].mxu0
  %2685 = vmatprep.mubr.f32.mxu0 0.0
  %2686 = vmatmul.mubr.f32.gmra.mrb[0].mxu0 %v1991
  %v2687 = vpop.f32.mrb[0].mxu0
  %v2688 = vadd.f32 %v1596, %v2687
  %v2689 = vpop.f32.mrb[0].mxu0
  %2690 = vmatprep.mubr.f32.mxu0 0.0
  %2691 = vmatmul.mubr.f32.gmra.mrb[0].mxu0 %v1994
  %v2692 = vpop.f32.mrb[0].mxu0
  %v2693 = vadd.f32 %v1601, %v2692
  %v2694 = vpop.f32.mrb[0].mxu0
  %2695 = vmatprep.mubr.f32.mxu0 0.0
  %2696 = vmatmul.mubr.f32.gmra.mrb[0].mxu0 %v1997
  %v2697 = vpop.f32.mrb[0].mxu0
  %v2698 = vadd.f32 %v1606, %v2697
  %v2699 = vpop.f32.mrb[0].mxu0
  %2700 = vmatprep.mubr.f32.mxu0 0.0
  %2701 = vmatmul.mubr.f32.gmra.mrb[0].mxu0 %v2000
  %v2702 = vpop.f32.mrb[0].mxu0
  %v2703 = vadd.f32 %v1611, %v2702
  %v2704 = vpop.f32.mrb[0].mxu0
  %2705 = vmatprep.mubr.f32.mxu0 0.0
  %2706 = vmatmul.mubr.f32.gmra.mrb[0].mxu0 %v2003
  %v2707 = vpop.f32.mrb[0].mxu0
  %v2708 = vadd.f32 %v1616, %v2707
  %v2709 = vpop.f32.mrb[0].mxu0
  %2710 = vmatprep.mubr.f32.mxu0 0.0
  %2711 = vmatmul.mubr.f32.gmra.mrb[0].mxu0 %v2006
  %v2712 = vpop.f32.mrb[0].mxu0
  %v2713 = vadd.f32 %v1621, %v2712
  %v2714 = vpop.f32.mrb[0].mxu0
  %2715 = vdwg.mxu0
  %s2716 = scalar_lea.vmem %s0, 64
  %v2717 = vld [vmem:[%s2716] sm:$0xf]
  %v2718 = vld [vmem:[%s2716 + $0x8] sm:$0xf]
  %v2719 = vld [vmem:[%s2716 + $0x10] sm:$0xf]
  %v2720 = vld [vmem:[%s2716 + $0x18] sm:$0xf]
  %v2721 = vld [vmem:[%s2716 + $0x20] sm:$0xf]
  %v2722 = vld [vmem:[%s2716 + $0x28] sm:$0xf]
  %v2723 = vld [vmem:[%s2716 + $0x30] sm:$0xf]
  %v2724 = vld [vmem:[%s2716 + $0x38] sm:$0xf]
  %v2725 = vld [vmem:[%s2716 + $0x80] sm:$0xf]
  %v2726 = vld [vmem:[%s2716 + $0x88] sm:$0xf]
  %v2727 = vld [vmem:[%s2716 + $0x90] sm:$0xf]
  %v2728 = vld [vmem:[%s2716 + $0x98] sm:$0xf]
  %v2729 = vld [vmem:[%s2716 + $0xa0] sm:$0xf]
  %v2730 = vld [vmem:[%s2716 + $0xa8] sm:$0xf]
  %v2731 = vld [vmem:[%s2716 + $0xb0] sm:$0xf]
  %v2732 = vld [vmem:[%s2716 + $0xb8] sm:$0xf]
  %v2733 = vld [vmem:[%s2716 + $0x100] sm:$0xf]
  %v2734 = vld [vmem:[%s2716 + $0x108] sm:$0xf]
  %v2735 = vld [vmem:[%s2716 + $0x110] sm:$0xf]
  %v2736 = vld [vmem:[%s2716 + $0x118] sm:$0xf]
  %v2737 = vld [vmem:[%s2716 + $0x120] sm:$0xf]
  %v2738 = vld [vmem:[%s2716 + $0x128] sm:$0xf]
  %v2739 = vld [vmem:[%s2716 + $0x130] sm:$0xf]
  %v2740 = vld [vmem:[%s2716 + $0x138] sm:$0xf]
  %v2741 = vld [vmem:[%s2716 + $0x180] sm:$0xf]
  %v2742 = vld [vmem:[%s2716 + $0x188] sm:$0xf]
  %v2743 = vld [vmem:[%s2716 + $0x190] sm:$0xf]
  %v2744 = vld [vmem:[%s2716 + $0x198] sm:$0xf]
  %v2745 = vld [vmem:[%s2716 + $0x1a0] sm:$0xf]
  %v2746 = vld [vmem:[%s2716 + $0x1a8] sm:$0xf]
  %v2747 = vld [vmem:[%s2716 + $0x1b0] sm:$0xf]
  %v2748 = vld [vmem:[%s2716 + $0x1b8] sm:$0xf]
  %v2749 = vld [vmem:[%s2716 + $0x200] sm:$0xf]
  %v2750 = vld [vmem:[%s2716 + $0x208] sm:$0xf]
  %v2751 = vld [vmem:[%s2716 + $0x210] sm:$0xf]
  %v2752 = vld [vmem:[%s2716 + $0x218] sm:$0xf]
  %v2753 = vld [vmem:[%s2716 + $0x220] sm:$0xf]
  %v2754 = vld [vmem:[%s2716 + $0x228] sm:$0xf]
  %v2755 = vld [vmem:[%s2716 + $0x230] sm:$0xf]
  %v2756 = vld [vmem:[%s2716 + $0x238] sm:$0xf]
  %v2757 = vld [vmem:[%s2716 + $0x280] sm:$0xf]
  %v2758 = vld [vmem:[%s2716 + $0x288] sm:$0xf]
  %v2759 = vld [vmem:[%s2716 + $0x290] sm:$0xf]
  %v2760 = vld [vmem:[%s2716 + $0x298] sm:$0xf]
  %v2761 = vld [vmem:[%s2716 + $0x2a0] sm:$0xf]
  %v2762 = vld [vmem:[%s2716 + $0x2a8] sm:$0xf]
  %v2763 = vld [vmem:[%s2716 + $0x2b0] sm:$0xf]
  %v2764 = vld [vmem:[%s2716 + $0x2b8] sm:$0xf]
  %v2765 = vld [vmem:[%s2716 + $0x300] sm:$0xf]
  %v2766 = vld [vmem:[%s2716 + $0x308] sm:$0xf]
  %v2767 = vld [vmem:[%s2716 + $0x310] sm:$0xf]
  %v2768 = vld [vmem:[%s2716 + $0x318] sm:$0xf]
  %v2769 = vld [vmem:[%s2716 + $0x320] sm:$0xf]
  %v2770 = vld [vmem:[%s2716 + $0x328] sm:$0xf]
  %v2771 = vld [vmem:[%s2716 + $0x330] sm:$0xf]
  %v2772 = vld [vmem:[%s2716 + $0x338] sm:$0xf]
  %v2773 = vld [vmem:[%s2716 + $0x380] sm:$0xf]
  %v2774 = vld [vmem:[%s2716 + $0x388] sm:$0xf]
  %v2775 = vld [vmem:[%s2716 + $0x390] sm:$0xf]
  %v2776 = vld [vmem:[%s2716 + $0x398] sm:$0xf]
  %v2777 = vld [vmem:[%s2716 + $0x3a0] sm:$0xf]
  %v2778 = vld [vmem:[%s2716 + $0x3a8] sm:$0xf]
  %v2779 = vld [vmem:[%s2716 + $0x3b0] sm:$0xf]
  %v2780 = vld [vmem:[%s2716 + $0x3b8] sm:$0xf]
  %v2781 = vld [vmem:[%s2716 + $0x400] sm:$0xf]
  %v2782 = vld [vmem:[%s2716 + $0x408] sm:$0xf]
  %v2783 = vld [vmem:[%s2716 + $0x410] sm:$0xf]
  %v2784 = vld [vmem:[%s2716 + $0x418] sm:$0xf]
  %v2785 = vld [vmem:[%s2716 + $0x420] sm:$0xf]
  %v2786 = vld [vmem:[%s2716 + $0x428] sm:$0xf]
  %v2787 = vld [vmem:[%s2716 + $0x430] sm:$0xf]
  %v2788 = vld [vmem:[%s2716 + $0x438] sm:$0xf]
  %v2789 = vld [vmem:[%s2716 + $0x480] sm:$0xf]
  %v2790 = vld [vmem:[%s2716 + $0x488] sm:$0xf]
  %v2791 = vld [vmem:[%s2716 + $0x490] sm:$0xf]
  %v2792 = vld [vmem:[%s2716 + $0x498] sm:$0xf]
  %v2793 = vld [vmem:[%s2716 + $0x4a0] sm:$0xf]
  %v2794 = vld [vmem:[%s2716 + $0x4a8] sm:$0xf]
  %v2795 = vld [vmem:[%s2716 + $0x4b0] sm:$0xf]
  %v2796 = vld [vmem:[%s2716 + $0x4b8] sm:$0xf]
  %v2797 = vld [vmem:[%s2716 + $0x500] sm:$0xf]
  %v2798 = vld [vmem:[%s2716 + $0x508] sm:$0xf]
  %v2799 = vld [vmem:[%s2716 + $0x510] sm:$0xf]
  %v2800 = vld [vmem:[%s2716 + $0x518] sm:$0xf]
  %v2801 = vld [vmem:[%s2716 + $0x520] sm:$0xf]
  %v2802 = vld [vmem:[%s2716 + $0x528] sm:$0xf]
  %v2803 = vld [vmem:[%s2716 + $0x530] sm:$0xf]
  %v2804 = vld [vmem:[%s2716 + $0x538] sm:$0xf]
  %v2805 = vld [vmem:[%s2716 + $0x580] sm:$0xf]
  %v2806 = vld [vmem:[%s2716 + $0x588] sm:$0xf]
  %v2807 = vld [vmem:[%s2716 + $0x590] sm:$0xf]
  %v2808 = vld [vmem:[%s2716 + $0x598] sm:$0xf]
  %v2809 = vld [vmem:[%s2716 + $0x5a0] sm:$0xf]
  %v2810 = vld [vmem:[%s2716 + $0x5a8] sm:$0xf]
  %v2811 = vld [vmem:[%s2716 + $0x5b0] sm:$0xf]
  %v2812 = vld [vmem:[%s2716 + $0x5b8] sm:$0xf]
  %v2813 = vld [vmem:[%s2716 + $0x600] sm:$0xf]
  %v2814 = vld [vmem:[%s2716 + $0x608] sm:$0xf]
  %v2815 = vld [vmem:[%s2716 + $0x610] sm:$0xf]
  %v2816 = vld [vmem:[%s2716 + $0x618] sm:$0xf]
  %v2817 = vld [vmem:[%s2716 + $0x620] sm:$0xf]
  %v2818 = vld [vmem:[%s2716 + $0x628] sm:$0xf]
  %v2819 = vld [vmem:[%s2716 + $0x630] sm:$0xf]
  %v2820 = vld [vmem:[%s2716 + $0x638] sm:$0xf]
  %v2821 = vld [vmem:[%s2716 + $0x680] sm:$0xf]
  %v2822 = vld [vmem:[%s2716 + $0x688] sm:$0xf]
  %v2823 = vld [vmem:[%s2716 + $0x690] sm:$0xf]
  %v2824 = vld [vmem:[%s2716 + $0x698] sm:$0xf]
  %v2825 = vld [vmem:[%s2716 + $0x6a0] sm:$0xf]
  %v2826 = vld [vmem:[%s2716 + $0x6a8] sm:$0xf]
  %v2827 = vld [vmem:[%s2716 + $0x6b0] sm:$0xf]
  %v2828 = vld [vmem:[%s2716 + $0x6b8] sm:$0xf]
  %v2829 = vld [vmem:[%s2716 + $0x700] sm:$0xf]
  %v2830 = vld [vmem:[%s2716 + $0x708] sm:$0xf]
  %v2831 = vld [vmem:[%s2716 + $0x710] sm:$0xf]
  %v2832 = vld [vmem:[%s2716 + $0x718] sm:$0xf]
  %v2833 = vld [vmem:[%s2716 + $0x720] sm:$0xf]
  %v2834 = vld [vmem:[%s2716 + $0x728] sm:$0xf]
  %v2835 = vld [vmem:[%s2716 + $0x730] sm:$0xf]
  %v2836 = vld [vmem:[%s2716 + $0x738] sm:$0xf]
  %v2837 = vld [vmem:[%s2716 + $0x780] sm:$0xf]
  %v2838 = vld [vmem:[%s2716 + $0x788] sm:$0xf]
  %v2839 = vld [vmem:[%s2716 + $0x790] sm:$0xf]
  %v2840 = vld [vmem:[%s2716 + $0x798] sm:$0xf]
  %v2841 = vld [vmem:[%s2716 + $0x7a0] sm:$0xf]
  %v2842 = vld [vmem:[%s2716 + $0x7a8] sm:$0xf]
  %v2843 = vld [vmem:[%s2716 + $0x7b0] sm:$0xf]
  %v2844 = vld [vmem:[%s2716 + $0x7b8] sm:$0xf]
  %v2845 = vunpack.c.l.bf16 %v2717
  %v2846 = vunpack.c.l.bf16 %v2718
  %v2847 = vunpack.c.l.bf16 %v2719
  %v2848 = vunpack.c.l.bf16 %v2720
  %v2849 = vunpack.c.l.bf16 %v2721
  %v2850 = vunpack.c.l.bf16 %v2722
  %v2851 = vunpack.c.l.bf16 %v2723
  %v2852 = vunpack.c.l.bf16 %v2724
  %v2853 = vunpack.c.l.bf16 %v2725
  %v2854 = vunpack.c.l.bf16 %v2726
  %v2855 = vunpack.c.l.bf16 %v2727
  %v2856 = vunpack.c.l.bf16 %v2728
  %v2857 = vunpack.c.l.bf16 %v2729
  %v2858 = vunpack.c.l.bf16 %v2730
  %v2859 = vunpack.c.l.bf16 %v2731
  %v2860 = vunpack.c.l.bf16 %v2732
  %v2861 = vunpack.c.l.bf16 %v2733
  %v2862 = vunpack.c.l.bf16 %v2734
  %v2863 = vunpack.c.l.bf16 %v2735
  %v2864 = vunpack.c.l.bf16 %v2736
  %v2865 = vunpack.c.l.bf16 %v2737
  %v2866 = vunpack.c.l.bf16 %v2738
  %v2867 = vunpack.c.l.bf16 %v2739
  %v2868 = vunpack.c.l.bf16 %v2740
  %v2869 = vunpack.c.l.bf16 %v2741
  %v2870 = vunpack.c.l.bf16 %v2742
  %v2871 = vunpack.c.l.bf16 %v2743
  %v2872 = vunpack.c.l.bf16 %v2744
  %v2873 = vunpack.c.l.bf16 %v2745
  %v2874 = vunpack.c.l.bf16 %v2746
  %v2875 = vunpack.c.l.bf16 %v2747
  %v2876 = vunpack.c.l.bf16 %v2748
  %v2877 = vunpack.c.l.bf16 %v2749
  %v2878 = vunpack.c.l.bf16 %v2750
  %v2879 = vunpack.c.l.bf16 %v2751
  %v2880 = vunpack.c.l.bf16 %v2752
  %v2881 = vunpack.c.l.bf16 %v2753
  %v2882 = vunpack.c.l.bf16 %v2754
  %v2883 = vunpack.c.l.bf16 %v2755
  %v2884 = vunpack.c.l.bf16 %v2756
  %v2885 = vunpack.c.l.bf16 %v2757
  %v2886 = vunpack.c.l.bf16 %v2758
  %v2887 = vunpack.c.l.bf16 %v2759
  %v2888 = vunpack.c.l.bf16 %v2760
  %v2889 = vunpack.c.l.bf16 %v2761
  %v2890 = vunpack.c.l.bf16 %v2762
  %v2891 = vunpack.c.l.bf16 %v2763
  %v2892 = vunpack.c.l.bf16 %v2764
  %v2893 = vunpack.c.l.bf16 %v2765
  %v2894 = vunpack.c.l.bf16 %v2766
  %v2895 = vunpack.c.l.bf16 %v2767
  %v2896 = vunpack.c.l.bf16 %v2768
  %v2897 = vunpack.c.l.bf16 %v2769
  %v2898 = vunpack.c.l.bf16 %v2770
  %v2899 = vunpack.c.l.bf16 %v2771
  %v2900 = vunpack.c.l.bf16 %v2772
  %v2901 = vunpack.c.l.bf16 %v2773
  %v2902 = vunpack.c.l.bf16 %v2774
  %v2903 = vunpack.c.l.bf16 %v2775
  %v2904 = vunpack.c.l.bf16 %v2776
  %v2905 = vunpack.c.l.bf16 %v2777
  %v2906 = vunpack.c.l.bf16 %v2778
  %v2907 = vunpack.c.l.bf16 %v2779
  %v2908 = vunpack.c.l.bf16 %v2780
  %v2909 = vunpack.c.l.bf16 %v2781
  %v2910 = vunpack.c.l.bf16 %v2782
  %v2911 = vunpack.c.l.bf16 %v2783
  %v2912 = vunpack.c.l.bf16 %v2784
  %v2913 = vunpack.c.l.bf16 %v2785
  %v2914 = vunpack.c.l.bf16 %v2786
  %v2915 = vunpack.c.l.bf16 %v2787
  %v2916 = vunpack.c.l.bf16 %v2788
  %v2917 = vunpack.c.l.bf16 %v2789
  %v2918 = vunpack.c.l.bf16 %v2790
  %v2919 = vunpack.c.l.bf16 %v2791
  %v2920 = vunpack.c.l.bf16 %v2792
  %v2921 = vunpack.c.l.bf16 %v2793
  %v2922 = vunpack.c.l.bf16 %v2794
  %v2923 = vunpack.c.l.bf16 %v2795
  %v2924 = vunpack.c.l.bf16 %v2796
  %v2925 = vunpack.c.l.bf16 %v2797
  %v2926 = vunpack.c.l.bf16 %v2798
  %v2927 = vunpack.c.l.bf16 %v2799
  %v2928 = vunpack.c.l.bf16 %v2800
  %v2929 = vunpack.c.l.bf16 %v2801
  %v2930 = vunpack.c.l.bf16 %v2802
  %v2931 = vunpack.c.l.bf16 %v2803
  %v2932 = vunpack.c.l.bf16 %v2804
  %v2933 = vunpack.c.l.bf16 %v2805
  %v2934 = vunpack.c.l.bf16 %v2806
  %v2935 = vunpack.c.l.bf16 %v2807
  %v2936 = vunpack.c.l.bf16 %v2808
  %v2937 = vunpack.c.l.bf16 %v2809
  %v2938 = vunpack.c.l.bf16 %v2810
  %v2939 = vunpack.c.l.bf16 %v2811
  %v2940 = vunpack.c.l.bf16 %v2812
  %v2941 = vunpack.c.l.bf16 %v2813
  %v2942 = vunpack.c.l.bf16 %v2814
  %v2943 = vunpack.c.l.bf16 %v2815
  %v2944 = vunpack.c.l.bf16 %v2816
  %v2945 = vunpack.c.l.bf16 %v2817
  %v2946 = vunpack.c.l.bf16 %v2818
  %v2947 = vunpack.c.l.bf16 %v2819
  %v2948 = vunpack.c.l.bf16 %v2820
  %v2949 = vunpack.c.l.bf16 %v2821
  %v2950 = vunpack.c.l.bf16 %v2822
  %v2951 = vunpack.c.l.bf16 %v2823
  %v2952 = vunpack.c.l.bf16 %v2824
  %v2953 = vunpack.c.l.bf16 %v2825
  %v2954 = vunpack.c.l.bf16 %v2826
  %v2955 = vunpack.c.l.bf16 %v2827
  %v2956 = vunpack.c.l.bf16 %v2828
  %v2957 = vunpack.c.l.bf16 %v2829
  %v2958 = vunpack.c.l.bf16 %v2830
  %v2959 = vunpack.c.l.bf16 %v2831
  %v2960 = vunpack.c.l.bf16 %v2832
  %v2961 = vunpack.c.l.bf16 %v2833
  %v2962 = vunpack.c.l.bf16 %v2834
  %v2963 = vunpack.c.l.bf16 %v2835
  %v2964 = vunpack.c.l.bf16 %v2836
  %v2965 = vunpack.c.l.bf16 %v2837
  %v2966 = vunpack.c.l.bf16 %v2838
  %v2967 = vunpack.c.l.bf16 %v2839
  %v2968 = vunpack.c.l.bf16 %v2840
  %v2969 = vunpack.c.l.bf16 %v2841
  %v2970 = vunpack.c.l.bf16 %v2842
  %v2971 = vunpack.c.l.bf16 %v2843
  %v2972 = vunpack.c.l.bf16 %v2844
  %s2973 = scalar_lea.vmem %s1, 4
  %v2974 = vld [vmem:[%s2973] sm:$0x3]
  %v2976 = vsel %vm530, %v2845, 0
  %v2979 = vsel %vm530, %v2846, 0
  %v2982 = vsel %vm530, %v2847, 0
  %v2985 = vsel %vm530, %v2848, 0
  %v2988 = vsel %vm530, %v2849, 0
  %v2991 = vsel %vm530, %v2850, 0
  %v2994 = vsel %vm530, %v2851, 0
  %v2997 = vsel %vm530, %v2852, 0
  %v3000 = vsel %vm530, %v2853, 0
  %v3003 = vsel %vm530, %v2854, 0
  %v3006 = vsel %vm530, %v2855, 0
  %v3009 = vsel %vm530, %v2856, 0
  %v3012 = vsel %vm530, %v2857, 0
  %v3015 = vsel %vm530, %v2858, 0
  %v3018 = vsel %vm530, %v2859, 0
  %v3021 = vsel %vm530, %v2860, 0
  %v3024 = vsel %vm530, %v2861, 0
  %v3027 = vsel %vm530, %v2862, 0
  %v3030 = vsel %vm530, %v2863, 0
  %v3033 = vsel %vm530, %v2864, 0
  %v3036 = vsel %vm530, %v2865, 0
  %v3039 = vsel %vm530, %v2866, 0
  %v3042 = vsel %vm530, %v2867, 0
  %v3045 = vsel %vm530, %v2868, 0
  %v3048 = vsel %vm530, %v2869, 0
  %v3051 = vsel %vm530, %v2870, 0
  %v3054 = vsel %vm530, %v2871, 0
  %v3057 = vsel %vm530, %v2872, 0
  %v3060 = vsel %vm530, %v2873, 0
  %v3063 = vsel %vm530, %v2874, 0
  %v3066 = vsel %vm530, %v2875, 0
  %v3069 = vsel %vm530, %v2876, 0
  %v3072 = vsel %vm530, %v2877, 0
  %v3075 = vsel %vm530, %v2878, 0
  %v3078 = vsel %vm530, %v2879, 0
  %v3081 = vsel %vm530, %v2880, 0
  %v3084 = vsel %vm530, %v2881, 0
  %v3087 = vsel %vm530, %v2882, 0
  %v3090 = vsel %vm530, %v2883, 0
  %v3093 = vsel %vm530, %v2884, 0
  %v3096 = vsel %vm530, %v2885, 0
  %v3099 = vsel %vm530, %v2886, 0
  %v3102 = vsel %vm530, %v2887, 0
  %v3105 = vsel %vm530, %v2888, 0
  %v3108 = vsel %vm530, %v2889, 0
  %v3111 = vsel %vm530, %v2890, 0
  %v3114 = vsel %vm530, %v2891, 0
  %v3117 = vsel %vm530, %v2892, 0
  %v3120 = vsel %vm530, %v2893, 0
  %v3123 = vsel %vm530, %v2894, 0
  %v3126 = vsel %vm530, %v2895, 0
  %v3129 = vsel %vm530, %v2896, 0
  %v3132 = vsel %vm530, %v2897, 0
  %v3135 = vsel %vm530, %v2898, 0
  %v3138 = vsel %vm530, %v2899, 0
  %v3141 = vsel %vm530, %v2900, 0
  %v3144 = vsel %vm530, %v2901, 0
  %v3147 = vsel %vm530, %v2902, 0
  %v3150 = vsel %vm530, %v2903, 0
  %v3153 = vsel %vm530, %v2904, 0
  %v3156 = vsel %vm530, %v2905, 0
  %v3159 = vsel %vm530, %v2906, 0
  %v3162 = vsel %vm530, %v2907, 0
  %v3165 = vsel %vm530, %v2908, 0
  %v3168 = vsel %vm530, %v2909, 0
  %v3171 = vsel %vm530, %v2910, 0
  %v3174 = vsel %vm530, %v2911, 0
  %v3177 = vsel %vm530, %v2912, 0
  %v3180 = vsel %vm530, %v2913, 0
  %v3183 = vsel %vm530, %v2914, 0
  %v3186 = vsel %vm530, %v2915, 0
  %v3189 = vsel %vm530, %v2916, 0
  %v3192 = vsel %vm530, %v2917, 0
  %v3195 = vsel %vm530, %v2918, 0
  %v3198 = vsel %vm530, %v2919, 0
  %v3201 = vsel %vm530, %v2920, 0
  %v3204 = vsel %vm530, %v2921, 0
  %v3207 = vsel %vm530, %v2922, 0
  %v3210 = vsel %vm530, %v2923, 0
  %v3213 = vsel %vm530, %v2924, 0
  %v3216 = vsel %vm530, %v2925, 0
  %v3219 = vsel %vm530, %v2926, 0
  %v3222 = vsel %vm530, %v2927, 0
  %v3225 = vsel %vm530, %v2928, 0
  %v3228 = vsel %vm530, %v2929, 0
  %v3231 = vsel %vm530, %v2930, 0
  %v3234 = vsel %vm530, %v2931, 0
  %v3237 = vsel %vm530, %v2932, 0
  %v3240 = vsel %vm530, %v2933, 0
  %v3243 = vsel %vm530, %v2934, 0
  %v3246 = vsel %vm530, %v2935, 0
  %v3249 = vsel %vm530, %v2936, 0
  %v3252 = vsel %vm530, %v2937, 0
  %v3255 = vsel %vm530, %v2938, 0
  %v3258 = vsel %vm530, %v2939, 0
  %v3261 = vsel %vm530, %v2940, 0
  %v3264 = vsel %vm530, %v2941, 0
  %v3267 = vsel %vm530, %v2942, 0
  %v3270 = vsel %vm530, %v2943, 0
  %v3273 = vsel %vm530, %v2944, 0
  %v3276 = vsel %vm530, %v2945, 0
  %v3279 = vsel %vm530, %v2946, 0
  %v3282 = vsel %vm530, %v2947, 0
  %v3285 = vsel %vm530, %v2948, 0
  %v3288 = vsel %vm530, %v2949, 0
  %v3291 = vsel %vm530, %v2950, 0
  %v3294 = vsel %vm530, %v2951, 0
  %v3297 = vsel %vm530, %v2952, 0
  %v3300 = vsel %vm530, %v2953, 0
  %v3303 = vsel %vm530, %v2954, 0
  %v3306 = vsel %vm530, %v2955, 0
  %v3309 = vsel %vm530, %v2956, 0
  %v3312 = vsel %vm530, %v2957, 0
  %v3315 = vsel %vm530, %v2958, 0
  %v3318 = vsel %vm530, %v2959, 0
  %v3321 = vsel %vm530, %v2960, 0
  %v3324 = vsel %vm530, %v2961, 0
  %v3327 = vsel %vm530, %v2962, 0
  %v3330 = vsel %vm530, %v2963, 0
  %v3333 = vsel %vm530, %v2964, 0
  %v3336 = vsel %vm530, %v2965, 0
  %v3339 = vsel %vm530, %v2966, 0
  %v3342 = vsel %vm530, %v2967, 0
  %v3345 = vsel %vm530, %v2968, 0
  %v3348 = vsel %vm530, %v2969, 0
  %v3351 = vsel %vm530, %v2970, 0
  %v3354 = vsel %vm530, %v2971, 0
  %v3357 = vsel %vm530, %v2972, 0
  %v3360 = vsel %vm915, %v2974, 0
  %3362 = vmatprep.subr.mxu0 0.0
  %3363 = vmatpush1.msra.mxu0 %v3360
  %3364 = vmatprep.subr.mxu0 0.0
  %3365 = vmatpush1.msra.mxu0 0.0
  %3366 = vmatprep.subr.mxu0 0.0
  %3367 = vmatpush1.msra.mxu0 0.0
  %3368 = vmatprep.subr.mxu0 0.0
  %3369 = vmatpush1.msra.mxu0 0.0
  %3370 = vmatprep.subr.mxu0 0.0
  %3371 = vmatpush1.msra.mxu0 0.0
  %3372 = vmatprep.subr.mxu0 0.0
  %3373 = vmatpush1.msra.mxu0 0.0
  %3374 = vmatprep.subr.mxu0 0.0
  %3375 = vmatpush1.msra.mxu0 0.0
  %3376 = vmatprep.subr.mxu0 0.0
  %3377 = vmatpush1.msra.mxu0 0.0
  %3378 = vmatprep.subr.mxu0 0.0
  %3379 = vmatpush1.msra.mxu0 0.0
  %3380 = vmatprep.subr.mxu0 0.0
  %3381 = vmatpush1.msra.mxu0 0.0
  %3382 = vmatprep.subr.mxu0 0.0
  %3383 = vmatpush1.msra.mxu0 0.0
  %3384 = vmatprep.subr.mxu0 0.0
  %3385 = vmatpush1.msra.mxu0 0.0
  %3386 = vmatprep.subr.mxu0 0.0
  %3387 = vmatpush1.msra.mxu0 0.0
  %3388 = vmatprep.subr.mxu0 0.0
  %3389 = vmatpush1.msra.mxu0 0.0
  %3390 = vmatprep.subr.mxu0 0.0
  %3391 = vmatpush1.msra.mxu0 0.0
  %3392 = vmatprep.subr.mxu0 0.0
  %3393 = vmatpush1.msra.mxu0 0.0
  %3394 = vmatprep.subr.mxu0 0.0
  %3395 = vmatpush1.msra.mxu0 0.0
  %3396 = vmatprep.subr.mxu0 0.0
  %3397 = vmatpush1.msra.mxu0 0.0
  %3398 = vmatprep.subr.mxu0 0.0
  %3399 = vmatpush1.msra.mxu0 0.0
  %3400 = vmatprep.subr.mxu0 0.0
  %3401 = vmatpush1.msra.mxu0 0.0
  %3402 = vmatprep.subr.mxu0 0.0
  %3403 = vmatpush1.msra.mxu0 0.0
  %3404 = vmatprep.subr.mxu0 0.0
  %3405 = vmatpush1.msra.mxu0 0.0
  %3406 = vmatprep.subr.mxu0 0.0
  %3407 = vmatpush1.msra.mxu0 0.0
  %3408 = vmatprep.subr.mxu0 0.0
  %3409 = vmatpush1.msra.mxu0 0.0
  %3410 = vmatprep.subr.mxu0 0.0
  %3411 = vmatpush1.msra.mxu0 0.0
  %3412 = vmatprep.subr.mxu0 0.0
  %3413 = vmatpush1.msra.mxu0 0.0
  %3414 = vmatprep.subr.mxu0 0.0
  %3415 = vmatpush1.msra.mxu0 0.0
  %3416 = vmatprep.subr.mxu0 0.0
  %3417 = vmatpush1.msra.mxu0 0.0
  %3418 = vmatprep.subr.mxu0 0.0
  %3419 = vmatpush1.msra.mxu0 0.0
  %3420 = vmatprep.subr.mxu0 0.0
  %3421 = vmatpush1.msra.mxu0 0.0
  %3422 = vmatprep.subr.mxu0 0.0
  %3423 = vmatpush1.msra.mxu0 0.0
  %3424 = vmatprep.subr.mxu0 0.0
  %3425 = vmatpush1.msra.mxu0 0.0
  %3426 = vmatprep.mubr.f32.mxu0 0.0
  %3427 = vmatmul.mubr.f32.gmra.mrb[0].mxu0 %v2976
  %v3428 = vpop.f32.mrb[0].mxu0
  %v3429 = vadd.f32 0.0, %v3428
  %v3430 = vpop.f32.mrb[0].mxu0
  %3431 = vmatprep.mubr.f32.mxu0 0.0
  %3432 = vmatmul.mubr.f32.gmra.mrb[0].mxu0 %v2979
  %v3433 = vpop.f32.mrb[0].mxu0
  %v3434 = vadd.f32 0.0, %v3433
  %v3435 = vpop.f32.mrb[0].mxu0
  %3436 = vmatprep.mubr.f32.mxu0 0.0
  %3437 = vmatmul.mubr.f32.gmra.mrb[0].mxu0 %v2982
  %v3438 = vpop.f32.mrb[0].mxu0
  %v3439 = vadd.f32 0.0, %v3438
  %v3440 = vpop.f32.mrb[0].mxu0
  %3441 = vmatprep.mubr.f32.mxu0 0.0
  %3442 = vmatmul.mubr.f32.gmra.mrb[0].mxu0 %v2985
  %v3443 = vpop.f32.mrb[0].mxu0
  %v3444 = vadd.f32 0.0, %v3443
  %v3445 = vpop.f32.mrb[0].mxu0
  %3446 = vmatprep.mubr.f32.mxu0 0.0
  %3447 = vmatmul.mubr.f32.gmra.mrb[0].mxu0 %v2988
  %v3448 = vpop.f32.mrb[0].mxu0
  %v3449 = vadd.f32 0.0, %v3448
  %v3450 = vpop.f32.mrb[0].mxu0
  %3451 = vmatprep.mubr.f32.mxu0 0.0
  %3452 = vmatmul.mubr.f32.gmra.mrb[0].mxu0 %v2991
  %v3453 = vpop.f32.mrb[0].mxu0
  %v3454 = vadd.f32 0.0, %v3453
  %v3455 = vpop.f32.mrb[0].mxu0
  %3456 = vmatprep.mubr.f32.mxu0 0.0
  %3457 = vmatmul.mubr.f32.gmra.mrb[0].mxu0 %v2994
  %v3458 = vpop.f32.mrb[0].mxu0
  %v3459 = vadd.f32 0.0, %v3458
  %v3460 = vpop.f32.mrb[0].mxu0
  %3461 = vmatprep.mubr.f32.mxu0 0.0
  %3462 = vmatmul.mubr.f32.gmra.mrb[0].mxu0 %v2997
  %v3463 = vpop.f32.mrb[0].mxu0
  %v3464 = vadd.f32 0.0, %v3463
  %v3465 = vpop.f32.mrb[0].mxu0
  %3466 = vmatprep.mubr.f32.mxu0 0.0
  %3467 = vmatmul.mubr.f32.gmra.mrb[0].mxu0 %v3000
  %v3468 = vpop.f32.mrb[0].mxu0
  %v3469 = vadd.f32 0.0, %v3468
  %v3470 = vpop.f32.mrb[0].mxu0
  %3471 = vmatprep.mubr.f32.mxu0 0.0
  %3472 = vmatmul.mubr.f32.gmra.mrb[0].mxu0 %v3003
  %v3473 = vpop.f32.mrb[0].mxu0
  %v3474 = vadd.f32 0.0, %v3473
  %v3475 = vpop.f32.mrb[0].mxu0
  %3476 = vmatprep.mubr.f32.mxu0 0.0
  %3477 = vmatmul.mubr.f32.gmra.mrb[0].mxu0 %v3006
  %v3478 = vpop.f32.mrb[0].mxu0
  %v3479 = vadd.f32 0.0, %v3478
  %v3480 = vpop.f32.mrb[0].mxu0
  %3481 = vmatprep.mubr.f32.mxu0 0.0
  %3482 = vmatmul.mubr.f32.gmra.mrb[0].mxu0 %v3009
  %v3483 = vpop.f32.mrb[0].mxu0
  %v3484 = vadd.f32 0.0, %v3483
  %v3485 = vpop.f32.mrb[0].mxu0
  %3486 = vmatprep.mubr.f32.mxu0 0.0
  %3487 = vmatmul.mubr.f32.gmra.mrb[0].mxu0 %v3012
  %v3488 = vpop.f32.mrb[0].mxu0
  %v3489 = vadd.f32 0.0, %v3488
  %v3490 = vpop.f32.mrb[0].mxu0
  %3491 = vmatprep.mubr.f32.mxu0 0.0
  %3492 = vmatmul.mubr.f32.gmra.mrb[0].mxu0 %v3015
  %v3493 = vpop.f32.mrb[0].mxu0
  %v3494 = vadd.f32 0.0, %v3493
  %v3495 = vpop.f32.mrb[0].mxu0
  %3496 = vmatprep.mubr.f32.mxu0 0.0
  %3497 = vmatmul.mubr.f32.gmra.mrb[0].mxu0 %v3018
  %v3498 = vpop.f32.mrb[0].mxu0
  %v3499 = vadd.f32 0.0, %v3498
  %v3500 = vpop.f32.mrb[0].mxu0
  %3501 = vmatprep.mubr.f32.mxu0 0.0
  %3502 = vmatmul.mubr.f32.gmra.mrb[0].mxu0 %v3021
  %v3503 = vpop.f32.mrb[0].mxu0
  %v3504 = vadd.f32 0.0, %v3503
  %v3505 = vpop.f32.mrb[0].mxu0
  %3506 = vmatprep.mubr.f32.mxu0 0.0
  %3507 = vmatmul.mubr.f32.gmra.mrb[0].mxu0 %v3024
  %v3508 = vpop.f32.mrb[0].mxu0
  %v3509 = vadd.f32 0.0, %v3508
  %v3510 = vpop.f32.mrb[0].mxu0
  %3511 = vmatprep.mubr.f32.mxu0 0.0
  %3512 = vmatmul.mubr.f32.gmra.mrb[0].mxu0 %v3027
  %v3513 = vpop.f32.mrb[0].mxu0
  %v3514 = vadd.f32 0.0, %v3513
  %v3515 = vpop.f32.mrb[0].mxu0
  %3516 = vmatprep.mubr.f32.mxu0 0.0
  %3517 = vmatmul.mubr.f32.gmra.mrb[0].mxu0 %v3030
  %v3518 = vpop.f32.mrb[0].mxu0
  %v3519 = vadd.f32 0.0, %v3518
  %v3520 = vpop.f32.mrb[0].mxu0
  %3521 = vmatprep.mubr.f32.mxu0 0.0
  %3522 = vmatmul.mubr.f32.gmra.mrb[0].mxu0 %v3033
  %v3523 = vpop.f32.mrb[0].mxu0
  %v3524 = vadd.f32 0.0, %v3523
  %v3525 = vpop.f32.mrb[0].mxu0
  %3526 = vmatprep.mubr.f32.mxu0 0.0
  %3527 = vmatmul.mubr.f32.gmra.mrb[0].mxu0 %v3036
  %v3528 = vpop.f32.mrb[0].mxu0
  %v3529 = vadd.f32 0.0, %v3528
  %v3530 = vpop.f32.mrb[0].mxu0
  %3531 = vmatprep.mubr.f32.mxu0 0.0
  %3532 = vmatmul.mubr.f32.gmra.mrb[0].mxu0 %v3039
  %v3533 = vpop.f32.mrb[0].mxu0
  %v3534 = vadd.f32 0.0, %v3533
  %v3535 = vpop.f32.mrb[0].mxu0
  %3536 = vmatprep.mubr.f32.mxu0 0.0
  %3537 = vmatmul.mubr.f32.gmra.mrb[0].mxu0 %v3042
  %v3538 = vpop.f32.mrb[0].mxu0
  %v3539 = vadd.f32 0.0, %v3538
  %v3540 = vpop.f32.mrb[0].mxu0
  %3541 = vmatprep.mubr.f32.mxu0 0.0
  %3542 = vmatmul.mubr.f32.gmra.mrb[0].mxu0 %v3045
  %v3543 = vpop.f32.mrb[0].mxu0
  %v3544 = vadd.f32 0.0, %v3543
  %v3545 = vpop.f32.mrb[0].mxu0
  %3546 = vmatprep.mubr.f32.mxu0 0.0
  %3547 = vmatmul.mubr.f32.gmra.mrb[0].mxu0 %v3048
  %v3548 = vpop.f32.mrb[0].mxu0
  %v3549 = vadd.f32 0.0, %v3548
  %v3550 = vpop.f32.mrb[0].mxu0
  %3551 = vmatprep.mubr.f32.mxu0 0.0
  %3552 = vmatmul.mubr.f32.gmra.mrb[0].mxu0 %v3051
  %v3553 = vpop.f32.mrb[0].mxu0
  %v3554 = vadd.f32 0.0, %v3553
  %v3555 = vpop.f32.mrb[0].mxu0
  %3556 = vmatprep.mubr.f32.mxu0 0.0
  %3557 = vmatmul.mubr.f32.gmra.mrb[0].mxu0 %v3054
  %v3558 = vpop.f32.mrb[0].mxu0
  %v3559 = vadd.f32 0.0, %v3558
  %v3560 = vpop.f32.mrb[0].mxu0
  %3561 = vmatprep.mubr.f32.mxu0 0.0
  %3562 = vmatmul.mubr.f32.gmra.mrb[0].mxu0 %v3057
  %v3563 = vpop.f32.mrb[0].mxu0
  %v3564 = vadd.f32 0.0, %v3563
  %v3565 = vpop.f32.mrb[0].mxu0
  %3566 = vmatprep.mubr.f32.mxu0 0.0
  %3567 = vmatmul.mubr.f32.gmra.mrb[0].mxu0 %v3060
  %v3568 = vpop.f32.mrb[0].mxu0
  %v3569 = vadd.f32 0.0, %v3568
  %v3570 = vpop.f32.mrb[0].mxu0
  %3571 = vmatprep.mubr.f32.mxu0 0.0
  %3572 = vmatmul.mubr.f32.gmra.mrb[0].mxu0 %v3063
  %v3573 = vpop.f32.mrb[0].mxu0
  %v3574 = vadd.f32 0.0, %v3573
  %v3575 = vpop.f32.mrb[0].mxu0
  %3576 = vmatprep.mubr.f32.mxu0 0.0
  %3577 = vmatmul.mubr.f32.gmra.mrb[0].mxu0 %v3066
  %v3578 = vpop.f32.mrb[0].mxu0
  %v3579 = vadd.f32 0.0, %v3578
  %v3580 = vpop.f32.mrb[0].mxu0
  %3581 = vmatprep.mubr.f32.mxu0 0.0
  %3582 = vmatmul.mubr.f32.gmra.mrb[0].mxu0 %v3069
  %v3583 = vpop.f32.mrb[0].mxu0
  %v3584 = vadd.f32 0.0, %v3583
  %v3585 = vpop.f32.mrb[0].mxu0
  %3586 = vmatprep.mubr.f32.mxu0 0.0
  %3587 = vmatmul.mubr.f32.gmra.mrb[0].mxu0 %v3072
  %v3588 = vpop.f32.mrb[0].mxu0
  %v3589 = vadd.f32 0.0, %v3588
  %v3590 = vpop.f32.mrb[0].mxu0
  %3591 = vmatprep.mubr.f32.mxu0 0.0
  %3592 = vmatmul.mubr.f32.gmra.mrb[0].mxu0 %v3075
  %v3593 = vpop.f32.mrb[0].mxu0
  %v3594 = vadd.f32 0.0, %v3593
  %v3595 = vpop.f32.mrb[0].mxu0
  %3596 = vmatprep.mubr.f32.mxu0 0.0
  %3597 = vmatmul.mubr.f32.gmra.mrb[0].mxu0 %v3078
  %v3598 = vpop.f32.mrb[0].mxu0
  %v3599 = vadd.f32 0.0, %v3598
  %v3600 = vpop.f32.mrb[0].mxu0
  %3601 = vmatprep.mubr.f32.mxu0 0.0
  %3602 = vmatmul.mubr.f32.gmra.mrb[0].mxu0 %v3081
  %v3603 = vpop.f32.mrb[0].mxu0
  %v3604 = vadd.f32 0.0, %v3603
  %v3605 = vpop.f32.mrb[0].mxu0
  %3606 = vmatprep.mubr.f32.mxu0 0.0
  %3607 = vmatmul.mubr.f32.gmra.mrb[0].mxu0 %v3084
  %v3608 = vpop.f32.mrb[0].mxu0
  %v3609 = vadd.f32 0.0, %v3608
  %v3610 = vpop.f32.mrb[0].mxu0
  %3611 = vmatprep.mubr.f32.mxu0 0.0
  %3612 = vmatmul.mubr.f32.gmra.mrb[0].mxu0 %v3087
  %v3613 = vpop.f32.mrb[0].mxu0
  %v3614 = vadd.f32 0.0, %v3613
  %v3615 = vpop.f32.mrb[0].mxu0
  %3616 = vmatprep.mubr.f32.mxu0 0.0
  %3617 = vmatmul.mubr.f32.gmra.mrb[0].mxu0 %v3090
  %v3618 = vpop.f32.mrb[0].mxu0
  %v3619 = vadd.f32 0.0, %v3618
  %v3620 = vpop.f32.mrb[0].mxu0
  %3621 = vmatprep.mubr.f32.mxu0 0.0
  %3622 = vmatmul.mubr.f32.gmra.mrb[0].mxu0 %v3093
  %v3623 = vpop.f32.mrb[0].mxu0
  %v3624 = vadd.f32 0.0, %v3623
  %v3625 = vpop.f32.mrb[0].mxu0
  %3626 = vmatprep.mubr.f32.mxu0 0.0
  %3627 = vmatmul.mubr.f32.gmra.mrb[0].mxu0 %v3096
  %v3628 = vpop.f32.mrb[0].mxu0
  %v3629 = vadd.f32 0.0, %v3628
  %v3630 = vpop.f32.mrb[0].mxu0
  %3631 = vmatprep.mubr.f32.mxu0 0.0
  %3632 = vmatmul.mubr.f32.gmra.mrb[0].mxu0 %v3099
  %v3633 = vpop.f32.mrb[0].mxu0
  %v3634 = vadd.f32 0.0, %v3633
  %v3635 = vpop.f32.mrb[0].mxu0
  %3636 = vmatprep.mubr.f32.mxu0 0.0
  %3637 = vmatmul.mubr.f32.gmra.mrb[0].mxu0 %v3102
  %v3638 = vpop.f32.mrb[0].mxu0
  %v3639 = vadd.f32 0.0, %v3638
  %v3640 = vpop.f32.mrb[0].mxu0
  %3641 = vmatprep.mubr.f32.mxu0 0.0
  %3642 = vmatmul.mubr.f32.gmra.mrb[0].mxu0 %v3105
  %v3643 = vpop.f32.mrb[0].mxu0
  %v3644 = vadd.f32 0.0, %v3643
  %v3645 = vpop.f32.mrb[0].mxu0
  %3646 = vmatprep.mubr.f32.mxu0 0.0
  %3647 = vmatmul.mubr.f32.gmra.mrb[0].mxu0 %v3108
  %v3648 = vpop.f32.mrb[0].mxu0
  %v3649 = vadd.f32 0.0, %v3648
  %v3650 = vpop.f32.mrb[0].mxu0
  %3651 = vmatprep.mubr.f32.mxu0 0.0
  %3652 = vmatmul.mubr.f32.gmra.mrb[0].mxu0 %v3111
  %v3653 = vpop.f32.mrb[0].mxu0
  %v3654 = vadd.f32 0.0, %v3653
  %v3655 = vpop.f32.mrb[0].mxu0
  %3656 = vmatprep.mubr.f32.mxu0 0.0
  %3657 = vmatmul.mubr.f32.gmra.mrb[0].mxu0 %v3114
  %v3658 = vpop.f32.mrb[0].mxu0
  %v3659 = vadd.f32 0.0, %v3658
  %v3660 = vpop.f32.mrb[0].mxu0
  %3661 = vmatprep.mubr.f32.mxu0 0.0
  %3662 = vmatmul.mubr.f32.gmra.mrb[0].mxu0 %v3117
  %v3663 = vpop.f32.mrb[0].mxu0
  %v3664 = vadd.f32 0.0, %v3663
  %v3665 = vpop.f32.mrb[0].mxu0
  %3666 = vmatprep.mubr.f32.mxu0 0.0
  %3667 = vmatmul.mubr.f32.gmra.mrb[0].mxu0 %v3120
  %v3668 = vpop.f32.mrb[0].mxu0
  %v3669 = vadd.f32 0.0, %v3668
  %v3670 = vpop.f32.mrb[0].mxu0
  %3671 = vmatprep.mubr.f32.mxu0 0.0
  %3672 = vmatmul.mubr.f32.gmra.mrb[0].mxu0 %v3123
  %v3673 = vpop.f32.mrb[0].mxu0
  %v3674 = vadd.f32 0.0, %v3673
  %v3675 = vpop.f32.mrb[0].mxu0
  %3676 = vmatprep.mubr.f32.mxu0 0.0
  %3677 = vmatmul.mubr.f32.gmra.mrb[0].mxu0 %v3126
  %v3678 = vpop.f32.mrb[0].mxu0
  %v3679 = vadd.f32 0.0, %v3678
  %v3680 = vpop.f32.mrb[0].mxu0
  %3681 = vmatprep.mubr.f32.mxu0 0.0
  %3682 = vmatmul.mubr.f32.gmra.mrb[0].mxu0 %v3129
  %v3683 = vpop.f32.mrb[0].mxu0
  %v3684 = vadd.f32 0.0, %v3683
  %v3685 = vpop.f32.mrb[0].mxu0
  %3686 = vmatprep.mubr.f32.mxu0 0.0
  %3687 = vmatmul.mubr.f32.gmra.mrb[0].mxu0 %v3132
  %v3688 = vpop.f32.mrb[0].mxu0
  %v3689 = vadd.f32 0.0, %v3688
  %v3690 = vpop.f32.mrb[0].mxu0
  %3691 = vmatprep.mubr.f32.mxu0 0.0
  %3692 = vmatmul.mubr.f32.gmra.mrb[0].mxu0 %v3135
  %v3693 = vpop.f32.mrb[0].mxu0
  %v3694 = vadd.f32 0.0, %v3693
  %v3695 = vpop.f32.mrb[0].mxu0
  %3696 = vmatprep.mubr.f32.mxu0 0.0
  %3697 = vmatmul.mubr.f32.gmra.mrb[0].mxu0 %v3138
  %v3698 = vpop.f32.mrb[0].mxu0
  %v3699 = vadd.f32 0.0, %v3698
  %v3700 = vpop.f32.mrb[0].mxu0
  %3701 = vmatprep.mubr.f32.mxu0 0.0
  %3702 = vmatmul.mubr.f32.gmra.mrb[0].mxu0 %v3141
  %v3703 = vpop.f32.mrb[0].mxu0
  %v3704 = vadd.f32 0.0, %v3703
  %v3705 = vpop.f32.mrb[0].mxu0
  %3706 = vmatprep.mubr.f32.mxu0 0.0
  %3707 = vmatmul.mubr.f32.gmra.mrb[0].mxu0 %v3144
  %v3708 = vpop.f32.mrb[0].mxu0
  %v3709 = vadd.f32 0.0, %v3708
  %v3710 = vpop.f32.mrb[0].mxu0
  %3711 = vmatprep.mubr.f32.mxu0 0.0
  %3712 = vmatmul.mubr.f32.gmra.mrb[0].mxu0 %v3147
  %v3713 = vpop.f32.mrb[0].mxu0
  %v3714 = vadd.f32 0.0, %v3713
  %v3715 = vpop.f32.mrb[0].mxu0
  %3716 = vmatprep.mubr.f32.mxu0 0.0
  %3717 = vmatmul.mubr.f32.gmra.mrb[0].mxu0 %v3150
  %v3718 = vpop.f32.mrb[0].mxu0
  %v3719 = vadd.f32 0.0, %v3718
  %v3720 = vpop.f32.mrb[0].mxu0
  %3721 = vmatprep.mubr.f32.mxu0 0.0
  %3722 = vmatmul.mubr.f32.gmra.mrb[0].mxu0 %v3153
  %v3723 = vpop.f32.mrb[0].mxu0
  %v3724 = vadd.f32 0.0, %v3723
  %v3725 = vpop.f32.mrb[0].mxu0
  %3726 = vmatprep.mubr.f32.mxu0 0.0
  %3727 = vmatmul.mubr.f32.gmra.mrb[0].mxu0 %v3156
  %v3728 = vpop.f32.mrb[0].mxu0
  %v3729 = vadd.f32 0.0, %v3728
  %v3730 = vpop.f32.mrb[0].mxu0
  %3731 = vmatprep.mubr.f32.mxu0 0.0
  %3732 = vmatmul.mubr.f32.gmra.mrb[0].mxu0 %v3159
  %v3733 = vpop.f32.mrb[0].mxu0
  %v3734 = vadd.f32 0.0, %v3733
  %v3735 = vpop.f32.mrb[0].mxu0
  %3736 = vmatprep.mubr.f32.mxu0 0.0
  %3737 = vmatmul.mubr.f32.gmra.mrb[0].mxu0 %v3162
  %v3738 = vpop.f32.mrb[0].mxu0
  %v3739 = vadd.f32 0.0, %v3738
  %v3740 = vpop.f32.mrb[0].mxu0
  %3741 = vmatprep.mubr.f32.mxu0 0.0
  %3742 = vmatmul.mubr.f32.gmra.mrb[0].mxu0 %v3165
  %v3743 = vpop.f32.mrb[0].mxu0
  %v3744 = vadd.f32 0.0, %v3743
  %v3745 = vpop.f32.mrb[0].mxu0
  %3746 = vmatprep.mubr.f32.mxu0 0.0
  %3747 = vmatmul.mubr.f32.gmra.mrb[0].mxu0 %v3168
  %v3748 = vpop.f32.mrb[0].mxu0
  %v3749 = vadd.f32 0.0, %v3748
  %v3750 = vpop.f32.mrb[0].mxu0
  %3751 = vmatprep.mubr.f32.mxu0 0.0
  %3752 = vmatmul.mubr.f32.gmra.mrb[0].mxu0 %v3171
  %v3753 = vpop.f32.mrb[0].mxu0
  %v3754 = vadd.f32 0.0, %v3753
  %v3755 = vpop.f32.mrb[0].mxu0
  %3756 = vmatprep.mubr.f32.mxu0 0.0
  %3757 = vmatmul.mubr.f32.gmra.mrb[0].mxu0 %v3174
  %v3758 = vpop.f32.mrb[0].mxu0
  %v3759 = vadd.f32 0.0, %v3758
  %v3760 = vpop.f32.mrb[0].mxu0
  %3761 = vmatprep.mubr.f32.mxu0 0.0
  %3762 = vmatmul.mubr.f32.gmra.mrb[0].mxu0 %v3177
  %v3763 = vpop.f32.mrb[0].mxu0
  %v3764 = vadd.f32 0.0, %v3763
  %v3765 = vpop.f32.mrb[0].mxu0
  %3766 = vmatprep.mubr.f32.mxu0 0.0
  %3767 = vmatmul.mubr.f32.gmra.mrb[0].mxu0 %v3180
  %v3768 = vpop.f32.mrb[0].mxu0
  %v3769 = vadd.f32 0.0, %v3768
  %v3770 = vpop.f32.mrb[0].mxu0
  %3771 = vmatprep.mubr.f32.mxu0 0.0
  %3772 = vmatmul.mubr.f32.gmra.mrb[0].mxu0 %v3183
  %v3773 = vpop.f32.mrb[0].mxu0
  %v3774 = vadd.f32 0.0, %v3773
  %v3775 = vpop.f32.mrb[0].mxu0
  %3776 = vmatprep.mubr.f32.mxu0 0.0
  %3777 = vmatmul.mubr.f32.gmra.mrb[0].mxu0 %v3186
  %v3778 = vpop.f32.mrb[0].mxu0
  %v3779 = vadd.f32 0.0, %v3778
  %v3780 = vpop.f32.mrb[0].mxu0
  %3781 = vmatprep.mubr.f32.mxu0 0.0
  %3782 = vmatmul.mubr.f32.gmra.mrb[0].mxu0 %v3189
  %v3783 = vpop.f32.mrb[0].mxu0
  %v3784 = vadd.f32 0.0, %v3783
  %v3785 = vpop.f32.mrb[0].mxu0
  %3786 = vmatprep.mubr.f32.mxu0 0.0
  %3787 = vmatmul.mubr.f32.gmra.mrb[0].mxu0 %v3192
  %v3788 = vpop.f32.mrb[0].mxu0
  %v3789 = vadd.f32 0.0, %v3788
  %v3790 = vpop.f32.mrb[0].mxu0
  %3791 = vmatprep.mubr.f32.mxu0 0.0
  %3792 = vmatmul.mubr.f32.gmra.mrb[0].mxu0 %v3195
  %v3793 = vpop.f32.mrb[0].mxu0
  %v3794 = vadd.f32 0.0, %v3793
  %v3795 = vpop.f32.mrb[0].mxu0
  %3796 = vmatprep.mubr.f32.mxu0 0.0
  %3797 = vmatmul.mubr.f32.gmra.mrb[0].mxu0 %v3198
  %v3798 = vpop.f32.mrb[0].mxu0
  %v3799 = vadd.f32 0.0, %v3798
  %v3800 = vpop.f32.mrb[0].mxu0
  %3801 = vmatprep.mubr.f32.mxu0 0.0
  %3802 = vmatmul.mubr.f32.gmra.mrb[0].mxu0 %v3201
  %v3803 = vpop.f32.mrb[0].mxu0
  %v3804 = vadd.f32 0.0, %v3803
  %v3805 = vpop.f32.mrb[0].mxu0
  %3806 = vmatprep.mubr.f32.mxu0 0.0
  %3807 = vmatmul.mubr.f32.gmra.mrb[0].mxu0 %v3204
  %v3808 = vpop.f32.mrb[0].mxu0
  %v3809 = vadd.f32 0.0, %v3808
  %v3810 = vpop.f32.mrb[0].mxu0
  %3811 = vmatprep.mubr.f32.mxu0 0.0
  %3812 = vmatmul.mubr.f32.gmra.mrb[0].mxu0 %v3207
  %v3813 = vpop.f32.mrb[0].mxu0
  %v3814 = vadd.f32 0.0, %v3813
  %v3815 = vpop.f32.mrb[0].mxu0
  %3816 = vmatprep.mubr.f32.mxu0 0.0
  %3817 = vmatmul.mubr.f32.gmra.mrb[0].mxu0 %v3210
  %v3818 = vpop.f32.mrb[0].mxu0
  %v3819 = vadd.f32 0.0, %v3818
  %v3820 = vpop.f32.mrb[0].mxu0
  %3821 = vmatprep.mubr.f32.mxu0 0.0
  %3822 = vmatmul.mubr.f32.gmra.mrb[0].mxu0 %v3213
  %v3823 = vpop.f32.mrb[0].mxu0
  %v3824 = vadd.f32 0.0, %v3823
  %v3825 = vpop.f32.mrb[0].mxu0
  %3826 = vmatprep.mubr.f32.mxu0 0.0
  %3827 = vmatmul.mubr.f32.gmra.mrb[0].mxu0 %v3216
  %v3828 = vpop.f32.mrb[0].mxu0
  %v3829 = vadd.f32 0.0, %v3828
  %v3830 = vpop.f32.mrb[0].mxu0
  %3831 = vmatprep.mubr.f32.mxu0 0.0
  %3832 = vmatmul.mubr.f32.gmra.mrb[0].mxu0 %v3219
  %v3833 = vpop.f32.mrb[0].mxu0
  %v3834 = vadd.f32 0.0, %v3833
  %v3835 = vpop.f32.mrb[0].mxu0
  %3836 = vmatprep.mubr.f32.mxu0 0.0
  %3837 = vmatmul.mubr.f32.gmra.mrb[0].mxu0 %v3222
  %v3838 = vpop.f32.mrb[0].mxu0
  %v3839 = vadd.f32 0.0, %v3838
  %v3840 = vpop.f32.mrb[0].mxu0
  %3841 = vmatprep.mubr.f32.mxu0 0.0
  %3842 = vmatmul.mubr.f32.gmra.mrb[0].mxu0 %v3225
  %v3843 = vpop.f32.mrb[0].mxu0
  %v3844 = vadd.f32 0.0, %v3843
  %v3845 = vpop.f32.mrb[0].mxu0
  %3846 = vmatprep.mubr.f32.mxu0 0.0
  %3847 = vmatmul.mubr.f32.gmra.mrb[0].mxu0 %v3228
  %v3848 = vpop.f32.mrb[0].mxu0
  %v3849 = vadd.f32 0.0, %v3848
  %v3850 = vpop.f32.mrb[0].mxu0
  %3851 = vmatprep.mubr.f32.mxu0 0.0
  %3852 = vmatmul.mubr.f32.gmra.mrb[0].mxu0 %v3231
  %v3853 = vpop.f32.mrb[0].mxu0
  %v3854 = vadd.f32 0.0, %v3853
  %v3855 = vpop.f32.mrb[0].mxu0
  %3856 = vmatprep.mubr.f32.mxu0 0.0
  %3857 = vmatmul.mubr.f32.gmra.mrb[0].mxu0 %v3234
  %v3858 = vpop.f32.mrb[0].mxu0
  %v3859 = vadd.f32 0.0, %v3858
  %v3860 = vpop.f32.mrb[0].mxu0
  %3861 = vmatprep.mubr.f32.mxu0 0.0
  %3862 = vmatmul.mubr.f32.gmra.mrb[0].mxu0 %v3237
  %v3863 = vpop.f32.mrb[0].mxu0
  %v3864 = vadd.f32 0.0, %v3863
  %v3865 = vpop.f32.mrb[0].mxu0
  %3866 = vmatprep.mubr.f32.mxu0 0.0
  %3867 = vmatmul.mubr.f32.gmra.mrb[0].mxu0 %v3240
  %v3868 = vpop.f32.mrb[0].mxu0
  %v3869 = vadd.f32 0.0, %v3868
  %v3870 = vpop.f32.mrb[0].mxu0
  %3871 = vmatprep.mubr.f32.mxu0 0.0
  %3872 = vmatmul.mubr.f32.gmra.mrb[0].mxu0 %v3243
  %v3873 = vpop.f32.mrb[0].mxu0
  %v3874 = vadd.f32 0.0, %v3873
  %v3875 = vpop.f32.mrb[0].mxu0
  %3876 = vmatprep.mubr.f32.mxu0 0.0
  %3877 = vmatmul.mubr.f32.gmra.mrb[0].mxu0 %v3246
  %v3878 = vpop.f32.mrb[0].mxu0
  %v3879 = vadd.f32 0.0, %v3878
  %v3880 = vpop.f32.mrb[0].mxu0
  %3881 = vmatprep.mubr.f32.mxu0 0.0
  %3882 = vmatmul.mubr.f32.gmra.mrb[0].mxu0 %v3249
  %v3883 = vpop.f32.mrb[0].mxu0
  %v3884 = vadd.f32 0.0, %v3883
  %v3885 = vpop.f32.mrb[0].mxu0
  %3886 = vmatprep.mubr.f32.mxu0 0.0
  %3887 = vmatmul.mubr.f32.gmra.mrb[0].mxu0 %v3252
  %v3888 = vpop.f32.mrb[0].mxu0
  %v3889 = vadd.f32 0.0, %v3888
  %v3890 = vpop.f32.mrb[0].mxu0
  %3891 = vmatprep.mubr.f32.mxu0 0.0
  %3892 = vmatmul.mubr.f32.gmra.mrb[0].mxu0 %v3255
  %v3893 = vpop.f32.mrb[0].mxu0
  %v3894 = vadd.f32 0.0, %v3893
  %v3895 = vpop.f32.mrb[0].mxu0
  %3896 = vmatprep.mubr.f32.mxu0 0.0
  %3897 = vmatmul.mubr.f32.gmra.mrb[0].mxu0 %v3258
  %v3898 = vpop.f32.mrb[0].mxu0
  %v3899 = vadd.f32 0.0, %v3898
  %v3900 = vpop.f32.mrb[0].mxu0
  %3901 = vmatprep.mubr.f32.mxu0 0.0
  %3902 = vmatmul.mubr.f32.gmra.mrb[0].mxu0 %v3261
  %v3903 = vpop.f32.mrb[0].mxu0
  %v3904 = vadd.f32 0.0, %v3903
  %v3905 = vpop.f32.mrb[0].mxu0
  %3906 = vmatprep.mubr.f32.mxu0 0.0
  %3907 = vmatmul.mubr.f32.gmra.mrb[0].mxu0 %v3264
  %v3908 = vpop.f32.mrb[0].mxu0
  %v3909 = vadd.f32 0.0, %v3908
  %v3910 = vpop.f32.mrb[0].mxu0
  %3911 = vmatprep.mubr.f32.mxu0 0.0
  %3912 = vmatmul.mubr.f32.gmra.mrb[0].mxu0 %v3267
  %v3913 = vpop.f32.mrb[0].mxu0
  %v3914 = vadd.f32 0.0, %v3913
  %v3915 = vpop.f32.mrb[0].mxu0
  %3916 = vmatprep.mubr.f32.mxu0 0.0
  %3917 = vmatmul.mubr.f32.gmra.mrb[0].mxu0 %v3270
  %v3918 = vpop.f32.mrb[0].mxu0
  %v3919 = vadd.f32 0.0, %v3918
  %v3920 = vpop.f32.mrb[0].mxu0
  %3921 = vmatprep.mubr.f32.mxu0 0.0
  %3922 = vmatmul.mubr.f32.gmra.mrb[0].mxu0 %v3273
  %v3923 = vpop.f32.mrb[0].mxu0
  %v3924 = vadd.f32 0.0, %v3923
  %v3925 = vpop.f32.mrb[0].mxu0
  %3926 = vmatprep.mubr.f32.mxu0 0.0
  %3927 = vmatmul.mubr.f32.gmra.mrb[0].mxu0 %v3276
  %v3928 = vpop.f32.mrb[0].mxu0
  %v3929 = vadd.f32 0.0, %v3928
  %v3930 = vpop.f32.mrb[0].mxu0
  %3931 = vmatprep.mubr.f32.mxu0 0.0
  %3932 = vmatmul.mubr.f32.gmra.mrb[0].mxu0 %v3279
  %v3933 = vpop.f32.mrb[0].mxu0
  %v3934 = vadd.f32 0.0, %v3933
  %v3935 = vpop.f32.mrb[0].mxu0
  %3936 = vmatprep.mubr.f32.mxu0 0.0
  %3937 = vmatmul.mubr.f32.gmra.mrb[0].mxu0 %v3282
  %v3938 = vpop.f32.mrb[0].mxu0
  %v3939 = vadd.f32 0.0, %v3938
  %v3940 = vpop.f32.mrb[0].mxu0
  %3941 = vmatprep.mubr.f32.mxu0 0.0
  %3942 = vmatmul.mubr.f32.gmra.mrb[0].mxu0 %v3285
  %v3943 = vpop.f32.mrb[0].mxu0
  %v3944 = vadd.f32 0.0, %v3943
  %v3945 = vpop.f32.mrb[0].mxu0
  %3946 = vmatprep.mubr.f32.mxu0 0.0
  %3947 = vmatmul.mubr.f32.gmra.mrb[0].mxu0 %v3288
  %v3948 = vpop.f32.mrb[0].mxu0
  %v3949 = vadd.f32 0.0, %v3948
  %v3950 = vpop.f32.mrb[0].mxu0
  %3951 = vmatprep.mubr.f32.mxu0 0.0
  %3952 = vmatmul.mubr.f32.gmra.mrb[0].mxu0 %v3291
  %v3953 = vpop.f32.mrb[0].mxu0
  %v3954 = vadd.f32 0.0, %v3953
  %v3955 = vpop.f32.mrb[0].mxu0
  %3956 = vmatprep.mubr.f32.mxu0 0.0
  %3957 = vmatmul.mubr.f32.gmra.mrb[0].mxu0 %v3294
  %v3958 = vpop.f32.mrb[0].mxu0
  %v3959 = vadd.f32 0.0, %v3958
  %v3960 = vpop.f32.mrb[0].mxu0
  %3961 = vmatprep.mubr.f32.mxu0 0.0
  %3962 = vmatmul.mubr.f32.gmra.mrb[0].mxu0 %v3297
  %v3963 = vpop.f32.mrb[0].mxu0
  %v3964 = vadd.f32 0.0, %v3963
  %v3965 = vpop.f32.mrb[0].mxu0
  %3966 = vmatprep.mubr.f32.mxu0 0.0
  %3967 = vmatmul.mubr.f32.gmra.mrb[0].mxu0 %v3300
  %v3968 = vpop.f32.mrb[0].mxu0
  %v3969 = vadd.f32 0.0, %v3968
  %v3970 = vpop.f32.mrb[0].mxu0
  %3971 = vmatprep.mubr.f32.mxu0 0.0
  %3972 = vmatmul.mubr.f32.gmra.mrb[0].mxu0 %v3303
  %v3973 = vpop.f32.mrb[0].mxu0
  %v3974 = vadd.f32 0.0, %v3973
  %v3975 = vpop.f32.mrb[0].mxu0
  %3976 = vmatprep.mubr.f32.mxu0 0.0
  %3977 = vmatmul.mubr.f32.gmra.mrb[0].mxu0 %v3306
  %v3978 = vpop.f32.mrb[0].mxu0
  %v3979 = vadd.f32 0.0, %v3978
  %v3980 = vpop.f32.mrb[0].mxu0
  %3981 = vmatprep.mubr.f32.mxu0 0.0
  %3982 = vmatmul.mubr.f32.gmra.mrb[0].mxu0 %v3309
  %v3983 = vpop.f32.mrb[0].mxu0
  %v3984 = vadd.f32 0.0, %v3983
  %v3985 = vpop.f32.mrb[0].mxu0
  %3986 = vmatprep.mubr.f32.mxu0 0.0
  %3987 = vmatmul.mubr.f32.gmra.mrb[0].mxu0 %v3312
  %v3988 = vpop.f32.mrb[0].mxu0
  %v3989 = vadd.f32 0.0, %v3988
  %v3990 = vpop.f32.mrb[0].mxu0
  %3991 = vmatprep.mubr.f32.mxu0 0.0
  %3992 = vmatmul.mubr.f32.gmra.mrb[0].mxu0 %v3315
  %v3993 = vpop.f32.mrb[0].mxu0
  %v3994 = vadd.f32 0.0, %v3993
  %v3995 = vpop.f32.mrb[0].mxu0
  %3996 = vmatprep.mubr.f32.mxu0 0.0
  %3997 = vmatmul.mubr.f32.gmra.mrb[0].mxu0 %v3318
  %v3998 = vpop.f32.mrb[0].mxu0
  %v3999 = vadd.f32 0.0, %v3998
  %v4000 = vpop.f32.mrb[0].mxu0
  %4001 = vmatprep.mubr.f32.mxu0 0.0
  %4002 = vmatmul.mubr.f32.gmra.mrb[0].mxu0 %v3321
  %v4003 = vpop.f32.mrb[0].mxu0
  %v4004 = vadd.f32 0.0, %v4003
  %v4005 = vpop.f32.mrb[0].mxu0
  %4006 = vmatprep.mubr.f32.mxu0 0.0
  %4007 = vmatmul.mubr.f32.gmra.mrb[0].mxu0 %v3324
  %v4008 = vpop.f32.mrb[0].mxu0
  %v4009 = vadd.f32 0.0, %v4008
  %v4010 = vpop.f32.mrb[0].mxu0
  %4011 = vmatprep.mubr.f32.mxu0 0.0
  %4012 = vmatmul.mubr.f32.gmra.mrb[0].mxu0 %v3327
  %v4013 = vpop.f32.mrb[0].mxu0
  %v4014 = vadd.f32 0.0, %v4013
  %v4015 = vpop.f32.mrb[0].mxu0
  %4016 = vmatprep.mubr.f32.mxu0 0.0
  %4017 = vmatmul.mubr.f32.gmra.mrb[0].mxu0 %v3330
  %v4018 = vpop.f32.mrb[0].mxu0
  %v4019 = vadd.f32 0.0, %v4018
  %v4020 = vpop.f32.mrb[0].mxu0
  %4021 = vmatprep.mubr.f32.mxu0 0.0
  %4022 = vmatmul.mubr.f32.gmra.mrb[0].mxu0 %v3333
  %v4023 = vpop.f32.mrb[0].mxu0
  %v4024 = vadd.f32 0.0, %v4023
  %v4025 = vpop.f32.mrb[0].mxu0
  %4026 = vmatprep.mubr.f32.mxu0 0.0
  %4027 = vmatmul.mubr.f32.gmra.mrb[0].mxu0 %v3336
  %v4028 = vpop.f32.mrb[0].mxu0
  %v4029 = vadd.f32 0.0, %v4028
  %v4030 = vpop.f32.mrb[0].mxu0
  %4031 = vmatprep.mubr.f32.mxu0 0.0
  %4032 = vmatmul.mubr.f32.gmra.mrb[0].mxu0 %v3339
  %v4033 = vpop.f32.mrb[0].mxu0
  %v4034 = vadd.f32 0.0, %v4033
  %v4035 = vpop.f32.mrb[0].mxu0
  %4036 = vmatprep.mubr.f32.mxu0 0.0
  %4037 = vmatmul.mubr.f32.gmra.mrb[0].mxu0 %v3342
  %v4038 = vpop.f32.mrb[0].mxu0
  %v4039 = vadd.f32 0.0, %v4038
  %v4040 = vpop.f32.mrb[0].mxu0
  %4041 = vmatprep.mubr.f32.mxu0 0.0
  %4042 = vmatmul.mubr.f32.gmra.mrb[0].mxu0 %v3345
  %v4043 = vpop.f32.mrb[0].mxu0
  %v4044 = vadd.f32 0.0, %v4043
  %v4045 = vpop.f32.mrb[0].mxu0
  %4046 = vmatprep.mubr.f32.mxu0 0.0
  %4047 = vmatmul.mubr.f32.gmra.mrb[0].mxu0 %v3348
  %v4048 = vpop.f32.mrb[0].mxu0
  %v4049 = vadd.f32 0.0, %v4048
  %v4050 = vpop.f32.mrb[0].mxu0
  %4051 = vmatprep.mubr.f32.mxu0 0.0
  %4052 = vmatmul.mubr.f32.gmra.mrb[0].mxu0 %v3351
  %v4053 = vpop.f32.mrb[0].mxu0
  %v4054 = vadd.f32 0.0, %v4053
  %v4055 = vpop.f32.mrb[0].mxu0
  %4056 = vmatprep.mubr.f32.mxu0 0.0
  %4057 = vmatmul.mubr.f32.gmra.mrb[0].mxu0 %v3354
  %v4058 = vpop.f32.mrb[0].mxu0
  %v4059 = vadd.f32 0.0, %v4058
  %v4060 = vpop.f32.mrb[0].mxu0
  %4061 = vmatprep.mubr.f32.mxu0 0.0
  %4062 = vmatmul.mubr.f32.gmra.mrb[0].mxu0 %v3357
  %v4063 = vpop.f32.mrb[0].mxu0
  %v4064 = vadd.f32 0.0, %v4063
  %v4065 = vpop.f32.mrb[0].mxu0
  %4066 = vdwg.mxu0
  %v4067 = vadd.f32 %v2078, %v3429
  %v4068 = vadd.f32 %v2083, %v3434
  %v4069 = vadd.f32 %v2088, %v3439
  %v4070 = vadd.f32 %v2093, %v3444
  %v4071 = vadd.f32 %v2098, %v3449
  %v4072 = vadd.f32 %v2103, %v3454
  %v4073 = vadd.f32 %v2108, %v3459
  %v4074 = vadd.f32 %v2113, %v3464
  %v4075 = vadd.f32 %v2118, %v3469
  %v4076 = vadd.f32 %v2123, %v3474
  %v4077 = vadd.f32 %v2128, %v3479
  %v4078 = vadd.f32 %v2133, %v3484
  %v4079 = vadd.f32 %v2138, %v3489
  %v4080 = vadd.f32 %v2143, %v3494
  %v4081 = vadd.f32 %v2148, %v3499
  %v4082 = vadd.f32 %v2153, %v3504
  %v4083 = vadd.f32 %v2158, %v3509
  %v4084 = vadd.f32 %v2163, %v3514
  %v4085 = vadd.f32 %v2168, %v3519
  %v4086 = vadd.f32 %v2173, %v3524
  %v4087 = vadd.f32 %v2178, %v3529
  %v4088 = vadd.f32 %v2183, %v3534
  %v4089 = vadd.f32 %v2188, %v3539
  %v4090 = vadd.f32 %v2193, %v3544
  %v4091 = vadd.f32 %v2198, %v3549
  %v4092 = vadd.f32 %v2203, %v3554
  %v4093 = vadd.f32 %v2208, %v3559
  %v4094 = vadd.f32 %v2213, %v3564
  %v4095 = vadd.f32 %v2218, %v3569
  %v4096 = vadd.f32 %v2223, %v3574
  %v4097 = vadd.f32 %v2228, %v3579
  %v4098 = vadd.f32 %v2233, %v3584
  %v4099 = vadd.f32 %v2238, %v3589
  %v4100 = vadd.f32 %v2243, %v3594
  %v4101 = vadd.f32 %v2248, %v3599
  %v4102 = vadd.f32 %v2253, %v3604
  %v4103 = vadd.f32 %v2258, %v3609
  %v4104 = vadd.f32 %v2263, %v3614
  %v4105 = vadd.f32 %v2268, %v3619
  %v4106 = vadd.f32 %v2273, %v3624
  %v4107 = vadd.f32 %v2278, %v3629
  %v4108 = vadd.f32 %v2283, %v3634
  %v4109 = vadd.f32 %v2288, %v3639
  %v4110 = vadd.f32 %v2293, %v3644
  %v4111 = vadd.f32 %v2298, %v3649
  %v4112 = vadd.f32 %v2303, %v3654
  %v4113 = vadd.f32 %v2308, %v3659
  %v4114 = vadd.f32 %v2313, %v3664
  %v4115 = vadd.f32 %v2318, %v3669
  %v4116 = vadd.f32 %v2323, %v3674
  %v4117 = vadd.f32 %v2328, %v3679
  %v4118 = vadd.f32 %v2333, %v3684
  %v4119 = vadd.f32 %v2338, %v3689
  %v4120 = vadd.f32 %v2343, %v3694
  %v4121 = vadd.f32 %v2348, %v3699
  %v4122 = vadd.f32 %v2353, %v3704
  %v4123 = vadd.f32 %v2358, %v3709
  %v4124 = vadd.f32 %v2363, %v3714
  %v4125 = vadd.f32 %v2368, %v3719
  %v4126 = vadd.f32 %v2373, %v3724
  %v4127 = vadd.f32 %v2378, %v3729
  %v4128 = vadd.f32 %v2383, %v3734
  %v4129 = vadd.f32 %v2388, %v3739
  %v4130 = vadd.f32 %v2393, %v3744
  %v4131 = vadd.f32 %v2398, %v3749
  %v4132 = vadd.f32 %v2403, %v3754
  %v4133 = vadd.f32 %v2408, %v3759
  %v4134 = vadd.f32 %v2413, %v3764
  %v4135 = vadd.f32 %v2418, %v3769
  %v4136 = vadd.f32 %v2423, %v3774
  %v4137 = vadd.f32 %v2428, %v3779
  %v4138 = vadd.f32 %v2433, %v3784
  %v4139 = vadd.f32 %v2438, %v3789
  %v4140 = vadd.f32 %v2443, %v3794
  %v4141 = vadd.f32 %v2448, %v3799
  %v4142 = vadd.f32 %v2453, %v3804
  %v4143 = vadd.f32 %v2458, %v3809
  %v4144 = vadd.f32 %v2463, %v3814
  %v4145 = vadd.f32 %v2468, %v3819
  %v4146 = vadd.f32 %v2473, %v3824
  %v4147 = vadd.f32 %v2478, %v3829
  %v4148 = vadd.f32 %v2483, %v3834
  %v4149 = vadd.f32 %v2488, %v3839
  %v4150 = vadd.f32 %v2493, %v3844
  %v4151 = vadd.f32 %v2498, %v3849
  %v4152 = vadd.f32 %v2503, %v3854
  %v4153 = vadd.f32 %v2508, %v3859
  %v4154 = vadd.f32 %v2513, %v3864
  %v4155 = vadd.f32 %v2518, %v3869
  %v4156 = vadd.f32 %v2523, %v3874
  %v4157 = vadd.f32 %v2528, %v3879
  %v4158 = vadd.f32 %v2533, %v3884
  %v4159 = vadd.f32 %v2538, %v3889
  %v4160 = vadd.f32 %v2543, %v3894
  %v4161 = vadd.f32 %v2548, %v3899
  %v4162 = vadd.f32 %v2553, %v3904
  %v4163 = vadd.f32 %v2558, %v3909
  %v4164 = vadd.f32 %v2563, %v3914
  %v4165 = vadd.f32 %v2568, %v3919
  %v4166 = vadd.f32 %v2573, %v3924
  %v4167 = vadd.f32 %v2578, %v3929
  %v4168 = vadd.f32 %v2583, %v3934
  %v4169 = vadd.f32 %v2588, %v3939
  %v4170 = vadd.f32 %v2593, %v3944
  %v4171 = vadd.f32 %v2598, %v3949
  %v4172 = vadd.f32 %v2603, %v3954
  %v4173 = vadd.f32 %v2608, %v3959
  %v4174 = vadd.f32 %v2613, %v3964
  %v4175 = vadd.f32 %v2618, %v3969
  %v4176 = vadd.f32 %v2623, %v3974
  %v4177 = vadd.f32 %v2628, %v3979
  %v4178 = vadd.f32 %v2633, %v3984
  %v4179 = vadd.f32 %v2638, %v3989
  %v4180 = vadd.f32 %v2643, %v3994
  %v4181 = vadd.f32 %v2648, %v3999
  %v4182 = vadd.f32 %v2653, %v4004
  %v4183 = vadd.f32 %v2658, %v4009
  %v4184 = vadd.f32 %v2663, %v4014
  %v4185 = vadd.f32 %v2668, %v4019
  %v4186 = vadd.f32 %v2673, %v4024
  %v4187 = vadd.f32 %v2678, %v4029
  %v4188 = vadd.f32 %v2683, %v4034
  %v4189 = vadd.f32 %v2688, %v4039
  %v4190 = vadd.f32 %v2693, %v4044
  %v4191 = vadd.f32 %v2698, %v4049
  %v4192 = vadd.f32 %v2703, %v4054
  %v4193 = vadd.f32 %v2708, %v4059
  %v4194 = vadd.f32 %v2713, %v4064
  %s4195 = scalar_lea.vmem %s0, 68
  %v4196 = vld [vmem:[%s4195] sm:$0xf]
  %v4197 = vld [vmem:[%s4195 + $0x8] sm:$0xf]
  %v4198 = vld [vmem:[%s4195 + $0x10] sm:$0xf]
  %v4199 = vld [vmem:[%s4195 + $0x18] sm:$0xf]
  %v4200 = vld [vmem:[%s4195 + $0x20] sm:$0xf]
  %v4201 = vld [vmem:[%s4195 + $0x28] sm:$0xf]
  %v4202 = vld [vmem:[%s4195 + $0x30] sm:$0xf]
  %v4203 = vld [vmem:[%s4195 + $0x38] sm:$0xf]
  %v4204 = vld [vmem:[%s4195 + $0x80] sm:$0xf]
  %v4205 = vld [vmem:[%s4195 + $0x88] sm:$0xf]
  %v4206 = vld [vmem:[%s4195 + $0x90] sm:$0xf]
  %v4207 = vld [vmem:[%s4195 + $0x98] sm:$0xf]
  %v4208 = vld [vmem:[%s4195 + $0xa0] sm:$0xf]
  %v4209 = vld [vmem:[%s4195 + $0xa8] sm:$0xf]
  %v4210 = vld [vmem:[%s4195 + $0xb0] sm:$0xf]
  %v4211 = vld [vmem:[%s4195 + $0xb8] sm:$0xf]
  %v4212 = vld [vmem:[%s4195 + $0x100] sm:$0xf]
  %v4213 = vld [vmem:[%s4195 + $0x108] sm:$0xf]
  %v4214 = vld [vmem:[%s4195 + $0x110] sm:$0xf]
  %v4215 = vld [vmem:[%s4195 + $0x118] sm:$0xf]
  %v4216 = vld [vmem:[%s4195 + $0x120] sm:$0xf]
  %v4217 = vld [vmem:[%s4195 + $0x128] sm:$0xf]
  %v4218 = vld [vmem:[%s4195 + $0x130] sm:$0xf]
  %v4219 = vld [vmem:[%s4195 + $0x138] sm:$0xf]
  %v4220 = vld [vmem:[%s4195 + $0x180] sm:$0xf]
  %v4221 = vld [vmem:[%s4195 + $0x188] sm:$0xf]
  %v4222 = vld [vmem:[%s4195 + $0x190] sm:$0xf]
  %v4223 = vld [vmem:[%s4195 + $0x198] sm:$0xf]
  %v4224 = vld [vmem:[%s4195 + $0x1a0] sm:$0xf]
  %v4225 = vld [vmem:[%s4195 + $0x1a8] sm:$0xf]
  %v4226 = vld [vmem:[%s4195 + $0x1b0] sm:$0xf]
  %v4227 = vld [vmem:[%s4195 + $0x1b8] sm:$0xf]
  %v4228 = vld [vmem:[%s4195 + $0x200] sm:$0xf]
  %v4229 = vld [vmem:[%s4195 + $0x208] sm:$0xf]
  %v4230 = vld [vmem:[%s4195 + $0x210] sm:$0xf]
  %v4231 = vld [vmem:[%s4195 + $0x218] sm:$0xf]
  %v4232 = vld [vmem:[%s4195 + $0x220] sm:$0xf]
  %v4233 = vld [vmem:[%s4195 + $0x228] sm:$0xf]
  %v4234 = vld [vmem:[%s4195 + $0x230] sm:$0xf]
  %v4235 = vld [vmem:[%s4195 + $0x238] sm:$0xf]
  %v4236 = vld [vmem:[%s4195 + $0x280] sm:$0xf]
  %v4237 = vld [vmem:[%s4195 + $0x288] sm:$0xf]
  %v4238 = vld [vmem:[%s4195 + $0x290] sm:$0xf]
  %v4239 = vld [vmem:[%s4195 + $0x298] sm:$0xf]
  %v4240 = vld [vmem:[%s4195 + $0x2a0] sm:$0xf]
  %v4241 = vld [vmem:[%s4195 + $0x2a8] sm:$0xf]
  %v4242 = vld [vmem:[%s4195 + $0x2b0] sm:$0xf]
  %v4243 = vld [vmem:[%s4195 + $0x2b8] sm:$0xf]
  %v4244 = vld [vmem:[%s4195 + $0x300] sm:$0xf]
  %v4245 = vld [vmem:[%s4195 + $0x308] sm:$0xf]
  %v4246 = vld [vmem:[%s4195 + $0x310] sm:$0xf]
  %v4247 = vld [vmem:[%s4195 + $0x318] sm:$0xf]
  %v4248 = vld [vmem:[%s4195 + $0x320] sm:$0xf]
  %v4249 = vld [vmem:[%s4195 + $0x328] sm:$0xf]
  %v4250 = vld [vmem:[%s4195 + $0x330] sm:$0xf]
  %v4251 = vld [vmem:[%s4195 + $0x338] sm:$0xf]
  %v4252 = vld [vmem:[%s4195 + $0x380] sm:$0xf]
  %v4253 = vld [vmem:[%s4195 + $0x388] sm:$0xf]
  %v4254 = vld [vmem:[%s4195 + $0x390] sm:$0xf]
  %v4255 = vld [vmem:[%s4195 + $0x398] sm:$0xf]
  %v4256 = vld [vmem:[%s4195 + $0x3a0] sm:$0xf]
  %v4257 = vld [vmem:[%s4195 + $0x3a8] sm:$0xf]
  %v4258 = vld [vmem:[%s4195 + $0x3b0] sm:$0xf]
  %v4259 = vld [vmem:[%s4195 + $0x3b8] sm:$0xf]
  %v4260 = vld [vmem:[%s4195 + $0x400] sm:$0xf]
  %v4261 = vld [vmem:[%s4195 + $0x408] sm:$0xf]
  %v4262 = vld [vmem:[%s4195 + $0x410] sm:$0xf]
  %v4263 = vld [vmem:[%s4195 + $0x418] sm:$0xf]
  %v4264 = vld [vmem:[%s4195 + $0x420] sm:$0xf]
  %v4265 = vld [vmem:[%s4195 + $0x428] sm:$0xf]
  %v4266 = vld [vmem:[%s4195 + $0x430] sm:$0xf]
  %v4267 = vld [vmem:[%s4195 + $0x438] sm:$0xf]
  %v4268 = vld [vmem:[%s4195 + $0x480] sm:$0xf]
  %v4269 = vld [vmem:[%s4195 + $0x488] sm:$0xf]
  %v4270 = vld [vmem:[%s4195 + $0x490] sm:$0xf]
  %v4271 = vld [vmem:[%s4195 + $0x498] sm:$0xf]
  %v4272 = vld [vmem:[%s4195 + $0x4a0] sm:$0xf]
  %v4273 = vld [vmem:[%s4195 + $0x4a8] sm:$0xf]
  %v4274 = vld [vmem:[%s4195 + $0x4b0] sm:$0xf]
  %v4275 = vld [vmem:[%s4195 + $0x4b8] sm:$0xf]
  %v4276 = vld [vmem:[%s4195 + $0x500] sm:$0xf]
  %v4277 = vld [vmem:[%s4195 + $0x508] sm:$0xf]
  %v4278 = vld [vmem:[%s4195 + $0x510] sm:$0xf]
  %v4279 = vld [vmem:[%s4195 + $0x518] sm:$0xf]
  %v4280 = vld [vmem:[%s4195 + $0x520] sm:$0xf]
  %v4281 = vld [vmem:[%s4195 + $0x528] sm:$0xf]
  %v4282 = vld [vmem:[%s4195 + $0x530] sm:$0xf]
  %v4283 = vld [vmem:[%s4195 + $0x538] sm:$0xf]
  %v4284 = vld [vmem:[%s4195 + $0x580] sm:$0xf]
  %v4285 = vld [vmem:[%s4195 + $0x588] sm:$0xf]
  %v4286 = vld [vmem:[%s4195 + $0x590] sm:$0xf]
  %v4287 = vld [vmem:[%s4195 + $0x598] sm:$0xf]
  %v4288 = vld [vmem:[%s4195 + $0x5a0] sm:$0xf]
  %v4289 = vld [vmem:[%s4195 + $0x5a8] sm:$0xf]
  %v4290 = vld [vmem:[%s4195 + $0x5b0] sm:$0xf]
  %v4291 = vld [vmem:[%s4195 + $0x5b8] sm:$0xf]
  %v4292 = vld [vmem:[%s4195 + $0x600] sm:$0xf]
  %v4293 = vld [vmem:[%s4195 + $0x608] sm:$0xf]
  %v4294 = vld [vmem:[%s4195 + $0x610] sm:$0xf]
  %v4295 = vld [vmem:[%s4195 + $0x618] sm:$0xf]
  %v4296 = vld [vmem:[%s4195 + $0x620] sm:$0xf]
  %v4297 = vld [vmem:[%s4195 + $0x628] sm:$0xf]
  %v4298 = vld [vmem:[%s4195 + $0x630] sm:$0xf]
  %v4299 = vld [vmem:[%s4195 + $0x638] sm:$0xf]
  %v4300 = vld [vmem:[%s4195 + $0x680] sm:$0xf]
  %v4301 = vld [vmem:[%s4195 + $0x688] sm:$0xf]
  %v4302 = vld [vmem:[%s4195 + $0x690] sm:$0xf]
  %v4303 = vld [vmem:[%s4195 + $0x698] sm:$0xf]
  %v4304 = vld [vmem:[%s4195 + $0x6a0] sm:$0xf]
  %v4305 = vld [vmem:[%s4195 + $0x6a8] sm:$0xf]
  %v4306 = vld [vmem:[%s4195 + $0x6b0] sm:$0xf]
  %v4307 = vld [vmem:[%s4195 + $0x6b8] sm:$0xf]
  %v4308 = vld [vmem:[%s4195 + $0x700] sm:$0xf]
  %v4309 = vld [vmem:[%s4195 + $0x708] sm:$0xf]
  %v4310 = vld [vmem:[%s4195 + $0x710] sm:$0xf]
  %v4311 = vld [vmem:[%s4195 + $0x718] sm:$0xf]
  %v4312 = vld [vmem:[%s4195 + $0x720] sm:$0xf]
  %v4313 = vld [vmem:[%s4195 + $0x728] sm:$0xf]
  %v4314 = vld [vmem:[%s4195 + $0x730] sm:$0xf]
  %v4315 = vld [vmem:[%s4195 + $0x738] sm:$0xf]
  %v4316 = vld [vmem:[%s4195 + $0x780] sm:$0xf]
  %v4317 = vld [vmem:[%s4195 + $0x788] sm:$0xf]
  %v4318 = vld [vmem:[%s4195 + $0x790] sm:$0xf]
  %v4319 = vld [vmem:[%s4195 + $0x798] sm:$0xf]
  %v4320 = vld [vmem:[%s4195 + $0x7a0] sm:$0xf]
  %v4321 = vld [vmem:[%s4195 + $0x7a8] sm:$0xf]
  %v4322 = vld [vmem:[%s4195 + $0x7b0] sm:$0xf]
  %v4323 = vld [vmem:[%s4195 + $0x7b8] sm:$0xf]
  %v4324 = vunpack.c.l.bf16 %v4196
  %v4325 = vunpack.c.l.bf16 %v4197
  %v4326 = vunpack.c.l.bf16 %v4198
  %v4327 = vunpack.c.l.bf16 %v4199
  %v4328 = vunpack.c.l.bf16 %v4200
  %v4329 = vunpack.c.l.bf16 %v4201
  %v4330 = vunpack.c.l.bf16 %v4202
  %v4331 = vunpack.c.l.bf16 %v4203
  %v4332 = vunpack.c.l.bf16 %v4204
  %v4333 = vunpack.c.l.bf16 %v4205
  %v4334 = vunpack.c.l.bf16 %v4206
  %v4335 = vunpack.c.l.bf16 %v4207
  %v4336 = vunpack.c.l.bf16 %v4208
  %v4337 = vunpack.c.l.bf16 %v4209
  %v4338 = vunpack.c.l.bf16 %v4210
  %v4339 = vunpack.c.l.bf16 %v4211
  %v4340 = vunpack.c.l.bf16 %v4212
  %v4341 = vunpack.c.l.bf16 %v4213
  %v4342 = vunpack.c.l.bf16 %v4214
  %v4343 = vunpack.c.l.bf16 %v4215
  %v4344 = vunpack.c.l.bf16 %v4216
  %v4345 = vunpack.c.l.bf16 %v4217
  %v4346 = vunpack.c.l.bf16 %v4218
  %v4347 = vunpack.c.l.bf16 %v4219
  %v4348 = vunpack.c.l.bf16 %v4220
  %v4349 = vunpack.c.l.bf16 %v4221
  %v4350 = vunpack.c.l.bf16 %v4222
  %v4351 = vunpack.c.l.bf16 %v4223
  %v4352 = vunpack.c.l.bf16 %v4224
  %v4353 = vunpack.c.l.bf16 %v4225
  %v4354 = vunpack.c.l.bf16 %v4226
  %v4355 = vunpack.c.l.bf16 %v4227
  %v4356 = vunpack.c.l.bf16 %v4228
  %v4357 = vunpack.c.l.bf16 %v4229
  %v4358 = vunpack.c.l.bf16 %v4230
  %v4359 = vunpack.c.l.bf16 %v4231
  %v4360 = vunpack.c.l.bf16 %v4232
  %v4361 = vunpack.c.l.bf16 %v4233
  %v4362 = vunpack.c.l.bf16 %v4234
  %v4363 = vunpack.c.l.bf16 %v4235
  %v4364 = vunpack.c.l.bf16 %v4236
  %v4365 = vunpack.c.l.bf16 %v4237
  %v4366 = vunpack.c.l.bf16 %v4238
  %v4367 = vunpack.c.l.bf16 %v4239
  %v4368 = vunpack.c.l.bf16 %v4240
  %v4369 = vunpack.c.l.bf16 %v4241
  %v4370 = vunpack.c.l.bf16 %v4242
  %v4371 = vunpack.c.l.bf16 %v4243
  %v4372 = vunpack.c.l.bf16 %v4244
  %v4373 = vunpack.c.l.bf16 %v4245
  %v4374 = vunpack.c.l.bf16 %v4246
  %v4375 = vunpack.c.l.bf16 %v4247
  %v4376 = vunpack.c.l.bf16 %v4248
  %v4377 = vunpack.c.l.bf16 %v4249
  %v4378 = vunpack.c.l.bf16 %v4250
  %v4379 = vunpack.c.l.bf16 %v4251
  %v4380 = vunpack.c.l.bf16 %v4252
  %v4381 = vunpack.c.l.bf16 %v4253
  %v4382 = vunpack.c.l.bf16 %v4254
  %v4383 = vunpack.c.l.bf16 %v4255
  %v4384 = vunpack.c.l.bf16 %v4256
  %v4385 = vunpack.c.l.bf16 %v4257
  %v4386 = vunpack.c.l.bf16 %v4258
  %v4387 = vunpack.c.l.bf16 %v4259
  %v4388 = vunpack.c.l.bf16 %v4260
  %v4389 = vunpack.c.l.bf16 %v4261
  %v4390 = vunpack.c.l.bf16 %v4262
  %v4391 = vunpack.c.l.bf16 %v4263
  %v4392 = vunpack.c.l.bf16 %v4264
  %v4393 = vunpack.c.l.bf16 %v4265
  %v4394 = vunpack.c.l.bf16 %v4266
  %v4395 = vunpack.c.l.bf16 %v4267
  %v4396 = vunpack.c.l.bf16 %v4268
  %v4397 = vunpack.c.l.bf16 %v4269
  %v4398 = vunpack.c.l.bf16 %v4270
  %v4399 = vunpack.c.l.bf16 %v4271
  %v4400 = vunpack.c.l.bf16 %v4272
  %v4401 = vunpack.c.l.bf16 %v4273
  %v4402 = vunpack.c.l.bf16 %v4274
  %v4403 = vunpack.c.l.bf16 %v4275
  %v4404 = vunpack.c.l.bf16 %v4276
  %v4405 = vunpack.c.l.bf16 %v4277
  %v4406 = vunpack.c.l.bf16 %v4278
  %v4407 = vunpack.c.l.bf16 %v4279
  %v4408 = vunpack.c.l.bf16 %v4280
  %v4409 = vunpack.c.l.bf16 %v4281
  %v4410 = vunpack.c.l.bf16 %v4282
  %v4411 = vunpack.c.l.bf16 %v4283
  %v4412 = vunpack.c.l.bf16 %v4284
  %v4413 = vunpack.c.l.bf16 %v4285
  %v4414 = vunpack.c.l.bf16 %v4286
  %v4415 = vunpack.c.l.bf16 %v4287
  %v4416 = vunpack.c.l.bf16 %v4288
  %v4417 = vunpack.c.l.bf16 %v4289
  %v4418 = vunpack.c.l.bf16 %v4290
  %v4419 = vunpack.c.l.bf16 %v4291
  %v4420 = vunpack.c.l.bf16 %v4292
  %v4421 = vunpack.c.l.bf16 %v4293
  %v4422 = vunpack.c.l.bf16 %v4294
  %v4423 = vunpack.c.l.bf16 %v4295
  %v4424 = vunpack.c.l.bf16 %v4296
  %v4425 = vunpack.c.l.bf16 %v4297
  %v4426 = vunpack.c.l.bf16 %v4298
  %v4427 = vunpack.c.l.bf16 %v4299
  %v4428 = vunpack.c.l.bf16 %v4300
  %v4429 = vunpack.c.l.bf16 %v4301
  %v4430 = vunpack.c.l.bf16 %v4302
  %v4431 = vunpack.c.l.bf16 %v4303
  %v4432 = vunpack.c.l.bf16 %v4304
  %v4433 = vunpack.c.l.bf16 %v4305
  %v4434 = vunpack.c.l.bf16 %v4306
  %v4435 = vunpack.c.l.bf16 %v4307
  %v4436 = vunpack.c.l.bf16 %v4308
  %v4437 = vunpack.c.l.bf16 %v4309
  %v4438 = vunpack.c.l.bf16 %v4310
  %v4439 = vunpack.c.l.bf16 %v4311
  %v4440 = vunpack.c.l.bf16 %v4312
  %v4441 = vunpack.c.l.bf16 %v4313
  %v4442 = vunpack.c.l.bf16 %v4314
  %v4443 = vunpack.c.l.bf16 %v4315
  %v4444 = vunpack.c.l.bf16 %v4316
  %v4445 = vunpack.c.l.bf16 %v4317
  %v4446 = vunpack.c.l.bf16 %v4318
  %v4447 = vunpack.c.l.bf16 %v4319
  %v4448 = vunpack.c.l.bf16 %v4320
  %v4449 = vunpack.c.l.bf16 %v4321
  %v4450 = vunpack.c.l.bf16 %v4322
  %v4451 = vunpack.c.l.bf16 %v4323
  %s4452 = scalar_lea.vmem %s1, 6
  %v4453 = vld [vmem:[%s4452] sm:$0x3]
  %v4455 = vsel %vm530, %v4324, 0
  %v4458 = vsel %vm530, %v4325, 0
  %v4461 = vsel %vm530, %v4326, 0
  %v4464 = vsel %vm530, %v4327, 0
  %v4467 = vsel %vm530, %v4328, 0
  %v4470 = vsel %vm530, %v4329, 0
  %v4473 = vsel %vm530, %v4330, 0
  %v4476 = vsel %vm530, %v4331, 0
  %v4479 = vsel %vm530, %v4332, 0
  %v4482 = vsel %vm530, %v4333, 0
  %v4485 = vsel %vm530, %v4334, 0
  %v4488 = vsel %vm530, %v4335, 0
  %v4491 = vsel %vm530, %v4336, 0
  %v4494 = vsel %vm530, %v4337, 0
  %v4497 = vsel %vm530, %v4338, 0
  %v4500 = vsel %vm530, %v4339, 0
  %v4503 = vsel %vm530, %v4340, 0
  %v4506 = vsel %vm530, %v4341, 0
  %v4509 = vsel %vm530, %v4342, 0
  %v4512 = vsel %vm530, %v4343, 0
  %v4515 = vsel %vm530, %v4344, 0
  %v4518 = vsel %vm530, %v4345, 0
  %v4521 = vsel %vm530, %v4346, 0
  %v4524 = vsel %vm530, %v4347, 0
  %v4527 = vsel %vm530, %v4348, 0
  %v4530 = vsel %vm530, %v4349, 0
  %v4533 = vsel %vm530, %v4350, 0
  %v4536 = vsel %vm530, %v4351, 0
  %v4539 = vsel %vm530, %v4352, 0
  %v4542 = vsel %vm530, %v4353, 0
  %v4545 = vsel %vm530, %v4354, 0
  %v4548 = vsel %vm530, %v4355, 0
  %v4551 = vsel %vm530, %v4356, 0
  %v4554 = vsel %vm530, %v4357, 0
  %v4557 = vsel %vm530, %v4358, 0
  %v4560 = vsel %vm530, %v4359, 0
  %v4563 = vsel %vm530, %v4360, 0
  %v4566 = vsel %vm530, %v4361, 0
  %v4569 = vsel %vm530, %v4362, 0
  %v4572 = vsel %vm530, %v4363, 0
  %v4575 = vsel %vm530, %v4364, 0
  %v4578 = vsel %vm530, %v4365, 0
  %v4581 = vsel %vm530, %v4366, 0
  %v4584 = vsel %vm530, %v4367, 0
  %v4587 = vsel %vm530, %v4368, 0
  %v4590 = vsel %vm530, %v4369, 0
  %v4593 = vsel %vm530, %v4370, 0
  %v4596 = vsel %vm530, %v4371, 0
  %v4599 = vsel %vm530, %v4372, 0
  %v4602 = vsel %vm530, %v4373, 0
  %v4605 = vsel %vm530, %v4374, 0
  %v4608 = vsel %vm530, %v4375, 0
  %v4611 = vsel %vm530, %v4376, 0
  %v4614 = vsel %vm530, %v4377, 0
  %v4617 = vsel %vm530, %v4378, 0
  %v4620 = vsel %vm530, %v4379, 0
  %v4623 = vsel %vm530, %v4380, 0
  %v4626 = vsel %vm530, %v4381, 0
  %v4629 = vsel %vm530, %v4382, 0
  %v4632 = vsel %vm530, %v4383, 0
  %v4635 = vsel %vm530, %v4384, 0
  %v4638 = vsel %vm530, %v4385, 0
  %v4641 = vsel %vm530, %v4386, 0
  %v4644 = vsel %vm530, %v4387, 0
  %v4647 = vsel %vm530, %v4388, 0
  %v4650 = vsel %vm530, %v4389, 0
  %v4653 = vsel %vm530, %v4390, 0
  %v4656 = vsel %vm530, %v4391, 0
  %v4659 = vsel %vm530, %v4392, 0
  %v4662 = vsel %vm530, %v4393, 0
  %v4665 = vsel %vm530, %v4394, 0
  %v4668 = vsel %vm530, %v4395, 0
  %v4671 = vsel %vm530, %v4396, 0
  %v4674 = vsel %vm530, %v4397, 0
  %v4677 = vsel %vm530, %v4398, 0
  %v4680 = vsel %vm530, %v4399, 0
  %v4683 = vsel %vm530, %v4400, 0
  %v4686 = vsel %vm530, %v4401, 0
  %v4689 = vsel %vm530, %v4402, 0
  %v4692 = vsel %vm530, %v4403, 0
  %v4695 = vsel %vm530, %v4404, 0
  %v4698 = vsel %vm530, %v4405, 0
  %v4701 = vsel %vm530, %v4406, 0
  %v4704 = vsel %vm530, %v4407, 0
  %v4707 = vsel %vm530, %v4408, 0
  %v4710 = vsel %vm530, %v4409, 0
  %v4713 = vsel %vm530, %v4410, 0
  %v4716 = vsel %vm530, %v4411, 0
  %v4719 = vsel %vm530, %v4412, 0
  %v4722 = vsel %vm530, %v4413, 0
  %v4725 = vsel %vm530, %v4414, 0
  %v4728 = vsel %vm530, %v4415, 0
  %v4731 = vsel %vm530, %v4416, 0
  %v4734 = vsel %vm530, %v4417, 0
  %v4737 = vsel %vm530, %v4418, 0
  %v4740 = vsel %vm530, %v4419, 0
  %v4743 = vsel %vm530, %v4420, 0
  %v4746 = vsel %vm530, %v4421, 0
  %v4749 = vsel %vm530, %v4422, 0
  %v4752 = vsel %vm530, %v4423, 0
  %v4755 = vsel %vm530, %v4424, 0
  %v4758 = vsel %vm530, %v4425, 0
  %v4761 = vsel %vm530, %v4426, 0
  %v4764 = vsel %vm530, %v4427, 0
  %v4767 = vsel %vm530, %v4428, 0
  %v4770 = vsel %vm530, %v4429, 0
  %v4773 = vsel %vm530, %v4430, 0
  %v4776 = vsel %vm530, %v4431, 0
  %v4779 = vsel %vm530, %v4432, 0
  %v4782 = vsel %vm530, %v4433, 0
  %v4785 = vsel %vm530, %v4434, 0
  %v4788 = vsel %vm530, %v4435, 0
  %v4791 = vsel %vm530, %v4436, 0
  %v4794 = vsel %vm530, %v4437, 0
  %v4797 = vsel %vm530, %v4438, 0
  %v4800 = vsel %vm530, %v4439, 0
  %v4803 = vsel %vm530, %v4440, 0
  %v4806 = vsel %vm530, %v4441, 0
  %v4809 = vsel %vm530, %v4442, 0
  %v4812 = vsel %vm530, %v4443, 0
  %v4815 = vsel %vm530, %v4444, 0
  %v4818 = vsel %vm530, %v4445, 0
  %v4821 = vsel %vm530, %v4446, 0
  %v4824 = vsel %vm530, %v4447, 0
  %v4827 = vsel %vm530, %v4448, 0
  %v4830 = vsel %vm530, %v4449, 0
  %v4833 = vsel %vm530, %v4450, 0
  %v4836 = vsel %vm530, %v4451, 0
  %v4839 = vsel %vm915, %v4453, 0
  %4841 = vmatprep.subr.mxu0 0.0
  %4842 = vmatpush1.msra.mxu0 %v4839
  %4843 = vmatprep.subr.mxu0 0.0
  %4844 = vmatpush1.msra.mxu0 0.0
  %4845 = vmatprep.subr.mxu0 0.0
  %4846 = vmatpush1.msra.mxu0 0.0
  %4847 = vmatprep.subr.mxu0 0.0
  %4848 = vmatpush1.msra.mxu0 0.0
  %4849 = vmatprep.subr.mxu0 0.0
  %4850 = vmatpush1.msra.mxu0 0.0
  %4851 = vmatprep.subr.mxu0 0.0
  %4852 = vmatpush1.msra.mxu0 0.0
  %4853 = vmatprep.subr.mxu0 0.0
  %4854 = vmatpush1.msra.mxu0 0.0
  %4855 = vmatprep.subr.mxu0 0.0
  %4856 = vmatpush1.msra.mxu0 0.0
  %4857 = vmatprep.subr.mxu0 0.0
  %4858 = vmatpush1.msra.mxu0 0.0
  %4859 = vmatprep.subr.mxu0 0.0
  %4860 = vmatpush1.msra.mxu0 0.0
  %4861 = vmatprep.subr.mxu0 0.0
  %4862 = vmatpush1.msra.mxu0 0.0
  %4863 = vmatprep.subr.mxu0 0.0
  %4864 = vmatpush1.msra.mxu0 0.0
  %4865 = vmatprep.subr.mxu0 0.0
  %4866 = vmatpush1.msra.mxu0 0.0
  %4867 = vmatprep.subr.mxu0 0.0
  %4868 = vmatpush1.msra.mxu0 0.0
  %4869 = vmatprep.subr.mxu0 0.0
  %4870 = vmatpush1.msra.mxu0 0.0
  %4871 = vmatprep.subr.mxu0 0.0
  %4872 = vmatpush1.msra.mxu0 0.0
  %4873 = vmatprep.subr.mxu0 0.0
  %4874 = vmatpush1.msra.mxu0 0.0
  %4875 = vmatprep.subr.mxu0 0.0
  %4876 = vmatpush1.msra.mxu0 0.0
  %4877 = vmatprep.subr.mxu0 0.0
  %4878 = vmatpush1.msra.mxu0 0.0
  %4879 = vmatprep.subr.mxu0 0.0
  %4880 = vmatpush1.msra.mxu0 0.0
  %4881 = vmatprep.subr.mxu0 0.0
  %4882 = vmatpush1.msra.mxu0 0.0
  %4883 = vmatprep.subr.mxu0 0.0
  %4884 = vmatpush1.msra.mxu0 0.0
  %4885 = vmatprep.subr.mxu0 0.0
  %4886 = vmatpush1.msra.mxu0 0.0
  %4887 = vmatprep.subr.mxu0 0.0
  %4888 = vmatpush1.msra.mxu0 0.0
  %4889 = vmatprep.subr.mxu0 0.0
  %4890 = vmatpush1.msra.mxu0 0.0
  %4891 = vmatprep.subr.mxu0 0.0
  %4892 = vmatpush1.msra.mxu0 0.0
  %4893 = vmatprep.subr.mxu0 0.0
  %4894 = vmatpush1.msra.mxu0 0.0
  %4895 = vmatprep.subr.mxu0 0.0
  %4896 = vmatpush1.msra.mxu0 0.0
  %4897 = vmatprep.subr.mxu0 0.0
  %4898 = vmatpush1.msra.mxu0 0.0
  %4899 = vmatprep.subr.mxu0 0.0
  %4900 = vmatpush1.msra.mxu0 0.0
  %4901 = vmatprep.subr.mxu0 0.0
  %4902 = vmatpush1.msra.mxu0 0.0
  %4903 = vmatprep.subr.mxu0 0.0
  %4904 = vmatpush1.msra.mxu0 0.0
  %4905 = vmatprep.mubr.f32.mxu0 0.0
  %4906 = vmatmul.mubr.f32.gmra.mrb[0].mxu0 %v4455
  %v4907 = vpop.f32.mrb[0].mxu0
  %v4908 = vadd.f32 0.0, %v4907
  %v4909 = vpop.f32.mrb[0].mxu0
  %4910 = vmatprep.mubr.f32.mxu0 0.0
  %4911 = vmatmul.mubr.f32.gmra.mrb[0].mxu0 %v4458
  %v4912 = vpop.f32.mrb[0].mxu0
  %v4913 = vadd.f32 0.0, %v4912
  %v4914 = vpop.f32.mrb[0].mxu0
  %4915 = vmatprep.mubr.f32.mxu0 0.0
  %4916 = vmatmul.mubr.f32.gmra.mrb[0].mxu0 %v4461
  %v4917 = vpop.f32.mrb[0].mxu0
  %v4918 = vadd.f32 0.0, %v4917
  %v4919 = vpop.f32.mrb[0].mxu0
  %4920 = vmatprep.mubr.f32.mxu0 0.0
  %4921 = vmatmul.mubr.f32.gmra.mrb[0].mxu0 %v4464
  %v4922 = vpop.f32.mrb[0].mxu0
  %v4923 = vadd.f32 0.0, %v4922
  %v4924 = vpop.f32.mrb[0].mxu0
  %4925 = vmatprep.mubr.f32.mxu0 0.0
  %4926 = vmatmul.mubr.f32.gmra.mrb[0].mxu0 %v4467
  %v4927 = vpop.f32.mrb[0].mxu0
  %v4928 = vadd.f32 0.0, %v4927
  %v4929 = vpop.f32.mrb[0].mxu0
  %4930 = vmatprep.mubr.f32.mxu0 0.0
  %4931 = vmatmul.mubr.f32.gmra.mrb[0].mxu0 %v4470
  %v4932 = vpop.f32.mrb[0].mxu0
  %v4933 = vadd.f32 0.0, %v4932
  %v4934 = vpop.f32.mrb[0].mxu0
  %4935 = vmatprep.mubr.f32.mxu0 0.0
  %4936 = vmatmul.mubr.f32.gmra.mrb[0].mxu0 %v4473
  %v4937 = vpop.f32.mrb[0].mxu0
  %v4938 = vadd.f32 0.0, %v4937
  %v4939 = vpop.f32.mrb[0].mxu0
  %4940 = vmatprep.mubr.f32.mxu0 0.0
  %4941 = vmatmul.mubr.f32.gmra.mrb[0].mxu0 %v4476
  %v4942 = vpop.f32.mrb[0].mxu0
  %v4943 = vadd.f32 0.0, %v4942
  %v4944 = vpop.f32.mrb[0].mxu0
  %4945 = vmatprep.mubr.f32.mxu0 0.0
  %4946 = vmatmul.mubr.f32.gmra.mrb[0].mxu0 %v4479
  %v4947 = vpop.f32.mrb[0].mxu0
  %v4948 = vadd.f32 0.0, %v4947
  %v4949 = vpop.f32.mrb[0].mxu0
  %4950 = vmatprep.mubr.f32.mxu0 0.0
  %4951 = vmatmul.mubr.f32.gmra.mrb[0].mxu0 %v4482
  %v4952 = vpop.f32.mrb[0].mxu0
  %v4953 = vadd.f32 0.0, %v4952
  %v4954 = vpop.f32.mrb[0].mxu0
  %4955 = vmatprep.mubr.f32.mxu0 0.0
  %4956 = vmatmul.mubr.f32.gmra.mrb[0].mxu0 %v4485
  %v4957 = vpop.f32.mrb[0].mxu0
  %v4958 = vadd.f32 0.0, %v4957
  %v4959 = vpop.f32.mrb[0].mxu0
  %4960 = vmatprep.mubr.f32.mxu0 0.0
  %4961 = vmatmul.mubr.f32.gmra.mrb[0].mxu0 %v4488
  %v4962 = vpop.f32.mrb[0].mxu0
  %v4963 = vadd.f32 0.0, %v4962
  %v4964 = vpop.f32.mrb[0].mxu0
  %4965 = vmatprep.mubr.f32.mxu0 0.0
  %4966 = vmatmul.mubr.f32.gmra.mrb[0].mxu0 %v4491
  %v4967 = vpop.f32.mrb[0].mxu0
  %v4968 = vadd.f32 0.0, %v4967
  %v4969 = vpop.f32.mrb[0].mxu0
  %4970 = vmatprep.mubr.f32.mxu0 0.0
  %4971 = vmatmul.mubr.f32.gmra.mrb[0].mxu0 %v4494
  %v4972 = vpop.f32.mrb[0].mxu0
  %v4973 = vadd.f32 0.0, %v4972
  %v4974 = vpop.f32.mrb[0].mxu0
  %4975 = vmatprep.mubr.f32.mxu0 0.0
  %4976 = vmatmul.mubr.f32.gmra.mrb[0].mxu0 %v4497
  %v4977 = vpop.f32.mrb[0].mxu0
  %v4978 = vadd.f32 0.0, %v4977
  %v4979 = vpop.f32.mrb[0].mxu0
  %4980 = vmatprep.mubr.f32.mxu0 0.0
  %4981 = vmatmul.mubr.f32.gmra.mrb[0].mxu0 %v4500
  %v4982 = vpop.f32.mrb[0].mxu0
  %v4983 = vadd.f32 0.0, %v4982
  %v4984 = vpop.f32.mrb[0].mxu0
  %4985 = vmatprep.mubr.f32.mxu0 0.0
  %4986 = vmatmul.mubr.f32.gmra.mrb[0].mxu0 %v4503
  %v4987 = vpop.f32.mrb[0].mxu0
  %v4988 = vadd.f32 0.0, %v4987
  %v4989 = vpop.f32.mrb[0].mxu0
  %4990 = vmatprep.mubr.f32.mxu0 0.0
  %4991 = vmatmul.mubr.f32.gmra.mrb[0].mxu0 %v4506
  %v4992 = vpop.f32.mrb[0].mxu0
  %v4993 = vadd.f32 0.0, %v4992
  %v4994 = vpop.f32.mrb[0].mxu0
  %4995 = vmatprep.mubr.f32.mxu0 0.0
  %4996 = vmatmul.mubr.f32.gmra.mrb[0].mxu0 %v4509
  %v4997 = vpop.f32.mrb[0].mxu0
  %v4998 = vadd.f32 0.0, %v4997
  %v4999 = vpop.f32.mrb[0].mxu0
  %5000 = vmatprep.mubr.f32.mxu0 0.0
  %5001 = vmatmul.mubr.f32.gmra.mrb[0].mxu0 %v4512
  %v5002 = vpop.f32.mrb[0].mxu0
  %v5003 = vadd.f32 0.0, %v5002
  %v5004 = vpop.f32.mrb[0].mxu0
  %5005 = vmatprep.mubr.f32.mxu0 0.0
  %5006 = vmatmul.mubr.f32.gmra.mrb[0].mxu0 %v4515
  %v5007 = vpop.f32.mrb[0].mxu0
  %v5008 = vadd.f32 0.0, %v5007
  %v5009 = vpop.f32.mrb[0].mxu0
  %5010 = vmatprep.mubr.f32.mxu0 0.0
  %5011 = vmatmul.mubr.f32.gmra.mrb[0].mxu0 %v4518
  %v5012 = vpop.f32.mrb[0].mxu0
  %v5013 = vadd.f32 0.0, %v5012
  %v5014 = vpop.f32.mrb[0].mxu0
  %5015 = vmatprep.mubr.f32.mxu0 0.0
  %5016 = vmatmul.mubr.f32.gmra.mrb[0].mxu0 %v4521
  %v5017 = vpop.f32.mrb[0].mxu0
  %v5018 = vadd.f32 0.0, %v5017
  %v5019 = vpop.f32.mrb[0].mxu0
  %5020 = vmatprep.mubr.f32.mxu0 0.0
  %5021 = vmatmul.mubr.f32.gmra.mrb[0].mxu0 %v4524
  %v5022 = vpop.f32.mrb[0].mxu0
  %v5023 = vadd.f32 0.0, %v5022
  %v5024 = vpop.f32.mrb[0].mxu0
  %5025 = vmatprep.mubr.f32.mxu0 0.0
  %5026 = vmatmul.mubr.f32.gmra.mrb[0].mxu0 %v4527
  %v5027 = vpop.f32.mrb[0].mxu0
  %v5028 = vadd.f32 0.0, %v5027
  %v5029 = vpop.f32.mrb[0].mxu0
  %5030 = vmatprep.mubr.f32.mxu0 0.0
  %5031 = vmatmul.mubr.f32.gmra.mrb[0].mxu0 %v4530
  %v5032 = vpop.f32.mrb[0].mxu0
  %v5033 = vadd.f32 0.0, %v5032
  %v5034 = vpop.f32.mrb[0].mxu0
  %5035 = vmatprep.mubr.f32.mxu0 0.0
  %5036 = vmatmul.mubr.f32.gmra.mrb[0].mxu0 %v4533
  %v5037 = vpop.f32.mrb[0].mxu0
  %v5038 = vadd.f32 0.0, %v5037
  %v5039 = vpop.f32.mrb[0].mxu0
  %5040 = vmatprep.mubr.f32.mxu0 0.0
  %5041 = vmatmul.mubr.f32.gmra.mrb[0].mxu0 %v4536
  %v5042 = vpop.f32.mrb[0].mxu0
  %v5043 = vadd.f32 0.0, %v5042
  %v5044 = vpop.f32.mrb[0].mxu0
  %5045 = vmatprep.mubr.f32.mxu0 0.0
  %5046 = vmatmul.mubr.f32.gmra.mrb[0].mxu0 %v4539
  %v5047 = vpop.f32.mrb[0].mxu0
  %v5048 = vadd.f32 0.0, %v5047
  %v5049 = vpop.f32.mrb[0].mxu0
  %5050 = vmatprep.mubr.f32.mxu0 0.0
  %5051 = vmatmul.mubr.f32.gmra.mrb[0].mxu0 %v4542
  %v5052 = vpop.f32.mrb[0].mxu0
  %v5053 = vadd.f32 0.0, %v5052
  %v5054 = vpop.f32.mrb[0].mxu0
  %5055 = vmatprep.mubr.f32.mxu0 0.0
  %5056 = vmatmul.mubr.f32.gmra.mrb[0].mxu0 %v4545
  %v5057 = vpop.f32.mrb[0].mxu0
  %v5058 = vadd.f32 0.0, %v5057
  %v5059 = vpop.f32.mrb[0].mxu0
  %5060 = vmatprep.mubr.f32.mxu0 0.0
  %5061 = vmatmul.mubr.f32.gmra.mrb[0].mxu0 %v4548
  %v5062 = vpop.f32.mrb[0].mxu0
  %v5063 = vadd.f32 0.0, %v5062
  %v5064 = vpop.f32.mrb[0].mxu0
  %5065 = vmatprep.mubr.f32.mxu0 0.0
  %5066 = vmatmul.mubr.f32.gmra.mrb[0].mxu0 %v4551
  %v5067 = vpop.f32.mrb[0].mxu0
  %v5068 = vadd.f32 0.0, %v5067
  %v5069 = vpop.f32.mrb[0].mxu0
  %5070 = vmatprep.mubr.f32.mxu0 0.0
  %5071 = vmatmul.mubr.f32.gmra.mrb[0].mxu0 %v4554
  %v5072 = vpop.f32.mrb[0].mxu0
  %v5073 = vadd.f32 0.0, %v5072
  %v5074 = vpop.f32.mrb[0].mxu0
  %5075 = vmatprep.mubr.f32.mxu0 0.0
  %5076 = vmatmul.mubr.f32.gmra.mrb[0].mxu0 %v4557
  %v5077 = vpop.f32.mrb[0].mxu0
  %v5078 = vadd.f32 0.0, %v5077
  %v5079 = vpop.f32.mrb[0].mxu0
  %5080 = vmatprep.mubr.f32.mxu0 0.0
  %5081 = vmatmul.mubr.f32.gmra.mrb[0].mxu0 %v4560
  %v5082 = vpop.f32.mrb[0].mxu0
  %v5083 = vadd.f32 0.0, %v5082
  %v5084 = vpop.f32.mrb[0].mxu0
  %5085 = vmatprep.mubr.f32.mxu0 0.0
  %5086 = vmatmul.mubr.f32.gmra.mrb[0].mxu0 %v4563
  %v5087 = vpop.f32.mrb[0].mxu0
  %v5088 = vadd.f32 0.0, %v5087
  %v5089 = vpop.f32.mrb[0].mxu0
  %5090 = vmatprep.mubr.f32.mxu0 0.0
  %5091 = vmatmul.mubr.f32.gmra.mrb[0].mxu0 %v4566
  %v5092 = vpop.f32.mrb[0].mxu0
  %v5093 = vadd.f32 0.0, %v5092
  %v5094 = vpop.f32.mrb[0].mxu0
  %5095 = vmatprep.mubr.f32.mxu0 0.0
  %5096 = vmatmul.mubr.f32.gmra.mrb[0].mxu0 %v4569
  %v5097 = vpop.f32.mrb[0].mxu0
  %v5098 = vadd.f32 0.0, %v5097
  %v5099 = vpop.f32.mrb[0].mxu0
  %5100 = vmatprep.mubr.f32.mxu0 0.0
  %5101 = vmatmul.mubr.f32.gmra.mrb[0].mxu0 %v4572
  %v5102 = vpop.f32.mrb[0].mxu0
  %v5103 = vadd.f32 0.0, %v5102
  %v5104 = vpop.f32.mrb[0].mxu0
  %5105 = vmatprep.mubr.f32.mxu0 0.0
  %5106 = vmatmul.mubr.f32.gmra.mrb[0].mxu0 %v4575
  %v5107 = vpop.f32.mrb[0].mxu0
  %v5108 = vadd.f32 0.0, %v5107
  %v5109 = vpop.f32.mrb[0].mxu0
  %5110 = vmatprep.mubr.f32.mxu0 0.0
  %5111 = vmatmul.mubr.f32.gmra.mrb[0].mxu0 %v4578
  %v5112 = vpop.f32.mrb[0].mxu0
  %v5113 = vadd.f32 0.0, %v5112
  %v5114 = vpop.f32.mrb[0].mxu0
  %5115 = vmatprep.mubr.f32.mxu0 0.0
  %5116 = vmatmul.mubr.f32.gmra.mrb[0].mxu0 %v4581
  %v5117 = vpop.f32.mrb[0].mxu0
  %v5118 = vadd.f32 0.0, %v5117
  %v5119 = vpop.f32.mrb[0].mxu0
  %5120 = vmatprep.mubr.f32.mxu0 0.0
  %5121 = vmatmul.mubr.f32.gmra.mrb[0].mxu0 %v4584
  %v5122 = vpop.f32.mrb[0].mxu0
  %v5123 = vadd.f32 0.0, %v5122
  %v5124 = vpop.f32.mrb[0].mxu0
  %5125 = vmatprep.mubr.f32.mxu0 0.0
  %5126 = vmatmul.mubr.f32.gmra.mrb[0].mxu0 %v4587
  %v5127 = vpop.f32.mrb[0].mxu0
  %v5128 = vadd.f32 0.0, %v5127
  %v5129 = vpop.f32.mrb[0].mxu0
  %5130 = vmatprep.mubr.f32.mxu0 0.0
  %5131 = vmatmul.mubr.f32.gmra.mrb[0].mxu0 %v4590
  %v5132 = vpop.f32.mrb[0].mxu0
  %v5133 = vadd.f32 0.0, %v5132
  %v5134 = vpop.f32.mrb[0].mxu0
  %5135 = vmatprep.mubr.f32.mxu0 0.0
  %5136 = vmatmul.mubr.f32.gmra.mrb[0].mxu0 %v4593
  %v5137 = vpop.f32.mrb[0].mxu0
  %v5138 = vadd.f32 0.0, %v5137
  %v5139 = vpop.f32.mrb[0].mxu0
  %5140 = vmatprep.mubr.f32.mxu0 0.0
  %5141 = vmatmul.mubr.f32.gmra.mrb[0].mxu0 %v4596
  %v5142 = vpop.f32.mrb[0].mxu0
  %v5143 = vadd.f32 0.0, %v5142
  %v5144 = vpop.f32.mrb[0].mxu0
  %5145 = vmatprep.mubr.f32.mxu0 0.0
  %5146 = vmatmul.mubr.f32.gmra.mrb[0].mxu0 %v4599
  %v5147 = vpop.f32.mrb[0].mxu0
  %v5148 = vadd.f32 0.0, %v5147
  %v5149 = vpop.f32.mrb[0].mxu0
  %5150 = vmatprep.mubr.f32.mxu0 0.0
  %5151 = vmatmul.mubr.f32.gmra.mrb[0].mxu0 %v4602
  %v5152 = vpop.f32.mrb[0].mxu0
  %v5153 = vadd.f32 0.0, %v5152
  %v5154 = vpop.f32.mrb[0].mxu0
  %5155 = vmatprep.mubr.f32.mxu0 0.0
  %5156 = vmatmul.mubr.f32.gmra.mrb[0].mxu0 %v4605
  %v5157 = vpop.f32.mrb[0].mxu0
  %v5158 = vadd.f32 0.0, %v5157
  %v5159 = vpop.f32.mrb[0].mxu0
  %5160 = vmatprep.mubr.f32.mxu0 0.0
  %5161 = vmatmul.mubr.f32.gmra.mrb[0].mxu0 %v4608
  %v5162 = vpop.f32.mrb[0].mxu0
  %v5163 = vadd.f32 0.0, %v5162
  %v5164 = vpop.f32.mrb[0].mxu0
  %5165 = vmatprep.mubr.f32.mxu0 0.0
  %5166 = vmatmul.mubr.f32.gmra.mrb[0].mxu0 %v4611
  %v5167 = vpop.f32.mrb[0].mxu0
  %v5168 = vadd.f32 0.0, %v5167
  %v5169 = vpop.f32.mrb[0].mxu0
  %5170 = vmatprep.mubr.f32.mxu0 0.0
  %5171 = vmatmul.mubr.f32.gmra.mrb[0].mxu0 %v4614
  %v5172 = vpop.f32.mrb[0].mxu0
  %v5173 = vadd.f32 0.0, %v5172
  %v5174 = vpop.f32.mrb[0].mxu0
  %5175 = vmatprep.mubr.f32.mxu0 0.0
  %5176 = vmatmul.mubr.f32.gmra.mrb[0].mxu0 %v4617
  %v5177 = vpop.f32.mrb[0].mxu0
  %v5178 = vadd.f32 0.0, %v5177
  %v5179 = vpop.f32.mrb[0].mxu0
  %5180 = vmatprep.mubr.f32.mxu0 0.0
  %5181 = vmatmul.mubr.f32.gmra.mrb[0].mxu0 %v4620
  %v5182 = vpop.f32.mrb[0].mxu0
  %v5183 = vadd.f32 0.0, %v5182
  %v5184 = vpop.f32.mrb[0].mxu0
  %5185 = vmatprep.mubr.f32.mxu0 0.0
  %5186 = vmatmul.mubr.f32.gmra.mrb[0].mxu0 %v4623
  %v5187 = vpop.f32.mrb[0].mxu0
  %v5188 = vadd.f32 0.0, %v5187
  %v5189 = vpop.f32.mrb[0].mxu0
  %5190 = vmatprep.mubr.f32.mxu0 0.0
  %5191 = vmatmul.mubr.f32.gmra.mrb[0].mxu0 %v4626
  %v5192 = vpop.f32.mrb[0].mxu0
  %v5193 = vadd.f32 0.0, %v5192
  %v5194 = vpop.f32.mrb[0].mxu0
  %5195 = vmatprep.mubr.f32.mxu0 0.0
  %5196 = vmatmul.mubr.f32.gmra.mrb[0].mxu0 %v4629
  %v5197 = vpop.f32.mrb[0].mxu0
  %v5198 = vadd.f32 0.0, %v5197
  %v5199 = vpop.f32.mrb[0].mxu0
  %5200 = vmatprep.mubr.f32.mxu0 0.0
  %5201 = vmatmul.mubr.f32.gmra.mrb[0].mxu0 %v4632
  %v5202 = vpop.f32.mrb[0].mxu0
  %v5203 = vadd.f32 0.0, %v5202
  %v5204 = vpop.f32.mrb[0].mxu0
  %5205 = vmatprep.mubr.f32.mxu0 0.0
  %5206 = vmatmul.mubr.f32.gmra.mrb[0].mxu0 %v4635
  %v5207 = vpop.f32.mrb[0].mxu0
  %v5208 = vadd.f32 0.0, %v5207
  %v5209 = vpop.f32.mrb[0].mxu0
  %5210 = vmatprep.mubr.f32.mxu0 0.0
  %5211 = vmatmul.mubr.f32.gmra.mrb[0].mxu0 %v4638
  %v5212 = vpop.f32.mrb[0].mxu0
  %v5213 = vadd.f32 0.0, %v5212
  %v5214 = vpop.f32.mrb[0].mxu0
  %5215 = vmatprep.mubr.f32.mxu0 0.0
  %5216 = vmatmul.mubr.f32.gmra.mrb[0].mxu0 %v4641
  %v5217 = vpop.f32.mrb[0].mxu0
  %v5218 = vadd.f32 0.0, %v5217
  %v5219 = vpop.f32.mrb[0].mxu0
  %5220 = vmatprep.mubr.f32.mxu0 0.0
  %5221 = vmatmul.mubr.f32.gmra.mrb[0].mxu0 %v4644
  %v5222 = vpop.f32.mrb[0].mxu0
  %v5223 = vadd.f32 0.0, %v5222
  %v5224 = vpop.f32.mrb[0].mxu0
  %5225 = vmatprep.mubr.f32.mxu0 0.0
  %5226 = vmatmul.mubr.f32.gmra.mrb[0].mxu0 %v4647
  %v5227 = vpop.f32.mrb[0].mxu0
  %v5228 = vadd.f32 0.0, %v5227
  %v5229 = vpop.f32.mrb[0].mxu0
  %5230 = vmatprep.mubr.f32.mxu0 0.0
  %5231 = vmatmul.mubr.f32.gmra.mrb[0].mxu0 %v4650
  %v5232 = vpop.f32.mrb[0].mxu0
  %v5233 = vadd.f32 0.0, %v5232
  %v5234 = vpop.f32.mrb[0].mxu0
  %5235 = vmatprep.mubr.f32.mxu0 0.0
  %5236 = vmatmul.mubr.f32.gmra.mrb[0].mxu0 %v4653
  %v5237 = vpop.f32.mrb[0].mxu0
  %v5238 = vadd.f32 0.0, %v5237
  %v5239 = vpop.f32.mrb[0].mxu0
  %5240 = vmatprep.mubr.f32.mxu0 0.0
  %5241 = vmatmul.mubr.f32.gmra.mrb[0].mxu0 %v4656
  %v5242 = vpop.f32.mrb[0].mxu0
  %v5243 = vadd.f32 0.0, %v5242
  %v5244 = vpop.f32.mrb[0].mxu0
  %5245 = vmatprep.mubr.f32.mxu0 0.0
  %5246 = vmatmul.mubr.f32.gmra.mrb[0].mxu0 %v4659
  %v5247 = vpop.f32.mrb[0].mxu0
  %v5248 = vadd.f32 0.0, %v5247
  %v5249 = vpop.f32.mrb[0].mxu0
  %5250 = vmatprep.mubr.f32.mxu0 0.0
  %5251 = vmatmul.mubr.f32.gmra.mrb[0].mxu0 %v4662
  %v5252 = vpop.f32.mrb[0].mxu0
  %v5253 = vadd.f32 0.0, %v5252
  %v5254 = vpop.f32.mrb[0].mxu0
  %5255 = vmatprep.mubr.f32.mxu0 0.0
  %5256 = vmatmul.mubr.f32.gmra.mrb[0].mxu0 %v4665
  %v5257 = vpop.f32.mrb[0].mxu0
  %v5258 = vadd.f32 0.0, %v5257
  %v5259 = vpop.f32.mrb[0].mxu0
  %5260 = vmatprep.mubr.f32.mxu0 0.0
  %5261 = vmatmul.mubr.f32.gmra.mrb[0].mxu0 %v4668
  %v5262 = vpop.f32.mrb[0].mxu0
  %v5263 = vadd.f32 0.0, %v5262
  %v5264 = vpop.f32.mrb[0].mxu0
  %5265 = vmatprep.mubr.f32.mxu0 0.0
  %5266 = vmatmul.mubr.f32.gmra.mrb[0].mxu0 %v4671
  %v5267 = vpop.f32.mrb[0].mxu0
  %v5268 = vadd.f32 0.0, %v5267
  %v5269 = vpop.f32.mrb[0].mxu0
  %5270 = vmatprep.mubr.f32.mxu0 0.0
  %5271 = vmatmul.mubr.f32.gmra.mrb[0].mxu0 %v4674
  %v5272 = vpop.f32.mrb[0].mxu0
  %v5273 = vadd.f32 0.0, %v5272
  %v5274 = vpop.f32.mrb[0].mxu0
  %5275 = vmatprep.mubr.f32.mxu0 0.0
  %5276 = vmatmul.mubr.f32.gmra.mrb[0].mxu0 %v4677
  %v5277 = vpop.f32.mrb[0].mxu0
  %v5278 = vadd.f32 0.0, %v5277
  %v5279 = vpop.f32.mrb[0].mxu0
  %5280 = vmatprep.mubr.f32.mxu0 0.0
  %5281 = vmatmul.mubr.f32.gmra.mrb[0].mxu0 %v4680
  %v5282 = vpop.f32.mrb[0].mxu0
  %v5283 = vadd.f32 0.0, %v5282
  %v5284 = vpop.f32.mrb[0].mxu0
  %5285 = vmatprep.mubr.f32.mxu0 0.0
  %5286 = vmatmul.mubr.f32.gmra.mrb[0].mxu0 %v4683
  %v5287 = vpop.f32.mrb[0].mxu0
  %v5288 = vadd.f32 0.0, %v5287
  %v5289 = vpop.f32.mrb[0].mxu0
  %5290 = vmatprep.mubr.f32.mxu0 0.0
  %5291 = vmatmul.mubr.f32.gmra.mrb[0].mxu0 %v4686
  %v5292 = vpop.f32.mrb[0].mxu0
  %v5293 = vadd.f32 0.0, %v5292
  %v5294 = vpop.f32.mrb[0].mxu0
  %5295 = vmatprep.mubr.f32.mxu0 0.0
  %5296 = vmatmul.mubr.f32.gmra.mrb[0].mxu0 %v4689
  %v5297 = vpop.f32.mrb[0].mxu0
  %v5298 = vadd.f32 0.0, %v5297
  %v5299 = vpop.f32.mrb[0].mxu0
  %5300 = vmatprep.mubr.f32.mxu0 0.0
  %5301 = vmatmul.mubr.f32.gmra.mrb[0].mxu0 %v4692
  %v5302 = vpop.f32.mrb[0].mxu0
  %v5303 = vadd.f32 0.0, %v5302
  %v5304 = vpop.f32.mrb[0].mxu0
  %5305 = vmatprep.mubr.f32.mxu0 0.0
  %5306 = vmatmul.mubr.f32.gmra.mrb[0].mxu0 %v4695
  %v5307 = vpop.f32.mrb[0].mxu0
  %v5308 = vadd.f32 0.0, %v5307
  %v5309 = vpop.f32.mrb[0].mxu0
  %5310 = vmatprep.mubr.f32.mxu0 0.0
  %5311 = vmatmul.mubr.f32.gmra.mrb[0].mxu0 %v4698
  %v5312 = vpop.f32.mrb[0].mxu0
  %v5313 = vadd.f32 0.0, %v5312
  %v5314 = vpop.f32.mrb[0].mxu0
  %5315 = vmatprep.mubr.f32.mxu0 0.0
  %5316 = vmatmul.mubr.f32.gmra.mrb[0].mxu0 %v4701
  %v5317 = vpop.f32.mrb[0].mxu0
  %v5318 = vadd.f32 0.0, %v5317
  %v5319 = vpop.f32.mrb[0].mxu0
  %5320 = vmatprep.mubr.f32.mxu0 0.0
  %5321 = vmatmul.mubr.f32.gmra.mrb[0].mxu0 %v4704
  %v5322 = vpop.f32.mrb[0].mxu0
  %v5323 = vadd.f32 0.0, %v5322
  %v5324 = vpop.f32.mrb[0].mxu0
  %5325 = vmatprep.mubr.f32.mxu0 0.0
  %5326 = vmatmul.mubr.f32.gmra.mrb[0].mxu0 %v4707
  %v5327 = vpop.f32.mrb[0].mxu0
  %v5328 = vadd.f32 0.0, %v5327
  %v5329 = vpop.f32.mrb[0].mxu0
  %5330 = vmatprep.mubr.f32.mxu0 0.0
  %5331 = vmatmul.mubr.f32.gmra.mrb[0].mxu0 %v4710
  %v5332 = vpop.f32.mrb[0].mxu0
  %v5333 = vadd.f32 0.0, %v5332
  %v5334 = vpop.f32.mrb[0].mxu0
  %5335 = vmatprep.mubr.f32.mxu0 0.0
  %5336 = vmatmul.mubr.f32.gmra.mrb[0].mxu0 %v4713
  %v5337 = vpop.f32.mrb[0].mxu0
  %v5338 = vadd.f32 0.0, %v5337
  %v5339 = vpop.f32.mrb[0].mxu0
  %5340 = vmatprep.mubr.f32.mxu0 0.0
  %5341 = vmatmul.mubr.f32.gmra.mrb[0].mxu0 %v4716
  %v5342 = vpop.f32.mrb[0].mxu0
  %v5343 = vadd.f32 0.0, %v5342
  %v5344 = vpop.f32.mrb[0].mxu0
  %5345 = vmatprep.mubr.f32.mxu0 0.0
  %5346 = vmatmul.mubr.f32.gmra.mrb[0].mxu0 %v4719
  %v5347 = vpop.f32.mrb[0].mxu0
  %v5348 = vadd.f32 0.0, %v5347
  %v5349 = vpop.f32.mrb[0].mxu0
  %5350 = vmatprep.mubr.f32.mxu0 0.0
  %5351 = vmatmul.mubr.f32.gmra.mrb[0].mxu0 %v4722
  %v5352 = vpop.f32.mrb[0].mxu0
  %v5353 = vadd.f32 0.0, %v5352
  %v5354 = vpop.f32.mrb[0].mxu0
  %5355 = vmatprep.mubr.f32.mxu0 0.0
  %5356 = vmatmul.mubr.f32.gmra.mrb[0].mxu0 %v4725
  %v5357 = vpop.f32.mrb[0].mxu0
  %v5358 = vadd.f32 0.0, %v5357
  %v5359 = vpop.f32.mrb[0].mxu0
  %5360 = vmatprep.mubr.f32.mxu0 0.0
  %5361 = vmatmul.mubr.f32.gmra.mrb[0].mxu0 %v4728
  %v5362 = vpop.f32.mrb[0].mxu0
  %v5363 = vadd.f32 0.0, %v5362
  %v5364 = vpop.f32.mrb[0].mxu0
  %5365 = vmatprep.mubr.f32.mxu0 0.0
  %5366 = vmatmul.mubr.f32.gmra.mrb[0].mxu0 %v4731
  %v5367 = vpop.f32.mrb[0].mxu0
  %v5368 = vadd.f32 0.0, %v5367
  %v5369 = vpop.f32.mrb[0].mxu0
  %5370 = vmatprep.mubr.f32.mxu0 0.0
  %5371 = vmatmul.mubr.f32.gmra.mrb[0].mxu0 %v4734
  %v5372 = vpop.f32.mrb[0].mxu0
  %v5373 = vadd.f32 0.0, %v5372
  %v5374 = vpop.f32.mrb[0].mxu0
  %5375 = vmatprep.mubr.f32.mxu0 0.0
  %5376 = vmatmul.mubr.f32.gmra.mrb[0].mxu0 %v4737
  %v5377 = vpop.f32.mrb[0].mxu0
  %v5378 = vadd.f32 0.0, %v5377
  %v5379 = vpop.f32.mrb[0].mxu0
  %5380 = vmatprep.mubr.f32.mxu0 0.0
  %5381 = vmatmul.mubr.f32.gmra.mrb[0].mxu0 %v4740
  %v5382 = vpop.f32.mrb[0].mxu0
  %v5383 = vadd.f32 0.0, %v5382
  %v5384 = vpop.f32.mrb[0].mxu0
  %5385 = vmatprep.mubr.f32.mxu0 0.0
  %5386 = vmatmul.mubr.f32.gmra.mrb[0].mxu0 %v4743
  %v5387 = vpop.f32.mrb[0].mxu0
  %v5388 = vadd.f32 0.0, %v5387
  %v5389 = vpop.f32.mrb[0].mxu0
  %5390 = vmatprep.mubr.f32.mxu0 0.0
  %5391 = vmatmul.mubr.f32.gmra.mrb[0].mxu0 %v4746
  %v5392 = vpop.f32.mrb[0].mxu0
  %v5393 = vadd.f32 0.0, %v5392
  %v5394 = vpop.f32.mrb[0].mxu0
  %5395 = vmatprep.mubr.f32.mxu0 0.0
  %5396 = vmatmul.mubr.f32.gmra.mrb[0].mxu0 %v4749
  %v5397 = vpop.f32.mrb[0].mxu0
  %v5398 = vadd.f32 0.0, %v5397
  %v5399 = vpop.f32.mrb[0].mxu0
  %5400 = vmatprep.mubr.f32.mxu0 0.0
  %5401 = vmatmul.mubr.f32.gmra.mrb[0].mxu0 %v4752
  %v5402 = vpop.f32.mrb[0].mxu0
  %v5403 = vadd.f32 0.0, %v5402
  %v5404 = vpop.f32.mrb[0].mxu0
  %5405 = vmatprep.mubr.f32.mxu0 0.0
  %5406 = vmatmul.mubr.f32.gmra.mrb[0].mxu0 %v4755
  %v5407 = vpop.f32.mrb[0].mxu0
  %v5408 = vadd.f32 0.0, %v5407
  %v5409 = vpop.f32.mrb[0].mxu0
  %5410 = vmatprep.mubr.f32.mxu0 0.0
  %5411 = vmatmul.mubr.f32.gmra.mrb[0].mxu0 %v4758
  %v5412 = vpop.f32.mrb[0].mxu0
  %v5413 = vadd.f32 0.0, %v5412
  %v5414 = vpop.f32.mrb[0].mxu0
  %5415 = vmatprep.mubr.f32.mxu0 0.0
  %5416 = vmatmul.mubr.f32.gmra.mrb[0].mxu0 %v4761
  %v5417 = vpop.f32.mrb[0].mxu0
  %v5418 = vadd.f32 0.0, %v5417
  %v5419 = vpop.f32.mrb[0].mxu0
  %5420 = vmatprep.mubr.f32.mxu0 0.0
  %5421 = vmatmul.mubr.f32.gmra.mrb[0].mxu0 %v4764
  %v5422 = vpop.f32.mrb[0].mxu0
  %v5423 = vadd.f32 0.0, %v5422
  %v5424 = vpop.f32.mrb[0].mxu0
  %5425 = vmatprep.mubr.f32.mxu0 0.0
  %5426 = vmatmul.mubr.f32.gmra.mrb[0].mxu0 %v4767
  %v5427 = vpop.f32.mrb[0].mxu0
  %v5428 = vadd.f32 0.0, %v5427
  %v5429 = vpop.f32.mrb[0].mxu0
  %5430 = vmatprep.mubr.f32.mxu0 0.0
  %5431 = vmatmul.mubr.f32.gmra.mrb[0].mxu0 %v4770
  %v5432 = vpop.f32.mrb[0].mxu0
  %v5433 = vadd.f32 0.0, %v5432
  %v5434 = vpop.f32.mrb[0].mxu0
  %5435 = vmatprep.mubr.f32.mxu0 0.0
  %5436 = vmatmul.mubr.f32.gmra.mrb[0].mxu0 %v4773
  %v5437 = vpop.f32.mrb[0].mxu0
  %v5438 = vadd.f32 0.0, %v5437
  %v5439 = vpop.f32.mrb[0].mxu0
  %5440 = vmatprep.mubr.f32.mxu0 0.0
  %5441 = vmatmul.mubr.f32.gmra.mrb[0].mxu0 %v4776
  %v5442 = vpop.f32.mrb[0].mxu0
  %v5443 = vadd.f32 0.0, %v5442
  %v5444 = vpop.f32.mrb[0].mxu0
  %5445 = vmatprep.mubr.f32.mxu0 0.0
  %5446 = vmatmul.mubr.f32.gmra.mrb[0].mxu0 %v4779
  %v5447 = vpop.f32.mrb[0].mxu0
  %v5448 = vadd.f32 0.0, %v5447
  %v5449 = vpop.f32.mrb[0].mxu0
  %5450 = vmatprep.mubr.f32.mxu0 0.0
  %5451 = vmatmul.mubr.f32.gmra.mrb[0].mxu0 %v4782
  %v5452 = vpop.f32.mrb[0].mxu0
  %v5453 = vadd.f32 0.0, %v5452
  %v5454 = vpop.f32.mrb[0].mxu0
  %5455 = vmatprep.mubr.f32.mxu0 0.0
  %5456 = vmatmul.mubr.f32.gmra.mrb[0].mxu0 %v4785
  %v5457 = vpop.f32.mrb[0].mxu0
  %v5458 = vadd.f32 0.0, %v5457
  %v5459 = vpop.f32.mrb[0].mxu0
  %5460 = vmatprep.mubr.f32.mxu0 0.0
  %5461 = vmatmul.mubr.f32.gmra.mrb[0].mxu0 %v4788
  %v5462 = vpop.f32.mrb[0].mxu0
  %v5463 = vadd.f32 0.0, %v5462
  %v5464 = vpop.f32.mrb[0].mxu0
  %5465 = vmatprep.mubr.f32.mxu0 0.0
  %5466 = vmatmul.mubr.f32.gmra.mrb[0].mxu0 %v4791
  %v5467 = vpop.f32.mrb[0].mxu0
  %v5468 = vadd.f32 0.0, %v5467
  %v5469 = vpop.f32.mrb[0].mxu0
  %5470 = vmatprep.mubr.f32.mxu0 0.0
  %5471 = vmatmul.mubr.f32.gmra.mrb[0].mxu0 %v4794
  %v5472 = vpop.f32.mrb[0].mxu0
  %v5473 = vadd.f32 0.0, %v5472
  %v5474 = vpop.f32.mrb[0].mxu0
  %5475 = vmatprep.mubr.f32.mxu0 0.0
  %5476 = vmatmul.mubr.f32.gmra.mrb[0].mxu0 %v4797
  %v5477 = vpop.f32.mrb[0].mxu0
  %v5478 = vadd.f32 0.0, %v5477
  %v5479 = vpop.f32.mrb[0].mxu0
  %5480 = vmatprep.mubr.f32.mxu0 0.0
  %5481 = vmatmul.mubr.f32.gmra.mrb[0].mxu0 %v4800
  %v5482 = vpop.f32.mrb[0].mxu0
  %v5483 = vadd.f32 0.0, %v5482
  %v5484 = vpop.f32.mrb[0].mxu0
  %5485 = vmatprep.mubr.f32.mxu0 0.0
  %5486 = vmatmul.mubr.f32.gmra.mrb[0].mxu0 %v4803
  %v5487 = vpop.f32.mrb[0].mxu0
  %v5488 = vadd.f32 0.0, %v5487
  %v5489 = vpop.f32.mrb[0].mxu0
  %5490 = vmatprep.mubr.f32.mxu0 0.0
  %5491 = vmatmul.mubr.f32.gmra.mrb[0].mxu0 %v4806
  %v5492 = vpop.f32.mrb[0].mxu0
  %v5493 = vadd.f32 0.0, %v5492
  %v5494 = vpop.f32.mrb[0].mxu0
  %5495 = vmatprep.mubr.f32.mxu0 0.0
  %5496 = vmatmul.mubr.f32.gmra.mrb[0].mxu0 %v4809
  %v5497 = vpop.f32.mrb[0].mxu0
  %v5498 = vadd.f32 0.0, %v5497
  %v5499 = vpop.f32.mrb[0].mxu0
  %5500 = vmatprep.mubr.f32.mxu0 0.0
  %5501 = vmatmul.mubr.f32.gmra.mrb[0].mxu0 %v4812
  %v5502 = vpop.f32.mrb[0].mxu0
  %v5503 = vadd.f32 0.0, %v5502
  %v5504 = vpop.f32.mrb[0].mxu0
  %5505 = vmatprep.mubr.f32.mxu0 0.0
  %5506 = vmatmul.mubr.f32.gmra.mrb[0].mxu0 %v4815
  %v5507 = vpop.f32.mrb[0].mxu0
  %v5508 = vadd.f32 0.0, %v5507
  %v5509 = vpop.f32.mrb[0].mxu0
  %5510 = vmatprep.mubr.f32.mxu0 0.0
  %5511 = vmatmul.mubr.f32.gmra.mrb[0].mxu0 %v4818
  %v5512 = vpop.f32.mrb[0].mxu0
  %v5513 = vadd.f32 0.0, %v5512
  %v5514 = vpop.f32.mrb[0].mxu0
  %5515 = vmatprep.mubr.f32.mxu0 0.0
  %5516 = vmatmul.mubr.f32.gmra.mrb[0].mxu0 %v4821
  %v5517 = vpop.f32.mrb[0].mxu0
  %v5518 = vadd.f32 0.0, %v5517
  %v5519 = vpop.f32.mrb[0].mxu0
  %5520 = vmatprep.mubr.f32.mxu0 0.0
  %5521 = vmatmul.mubr.f32.gmra.mrb[0].mxu0 %v4824
  %v5522 = vpop.f32.mrb[0].mxu0
  %v5523 = vadd.f32 0.0, %v5522
  %v5524 = vpop.f32.mrb[0].mxu0
  %5525 = vmatprep.mubr.f32.mxu0 0.0
  %5526 = vmatmul.mubr.f32.gmra.mrb[0].mxu0 %v4827
  %v5527 = vpop.f32.mrb[0].mxu0
  %v5528 = vadd.f32 0.0, %v5527
  %v5529 = vpop.f32.mrb[0].mxu0
  %5530 = vmatprep.mubr.f32.mxu0 0.0
  %5531 = vmatmul.mubr.f32.gmra.mrb[0].mxu0 %v4830
  %v5532 = vpop.f32.mrb[0].mxu0
  %v5533 = vadd.f32 0.0, %v5532
  %v5534 = vpop.f32.mrb[0].mxu0
  %5535 = vmatprep.mubr.f32.mxu0 0.0
  %5536 = vmatmul.mubr.f32.gmra.mrb[0].mxu0 %v4833
  %v5537 = vpop.f32.mrb[0].mxu0
  %v5538 = vadd.f32 0.0, %v5537
  %v5539 = vpop.f32.mrb[0].mxu0
  %5540 = vmatprep.mubr.f32.mxu0 0.0
  %5541 = vmatmul.mubr.f32.gmra.mrb[0].mxu0 %v4836
  %v5542 = vpop.f32.mrb[0].mxu0
  %v5543 = vadd.f32 0.0, %v5542
  %v5544 = vpop.f32.mrb[0].mxu0
  %5545 = vdwg.mxu0
  %v5546 = vadd.f32 %v4067, %v4908
  %v5547 = vadd.f32 %v4068, %v4913
  %v5548 = vadd.f32 %v4069, %v4918
  %v5549 = vadd.f32 %v4070, %v4923
  %v5550 = vadd.f32 %v4071, %v4928
  %v5551 = vadd.f32 %v4072, %v4933
  %v5552 = vadd.f32 %v4073, %v4938
  %v5553 = vadd.f32 %v4074, %v4943
  %v5554 = vadd.f32 %v4075, %v4948
  %v5555 = vadd.f32 %v4076, %v4953
  %v5556 = vadd.f32 %v4077, %v4958
  %v5557 = vadd.f32 %v4078, %v4963
  %v5558 = vadd.f32 %v4079, %v4968
  %v5559 = vadd.f32 %v4080, %v4973
  %v5560 = vadd.f32 %v4081, %v4978
  %v5561 = vadd.f32 %v4082, %v4983
  %v5562 = vadd.f32 %v4083, %v4988
  %v5563 = vadd.f32 %v4084, %v4993
  %v5564 = vadd.f32 %v4085, %v4998
  %v5565 = vadd.f32 %v4086, %v5003
  %v5566 = vadd.f32 %v4087, %v5008
  %v5567 = vadd.f32 %v4088, %v5013
  %v5568 = vadd.f32 %v4089, %v5018
  %v5569 = vadd.f32 %v4090, %v5023
  %v5570 = vadd.f32 %v4091, %v5028
  %v5571 = vadd.f32 %v4092, %v5033
  %v5572 = vadd.f32 %v4093, %v5038
  %v5573 = vadd.f32 %v4094, %v5043
  %v5574 = vadd.f32 %v4095, %v5048
  %v5575 = vadd.f32 %v4096, %v5053
  %v5576 = vadd.f32 %v4097, %v5058
  %v5577 = vadd.f32 %v4098, %v5063
  %v5578 = vadd.f32 %v4099, %v5068
  %v5579 = vadd.f32 %v4100, %v5073
  %v5580 = vadd.f32 %v4101, %v5078
  %v5581 = vadd.f32 %v4102, %v5083
  %v5582 = vadd.f32 %v4103, %v5088
  %v5583 = vadd.f32 %v4104, %v5093
  %v5584 = vadd.f32 %v4105, %v5098
  %v5585 = vadd.f32 %v4106, %v5103
  %v5586 = vadd.f32 %v4107, %v5108
  %v5587 = vadd.f32 %v4108, %v5113
  %v5588 = vadd.f32 %v4109, %v5118
  %v5589 = vadd.f32 %v4110, %v5123
  %v5590 = vadd.f32 %v4111, %v5128
  %v5591 = vadd.f32 %v4112, %v5133
  %v5592 = vadd.f32 %v4113, %v5138
  %v5593 = vadd.f32 %v4114, %v5143
  %v5594 = vadd.f32 %v4115, %v5148
  %v5595 = vadd.f32 %v4116, %v5153
  %v5596 = vadd.f32 %v4117, %v5158
  %v5597 = vadd.f32 %v4118, %v5163
  %v5598 = vadd.f32 %v4119, %v5168
  %v5599 = vadd.f32 %v4120, %v5173
  %v5600 = vadd.f32 %v4121, %v5178
  %v5601 = vadd.f32 %v4122, %v5183
  %v5602 = vadd.f32 %v4123, %v5188
  %v5603 = vadd.f32 %v4124, %v5193
  %v5604 = vadd.f32 %v4125, %v5198
  %v5605 = vadd.f32 %v4126, %v5203
  %v5606 = vadd.f32 %v4127, %v5208
  %v5607 = vadd.f32 %v4128, %v5213
  %v5608 = vadd.f32 %v4129, %v5218
  %v5609 = vadd.f32 %v4130, %v5223
  %v5610 = vadd.f32 %v4131, %v5228
  %v5611 = vadd.f32 %v4132, %v5233
  %v5612 = vadd.f32 %v4133, %v5238
  %v5613 = vadd.f32 %v4134, %v5243
  %v5614 = vadd.f32 %v4135, %v5248
  %v5615 = vadd.f32 %v4136, %v5253
  %v5616 = vadd.f32 %v4137, %v5258
  %v5617 = vadd.f32 %v4138, %v5263
  %v5618 = vadd.f32 %v4139, %v5268
  %v5619 = vadd.f32 %v4140, %v5273
  %v5620 = vadd.f32 %v4141, %v5278
  %v5621 = vadd.f32 %v4142, %v5283
  %v5622 = vadd.f32 %v4143, %v5288
  %v5623 = vadd.f32 %v4144, %v5293
  %v5624 = vadd.f32 %v4145, %v5298
  %v5625 = vadd.f32 %v4146, %v5303
  %v5626 = vadd.f32 %v4147, %v5308
  %v5627 = vadd.f32 %v4148, %v5313
  %v5628 = vadd.f32 %v4149, %v5318
  %v5629 = vadd.f32 %v4150, %v5323
  %v5630 = vadd.f32 %v4151, %v5328
  %v5631 = vadd.f32 %v4152, %v5333
  %v5632 = vadd.f32 %v4153, %v5338
  %v5633 = vadd.f32 %v4154, %v5343
  %v5634 = vadd.f32 %v4155, %v5348
  %v5635 = vadd.f32 %v4156, %v5353
  %v5636 = vadd.f32 %v4157, %v5358
  %v5637 = vadd.f32 %v4158, %v5363
  %v5638 = vadd.f32 %v4159, %v5368
  %v5639 = vadd.f32 %v4160, %v5373
  %v5640 = vadd.f32 %v4161, %v5378
  %v5641 = vadd.f32 %v4162, %v5383
  %v5642 = vadd.f32 %v4163, %v5388
  %v5643 = vadd.f32 %v4164, %v5393
  %v5644 = vadd.f32 %v4165, %v5398
  %v5645 = vadd.f32 %v4166, %v5403
  %v5646 = vadd.f32 %v4167, %v5408
  %v5647 = vadd.f32 %v4168, %v5413
  %v5648 = vadd.f32 %v4169, %v5418
  %v5649 = vadd.f32 %v4170, %v5423
  %v5650 = vadd.f32 %v4171, %v5428
  %v5651 = vadd.f32 %v4172, %v5433
  %v5652 = vadd.f32 %v4173, %v5438
  %v5653 = vadd.f32 %v4174, %v5443
  %v5654 = vadd.f32 %v4175, %v5448
  %v5655 = vadd.f32 %v4176, %v5453
  %v5656 = vadd.f32 %v4177, %v5458
  %v5657 = vadd.f32 %v4178, %v5463
  %v5658 = vadd.f32 %v4179, %v5468
  %v5659 = vadd.f32 %v4180, %v5473
  %v5660 = vadd.f32 %v4181, %v5478
  %v5661 = vadd.f32 %v4182, %v5483
  %v5662 = vadd.f32 %v4183, %v5488
  %v5663 = vadd.f32 %v4184, %v5493
  %v5664 = vadd.f32 %v4185, %v5498
  %v5665 = vadd.f32 %v4186, %v5503
  %v5666 = vadd.f32 %v4187, %v5508
  %v5667 = vadd.f32 %v4188, %v5513
  %v5668 = vadd.f32 %v4189, %v5518
  %v5669 = vadd.f32 %v4190, %v5523
  %v5670 = vadd.f32 %v4191, %v5528
  %v5671 = vadd.f32 %v4192, %v5533
  %v5672 = vadd.f32 %v4193, %v5538
  %v5673 = vadd.f32 %v4194, %v5543
  %v5674 = vld [vmem:[%s2] sm:$0x1]
  %v5676 = vlaneseq
  %v5677 = vshrl.u32 %v5676, 7
  %v5678 = vsub.s32 0, %v5677
  %v5679 = vrot.slane %v5674, %v5678
  %v5681 = vadd.f32 %v5546, %v5679
  %v5682 = vadd.f32 %v5547, %v5679
  %v5683 = vadd.f32 %v5548, %v5679
  %v5684 = vadd.f32 %v5549, %v5679
  %v5685 = vadd.f32 %v5550, %v5679
  %v5686 = vadd.f32 %v5551, %v5679
  %v5687 = vadd.f32 %v5552, %v5679
  %v5688 = vadd.f32 %v5553, %v5679
  %v5689 = vadd.f32 %v5554, %v5679
  %v5690 = vadd.f32 %v5555, %v5679
  %v5691 = vadd.f32 %v5556, %v5679
  %v5692 = vadd.f32 %v5557, %v5679
  %v5693 = vadd.f32 %v5558, %v5679
  %v5694 = vadd.f32 %v5559, %v5679
  %v5695 = vadd.f32 %v5560, %v5679
  %v5696 = vadd.f32 %v5561, %v5679
  %v5697 = vadd.f32 %v5562, %v5679
  %v5698 = vadd.f32 %v5563, %v5679
  %v5699 = vadd.f32 %v5564, %v5679
  %v5700 = vadd.f32 %v5565, %v5679
  %v5701 = vadd.f32 %v5566, %v5679
  %v5702 = vadd.f32 %v5567, %v5679
  %v5703 = vadd.f32 %v5568, %v5679
  %v5704 = vadd.f32 %v5569, %v5679
  %v5705 = vadd.f32 %v5570, %v5679
  %v5706 = vadd.f32 %v5571, %v5679
  %v5707 = vadd.f32 %v5572, %v5679
  %v5708 = vadd.f32 %v5573, %v5679
  %v5709 = vadd.f32 %v5574, %v5679
  %v5710 = vadd.f32 %v5575, %v5679
  %v5711 = vadd.f32 %v5576, %v5679
  %v5712 = vadd.f32 %v5577, %v5679
  %v5713 = vadd.f32 %v5578, %v5679
  %v5714 = vadd.f32 %v5579, %v5679
  %v5715 = vadd.f32 %v5580, %v5679
  %v5716 = vadd.f32 %v5581, %v5679
  %v5717 = vadd.f32 %v5582, %v5679
  %v5718 = vadd.f32 %v5583, %v5679
  %v5719 = vadd.f32 %v5584, %v5679
  %v5720 = vadd.f32 %v5585, %v5679
  %v5721 = vadd.f32 %v5586, %v5679
  %v5722 = vadd.f32 %v5587, %v5679
  %v5723 = vadd.f32 %v5588, %v5679
  %v5724 = vadd.f32 %v5589, %v5679
  %v5725 = vadd.f32 %v5590, %v5679
  %v5726 = vadd.f32 %v5591, %v5679
  %v5727 = vadd.f32 %v5592, %v5679
  %v5728 = vadd.f32 %v5593, %v5679
  %v5729 = vadd.f32 %v5594, %v5679
  %v5730 = vadd.f32 %v5595, %v5679
  %v5731 = vadd.f32 %v5596, %v5679
  %v5732 = vadd.f32 %v5597, %v5679
  %v5733 = vadd.f32 %v5598, %v5679
  %v5734 = vadd.f32 %v5599, %v5679
  %v5735 = vadd.f32 %v5600, %v5679
  %v5736 = vadd.f32 %v5601, %v5679
  %v5737 = vadd.f32 %v5602, %v5679
  %v5738 = vadd.f32 %v5603, %v5679
  %v5739 = vadd.f32 %v5604, %v5679
  %v5740 = vadd.f32 %v5605, %v5679
  %v5741 = vadd.f32 %v5606, %v5679
  %v5742 = vadd.f32 %v5607, %v5679
  %v5743 = vadd.f32 %v5608, %v5679
  %v5744 = vadd.f32 %v5609, %v5679
  %v5745 = vadd.f32 %v5610, %v5679
  %v5746 = vadd.f32 %v5611, %v5679
  %v5747 = vadd.f32 %v5612, %v5679
  %v5748 = vadd.f32 %v5613, %v5679
  %v5749 = vadd.f32 %v5614, %v5679
  %v5750 = vadd.f32 %v5615, %v5679
  %v5751 = vadd.f32 %v5616, %v5679
  %v5752 = vadd.f32 %v5617, %v5679
  %v5753 = vadd.f32 %v5618, %v5679
  %v5754 = vadd.f32 %v5619, %v5679
  %v5755 = vadd.f32 %v5620, %v5679
  %v5756 = vadd.f32 %v5621, %v5679
  %v5757 = vadd.f32 %v5622, %v5679
  %v5758 = vadd.f32 %v5623, %v5679
  %v5759 = vadd.f32 %v5624, %v5679
  %v5760 = vadd.f32 %v5625, %v5679
  %v5761 = vadd.f32 %v5626, %v5679
  %v5762 = vadd.f32 %v5627, %v5679
  %v5763 = vadd.f32 %v5628, %v5679
  %v5764 = vadd.f32 %v5629, %v5679
  %v5765 = vadd.f32 %v5630, %v5679
  %v5766 = vadd.f32 %v5631, %v5679
  %v5767 = vadd.f32 %v5632, %v5679
  %v5768 = vadd.f32 %v5633, %v5679
  %v5769 = vadd.f32 %v5634, %v5679
  %v5770 = vadd.f32 %v5635, %v5679
  %v5771 = vadd.f32 %v5636, %v5679
  %v5772 = vadd.f32 %v5637, %v5679
  %v5773 = vadd.f32 %v5638, %v5679
  %v5774 = vadd.f32 %v5639, %v5679
  %v5775 = vadd.f32 %v5640, %v5679
  %v5776 = vadd.f32 %v5641, %v5679
  %v5777 = vadd.f32 %v5642, %v5679
  %v5778 = vadd.f32 %v5643, %v5679
  %v5779 = vadd.f32 %v5644, %v5679
  %v5780 = vadd.f32 %v5645, %v5679
  %v5781 = vadd.f32 %v5646, %v5679
  %v5782 = vadd.f32 %v5647, %v5679
  %v5783 = vadd.f32 %v5648, %v5679
  %v5784 = vadd.f32 %v5649, %v5679
  %v5785 = vadd.f32 %v5650, %v5679
  %v5786 = vadd.f32 %v5651, %v5679
  %v5787 = vadd.f32 %v5652, %v5679
  %v5788 = vadd.f32 %v5653, %v5679
  %v5789 = vadd.f32 %v5654, %v5679
  %v5790 = vadd.f32 %v5655, %v5679
  %v5791 = vadd.f32 %v5656, %v5679
  %v5792 = vadd.f32 %v5657, %v5679
  %v5793 = vadd.f32 %v5658, %v5679
  %v5794 = vadd.f32 %v5659, %v5679
  %v5795 = vadd.f32 %v5660, %v5679
  %v5796 = vadd.f32 %v5661, %v5679
  %v5797 = vadd.f32 %v5662, %v5679
  %v5798 = vadd.f32 %v5663, %v5679
  %v5799 = vadd.f32 %v5664, %v5679
  %v5800 = vadd.f32 %v5665, %v5679
  %v5801 = vadd.f32 %v5666, %v5679
  %v5802 = vadd.f32 %v5667, %v5679
  %v5803 = vadd.f32 %v5668, %v5679
  %v5804 = vadd.f32 %v5669, %v5679
  %v5805 = vadd.f32 %v5670, %v5679
  %v5806 = vadd.f32 %v5671, %v5679
  %v5807 = vadd.f32 %v5672, %v5679
  %v5808 = vadd.f32 %v5673, %v5679
  %v5809 = vmax.f32 %v5681, 0.0
  %v5810 = vmax.f32 %v5682, 0.0
  %v5811 = vmax.f32 %v5683, 0.0
  %v5812 = vmax.f32 %v5684, 0.0
  %v5813 = vmax.f32 %v5685, 0.0
  %v5814 = vmax.f32 %v5686, 0.0
  %v5815 = vmax.f32 %v5687, 0.0
  %v5816 = vmax.f32 %v5688, 0.0
  %v5817 = vmax.f32 %v5689, 0.0
  %v5818 = vmax.f32 %v5690, 0.0
  %v5819 = vmax.f32 %v5691, 0.0
  %v5820 = vmax.f32 %v5692, 0.0
  %v5821 = vmax.f32 %v5693, 0.0
  %v5822 = vmax.f32 %v5694, 0.0
  %v5823 = vmax.f32 %v5695, 0.0
  %v5824 = vmax.f32 %v5696, 0.0
  %v5825 = vmax.f32 %v5697, 0.0
  %v5826 = vmax.f32 %v5698, 0.0
  %v5827 = vmax.f32 %v5699, 0.0
  %v5828 = vmax.f32 %v5700, 0.0
  %v5829 = vmax.f32 %v5701, 0.0
  %v5830 = vmax.f32 %v5702, 0.0
  %v5831 = vmax.f32 %v5703, 0.0
  %v5832 = vmax.f32 %v5704, 0.0
  %v5833 = vmax.f32 %v5705, 0.0
  %v5834 = vmax.f32 %v5706, 0.0
  %v5835 = vmax.f32 %v5707, 0.0
  %v5836 = vmax.f32 %v5708, 0.0
  %v5837 = vmax.f32 %v5709, 0.0
  %v5838 = vmax.f32 %v5710, 0.0
  %v5839 = vmax.f32 %v5711, 0.0
  %v5840 = vmax.f32 %v5712, 0.0
  %v5841 = vmax.f32 %v5713, 0.0
  %v5842 = vmax.f32 %v5714, 0.0
  %v5843 = vmax.f32 %v5715, 0.0
  %v5844 = vmax.f32 %v5716, 0.0
  %v5845 = vmax.f32 %v5717, 0.0
  %v5846 = vmax.f32 %v5718, 0.0
  %v5847 = vmax.f32 %v5719, 0.0
  %v5848 = vmax.f32 %v5720, 0.0
  %v5849 = vmax.f32 %v5721, 0.0
  %v5850 = vmax.f32 %v5722, 0.0
  %v5851 = vmax.f32 %v5723, 0.0
  %v5852 = vmax.f32 %v5724, 0.0
  %v5853 = vmax.f32 %v5725, 0.0
  %v5854 = vmax.f32 %v5726, 0.0
  %v5855 = vmax.f32 %v5727, 0.0
  %v5856 = vmax.f32 %v5728, 0.0
  %v5857 = vmax.f32 %v5729, 0.0
  %v5858 = vmax.f32 %v5730, 0.0
  %v5859 = vmax.f32 %v5731, 0.0
  %v5860 = vmax.f32 %v5732, 0.0
  %v5861 = vmax.f32 %v5733, 0.0
  %v5862 = vmax.f32 %v5734, 0.0
  %v5863 = vmax.f32 %v5735, 0.0
  %v5864 = vmax.f32 %v5736, 0.0
  %v5865 = vmax.f32 %v5737, 0.0
  %v5866 = vmax.f32 %v5738, 0.0
  %v5867 = vmax.f32 %v5739, 0.0
  %v5868 = vmax.f32 %v5740, 0.0
  %v5869 = vmax.f32 %v5741, 0.0
  %v5870 = vmax.f32 %v5742, 0.0
  %v5871 = vmax.f32 %v5743, 0.0
  %v5872 = vmax.f32 %v5744, 0.0
  %v5873 = vmax.f32 %v5745, 0.0
  %v5874 = vmax.f32 %v5746, 0.0
  %v5875 = vmax.f32 %v5747, 0.0
  %v5876 = vmax.f32 %v5748, 0.0
  %v5877 = vmax.f32 %v5749, 0.0
  %v5878 = vmax.f32 %v5750, 0.0
  %v5879 = vmax.f32 %v5751, 0.0
  %v5880 = vmax.f32 %v5752, 0.0
  %v5881 = vmax.f32 %v5753, 0.0
  %v5882 = vmax.f32 %v5754, 0.0
  %v5883 = vmax.f32 %v5755, 0.0
  %v5884 = vmax.f32 %v5756, 0.0
  %v5885 = vmax.f32 %v5757, 0.0
  %v5886 = vmax.f32 %v5758, 0.0
  %v5887 = vmax.f32 %v5759, 0.0
  %v5888 = vmax.f32 %v5760, 0.0
  %v5889 = vmax.f32 %v5761, 0.0
  %v5890 = vmax.f32 %v5762, 0.0
  %v5891 = vmax.f32 %v5763, 0.0
  %v5892 = vmax.f32 %v5764, 0.0
  %v5893 = vmax.f32 %v5765, 0.0
  %v5894 = vmax.f32 %v5766, 0.0
  %v5895 = vmax.f32 %v5767, 0.0
  %v5896 = vmax.f32 %v5768, 0.0
  %v5897 = vmax.f32 %v5769, 0.0
  %v5898 = vmax.f32 %v5770, 0.0
  %v5899 = vmax.f32 %v5771, 0.0
  %v5900 = vmax.f32 %v5772, 0.0
  %v5901 = vmax.f32 %v5773, 0.0
  %v5902 = vmax.f32 %v5774, 0.0
  %v5903 = vmax.f32 %v5775, 0.0
  %v5904 = vmax.f32 %v5776, 0.0
  %v5905 = vmax.f32 %v5777, 0.0
  %v5906 = vmax.f32 %v5778, 0.0
  %v5907 = vmax.f32 %v5779, 0.0
  %v5908 = vmax.f32 %v5780, 0.0
  %v5909 = vmax.f32 %v5781, 0.0
  %v5910 = vmax.f32 %v5782, 0.0
  %v5911 = vmax.f32 %v5783, 0.0
  %v5912 = vmax.f32 %v5784, 0.0
  %v5913 = vmax.f32 %v5785, 0.0
  %v5914 = vmax.f32 %v5786, 0.0
  %v5915 = vmax.f32 %v5787, 0.0
  %v5916 = vmax.f32 %v5788, 0.0
  %v5917 = vmax.f32 %v5789, 0.0
  %v5918 = vmax.f32 %v5790, 0.0
  %v5919 = vmax.f32 %v5791, 0.0
  %v5920 = vmax.f32 %v5792, 0.0
  %v5921 = vmax.f32 %v5793, 0.0
  %v5922 = vmax.f32 %v5794, 0.0
  %v5923 = vmax.f32 %v5795, 0.0
  %v5924 = vmax.f32 %v5796, 0.0
  %v5925 = vmax.f32 %v5797, 0.0
  %v5926 = vmax.f32 %v5798, 0.0
  %v5927 = vmax.f32 %v5799, 0.0
  %v5928 = vmax.f32 %v5800, 0.0
  %v5929 = vmax.f32 %v5801, 0.0
  %v5930 = vmax.f32 %v5802, 0.0
  %v5931 = vmax.f32 %v5803, 0.0
  %v5932 = vmax.f32 %v5804, 0.0
  %v5933 = vmax.f32 %v5805, 0.0
  %v5934 = vmax.f32 %v5806, 0.0
  %v5935 = vmax.f32 %v5807, 0.0
  %v5936 = vmax.f32 %v5808, 0.0
  %v5937 = vpack.c.bf16 %v5810, %v5809
  %v5938 = vpack.c.bf16 %v5812, %v5811
  %v5939 = vpack.c.bf16 %v5814, %v5813
  %v5940 = vpack.c.bf16 %v5816, %v5815
  %v5941 = vpack.c.bf16 %v5818, %v5817
  %v5942 = vpack.c.bf16 %v5820, %v5819
  %v5943 = vpack.c.bf16 %v5822, %v5821
  %v5944 = vpack.c.bf16 %v5824, %v5823
  %v5945 = vpack.c.bf16 %v5826, %v5825
  %v5946 = vpack.c.bf16 %v5828, %v5827
  %v5947 = vpack.c.bf16 %v5830, %v5829
  %v5948 = vpack.c.bf16 %v5832, %v5831
  %v5949 = vpack.c.bf16 %v5834, %v5833
  %v5950 = vpack.c.bf16 %v5836, %v5835
  %v5951 = vpack.c.bf16 %v5838, %v5837
  %v5952 = vpack.c.bf16 %v5840, %v5839
  %v5953 = vpack.c.bf16 %v5842, %v5841
  %v5954 = vpack.c.bf16 %v5844, %v5843
  %v5955 = vpack.c.bf16 %v5846, %v5845
  %v5956 = vpack.c.bf16 %v5848, %v5847
  %v5957 = vpack.c.bf16 %v5850, %v5849
  %v5958 = vpack.c.bf16 %v5852, %v5851
  %v5959 = vpack.c.bf16 %v5854, %v5853
  %v5960 = vpack.c.bf16 %v5856, %v5855
  %v5961 = vpack.c.bf16 %v5858, %v5857
  %v5962 = vpack.c.bf16 %v5860, %v5859
  %v5963 = vpack.c.bf16 %v5862, %v5861
  %v5964 = vpack.c.bf16 %v5864, %v5863
  %v5965 = vpack.c.bf16 %v5866, %v5865
  %v5966 = vpack.c.bf16 %v5868, %v5867
  %v5967 = vpack.c.bf16 %v5870, %v5869
  %v5968 = vpack.c.bf16 %v5872, %v5871
  %v5969 = vpack.c.bf16 %v5874, %v5873
  %v5970 = vpack.c.bf16 %v5876, %v5875
  %v5971 = vpack.c.bf16 %v5878, %v5877
  %v5972 = vpack.c.bf16 %v5880, %v5879
  %v5973 = vpack.c.bf16 %v5882, %v5881
  %v5974 = vpack.c.bf16 %v5884, %v5883
  %v5975 = vpack.c.bf16 %v5886, %v5885
  %v5976 = vpack.c.bf16 %v5888, %v5887
  %v5977 = vpack.c.bf16 %v5890, %v5889
  %v5978 = vpack.c.bf16 %v5892, %v5891
  %v5979 = vpack.c.bf16 %v5894, %v5893
  %v5980 = vpack.c.bf16 %v5896, %v5895
  %v5981 = vpack.c.bf16 %v5898, %v5897
  %v5982 = vpack.c.bf16 %v5900, %v5899
  %v5983 = vpack.c.bf16 %v5902, %v5901
  %v5984 = vpack.c.bf16 %v5904, %v5903
  %v5985 = vpack.c.bf16 %v5906, %v5905
  %v5986 = vpack.c.bf16 %v5908, %v5907
  %v5987 = vpack.c.bf16 %v5910, %v5909
  %v5988 = vpack.c.bf16 %v5912, %v5911
  %v5989 = vpack.c.bf16 %v5914, %v5913
  %v5990 = vpack.c.bf16 %v5916, %v5915
  %v5991 = vpack.c.bf16 %v5918, %v5917
  %v5992 = vpack.c.bf16 %v5920, %v5919
  %v5993 = vpack.c.bf16 %v5922, %v5921
  %v5994 = vpack.c.bf16 %v5924, %v5923
  %v5995 = vpack.c.bf16 %v5926, %v5925
  %v5996 = vpack.c.bf16 %v5928, %v5927
  %v5997 = vpack.c.bf16 %v5930, %v5929
  %v5998 = vpack.c.bf16 %v5932, %v5931
  %v5999 = vpack.c.bf16 %v5934, %v5933
  %v6000 = vpack.c.bf16 %v5936, %v5935
  %v6065 = vunpack.c.l.b16 %v5937
  %v6066 = vunpack.c.h.b16 %v5937
  %v6067 = vunpack.c.l.b16 %v5938
  %v6068 = vunpack.c.h.b16 %v5938
  %v6069 = vunpack.c.l.b16 %v5939
  %v6070 = vunpack.c.h.b16 %v5939
  %v6071 = vunpack.c.l.b16 %v5940
  %v6072 = vunpack.c.h.b16 %v5940
  %v6073 = vunpack.c.l.b16 %v5941
  %v6074 = vunpack.c.h.b16 %v5941
  %v6075 = vunpack.c.l.b16 %v5942
  %v6076 = vunpack.c.h.b16 %v5942
  %v6077 = vunpack.c.l.b16 %v5943
  %v6078 = vunpack.c.h.b16 %v5943
  %v6079 = vunpack.c.l.b16 %v5944
  %v6080 = vunpack.c.h.b16 %v5944
  %v6081 = vunpack.c.l.b16 %v5945
  %v6082 = vunpack.c.h.b16 %v5945
  %v6083 = vunpack.c.l.b16 %v5946
  %v6084 = vunpack.c.h.b16 %v5946
  %v6085 = vunpack.c.l.b16 %v5947
  %v6086 = vunpack.c.h.b16 %v5947
  %v6087 = vunpack.c.l.b16 %v5948
  %v6088 = vunpack.c.h.b16 %v5948
  %v6089 = vunpack.c.l.b16 %v5949
  %v6090 = vunpack.c.h.b16 %v5949
  %v6091 = vunpack.c.l.b16 %v5950
  %v6092 = vunpack.c.h.b16 %v5950
  %v6093 = vunpack.c.l.b16 %v5951
  %v6094 = vunpack.c.h.b16 %v5951
  %v6095 = vunpack.c.l.b16 %v5952
  %v6096 = vunpack.c.h.b16 %v5952
  %v6097 = vunpack.c.l.b16 %v5953
  %v6098 = vunpack.c.h.b16 %v5953
  %v6099 = vunpack.c.l.b16 %v5954
  %v6100 = vunpack.c.h.b16 %v5954
  %v6101 = vunpack.c.l.b16 %v5955
  %v6102 = vunpack.c.h.b16 %v5955
  %v6103 = vunpack.c.l.b16 %v5956
  %v6104 = vunpack.c.h.b16 %v5956
  %v6105 = vunpack.c.l.b16 %v5957
  %v6106 = vunpack.c.h.b16 %v5957
  %v6107 = vunpack.c.l.b16 %v5958
  %v6108 = vunpack.c.h.b16 %v5958
  %v6109 = vunpack.c.l.b16 %v5959
  %v6110 = vunpack.c.h.b16 %v5959
  %v6111 = vunpack.c.l.b16 %v5960
  %v6112 = vunpack.c.h.b16 %v5960
  %v6113 = vunpack.c.l.b16 %v5961
  %v6114 = vunpack.c.h.b16 %v5961
  %v6115 = vunpack.c.l.b16 %v5962
  %v6116 = vunpack.c.h.b16 %v5962
  %v6117 = vunpack.c.l.b16 %v5963
  %v6118 = vunpack.c.h.b16 %v5963
  %v6119 = vunpack.c.l.b16 %v5964
  %v6120 = vunpack.c.h.b16 %v5964
  %v6121 = vunpack.c.l.b16 %v5965
  %v6122 = vunpack.c.h.b16 %v5965
  %v6123 = vunpack.c.l.b16 %v5966
  %v6124 = vunpack.c.h.b16 %v5966
  %v6125 = vunpack.c.l.b16 %v5967
  %v6126 = vunpack.c.h.b16 %v5967
  %v6127 = vunpack.c.l.b16 %v5968
  %v6128 = vunpack.c.h.b16 %v5968
  %v6129 = vunpack.c.l.b16 %v5969
  %v6130 = vunpack.c.h.b16 %v5969
  %v6131 = vunpack.c.l.b16 %v5970
  %v6132 = vunpack.c.h.b16 %v5970
  %v6133 = vunpack.c.l.b16 %v5971
  %v6134 = vunpack.c.h.b16 %v5971
  %v6135 = vunpack.c.l.b16 %v5972
  %v6136 = vunpack.c.h.b16 %v5972
  %v6137 = vunpack.c.l.b16 %v5973
  %v6138 = vunpack.c.h.b16 %v5973
  %v6139 = vunpack.c.l.b16 %v5974
  %v6140 = vunpack.c.h.b16 %v5974
  %v6141 = vunpack.c.l.b16 %v5975
  %v6142 = vunpack.c.h.b16 %v5975
  %v6143 = vunpack.c.l.b16 %v5976
  %v6144 = vunpack.c.h.b16 %v5976
  %v6145 = vunpack.c.l.b16 %v5977
  %v6146 = vunpack.c.h.b16 %v5977
  %v6147 = vunpack.c.l.b16 %v5978
  %v6148 = vunpack.c.h.b16 %v5978
  %v6149 = vunpack.c.l.b16 %v5979
  %v6150 = vunpack.c.h.b16 %v5979
  %v6151 = vunpack.c.l.b16 %v5980
  %v6152 = vunpack.c.h.b16 %v5980
  %v6153 = vunpack.c.l.b16 %v5981
  %v6154 = vunpack.c.h.b16 %v5981
  %v6155 = vunpack.c.l.b16 %v5982
  %v6156 = vunpack.c.h.b16 %v5982
  %v6157 = vunpack.c.l.b16 %v5983
  %v6158 = vunpack.c.h.b16 %v5983
  %v6159 = vunpack.c.l.b16 %v5984
  %v6160 = vunpack.c.h.b16 %v5984
  %v6161 = vunpack.c.l.b16 %v5985
  %v6162 = vunpack.c.h.b16 %v5985
  %v6163 = vunpack.c.l.b16 %v5986
  %v6164 = vunpack.c.h.b16 %v5986
  %v6165 = vunpack.c.l.b16 %v5987
  %v6166 = vunpack.c.h.b16 %v5987
  %v6167 = vunpack.c.l.b16 %v5988
  %v6168 = vunpack.c.h.b16 %v5988
  %v6169 = vunpack.c.l.b16 %v5989
  %v6170 = vunpack.c.h.b16 %v5989
  %v6171 = vunpack.c.l.b16 %v5990
  %v6172 = vunpack.c.h.b16 %v5990
  %v6173 = vunpack.c.l.b16 %v5991
  %v6174 = vunpack.c.h.b16 %v5991
  %v6175 = vunpack.c.l.b16 %v5992
  %v6176 = vunpack.c.h.b16 %v5992
  %v6177 = vunpack.c.l.b16 %v5993
  %v6178 = vunpack.c.h.b16 %v5993
  %v6179 = vunpack.c.l.b16 %v5994
  %v6180 = vunpack.c.h.b16 %v5994
  %v6181 = vunpack.c.l.b16 %v5995
  %v6182 = vunpack.c.h.b16 %v5995
  %v6183 = vunpack.c.l.b16 %v5996
  %v6184 = vunpack.c.h.b16 %v5996
  %v6185 = vunpack.c.l.b16 %v5997
  %v6186 = vunpack.c.h.b16 %v5997
  %v6187 = vunpack.c.l.b16 %v5998
  %v6188 = vunpack.c.h.b16 %v5998
  %v6189 = vunpack.c.l.b16 %v5999
  %v6190 = vunpack.c.h.b16 %v5999
  %v6191 = vunpack.c.l.b16 %v6000
  %v6192 = vunpack.c.h.b16 %v6000
  %v6193 = vpack.c.b16 %v6065, %v6065
  %v6194 = vpack.c.b16 %v6066, %v6066
  %v6195 = vpack.c.b16 %v6067, %v6067
  %v6196 = vpack.c.b16 %v6068, %v6068
  %v6197 = vpack.c.b16 %v6069, %v6069
  %v6198 = vpack.c.b16 %v6070, %v6070
  %v6199 = vpack.c.b16 %v6071, %v6071
  %v6200 = vpack.c.b16 %v6072, %v6072
  %v6201 = vpack.c.b16 %v6073, %v6073
  %v6202 = vpack.c.b16 %v6074, %v6074
  %v6203 = vpack.c.b16 %v6075, %v6075
  %v6204 = vpack.c.b16 %v6076, %v6076
  %v6205 = vpack.c.b16 %v6077, %v6077
  %v6206 = vpack.c.b16 %v6078, %v6078
  %v6207 = vpack.c.b16 %v6079, %v6079
  %v6208 = vpack.c.b16 %v6080, %v6080
  %v6209 = vpack.c.b16 %v6081, %v6081
  %v6210 = vpack.c.b16 %v6082, %v6082
  %v6211 = vpack.c.b16 %v6083, %v6083
  %v6212 = vpack.c.b16 %v6084, %v6084
  %v6213 = vpack.c.b16 %v6085, %v6085
  %v6214 = vpack.c.b16 %v6086, %v6086
  %v6215 = vpack.c.b16 %v6087, %v6087
  %v6216 = vpack.c.b16 %v6088, %v6088
  %v6217 = vpack.c.b16 %v6089, %v6089
  %v6218 = vpack.c.b16 %v6090, %v6090
  %v6219 = vpack.c.b16 %v6091, %v6091
  %v6220 = vpack.c.b16 %v6092, %v6092
  %v6221 = vpack.c.b16 %v6093, %v6093
  %v6222 = vpack.c.b16 %v6094, %v6094
  %v6223 = vpack.c.b16 %v6095, %v6095
  %v6224 = vpack.c.b16 %v6096, %v6096
  %v6225 = vpack.c.b16 %v6097, %v6097
  %v6226 = vpack.c.b16 %v6098, %v6098
  %v6227 = vpack.c.b16 %v6099, %v6099
  %v6228 = vpack.c.b16 %v6100, %v6100
  %v6229 = vpack.c.b16 %v6101, %v6101
  %v6230 = vpack.c.b16 %v6102, %v6102
  %v6231 = vpack.c.b16 %v6103, %v6103
  %v6232 = vpack.c.b16 %v6104, %v6104
  %v6233 = vpack.c.b16 %v6105, %v6105
  %v6234 = vpack.c.b16 %v6106, %v6106
  %v6235 = vpack.c.b16 %v6107, %v6107
  %v6236 = vpack.c.b16 %v6108, %v6108
  %v6237 = vpack.c.b16 %v6109, %v6109
  %v6238 = vpack.c.b16 %v6110, %v6110
  %v6239 = vpack.c.b16 %v6111, %v6111
  %v6240 = vpack.c.b16 %v6112, %v6112
  %v6241 = vpack.c.b16 %v6113, %v6113
  %v6242 = vpack.c.b16 %v6114, %v6114
  %v6243 = vpack.c.b16 %v6115, %v6115
  %v6244 = vpack.c.b16 %v6116, %v6116
  %v6245 = vpack.c.b16 %v6117, %v6117
  %v6246 = vpack.c.b16 %v6118, %v6118
  %v6247 = vpack.c.b16 %v6119, %v6119
  %v6248 = vpack.c.b16 %v6120, %v6120
  %v6249 = vpack.c.b16 %v6121, %v6121
  %v6250 = vpack.c.b16 %v6122, %v6122
  %v6251 = vpack.c.b16 %v6123, %v6123
  %v6252 = vpack.c.b16 %v6124, %v6124
  %v6253 = vpack.c.b16 %v6125, %v6125
  %v6254 = vpack.c.b16 %v6126, %v6126
  %v6255 = vpack.c.b16 %v6127, %v6127
  %v6256 = vpack.c.b16 %v6128, %v6128
  %v6257 = vpack.c.b16 %v6129, %v6129
  %v6258 = vpack.c.b16 %v6130, %v6130
  %v6259 = vpack.c.b16 %v6131, %v6131
  %v6260 = vpack.c.b16 %v6132, %v6132
  %v6261 = vpack.c.b16 %v6133, %v6133
  %v6262 = vpack.c.b16 %v6134, %v6134
  %v6263 = vpack.c.b16 %v6135, %v6135
  %v6264 = vpack.c.b16 %v6136, %v6136
  %v6265 = vpack.c.b16 %v6137, %v6137
  %v6266 = vpack.c.b16 %v6138, %v6138
  %v6267 = vpack.c.b16 %v6139, %v6139
  %v6268 = vpack.c.b16 %v6140, %v6140
  %v6269 = vpack.c.b16 %v6141, %v6141
  %v6270 = vpack.c.b16 %v6142, %v6142
  %v6271 = vpack.c.b16 %v6143, %v6143
  %v6272 = vpack.c.b16 %v6144, %v6144
  %v6273 = vpack.c.b16 %v6145, %v6145
  %v6274 = vpack.c.b16 %v6146, %v6146
  %v6275 = vpack.c.b16 %v6147, %v6147
  %v6276 = vpack.c.b16 %v6148, %v6148
  %v6277 = vpack.c.b16 %v6149, %v6149
  %v6278 = vpack.c.b16 %v6150, %v6150
  %v6279 = vpack.c.b16 %v6151, %v6151
  %v6280 = vpack.c.b16 %v6152, %v6152
  %v6281 = vpack.c.b16 %v6153, %v6153
  %v6282 = vpack.c.b16 %v6154, %v6154
  %v6283 = vpack.c.b16 %v6155, %v6155
  %v6284 = vpack.c.b16 %v6156, %v6156
  %v6285 = vpack.c.b16 %v6157, %v6157
  %v6286 = vpack.c.b16 %v6158, %v6158
  %v6287 = vpack.c.b16 %v6159, %v6159
  %v6288 = vpack.c.b16 %v6160, %v6160
  %v6289 = vpack.c.b16 %v6161, %v6161
  %v6290 = vpack.c.b16 %v6162, %v6162
  %v6291 = vpack.c.b16 %v6163, %v6163
  %v6292 = vpack.c.b16 %v6164, %v6164
  %v6293 = vpack.c.b16 %v6165, %v6165
  %v6294 = vpack.c.b16 %v6166, %v6166
  %v6295 = vpack.c.b16 %v6167, %v6167
  %v6296 = vpack.c.b16 %v6168, %v6168
  %v6297 = vpack.c.b16 %v6169, %v6169
  %v6298 = vpack.c.b16 %v6170, %v6170
  %v6299 = vpack.c.b16 %v6171, %v6171
  %v6300 = vpack.c.b16 %v6172, %v6172
  %v6301 = vpack.c.b16 %v6173, %v6173
  %v6302 = vpack.c.b16 %v6174, %v6174
  %v6303 = vpack.c.b16 %v6175, %v6175
  %v6304 = vpack.c.b16 %v6176, %v6176
  %v6305 = vpack.c.b16 %v6177, %v6177
  %v6306 = vpack.c.b16 %v6178, %v6178
  %v6307 = vpack.c.b16 %v6179, %v6179
  %v6308 = vpack.c.b16 %v6180, %v6180
  %v6309 = vpack.c.b16 %v6181, %v6181
  %v6310 = vpack.c.b16 %v6182, %v6182
  %v6311 = vpack.c.b16 %v6183, %v6183
  %v6312 = vpack.c.b16 %v6184, %v6184
  %v6313 = vpack.c.b16 %v6185, %v6185
  %v6314 = vpack.c.b16 %v6186, %v6186
  %v6315 = vpack.c.b16 %v6187, %v6187
  %v6316 = vpack.c.b16 %v6188, %v6188
  %v6317 = vpack.c.b16 %v6189, %v6189
  %v6318 = vpack.c.b16 %v6190, %v6190
  %v6319 = vpack.c.b16 %v6191, %v6191
  %v6320 = vpack.c.b16 %v6192, %v6192
  %vm6449 = vcmask 60416
  %6450 = vst.msk [vmem:[%s3] sm:$0xf] %vm6449, %v6193
  %6451 = vst.msk [vmem:[%s3 + $0x4] sm:$0xf] %vm6449, %v6194
  %6452 = vst.msk [vmem:[%s3 + $0x8] sm:$0xf] %vm6449, %v6195
  %6453 = vst.msk [vmem:[%s3 + $0xc] sm:$0xf] %vm6449, %v6196
  %6454 = vst.msk [vmem:[%s3 + $0x10] sm:$0xf] %vm6449, %v6197
  %6455 = vst.msk [vmem:[%s3 + $0x14] sm:$0xf] %vm6449, %v6198
  %6456 = vst.msk [vmem:[%s3 + $0x18] sm:$0xf] %vm6449, %v6199
  %6457 = vst.msk [vmem:[%s3 + $0x1c] sm:$0xf] %vm6449, %v6200
  %6458 = vst.msk [vmem:[%s3 + $0x20] sm:$0xf] %vm6449, %v6201
  %6459 = vst.msk [vmem:[%s3 + $0x24] sm:$0xf] %vm6449, %v6202
  %6460 = vst.msk [vmem:[%s3 + $0x28] sm:$0xf] %vm6449, %v6203
  %6461 = vst.msk [vmem:[%s3 + $0x2c] sm:$0xf] %vm6449, %v6204
  %6462 = vst.msk [vmem:[%s3 + $0x30] sm:$0xf] %vm6449, %v6205
  %6463 = vst.msk [vmem:[%s3 + $0x34] sm:$0xf] %vm6449, %v6206
  %6464 = vst.msk [vmem:[%s3 + $0x38] sm:$0xf] %vm6449, %v6207
  %6465 = vst.msk [vmem:[%s3 + $0x3c] sm:$0xf] %vm6449, %v6208
  %6466 = vst.msk [vmem:[%s3 + $0x40] sm:$0xf] %vm6449, %v6209
  %6467 = vst.msk [vmem:[%s3 + $0x44] sm:$0xf] %vm6449, %v6210
  %6468 = vst.msk [vmem:[%s3 + $0x48] sm:$0xf] %vm6449, %v6211
  %6469 = vst.msk [vmem:[%s3 + $0x4c] sm:$0xf] %vm6449, %v6212
  %6470 = vst.msk [vmem:[%s3 + $0x50] sm:$0xf] %vm6449, %v6213
  %6471 = vst.msk [vmem:[%s3 + $0x54] sm:$0xf] %vm6449, %v6214
  %6472 = vst.msk [vmem:[%s3 + $0x58] sm:$0xf] %vm6449, %v6215
  %6473 = vst.msk [vmem:[%s3 + $0x5c] sm:$0xf] %vm6449, %v6216
  %6474 = vst.msk [vmem:[%s3 + $0x60] sm:$0xf] %vm6449, %v6217
  %6475 = vst.msk [vmem:[%s3 + $0x64] sm:$0xf] %vm6449, %v6218
  %6476 = vst.msk [vmem:[%s3 + $0x68] sm:$0xf] %vm6449, %v6219
  %6477 = vst.msk [vmem:[%s3 + $0x6c] sm:$0xf] %vm6449, %v6220
  %6478 = vst.msk [vmem:[%s3 + $0x70] sm:$0xf] %vm6449, %v6221
  %6479 = vst.msk [vmem:[%s3 + $0x74] sm:$0xf] %vm6449, %v6222
  %6480 = vst.msk [vmem:[%s3 + $0x78] sm:$0xf] %vm6449, %v6223
  %6481 = vst.msk [vmem:[%s3 + $0x7c] sm:$0xf] %vm6449, %v6224
  %6482 = vst.msk [vmem:[%s3 + $0x80] sm:$0xf] %vm6449, %v6225
  %6483 = vst.msk [vmem:[%s3 + $0x84] sm:$0xf] %vm6449, %v6226
  %6484 = vst.msk [vmem:[%s3 + $0x88] sm:$0xf] %vm6449, %v6227
  %6485 = vst.msk [vmem:[%s3 + $0x8c] sm:$0xf] %vm6449, %v6228
  %6486 = vst.msk [vmem:[%s3 + $0x90] sm:$0xf] %vm6449, %v6229
  %6487 = vst.msk [vmem:[%s3 + $0x94] sm:$0xf] %vm6449, %v6230
  %6488 = vst.msk [vmem:[%s3 + $0x98] sm:$0xf] %vm6449, %v6231
  %6489 = vst.msk [vmem:[%s3 + $0x9c] sm:$0xf] %vm6449, %v6232
  %6490 = vst.msk [vmem:[%s3 + $0xa0] sm:$0xf] %vm6449, %v6233
  %6491 = vst.msk [vmem:[%s3 + $0xa4] sm:$0xf] %vm6449, %v6234
  %6492 = vst.msk [vmem:[%s3 + $0xa8] sm:$0xf] %vm6449, %v6235
  %6493 = vst.msk [vmem:[%s3 + $0xac] sm:$0xf] %vm6449, %v6236
  %6494 = vst.msk [vmem:[%s3 + $0xb0] sm:$0xf] %vm6449, %v6237
  %6495 = vst.msk [vmem:[%s3 + $0xb4] sm:$0xf] %vm6449, %v6238
  %6496 = vst.msk [vmem:[%s3 + $0xb8] sm:$0xf] %vm6449, %v6239
  %6497 = vst.msk [vmem:[%s3 + $0xbc] sm:$0xf] %vm6449, %v6240
  %6498 = vst.msk [vmem:[%s3 + $0xc0] sm:$0xf] %vm6449, %v6241
  %6499 = vst.msk [vmem:[%s3 + $0xc4] sm:$0xf] %vm6449, %v6242
  %6500 = vst.msk [vmem:[%s3 + $0xc8] sm:$0xf] %vm6449, %v6243
  %6501 = vst.msk [vmem:[%s3 + $0xcc] sm:$0xf] %vm6449, %v6244
  %6502 = vst.msk [vmem:[%s3 + $0xd0] sm:$0xf] %vm6449, %v6245
  %6503 = vst.msk [vmem:[%s3 + $0xd4] sm:$0xf] %vm6449, %v6246
  %6504 = vst.msk [vmem:[%s3 + $0xd8] sm:$0xf] %vm6449, %v6247
  %6505 = vst.msk [vmem:[%s3 + $0xdc] sm:$0xf] %vm6449, %v6248
  %6506 = vst.msk [vmem:[%s3 + $0xe0] sm:$0xf] %vm6449, %v6249
  %6507 = vst.msk [vmem:[%s3 + $0xe4] sm:$0xf] %vm6449, %v6250
  %6508 = vst.msk [vmem:[%s3 + $0xe8] sm:$0xf] %vm6449, %v6251
  %6509 = vst.msk [vmem:[%s3 + $0xec] sm:$0xf] %vm6449, %v6252
  %6510 = vst.msk [vmem:[%s3 + $0xf0] sm:$0xf] %vm6449, %v6253
  %6511 = vst.msk [vmem:[%s3 + $0xf4] sm:$0xf] %vm6449, %v6254
  %6512 = vst.msk [vmem:[%s3 + $0xf8] sm:$0xf] %vm6449, %v6255
  %6513 = vst.msk [vmem:[%s3 + $0xfc] sm:$0xf] %vm6449, %v6256
  %6514 = vst.msk [vmem:[%s3 + $0x100] sm:$0xf] %vm6449, %v6257
  %6515 = vst.msk [vmem:[%s3 + $0x104] sm:$0xf] %vm6449, %v6258
  %6516 = vst.msk [vmem:[%s3 + $0x108] sm:$0xf] %vm6449, %v6259
  %6517 = vst.msk [vmem:[%s3 + $0x10c] sm:$0xf] %vm6449, %v6260
  %6518 = vst.msk [vmem:[%s3 + $0x110] sm:$0xf] %vm6449, %v6261
  %6519 = vst.msk [vmem:[%s3 + $0x114] sm:$0xf] %vm6449, %v6262
  %6520 = vst.msk [vmem:[%s3 + $0x118] sm:$0xf] %vm6449, %v6263
  %6521 = vst.msk [vmem:[%s3 + $0x11c] sm:$0xf] %vm6449, %v6264
  %6522 = vst.msk [vmem:[%s3 + $0x120] sm:$0xf] %vm6449, %v6265
  %6523 = vst.msk [vmem:[%s3 + $0x124] sm:$0xf] %vm6449, %v6266
  %6524 = vst.msk [vmem:[%s3 + $0x128] sm:$0xf] %vm6449, %v6267
  %6525 = vst.msk [vmem:[%s3 + $0x12c] sm:$0xf] %vm6449, %v6268
  %6526 = vst.msk [vmem:[%s3 + $0x130] sm:$0xf] %vm6449, %v6269
  %6527 = vst.msk [vmem:[%s3 + $0x134] sm:$0xf] %vm6449, %v6270
  %6528 = vst.msk [vmem:[%s3 + $0x138] sm:$0xf] %vm6449, %v6271
  %6529 = vst.msk [vmem:[%s3 + $0x13c] sm:$0xf] %vm6449, %v6272
  %6530 = vst.msk [vmem:[%s3 + $0x140] sm:$0xf] %vm6449, %v6273
  %6531 = vst.msk [vmem:[%s3 + $0x144] sm:$0xf] %vm6449, %v6274
  %6532 = vst.msk [vmem:[%s3 + $0x148] sm:$0xf] %vm6449, %v6275
  %6533 = vst.msk [vmem:[%s3 + $0x14c] sm:$0xf] %vm6449, %v6276
  %6534 = vst.msk [vmem:[%s3 + $0x150] sm:$0xf] %vm6449, %v6277
  %6535 = vst.msk [vmem:[%s3 + $0x154] sm:$0xf] %vm6449, %v6278
  %6536 = vst.msk [vmem:[%s3 + $0x158] sm:$0xf] %vm6449, %v6279
  %6537 = vst.msk [vmem:[%s3 + $0x15c] sm:$0xf] %vm6449, %v6280
  %6538 = vst.msk [vmem:[%s3 + $0x160] sm:$0xf] %vm6449, %v6281
  %6539 = vst.msk [vmem:[%s3 + $0x164] sm:$0xf] %vm6449, %v6282
  %6540 = vst.msk [vmem:[%s3 + $0x168] sm:$0xf] %vm6449, %v6283
  %6541 = vst.msk [vmem:[%s3 + $0x16c] sm:$0xf] %vm6449, %v6284
  %6542 = vst.msk [vmem:[%s3 + $0x170] sm:$0xf] %vm6449, %v6285
  %6543 = vst.msk [vmem:[%s3 + $0x174] sm:$0xf] %vm6449, %v6286
  %6544 = vst.msk [vmem:[%s3 + $0x178] sm:$0xf] %vm6449, %v6287
  %6545 = vst.msk [vmem:[%s3 + $0x17c] sm:$0xf] %vm6449, %v6288
  %6546 = vst.msk [vmem:[%s3 + $0x180] sm:$0xf] %vm6449, %v6289
  %6547 = vst.msk [vmem:[%s3 + $0x184] sm:$0xf] %vm6449, %v6290
  %6548 = vst.msk [vmem:[%s3 + $0x188] sm:$0xf] %vm6449, %v6291
  %6549 = vst.msk [vmem:[%s3 + $0x18c] sm:$0xf] %vm6449, %v6292
  %6550 = vst.msk [vmem:[%s3 + $0x190] sm:$0xf] %vm6449, %v6293
  %6551 = vst.msk [vmem:[%s3 + $0x194] sm:$0xf] %vm6449, %v6294
  %6552 = vst.msk [vmem:[%s3 + $0x198] sm:$0xf] %vm6449, %v6295
  %6553 = vst.msk [vmem:[%s3 + $0x19c] sm:$0xf] %vm6449, %v6296
  %6554 = vst.msk [vmem:[%s3 + $0x1a0] sm:$0xf] %vm6449, %v6297
  %6555 = vst.msk [vmem:[%s3 + $0x1a4] sm:$0xf] %vm6449, %v6298
  %6556 = vst.msk [vmem:[%s3 + $0x1a8] sm:$0xf] %vm6449, %v6299
  %6557 = vst.msk [vmem:[%s3 + $0x1ac] sm:$0xf] %vm6449, %v6300
  %6558 = vst.msk [vmem:[%s3 + $0x1b0] sm:$0xf] %vm6449, %v6301
  %6559 = vst.msk [vmem:[%s3 + $0x1b4] sm:$0xf] %vm6449, %v6302
  %6560 = vst.msk [vmem:[%s3 + $0x1b8] sm:$0xf] %vm6449, %v6303
  %6561 = vst.msk [vmem:[%s3 + $0x1bc] sm:$0xf] %vm6449, %v6304
  %6562 = vst.msk [vmem:[%s3 + $0x1c0] sm:$0xf] %vm6449, %v6305
  %6563 = vst.msk [vmem:[%s3 + $0x1c4] sm:$0xf] %vm6449, %v6306
  %6564 = vst.msk [vmem:[%s3 + $0x1c8] sm:$0xf] %vm6449, %v6307
  %6565 = vst.msk [vmem:[%s3 + $0x1cc] sm:$0xf] %vm6449, %v6308
  %6566 = vst.msk [vmem:[%s3 + $0x1d0] sm:$0xf] %vm6449, %v6309
  %6567 = vst.msk [vmem:[%s3 + $0x1d4] sm:$0xf] %vm6449, %v6310
  %6568 = vst.msk [vmem:[%s3 + $0x1d8] sm:$0xf] %vm6449, %v6311
  %6569 = vst.msk [vmem:[%s3 + $0x1dc] sm:$0xf] %vm6449, %v6312
  %6570 = vst.msk [vmem:[%s3 + $0x1e0] sm:$0xf] %vm6449, %v6313
  %6571 = vst.msk [vmem:[%s3 + $0x1e4] sm:$0xf] %vm6449, %v6314
  %6572 = vst.msk [vmem:[%s3 + $0x1e8] sm:$0xf] %vm6449, %v6315
  %6573 = vst.msk [vmem:[%s3 + $0x1ec] sm:$0xf] %vm6449, %v6316
  %6574 = vst.msk [vmem:[%s3 + $0x1f0] sm:$0xf] %vm6449, %v6317
  %6575 = vst.msk [vmem:[%s3 + $0x1f4] sm:$0xf] %vm6449, %v6318
  %6576 = vst.msk [vmem:[%s3 + $0x1f8] sm:$0xf] %vm6449, %v6319
  %6577 = vst.msk [vmem:[%s3 + $0x1fc] sm:$0xf] %vm6449, %v6320
  // Predicated region
  $region14: #{segmentation_forward.5} parent=0 // pred_check
    _
  $region15: #{segmentation_forward.5} parent=0 // pred_check_branch
    %6579 = sbr.rel (0) target = $region17
  $region16: #{segmentation_forward.5} parent=0 // pred_region
    _
  $region17: #{segmentation_forward.5} parent=0 // pred_fallthru
    _
  // Predicated region
  $region18: #{segmentation_forward.5} parent=0 // pred_check
    _
  $region19: #{segmentation_forward.5} parent=0 // pred_check_branch
    %6581 = sbr.rel (0) target = $region21
  $region20: #{segmentation_forward.5} parent=0 // pred_region
    _
  $region21: #{segmentation_forward.5} parent=0 // pred_fallthru
    _

</llo_original>
